<compile_context>
chip_gen: v7x
topology: tpu7x:2x2x1
jax: 0.10.0
libtpu: 0.0.40
codegen_flags: <defaults>
</compile_context>

<pallas_src>
import functools

import jax
import jax.numpy as jnp
from jax.experimental import pallas as pl
from jax.experimental.pallas import tpu as pltpu

MATMUL_DTYPE = jnp.bfloat16   # MXU operand dtype; accumulate/bias/ReLU in f32.


# ----------------------------------------------------------------------------
# Pallas kernel: out = relu(A @ W + b), full-K block per grid cell
# ----------------------------------------------------------------------------
def _matmul_bias_relu_kernel(a_ref, w_ref, b_ref, o_ref):
    acc = jnp.dot(a_ref[...], w_ref[...], preferred_element_type=jnp.float32)
    o_ref[...] = jnp.maximum(acc + b_ref[...], 0.0).astype(o_ref.dtype)


def _pick_tm(m):
    """Largest divisor of m (multiple of 8, <= min(512, m//2)); full m if small."""
    if m <= 256:
        return m
    cap = min(512, m // 2)
    cap -= cap % 8
    for t in range(cap, 7, -8):
        if m % t == 0:
            return t
    return m


def _pick_tn(n):
    """Largest divisor of n (multiple of 128, <= min(512, n//2)); full n if <=128."""
    if n <= 128:
        return n
    cap = min(512, n // 2)
    cap -= cap % 128
    for t in range(cap, 127, -128):
        if n % t == 0:
            return t
    return n


def matmul_bias_relu(a, w, b2):
    """relu(a @ w + b). a:(M,K)  w:(K,N)  b2:(1,N) f32. No padding, single K step."""
    M, K = a.shape
    Kw, N = w.shape
    assert K == Kw and b2.shape == (1, N)
    tm, tn = _pick_tm(M), _pick_tn(N)
    a = a.astype(MATMUL_DTYPE)
    w = w.astype(MATMUL_DTYPE)
    return pl.pallas_call(
        _matmul_bias_relu_kernel,
        out_shape=jax.ShapeDtypeStruct((M, N), jnp.float32),
        grid_spec=pltpu.PrefetchScalarGridSpec(
            num_scalar_prefetch=0,
            grid=(M // tm, N // tn),
            in_specs=[
                pl.BlockSpec((tm, K), lambda i, j: (i, 0)),
                pl.BlockSpec((K, tn), lambda i, j: (0, j)),
                pl.BlockSpec((1, tn), lambda i, j: (0, j)),
            ],
            out_specs=pl.BlockSpec((tm, tn), lambda i, j: (i, j)),
        ),
        compiler_params=pltpu.CompilerParams(
            dimension_semantics=("parallel", "parallel")),
    )(a, w, b2)


# ----------------------------------------------------------------------------
# NHWC conv / transposed-conv wrappers (im2col glue + Pallas matmul)
# ----------------------------------------------------------------------------
def conv2d_relu(x, wmat, b2, *, stride, pad, ksize=3):
    """x:(B,H,W,Cin) NHWC, wmat:(k*k*Cin, Cout) in (ky,kx,ci) order, b2:(1,Cout)."""
    B, H, W, C = x.shape
    xp = jnp.pad(x, ((0, 0), (pad, pad), (pad, pad), (0, 0)))
    Ho = (H + 2 * pad - ksize) // stride + 1
    Wo = (W + 2 * pad - ksize) // stride + 1
    taps = [xp[:, i:i + stride * Ho:stride, j:j + stride * Wo:stride, :]
            for i in range(ksize) for j in range(ksize)]
    a = jnp.concatenate(taps, axis=-1).reshape(B * Ho * Wo, ksize * ksize * C)
    y = matmul_bias_relu(a, wmat, b2)
    return y.reshape(B, Ho, Wo, wmat.shape[1])


def deconv2x_relu(x, wc, b2):
    """ConvTranspose2d(3x3, stride=2, padding=1, output_padding=1) + ReLU, NHWC.

    Stride-phase decomposition: output pixel (2r+py, 2c+px) only depends on the
    2x2 input neighbourhood {(r,c),(r,c+1),(r+1,c),(r+1,c+1)}; a single matmul
    against the precombined (4*Cin, 4*Cout) weight emits all 4 phases at once.
    """
    B, H, W, C = x.shape
    cout = wc.shape[1] // 4
    xp = jnp.pad(x, ((0, 0), (0, 1), (0, 1), (0, 0)))
    taps = [xp[:, dy:dy + H, dx:dx + W, :] for dy in (0, 1) for dx in (0, 1)]
    a = jnp.concatenate(taps, axis=-1).reshape(B * H * W, 4 * C)
    y = matmul_bias_relu(a, wc, b2)                          # (B*H*W, 4*Cout)
    y = y.reshape(B, H, W, 2, 2, cout)
    return jnp.transpose(y, (0, 1, 3, 2, 4, 5)).reshape(B, 2 * H, 2 * W, cout)


# ----------------------------------------------------------------------------
# Parameters: PyTorch layouts -> precomputed matmul-ready layouts
# ----------------------------------------------------------------------------
def init_params(key, latent_dim=32, conv_dims=(16, 32, 64, 128)):
    """Parameters in the exact PyTorch layouts of the reference AE module."""
    keys = iter(jax.random.split(key, 64))

    def rnd(shape, scale=0.05):
        return (scale * jax.random.normal(next(keys), shape)).astype(jnp.float32)

    params = {}
    enc, cin = [], 3
    for cout in conv_dims:
        enc.append({"w": rnd((cout, cin, 3, 3)), "b": rnd((cout,))})        # Conv2d
        cin = cout
    params["enc_convs"] = enc
    params["enc_fc"] = {"w": rnd((latent_dim, 4608)), "b": rnd((latent_dim,))}
    rdims = list(conv_dims[::-1])
    params["dec_fc"] = {"w": rnd((4608, latent_dim)), "b": rnd((4608,))}
    dec = []
    for i in range(len(rdims) - 1):                                         # ConvT2d: (in,out,kH,kW)
        dec.append({"w": rnd((rdims[i], rdims[i + 1], 3, 3)), "b": rnd((rdims[i + 1],))})
    dec.append({"w": rnd((rdims[-1], 3, 3, 3)), "b": rnd((3,))})
    params["dec_convs"] = dec
    return params


def _prep_conv(w, b):
    # Conv2d weight (Cout,Cin,kH,kW) -> (kH*kW*Cin, Cout) matching NHWC im2col order.
    cout, cin, kh, kw = w.shape
    wmat = jnp.transpose(w, (2, 3, 1, 0)).reshape(kh * kw * cin, cout)
    return {"w": wmat.astype(MATMUL_DTYPE), "b": b[None, :].astype(jnp.float32)}


def _prep_deconv(w, b):
    # ConvTranspose2d weight (Cin,Cout,3,3) -> combined phase weight (4*Cin, 4*Cout).
    # PyTorch: out[oy,ox] += in[iy,ix] * w[:,:,oy+1-2*iy, ox+1-2*ix] (valid k in [0,3)).
    # Phase py (=oy%2) with tap offset dy uses kernel row kmap[(py,dy)]; same for x.
    cin, cout, kh, kw = w.shape
    assert (kh, kw) == (3, 3)
    kmap = {(0, 0): 1, (0, 1): None, (1, 0): 2, (1, 1): 0}
    row_blocks = []
    for dy in (0, 1):
        for dx in (0, 1):
            col_blocks = []
            for py in (0, 1):
                for px in (0, 1):
                    ky, kx = kmap[(py, dy)], kmap[(px, dx)]
                    if ky is None or kx is None:
                        col_blocks.append(jnp.zeros((cin, cout), w.dtype))
                    else:
                        col_blocks.append(w[:, :, ky, kx])
            row_blocks.append(jnp.concatenate(col_blocks, axis=1))
    wc = jnp.concatenate(row_blocks, axis=0)                 # (4*Cin, 4*Cout)
    bc = jnp.tile(b, 4)[None, :]                             # (1, 4*Cout)
    return {"w": wc.astype(MATMUL_DTYPE), "b": bc.astype(jnp.float32)}


def _prep_enc_fc(w, b, c, h, ww):
    # Permute columns from NCHW flatten order (c,h,w) to NHWC flatten order (h,w,c).
    latent = w.shape[0]
    wp = w.reshape(latent, c, h, ww).transpose(0, 2, 3, 1).reshape(latent, c * h * ww)
    return {"w": wp.T.astype(MATMUL_DTYPE), "b": b[None, :].astype(jnp.float32)}


def _prep_dec_fc(w, b, c, h, ww):
    # Permute rows (output features) so the matmul output is already in NHWC order.
    latent = w.shape[1]
    wp = w.reshape(c, h, ww, latent).transpose(1, 2, 0, 3).reshape(c * h * ww, latent)
    bp = b.reshape(c, h, ww).transpose(1, 2, 0).reshape(-1)
    return {"w": wp.T.astype(MATMUL_DTYPE), "b": bp[None, :].astype(jnp.float32)}


def prepare_params(params, conv_dims=(16, 32, 64, 128)):
    c_last = conv_dims[-1]
    return {
        "enc_convs": [_prep_conv(l["w"], l["b"]) for l in params["enc_convs"]],
        "enc_fc": _prep_enc_fc(params["enc_fc"]["w"], params["enc_fc"]["b"], c_last, 6, 6),
        "dec_fc": _prep_dec_fc(params["dec_fc"]["w"], params["dec_fc"]["b"], c_last, 6, 6),
        "dec_convs": [_prep_deconv(l["w"], l["b"]) for l in params["dec_convs"]],
    }


# ----------------------------------------------------------------------------
# AE forward
# ----------------------------------------------------------------------------
def ae_forward(prep, x, conv_dims=(16, 32, 64, 128)):
    # x: (B, 3, H, W) NCHW like PyTorch; convert to NHWC once at entry/exit.
    x = jnp.transpose(x, (0, 2, 3, 1))
    # ----- Encoder -----
    for layer in prep["enc_convs"]:
        x = conv2d_relu(x, layer["w"], layer["b"], stride=2, pad=1)
    B = x.shape[0]
    x = x.reshape(B, -1)                            # NHWC flatten; fc weights pre-permuted
    x = matmul_bias_relu(x, prep["enc_fc"]["w"], prep["enc_fc"]["b"])
    # ----- Decoder -----
    x = matmul_bias_relu(x, prep["dec_fc"]["w"], prep["dec_fc"]["b"])
    x = x.reshape(-1, 6, 6, conv_dims[-1])          # NHWC; dec_fc output pre-permuted
    for layer in prep["dec_convs"]:
        x = deconv2x_relu(x, layer["w"], layer["b"])
    return jnp.transpose(x, (0, 3, 1, 2))           # back to NCHW


if __name__ == "__main__":
    key = jax.random.PRNGKey(0)
    pkey, xkey = jax.random.split(key)
    latent_dim = 32
    conv_dims = (16, 32, 64, 128)
    params = init_params(pkey, latent_dim=latent_dim, conv_dims=conv_dims)
    prep = prepare_params(params, conv_dims=conv_dims)

    # 4608 = conv_dims[-1]*6*6 forces a 96x96 spatial input (96 -> 6 via 4 stride-2 convs)
    x = jax.random.normal(xkey, (2, 3, 96, 96), dtype=jnp.float32)

    fwd = jax.jit(functools.partial(ae_forward, conv_dims=conv_dims))
    out = fwd(prep, x)
    jax.block_until_ready(out)

    assert out.shape == (2, 3, 96, 96), out.shape
    assert out.dtype == jnp.float32
    assert bool(jnp.all(out >= 0.0))   # ReLU after every layer, incl. the last (per spec)
    print("KERNEL_OK")
</pallas_src>

<mosaic_0001>
module attributes {stable_mosaic.version = 11 : i64} {
  func.func @_matmul_bias_relu_kernel(%arg0: i32, %arg1: i32, %arg2: memref<512x27xbf16, #tpu.memory_space<vmem>>, %arg3: memref<27x16xbf16, #tpu.memory_space<vmem>>, %arg4: memref<1x16xf32, #tpu.memory_space<vmem>>, %arg5: memref<512x16xf32, #tpu.memory_space<vmem>>) attributes {dimension_semantics = [#tpu.dimension_semantics<parallel>, #tpu.dimension_semantics<parallel>], iteration_bounds = array<i64: 9, 1>, scalar_prefetch = 0 : i64, scratch_operands = 0 : i64, tpu.core_type = #tpu.core_type<tc>, window_params = [{transform_indices = @transform_0, window_bounds = array<i64: 512, 27>}, {transform_indices = @transform_1, window_bounds = array<i64: 27, 16>}, {transform_indices = @transform_2, window_bounds = array<i64: 1, 16>}, {transform_indices = @transform_3, window_bounds = array<i64: 512, 16>}]} {
    %c0 = arith.constant 0 : index
    %c0_0 = arith.constant 0 : index
    %0 = vector.load %arg2[%c0, %c0_0] : memref<512x27xbf16, #tpu.memory_space<vmem>>, vector<512x27xbf16>
    %c0_1 = arith.constant 0 : index
    %c0_2 = arith.constant 0 : index
    %1 = vector.load %arg3[%c0_1, %c0_2] : memref<27x16xbf16, #tpu.memory_space<vmem>>, vector<27x16xbf16>
    %cst = arith.constant dense<0.000000e+00> : vector<512x16xf32>
    %2 = tpu.matmul %0, %1, %cst {dimension_numbers = #tpu.dot_dimension_numbers<[1], [0], [0], [1], [0, 0, 1, 1], [], []>} : vector<512x27xbf16>, vector<27x16xbf16>, vector<512x16xf32> -> vector<512x16xf32>
    %c0_3 = arith.constant 0 : index
    %c0_4 = arith.constant 0 : index
    %3 = vector.load %arg4[%c0_3, %c0_4] : memref<1x16xf32, #tpu.memory_space<vmem>>, vector<1x16xf32>
    %4 = vector.broadcast %3 : vector<1x16xf32> to vector<512x16xf32>
    %5 = arith.addf %2, %4 : vector<512x16xf32>
    %cst_5 = arith.constant 0.000000e+00 : f32
    %6 = vector.broadcast %cst_5 : f32 to vector<512x16xf32>
    %7 = arith.maximumf %5, %6 : vector<512x16xf32>
    %c0_6 = arith.constant 0 : index
    %c0_7 = arith.constant 0 : index
    %8 = vector.load %arg5[%c0_6, %c0_7] : memref<512x16xf32, #tpu.memory_space<vmem>>, vector<512x16xf32>
    tpu.vector_store %arg5[%c0_6, %c0_7], %7 {strides = array<i32>} : memref<512x16xf32, #tpu.memory_space<vmem>>, vector<512x16xf32>,
    return
  }
  func.func @transform_0(%arg0: i32, %arg1: i32) -> (i32, i32) {
    %c0_i32 = arith.constant 0 : i32
    %c0_i32_0 = arith.constant 0 : i32
    return %arg0, %c0_i32 : i32, i32
  }
  func.func @transform_1(%arg0: i32, %arg1: i32) -> (i32, i32) {
    %c0_i32 = arith.constant 0 : i32
    %c0_i32_0 = arith.constant 0 : i32
    return %c0_i32, %arg1 : i32, i32
  }
  func.func @transform_2(%arg0: i32, %arg1: i32) -> (i32, i32) {
    %c0_i32 = arith.constant 0 : i32
    %c0_i32_0 = arith.constant 0 : i32
    return %c0_i32, %arg1 : i32, i32
  }
  func.func @transform_3(%arg0: i32, %arg1: i32) -> (i32, i32) {
    %c0_i32 = arith.constant 0 : i32
    return %arg0, %arg1 : i32, i32
  }
}

module attributes {stable_mosaic.version = 11 : i64} {
  func.func @_matmul_bias_relu_kernel(%arg0: i32, %arg1: i32, %arg2: memref<384x144xbf16, #tpu.memory_space<vmem>>, %arg3: memref<144x32xbf16, #tpu.memory_space<vmem>>, %arg4: memref<1x32xf32, #tpu.memory_space<vmem>>, %arg5: memref<384x32xf32, #tpu.memory_space<vmem>>) attributes {dimension_semantics = [#tpu.dimension_semantics<parallel>, #tpu.dimension_semantics<parallel>], iteration_bounds = array<i64: 3, 1>, scalar_prefetch = 0 : i64, scratch_operands = 0 : i64, tpu.core_type = #tpu.core_type<tc>, window_params = [{transform_indices = @transform_0, window_bounds = array<i64: 384, 144>}, {transform_indices = @transform_1, window_bounds = array<i64: 144, 32>}, {transform_indices = @transform_2, window_bounds = array<i64: 1, 32>}, {transform_indices = @transform_3, window_bounds = array<i64: 384, 32>}]} {
    %c0 = arith.constant 0 : index
    %c0_0 = arith.constant 0 : index
    %0 = vector.load %arg2[%c0, %c0_0] : memref<384x144xbf16, #tpu.memory_space<vmem>>, vector<384x144xbf16>
    %c0_1 = arith.constant 0 : index
    %c0_2 = arith.constant 0 : index
    %1 = vector.load %arg3[%c0_1, %c0_2] : memref<144x32xbf16, #tpu.memory_space<vmem>>, vector<144x32xbf16>
    %cst = arith.constant dense<0.000000e+00> : vector<384x32xf32>
    %2 = tpu.matmul %0, %1, %cst {dimension_numbers = #tpu.dot_dimension_numbers<[1], [0], [0], [1], [0, 0, 1, 1], [], []>} : vector<384x144xbf16>, vector<144x32xbf16>, vector<384x32xf32> -> vector<384x32xf32>
    %c0_3 = arith.constant 0 : index
    %c0_4 = arith.constant 0 : index
    %3 = vector.load %arg4[%c0_3, %c0_4] : memref<1x32xf32, #tpu.memory_space<vmem>>, vector<1x32xf32>
    %4 = vector.broadcast %3 : vector<1x32xf32> to vector<384x32xf32>
    %5 = arith.addf %2, %4 : vector<384x32xf32>
    %cst_5 = arith.constant 0.000000e+00 : f32
    %6 = vector.broadcast %cst_5 : f32 to vector<384x32xf32>
    %7 = arith.maximumf %5, %6 : vector<384x32xf32>
    %c0_6 = arith.constant 0 : index
    %c0_7 = arith.constant 0 : index
    %8 = vector.load %arg5[%c0_6, %c0_7] : memref<384x32xf32, #tpu.memory_space<vmem>>, vector<384x32xf32>
    tpu.vector_store %arg5[%c0_6, %c0_7], %7 {strides = array<i32>} : memref<384x32xf32, #tpu.memory_space<vmem>>, vector<384x32xf32>,
    return
  }
  func.func @transform_0(%arg0: i32, %arg1: i32) -> (i32, i32) {
    %c0_i32 = arith.constant 0 : i32
    %c0_i32_0 = arith.constant 0 : i32
    return %arg0, %c0_i32 : i32, i32
  }
  func.func @transform_1(%arg0: i32, %arg1: i32) -> (i32, i32) {
    %c0_i32 = arith.constant 0 : i32
    %c0_i32_0 = arith.constant 0 : i32
    return %c0_i32, %arg1 : i32, i32
  }
  func.func @transform_2(%arg0: i32, %arg1: i32) -> (i32, i32) {
    %c0_i32 = arith.constant 0 : i32
    %c0_i32_0 = arith.constant 0 : i32
    return %c0_i32, %arg1 : i32, i32
  }
  func.func @transform_3(%arg0: i32, %arg1: i32) -> (i32, i32) {
    %c0_i32 = arith.constant 0 : i32
    return %arg0, %arg1 : i32, i32
  }
}

module attributes {stable_mosaic.version = 11 : i64} {
  func.func @_matmul_bias_relu_kernel(%arg0: i32, %arg1: i32, %arg2: memref<144x288xbf16, #tpu.memory_space<vmem>>, %arg3: memref<288x64xbf16, #tpu.memory_space<vmem>>, %arg4: memref<1x64xf32, #tpu.memory_space<vmem>>, %arg5: memref<144x64xf32, #tpu.memory_space<vmem>>) attributes {dimension_semantics = [#tpu.dimension_semantics<parallel>, #tpu.dimension_semantics<parallel>], iteration_bounds = array<i64: 2, 1>, scalar_prefetch = 0 : i64, scratch_operands = 0 : i64, tpu.core_type = #tpu.core_type<tc>, window_params = [{transform_indices = @transform_0, window_bounds = array<i64: 144, 288>}, {transform_indices = @transform_1, window_bounds = array<i64: 288, 64>}, {transform_indices = @transform_2, window_bounds = array<i64: 1, 64>}, {transform_indices = @transform_3, window_bounds = array<i64: 144, 64>}]} {
    %c0 = arith.constant 0 : index
    %c0_0 = arith.constant 0 : index
    %0 = vector.load %arg2[%c0, %c0_0] : memref<144x288xbf16, #tpu.memory_space<vmem>>, vector<144x288xbf16>
    %c0_1 = arith.constant 0 : index
    %c0_2 = arith.constant 0 : index
    %1 = vector.load %arg3[%c0_1, %c0_2] : memref<288x64xbf16, #tpu.memory_space<vmem>>, vector<288x64xbf16>
    %cst = arith.constant dense<0.000000e+00> : vector<144x64xf32>
    %2 = tpu.matmul %0, %1, %cst {dimension_numbers = #tpu.dot_dimension_numbers<[1], [0], [0], [1], [0, 0, 1, 1], [], []>} : vector<144x288xbf16>, vector<288x64xbf16>, vector<144x64xf32> -> vector<144x64xf32>
    %c0_3 = arith.constant 0 : index
    %c0_4 = arith.constant 0 : index
    %3 = vector.load %arg4[%c0_3, %c0_4] : memref<1x64xf32, #tpu.memory_space<vmem>>, vector<1x64xf32>
    %4 = vector.broadcast %3 : vector<1x64xf32> to vector<144x64xf32>
    %5 = arith.addf %2, %4 : vector<144x64xf32>
    %cst_5 = arith.constant 0.000000e+00 : f32
    %6 = vector.broadcast %cst_5 : f32 to vector<144x64xf32>
    %7 = arith.maximumf %5, %6 : vector<144x64xf32>
    %c0_6 = arith.constant 0 : index
    %c0_7 = arith.constant 0 : index
    %8 = vector.load %arg5[%c0_6, %c0_7] : memref<144x64xf32, #tpu.memory_space<vmem>>, vector<144x64xf32>
    tpu.vector_store %arg5[%c0_6, %c0_7], %7 {strides = array<i32>} : memref<144x64xf32, #tpu.memory_space<vmem>>, vector<144x64xf32>,
    return
  }
  func.func @transform_0(%arg0: i32, %arg1: i32) -> (i32, i32) {
    %c0_i32 = arith.constant 0 : i32
    %c0_i32_0 = arith.constant 0 : i32
    return %arg0, %c0_i32 : i32, i32
  }
  func.func @transform_1(%arg0: i32, %arg1: i32) -> (i32, i32) {
    %c0_i32 = arith.constant 0 : i32
    %c0_i32_0 = arith.constant 0 : i32
    return %c0_i32, %arg1 : i32, i32
  }
  func.func @transform_2(%arg0: i32, %arg1: i32) -> (i32, i32) {
    %c0_i32 = arith.constant 0 : i32
    %c0_i32_0 = arith.constant 0 : i32
    return %c0_i32, %arg1 : i32, i32
  }
  func.func @transform_3(%arg0: i32, %arg1: i32) -> (i32, i32) {
    %c0_i32 = arith.constant 0 : i32
    return %arg0, %arg1 : i32, i32
  }
}

module attributes {stable_mosaic.version = 11 : i64} {
  func.func @_matmul_bias_relu_kernel(%arg0: i32, %arg1: i32, %arg2: memref<72x576xbf16, #tpu.memory_space<vmem>>, %arg3: memref<576x128xbf16, #tpu.memory_space<vmem>>, %arg4: memref<1x128xf32, #tpu.memory_space<vmem>>, %arg5: memref<72x128xf32, #tpu.memory_space<vmem>>) attributes {dimension_semantics = [#tpu.dimension_semantics<parallel>, #tpu.dimension_semantics<parallel>], iteration_bounds = array<i64: 1, 1>, scalar_prefetch = 0 : i64, scratch_operands = 0 : i64, tpu.core_type = #tpu.core_type<tc>, window_params = [{transform_indices = @transform_0, window_bounds = array<i64: 72, 576>}, {transform_indices = @transform_1, window_bounds = array<i64: 576, 128>}, {transform_indices = @transform_2, window_bounds = array<i64: 1, 128>}, {transform_indices = @transform_3, window_bounds = array<i64: 72, 128>}]} {
    %c0 = arith.constant 0 : index
    %c0_0 = arith.constant 0 : index
    %0 = vector.load %arg2[%c0, %c0_0] : memref<72x576xbf16, #tpu.memory_space<vmem>>, vector<72x576xbf16>
    %c0_1 = arith.constant 0 : index
    %c0_2 = arith.constant 0 : index
    %1 = vector.load %arg3[%c0_1, %c0_2] : memref<576x128xbf16, #tpu.memory_space<vmem>>, vector<576x128xbf16>
    %cst = arith.constant dense<0.000000e+00> : vector<72x128xf32>
    %2 = tpu.matmul %0, %1, %cst {dimension_numbers = #tpu.dot_dimension_numbers<[1], [0], [0], [1], [0, 0, 1, 1], [], []>} : vector<72x576xbf16>, vector<576x128xbf16>, vector<72x128xf32> -> vector<72x128xf32>
    %c0_3 = arith.constant 0 : index
    %c0_4 = arith.constant 0 : index
    %3 = vector.load %arg4[%c0_3, %c0_4] : memref<1x128xf32, #tpu.memory_space<vmem>>, vector<1x128xf32>
    %4 = vector.broadcast %3 : vector<1x128xf32> to vector<72x128xf32>
    %5 = arith.addf %2, %4 : vector<72x128xf32>
    %cst_5 = arith.constant 0.000000e+00 : f32
    %6 = vector.broadcast %cst_5 : f32 to vector<72x128xf32>
    %7 = arith.maximumf %5, %6 : vector<72x128xf32>
    %c0_6 = arith.constant 0 : index
    %c0_7 = arith.constant 0 : index
    %8 = vector.load %arg5[%c0_6, %c0_7] : memref<72x128xf32, #tpu.memory_space<vmem>>, vector<72x128xf32>
    tpu.vector_store %arg5[%c0_6, %c0_7], %7 {strides = array<i32>} : memref<72x128xf32, #tpu.memory_space<vmem>>, vector<72x128xf32>,
    return
  }
  func.func @transform_0(%arg0: i32, %arg1: i32) -> (i32, i32) {
    %c0_i32 = arith.constant 0 : i32
    %c0_i32_0 = arith.constant 0 : i32
    return %arg0, %c0_i32 : i32, i32
  }
  func.func @transform_1(%arg0: i32, %arg1: i32) -> (i32, i32) {
    %c0_i32 = arith.constant 0 : i32
    %c0_i32_0 = arith.constant 0 : i32
    return %c0_i32, %arg1 : i32, i32
  }
  func.func @transform_2(%arg0: i32, %arg1: i32) -> (i32, i32) {
    %c0_i32 = arith.constant 0 : i32
    %c0_i32_0 = arith.constant 0 : i32
    return %c0_i32, %arg1 : i32, i32
  }
  func.func @transform_3(%arg0: i32, %arg1: i32) -> (i32, i32) {
    %c0_i32 = arith.constant 0 : i32
    return %arg0, %arg1 : i32, i32
  }
}

module attributes {stable_mosaic.version = 11 : i64} {
  func.func @_matmul_bias_relu_kernel(%arg0: i32, %arg1: i32, %arg2: memref<2x4608xbf16, #tpu.memory_space<vmem>>, %arg3: memref<4608x32xbf16, #tpu.memory_space<vmem>>, %arg4: memref<1x32xf32, #tpu.memory_space<vmem>>, %arg5: memref<2x32xf32, #tpu.memory_space<vmem>>) attributes {dimension_semantics = [#tpu.dimension_semantics<parallel>, #tpu.dimension_semantics<parallel>], iteration_bounds = array<i64: 1, 1>, scalar_prefetch = 0 : i64, scratch_operands = 0 : i64, tpu.core_type = #tpu.core_type<tc>, window_params = [{transform_indices = @transform_0, window_bounds = array<i64: 2, 4608>}, {transform_indices = @transform_1, window_bounds = array<i64: 4608, 32>}, {transform_indices = @transform_2, window_bounds = array<i64: 1, 32>}, {transform_indices = @transform_3, window_bounds = array<i64: 2, 32>}]} {
    %c0 = arith.constant 0 : index
    %c0_0 = arith.constant 0 : index
    %0 = vector.load %arg2[%c0, %c0_0] : memref<2x4608xbf16, #tpu.memory_space<vmem>>, vector<2x4608xbf16>
    %c0_1 = arith.constant 0 : index
    %c0_2 = arith.constant 0 : index
    %1 = vector.load %arg3[%c0_1, %c0_2] : memref<4608x32xbf16, #tpu.memory_space<vmem>>, vector<4608x32xbf16>
    %cst = arith.constant dense<0.000000e+00> : vector<2x32xf32>
    %2 = tpu.matmul %0, %1, %cst {dimension_numbers = #tpu.dot_dimension_numbers<[1], [0], [0], [1], [0, 0, 1, 1], [], []>} : vector<2x4608xbf16>, vector<4608x32xbf16>, vector<2x32xf32> -> vector<2x32xf32>
    %c0_3 = arith.constant 0 : index
    %c0_4 = arith.constant 0 : index
    %3 = vector.load %arg4[%c0_3, %c0_4] : memref<1x32xf32, #tpu.memory_space<vmem>>, vector<1x32xf32>
    %4 = vector.broadcast %3 : vector<1x32xf32> to vector<2x32xf32>
    %5 = arith.addf %2, %4 : vector<2x32xf32>
    %cst_5 = arith.constant 0.000000e+00 : f32
    %6 = vector.broadcast %cst_5 : f32 to vector<2x32xf32>
    %7 = arith.maximumf %5, %6 : vector<2x32xf32>
    %c0_6 = arith.constant 0 : index
    %c0_7 = arith.constant 0 : index
    %8 = vector.load %arg5[%c0_6, %c0_7] : memref<2x32xf32, #tpu.memory_space<vmem>>, vector<2x32xf32>
    tpu.vector_store %arg5[%c0_6, %c0_7], %7 {strides = array<i32>} : memref<2x32xf32, #tpu.memory_space<vmem>>, vector<2x32xf32>,
    return
  }
  func.func @transform_0(%arg0: i32, %arg1: i32) -> (i32, i32) {
    %c0_i32 = arith.constant 0 : i32
    %c0_i32_0 = arith.constant 0 : i32
    return %arg0, %c0_i32 : i32, i32
  }
  func.func @transform_1(%arg0: i32, %arg1: i32) -> (i32, i32) {
    %c0_i32 = arith.constant 0 : i32
    %c0_i32_0 = arith.constant 0 : i32
    return %c0_i32, %arg1 : i32, i32
  }
  func.func @transform_2(%arg0: i32, %arg1: i32) -> (i32, i32) {
    %c0_i32 = arith.constant 0 : i32
    %c0_i32_0 = arith.constant 0 : i32
    return %c0_i32, %arg1 : i32, i32
  }
  func.func @transform_3(%arg0: i32, %arg1: i32) -> (i32, i32) {
    %c0_i32 = arith.constant 0 : i32
    return %arg0, %arg1 : i32, i32
  }
}

module attributes {stable_mosaic.version = 11 : i64} {
  func.func @_matmul_bias_relu_kernel(%arg0: i32, %arg1: i32, %arg2: memref<2x32xbf16, #tpu.memory_space<vmem>>, %arg3: memref<32x512xbf16, #tpu.memory_space<vmem>>, %arg4: memref<1x512xf32, #tpu.memory_space<vmem>>, %arg5: memref<2x512xf32, #tpu.memory_space<vmem>>) attributes {dimension_semantics = [#tpu.dimension_semantics<parallel>, #tpu.dimension_semantics<parallel>], iteration_bounds = array<i64: 1, 9>, scalar_prefetch = 0 : i64, scratch_operands = 0 : i64, tpu.core_type = #tpu.core_type<tc>, window_params = [{transform_indices = @transform_0, window_bounds = array<i64: 2, 32>}, {transform_indices = @transform_1, window_bounds = array<i64: 32, 512>}, {transform_indices = @transform_2, window_bounds = array<i64: 1, 512>}, {transform_indices = @transform_3, window_bounds = array<i64: 2, 512>}]} {
    %c0 = arith.constant 0 : index
    %c0_0 = arith.constant 0 : index
    %0 = vector.load %arg2[%c0, %c0_0] : memref<2x32xbf16, #tpu.memory_space<vmem>>, vector<2x32xbf16>
    %c0_1 = arith.constant 0 : index
    %c0_2 = arith.constant 0 : index
    %1 = vector.load %arg3[%c0_1, %c0_2] : memref<32x512xbf16, #tpu.memory_space<vmem>>, vector<32x512xbf16>
    %cst = arith.constant dense<0.000000e+00> : vector<2x512xf32>
    %2 = tpu.matmul %0, %1, %cst {dimension_numbers = #tpu.dot_dimension_numbers<[1], [0], [0], [1], [0, 0, 1, 1], [], []>} : vector<2x32xbf16>, vector<32x512xbf16>, vector<2x512xf32> -> vector<2x512xf32>
    %c0_3 = arith.constant 0 : index
    %c0_4 = arith.constant 0 : index
    %3 = vector.load %arg4[%c0_3, %c0_4] : memref<1x512xf32, #tpu.memory_space<vmem>>, vector<1x512xf32>
    %4 = vector.broadcast %3 : vector<1x512xf32> to vector<2x512xf32>
    %5 = arith.addf %2, %4 : vector<2x512xf32>
    %cst_5 = arith.constant 0.000000e+00 : f32
    %6 = vector.broadcast %cst_5 : f32 to vector<2x512xf32>
    %7 = arith.maximumf %5, %6 : vector<2x512xf32>
    %c0_6 = arith.constant 0 : index
    %c0_7 = arith.constant 0 : index
    %8 = vector.load %arg5[%c0_6, %c0_7] : memref<2x512xf32, #tpu.memory_space<vmem>>, vector<2x512xf32>
    tpu.vector_store %arg5[%c0_6, %c0_7], %7 {strides = array<i32>} : memref<2x512xf32, #tpu.memory_space<vmem>>, vector<2x512xf32>,
    return
  }
  func.func @transform_0(%arg0: i32, %arg1: i32) -> (i32, i32) {
    %c0_i32 = arith.constant 0 : i32
    %c0_i32_0 = arith.constant 0 : i32
    return %arg0, %c0_i32 : i32, i32
  }
  func.func @transform_1(%arg0: i32, %arg1: i32) -> (i32, i32) {
    %c0_i32 = arith.constant 0 : i32
    %c0_i32_0 = arith.constant 0 : i32
    return %c0_i32, %arg1 : i32, i32
  }
  func.func @transform_2(%arg0: i32, %arg1: i32) -> (i32, i32) {
    %c0_i32 = arith.constant 0 : i32
    %c0_i32_0 = arith.constant 0 : i32
    return %c0_i32, %arg1 : i32, i32
  }
  func.func @transform_3(%arg0: i32, %arg1: i32) -> (i32, i32) {
    %c0_i32 = arith.constant 0 : i32
    return %arg0, %arg1 : i32, i32
  }
}

module attributes {stable_mosaic.version = 11 : i64} {
  func.func @_matmul_bias_relu_kernel(%arg0: i32, %arg1: i32, %arg2: memref<72x512xbf16, #tpu.memory_space<vmem>>, %arg3: memref<512x128xbf16, #tpu.memory_space<vmem>>, %arg4: memref<1x128xf32, #tpu.memory_space<vmem>>, %arg5: memref<72x128xf32, #tpu.memory_space<vmem>>) attributes {dimension_semantics = [#tpu.dimension_semantics<parallel>, #tpu.dimension_semantics<parallel>], iteration_bounds = array<i64: 1, 2>, scalar_prefetch = 0 : i64, scratch_operands = 0 : i64, tpu.core_type = #tpu.core_type<tc>, window_params = [{transform_indices = @transform_0, window_bounds = array<i64: 72, 512>}, {transform_indices = @transform_1, window_bounds = array<i64: 512, 128>}, {transform_indices = @transform_2, window_bounds = array<i64: 1, 128>}, {transform_indices = @transform_3, window_bounds = array<i64: 72, 128>}]} {
    %c0 = arith.constant 0 : index
    %c0_0 = arith.constant 0 : index
    %0 = vector.load %arg2[%c0, %c0_0] : memref<72x512xbf16, #tpu.memory_space<vmem>>, vector<72x512xbf16>
    %c0_1 = arith.constant 0 : index
    %c0_2 = arith.constant 0 : index
    %1 = vector.load %arg3[%c0_1, %c0_2] : memref<512x128xbf16, #tpu.memory_space<vmem>>, vector<512x128xbf16>
    %cst = arith.constant dense<0.000000e+00> : vector<72x128xf32>
    %2 = tpu.matmul %0, %1, %cst {dimension_numbers = #tpu.dot_dimension_numbers<[1], [0], [0], [1], [0, 0, 1, 1], [], []>} : vector<72x512xbf16>, vector<512x128xbf16>, vector<72x128xf32> -> vector<72x128xf32>
    %c0_3 = arith.constant 0 : index
    %c0_4 = arith.constant 0 : index
    %3 = vector.load %arg4[%c0_3, %c0_4] : memref<1x128xf32, #tpu.memory_space<vmem>>, vector<1x128xf32>
    %4 = vector.broadcast %3 : vector<1x128xf32> to vector<72x128xf32>
    %5 = arith.addf %2, %4 : vector<72x128xf32>
    %cst_5 = arith.constant 0.000000e+00 : f32
    %6 = vector.broadcast %cst_5 : f32 to vector<72x128xf32>
    %7 = arith.maximumf %5, %6 : vector<72x128xf32>
    %c0_6 = arith.constant 0 : index
    %c0_7 = arith.constant 0 : index
    %8 = vector.load %arg5[%c0_6, %c0_7] : memref<72x128xf32, #tpu.memory_space<vmem>>, vector<72x128xf32>
    tpu.vector_store %arg5[%c0_6, %c0_7], %7 {strides = array<i32>} : memref<72x128xf32, #tpu.memory_space<vmem>>, vector<72x128xf32>,
    return
  }
  func.func @transform_0(%arg0: i32, %arg1: i32) -> (i32, i32) {
    %c0_i32 = arith.constant 0 : i32
    %c0_i32_0 = arith.constant 0 : i32
    return %arg0, %c0_i32 : i32, i32
  }
  func.func @transform_1(%arg0: i32, %arg1: i32) -> (i32, i32) {
    %c0_i32 = arith.constant 0 : i32
    %c0_i32_0 = arith.constant 0 : i32
    return %c0_i32, %arg1 : i32, i32
  }
  func.func @transform_2(%arg0: i32, %arg1: i32) -> (i32, i32) {
    %c0_i32 = arith.constant 0 : i32
    %c0_i32_0 = arith.constant 0 : i32
    return %c0_i32, %arg1 : i32, i32
  }
  func.func @transform_3(%arg0: i32, %arg1: i32) -> (i32, i32) {
    %c0_i32 = arith.constant 0 : i32
    return %arg0, %arg1 : i32, i32
  }
}

module attributes {stable_mosaic.version = 11 : i64} {
  func.func @_matmul_bias_relu_kernel(%arg0: i32, %arg1: i32, %arg2: memref<144x256xbf16, #tpu.memory_space<vmem>>, %arg3: memref<256x128xbf16, #tpu.memory_space<vmem>>, %arg4: memref<1x128xf32, #tpu.memory_space<vmem>>, %arg5: memref<144x128xf32, #tpu.memory_space<vmem>>) attributes {dimension_semantics = [#tpu.dimension_semantics<parallel>, #tpu.dimension_semantics<parallel>], iteration_bounds = array<i64: 2, 1>, scalar_prefetch = 0 : i64, scratch_operands = 0 : i64, tpu.core_type = #tpu.core_type<tc>, window_params = [{transform_indices = @transform_0, window_bounds = array<i64: 144, 256>}, {transform_indices = @transform_1, window_bounds = array<i64: 256, 128>}, {transform_indices = @transform_2, window_bounds = array<i64: 1, 128>}, {transform_indices = @transform_3, window_bounds = array<i64: 144, 128>}]} {
    %c0 = arith.constant 0 : index
    %c0_0 = arith.constant 0 : index
    %0 = vector.load %arg2[%c0, %c0_0] : memref<144x256xbf16, #tpu.memory_space<vmem>>, vector<144x256xbf16>
    %c0_1 = arith.constant 0 : index
    %c0_2 = arith.constant 0 : index
    %1 = vector.load %arg3[%c0_1, %c0_2] : memref<256x128xbf16, #tpu.memory_space<vmem>>, vector<256x128xbf16>
    %cst = arith.constant dense<0.000000e+00> : vector<144x128xf32>
    %2 = tpu.matmul %0, %1, %cst {dimension_numbers = #tpu.dot_dimension_numbers<[1], [0], [0], [1], [0, 0, 1, 1], [], []>} : vector<144x256xbf16>, vector<256x128xbf16>, vector<144x128xf32> -> vector<144x128xf32>
    %c0_3 = arith.constant 0 : index
    %c0_4 = arith.constant 0 : index
    %3 = vector.load %arg4[%c0_3, %c0_4] : memref<1x128xf32, #tpu.memory_space<vmem>>, vector<1x128xf32>
    %4 = vector.broadcast %3 : vector<1x128xf32> to vector<144x128xf32>
    %5 = arith.addf %2, %4 : vector<144x128xf32>
    %cst_5 = arith.constant 0.000000e+00 : f32
    %6 = vector.broadcast %cst_5 : f32 to vector<144x128xf32>
    %7 = arith.maximumf %5, %6 : vector<144x128xf32>
    %c0_6 = arith.constant 0 : index
    %c0_7 = arith.constant 0 : index
    %8 = vector.load %arg5[%c0_6, %c0_7] : memref<144x128xf32, #tpu.memory_space<vmem>>, vector<144x128xf32>
    tpu.vector_store %arg5[%c0_6, %c0_7], %7 {strides = array<i32>} : memref<144x128xf32, #tpu.memory_space<vmem>>, vector<144x128xf32>,
    return
  }
  func.func @transform_0(%arg0: i32, %arg1: i32) -> (i32, i32) {
    %c0_i32 = arith.constant 0 : i32
    %c0_i32_0 = arith.constant 0 : i32
    return %arg0, %c0_i32 : i32, i32
  }
  func.func @transform_1(%arg0: i32, %arg1: i32) -> (i32, i32) {
    %c0_i32 = arith.constant 0 : i32
    %c0_i32_0 = arith.constant 0 : i32
    return %c0_i32, %arg1 : i32, i32
  }
  func.func @transform_2(%arg0: i32, %arg1: i32) -> (i32, i32) {
    %c0_i32 = arith.constant 0 : i32
    %c0_i32_0 = arith.constant 0 : i32
    return %c0_i32, %arg1 : i32, i32
  }
  func.func @transform_3(%arg0: i32, %arg1: i32) -> (i32, i32) {
    %c0_i32 = arith.constant 0 : i32
    return %arg0, %arg1 : i32, i32
  }
}

module attributes {stable_mosaic.version = 11 : i64} {
  func.func @_matmul_bias_relu_kernel(%arg0: i32, %arg1: i32, %arg2: memref<384x128xbf16, #tpu.memory_space<vmem>>, %arg3: memref<128x64xbf16, #tpu.memory_space<vmem>>, %arg4: memref<1x64xf32, #tpu.memory_space<vmem>>, %arg5: memref<384x64xf32, #tpu.memory_space<vmem>>) attributes {dimension_semantics = [#tpu.dimension_semantics<parallel>, #tpu.dimension_semantics<parallel>], iteration_bounds = array<i64: 3, 1>, scalar_prefetch = 0 : i64, scratch_operands = 0 : i64, tpu.core_type = #tpu.core_type<tc>, window_params = [{transform_indices = @transform_0, window_bounds = array<i64: 384, 128>}, {transform_indices = @transform_1, window_bounds = array<i64: 128, 64>}, {transform_indices = @transform_2, window_bounds = array<i64: 1, 64>}, {transform_indices = @transform_3, window_bounds = array<i64: 384, 64>}]} {
    %c0 = arith.constant 0 : index
    %c0_0 = arith.constant 0 : index
    %0 = vector.load %arg2[%c0, %c0_0] : memref<384x128xbf16, #tpu.memory_space<vmem>>, vector<384x128xbf16>
    %c0_1 = arith.constant 0 : index
    %c0_2 = arith.constant 0 : index
    %1 = vector.load %arg3[%c0_1, %c0_2] : memref<128x64xbf16, #tpu.memory_space<vmem>>, vector<128x64xbf16>
    %cst = arith.constant dense<0.000000e+00> : vector<384x64xf32>
    %2 = tpu.matmul %0, %1, %cst {dimension_numbers = #tpu.dot_dimension_numbers<[1], [0], [0], [1], [0, 0, 1, 1], [], []>} : vector<384x128xbf16>, vector<128x64xbf16>, vector<384x64xf32> -> vector<384x64xf32>
    %c0_3 = arith.constant 0 : index
    %c0_4 = arith.constant 0 : index
    %3 = vector.load %arg4[%c0_3, %c0_4] : memref<1x64xf32, #tpu.memory_space<vmem>>, vector<1x64xf32>
    %4 = vector.broadcast %3 : vector<1x64xf32> to vector<384x64xf32>
    %5 = arith.addf %2, %4 : vector<384x64xf32>
    %cst_5 = arith.constant 0.000000e+00 : f32
    %6 = vector.broadcast %cst_5 : f32 to vector<384x64xf32>
    %7 = arith.maximumf %5, %6 : vector<384x64xf32>
    %c0_6 = arith.constant 0 : index
    %c0_7 = arith.constant 0 : index
    %8 = vector.load %arg5[%c0_6, %c0_7] : memref<384x64xf32, #tpu.memory_space<vmem>>, vector<384x64xf32>
    tpu.vector_store %arg5[%c0_6, %c0_7], %7 {strides = array<i32>} : memref<384x64xf32, #tpu.memory_space<vmem>>, vector<384x64xf32>,
    return
  }
  func.func @transform_0(%arg0: i32, %arg1: i32) -> (i32, i32) {
    %c0_i32 = arith.constant 0 : i32
    %c0_i32_0 = arith.constant 0 : i32
    return %arg0, %c0_i32 : i32, i32
  }
  func.func @transform_1(%arg0: i32, %arg1: i32) -> (i32, i32) {
    %c0_i32 = arith.constant 0 : i32
    %c0_i32_0 = arith.constant 0 : i32
    return %c0_i32, %arg1 : i32, i32
  }
  func.func @transform_2(%arg0: i32, %arg1: i32) -> (i32, i32) {
    %c0_i32 = arith.constant 0 : i32
    %c0_i32_0 = arith.constant 0 : i32
    return %c0_i32, %arg1 : i32, i32
  }
  func.func @transform_3(%arg0: i32, %arg1: i32) -> (i32, i32) {
    %c0_i32 = arith.constant 0 : i32
    return %arg0, %arg1 : i32, i32
  }
}

module attributes {stable_mosaic.version = 11 : i64} {
  func.func @_matmul_bias_relu_kernel(%arg0: i32, %arg1: i32, %arg2: memref<512x64xbf16, #tpu.memory_space<vmem>>, %arg3: memref<64x12xbf16, #tpu.memory_space<vmem>>, %arg4: memref<1x12xf32, #tpu.memory_space<vmem>>, %arg5: memref<512x12xf32, #tpu.memory_space<vmem>>) attributes {dimension_semantics = [#tpu.dimension_semantics<parallel>, #tpu.dimension_semantics<parallel>], iteration_bounds = array<i64: 9, 1>, scalar_prefetch = 0 : i64, scratch_operands = 0 : i64, tpu.core_type = #tpu.core_type<tc>, window_params = [{transform_indices = @transform_0, window_bounds = array<i64: 512, 64>}, {transform_indices = @transform_1, window_bounds = array<i64: 64, 12>}, {transform_indices = @transform_2, window_bounds = array<i64: 1, 12>}, {transform_indices = @transform_3, window_bounds = array<i64: 512, 12>}]} {
    %c0 = arith.constant 0 : index
    %c0_0 = arith.constant 0 : index
    %0 = vector.load %arg2[%c0, %c0_0] : memref<512x64xbf16, #tpu.memory_space<vmem>>, vector<512x64xbf16>
    %c0_1 = arith.constant 0 : index
    %c0_2 = arith.constant 0 : index
    %1 = vector.load %arg3[%c0_1, %c0_2] : memref<64x12xbf16, #tpu.memory_space<vmem>>, vector<64x12xbf16>
    %cst = arith.constant dense<0.000000e+00> : vector<512x12xf32>
    %2 = tpu.matmul %0, %1, %cst {dimension_numbers = #tpu.dot_dimension_numbers<[1], [0], [0], [1], [0, 0, 1, 1], [], []>} : vector<512x64xbf16>, vector<64x12xbf16>, vector<512x12xf32> -> vector<512x12xf32>
    %c0_3 = arith.constant 0 : index
    %c0_4 = arith.constant 0 : index
    %3 = vector.load %arg4[%c0_3, %c0_4] : memref<1x12xf32, #tpu.memory_space<vmem>>, vector<1x12xf32>
    %4 = vector.broadcast %3 : vector<1x12xf32> to vector<512x12xf32>
    %5 = arith.addf %2, %4 : vector<512x12xf32>
    %cst_5 = arith.constant 0.000000e+00 : f32
    %6 = vector.broadcast %cst_5 : f32 to vector<512x12xf32>
    %7 = arith.maximumf %5, %6 : vector<512x12xf32>
    %c0_6 = arith.constant 0 : index
    %c0_7 = arith.constant 0 : index
    %8 = vector.load %arg5[%c0_6, %c0_7] : memref<512x12xf32, #tpu.memory_space<vmem>>, vector<512x12xf32>
    tpu.vector_store %arg5[%c0_6, %c0_7], %7 {strides = array<i32>} : memref<512x12xf32, #tpu.memory_space<vmem>>, vector<512x12xf32>,
    return
  }
  func.func @transform_0(%arg0: i32, %arg1: i32) -> (i32, i32) {
    %c0_i32 = arith.constant 0 : i32
    %c0_i32_0 = arith.constant 0 : i32
    return %arg0, %c0_i32 : i32, i32
  }
  func.func @transform_1(%arg0: i32, %arg1: i32) -> (i32, i32) {
    %c0_i32 = arith.constant 0 : i32
    %c0_i32_0 = arith.constant 0 : i32
    return %c0_i32, %arg1 : i32, i32
  }
  func.func @transform_2(%arg0: i32, %arg1: i32) -> (i32, i32) {
    %c0_i32 = arith.constant 0 : i32
    %c0_i32_0 = arith.constant 0 : i32
    return %c0_i32, %arg1 : i32, i32
  }
  func.func @transform_3(%arg0: i32, %arg1: i32) -> (i32, i32) {
    %c0_i32 = arith.constant 0 : i32
    return %arg0, %arg1 : i32, i32
  }
}

</mosaic_0001>

<llo_original>
// kernel: ae_forward.10
$region0: #{ae_forward.10}
  #allocation0 [shape = 'u32[]', space=smem, size = 0x4, offset = 0x4, fixed_abs, tag = 'smem constant byte address 0x4 - core index']
  #allocation1 [shape = 'u32[144,128]{1,0:T(1,128)}', space=vmem, size = 0x12000, scoped, tag = 'internal scratch']
  %s0 = inlined_call_operand.vmem [shape: bf16[4608,27], index: 0, kind: input, shape index: {}]
  %s1 = inlined_call_operand.vmem [shape: bf16[27,16], index: 1, kind: input, shape index: {}]
  %s2 = inlined_call_operand.vmem [shape: f32[1,16], index: 2, kind: input, shape index: {}]
  %s3 = inlined_call_operand.vmem [shape: f32[4608,16], index: 3, kind: output, shape index: {}]
  %s4 = sld [smem:[#allocation0]]
  $region45: #{ae_forward.10} parent=0
    _
  %s6 = ssub.s32 1, %s4
  %s7 = scalar_select 0, %s6, %s4
  loop: start=0, step=1, limit=11
  $region2: #{ae_forward.10} parent=0 // loop_pre_header
    _
  $region3: #{ae_forward.10} parent=0 // loop_header
    %s9 = sphi 0, %s13
    %p10 = scmp.ge.s32.totalorder %s9, 11
    %s16 = sphi 0, %s28
    %s17 = sphi 0, %s24
    %s18 = sphi 0, %s16
    %s19 = sphi 0, %s17
    %s20 = sphi 0, %s18
    %s21 = sphi 0, %s19
    %s31 = sphi 0, %s33
    %s34 = sphi 0, %s31
    %s35 = sphi 0, %s34
    %s51 = sphi 0, %s35
    %s57 = sphi 0, %s59
    %s60 = sphi 0, %s57
    %s61 = sphi 0, %s60
    %s77 = sphi 0, %s61
    %s83 = sphi 0, %s85
    %s86 = sphi 0, %s83
    %s87 = sphi 0, %s86
    %s103 = sphi 0, %s87
    %s111 = sphi 0, %s113
    %s114 = sphi 0, %s111
    %s115 = sphi 0, %s114
    %s131 = sphi 0, %s115
  $region4: #{ae_forward.10} parent=0 // loop_header_branch
    %12 = sbr.rel (%p10) target = $region8
  $region5: #{ae_forward.10} parent=0 // loop_body
    %s14 = ssub.s32 %s9, 1
    %s15 = ssub.s32 %s9, 2
    %s22 = sadd.s32 1, %s17
    %p23 = scmp.ge.s32.totalorder %s22, 1
    %s24 = scalar_select %p23, 0, %s22
    %s25 = sadd.s32 1, %s16
    %s26 = scalar_select %p23, %s25, %s16
    %p27 = scmp.ge.s32.totalorder %s26, 9
    %s28 = scalar_select %p27, 0, %s26
    %s29 = ssub.s32 %s16, %s28
    %p30 = scmp.eq.s32.totalorder %s29, 0
    %s32 = sadd.s32 %s31, 1
    %s33 = scalar_select %p30, %s31, %s32
    %p36 = pneg %p30
    %p37 = scmp.eq.s32.totalorder %s9, 8
    %p38 = por %p36, %p37
    %p39 = scmp.ne.s32.totalorder %s31, %s34
    %p40 = scmp.eq.s32.totalorder %s9, 0
    %p41 = por %p39, %p40
    %p42 = scmp.ne.s32.totalorder %s31, %s34
    %p43 = scmp.eq.s32.totalorder %s14, 8
    %p44 = por %p42, %p43
    %p45 = scmp.ne.s32.totalorder %s34, %s35
    %p46 = scmp.eq.s32.totalorder %s14, 0
    %p47 = por %p45, %p46
    %p48 = scmp.ne.s32.totalorder %s34, %s35
    %p49 = scmp.eq.s32.totalorder %s15, 8
    %p50 = por %p48, %p49
    %p52 = scmp.ne.s32.totalorder %s35, %s51
    %p53 = scmp.eq.s32.totalorder %s15, 0
    %p54 = por %p52, %p53
    %s55 = ssub.s32 %s17, %s24
    %p56 = scmp.eq.s32.totalorder %s55, 0
    %s58 = sadd.s32 %s57, 1
    %s59 = scalar_select %p56, %s57, %s58
    %p62 = pneg %p56
    %p63 = scmp.eq.s32.totalorder %s9, 8
    %p64 = por %p62, %p63
    %p65 = scmp.ne.s32.totalorder %s57, %s60
    %p66 = scmp.eq.s32.totalorder %s9, 0
    %p67 = por %p65, %p66
    %p68 = scmp.ne.s32.totalorder %s57, %s60
    %p69 = scmp.eq.s32.totalorder %s14, 8
    %p70 = por %p68, %p69
    %p71 = scmp.ne.s32.totalorder %s60, %s61
    %p72 = scmp.eq.s32.totalorder %s14, 0
    %p73 = por %p71, %p72
    %p74 = scmp.ne.s32.totalorder %s60, %s61
    %p75 = scmp.eq.s32.totalorder %s15, 8
    %p76 = por %p74, %p75
    %p78 = scmp.ne.s32.totalorder %s61, %s77
    %p79 = scmp.eq.s32.totalorder %s15, 0
    %p80 = por %p78, %p79
    %s81 = ssub.s32 %s17, %s24
    %p82 = scmp.eq.s32.totalorder %s81, 0
    %s84 = sadd.s32 %s83, 1
    %s85 = scalar_select %p82, %s83, %s84
    %p88 = pneg %p82
    %p89 = scmp.eq.s32.totalorder %s9, 8
    %p90 = por %p88, %p89
    %p91 = scmp.ne.s32.totalorder %s83, %s86
    %p92 = scmp.eq.s32.totalorder %s9, 0
    %p93 = por %p91, %p92
    %p94 = scmp.ne.s32.totalorder %s83, %s86
    %p95 = scmp.eq.s32.totalorder %s14, 8
    %p96 = por %p94, %p95
    %p97 = scmp.ne.s32.totalorder %s86, %s87
    %p98 = scmp.eq.s32.totalorder %s14, 0
    %p99 = por %p97, %p98
    %p100 = scmp.ne.s32.totalorder %s86, %s87
    %p101 = scmp.eq.s32.totalorder %s15, 8
    %p102 = por %p100, %p101
    %p104 = scmp.ne.s32.totalorder %s87, %s103
    %p105 = scmp.eq.s32.totalorder %s15, 0
    %p106 = por %p104, %p105
    %s107 = ssub.s32 %s16, %s28
    %s108 = ssub.s32 %s17, %s24
    %s109 = sor.u32 %s107, %s108
    %p110 = scmp.eq.s32.totalorder %s109, 0
    %s112 = sadd.s32 %s111, 1
    %s113 = scalar_select %p110, %s111, %s112
    %p116 = pneg %p110
    %p117 = scmp.eq.s32.totalorder %s9, 8
    %p118 = por %p116, %p117
    %p119 = scmp.ne.s32.totalorder %s111, %s114
    %p120 = scmp.eq.s32.totalorder %s9, 0
    %p121 = por %p119, %p120
    %p122 = scmp.ne.s32.totalorder %s111, %s114
    %p123 = scmp.eq.s32.totalorder %s14, 8
    %p124 = por %p122, %p123
    %p125 = scmp.ne.s32.totalorder %s114, %s115
    %p126 = scmp.eq.s32.totalorder %s14, 0
    %p127 = por %p125, %p126
    %p128 = scmp.ne.s32.totalorder %s114, %s115
    %p129 = scmp.eq.s32.totalorder %s15, 8
    %p130 = por %p128, %p129
    %p132 = scmp.ne.s32.totalorder %s115, %s131
    %p133 = scmp.eq.s32.totalorder %s15, 0
    %p134 = por %p132, %p133
    %p135 = scmp.le.s32.totalorder 1, %s9
    %p136 = scmp.lt.s32.totalorder %s9, 10
    %p137 = pnand %p135, %p136
    %p138 = pneg %p137
    // Predicated region
    $region9: #{ae_forward.10} parent=5 // pred_check
      _
    $region10: #{ae_forward.10} parent=5 // pred_check_branch
      %140 = sbr.rel (%p137) target = $region12
    $region11: #{ae_forward.10} parent=5 // pred_region
      %s141 = ssub.s32 %s9, 1
      // Predicated region
      $region13: #{ae_forward.10} parent=11 // pred_check
        %p142 = pneg %p73
      $region14: #{ae_forward.10} parent=11 // pred_check_branch
        %144 = sbr.rel (%p142) target = $region16
      $region15: #{ae_forward.10} parent=11 // pred_region
        %p145 = scmp.lt.s32.totalorder %s19, 0
        %s146 = scalar_select %p145, %s19, 0
        %s147 = smul.addr %s146, 4
        %s148 = scalar_lea.vmem %s1, %s147
      $region16: #{ae_forward.10} parent=11 // pred_fallthru
        _
      // Predicated region
      $region17: #{ae_forward.10} parent=11 // pred_check
        %p149 = pneg %p99
      $region18: #{ae_forward.10} parent=11 // pred_check_branch
        %151 = sbr.rel (%p149) target = $region20
      $region19: #{ae_forward.10} parent=11 // pred_region
        %p152 = scmp.lt.s32.totalorder %s19, 0
        %s153 = scalar_select %p152, %s19, 0
        %s154 = scalar_lea.vmem %s2, %s153
      $region20: #{ae_forward.10} parent=11 // pred_fallthru
        _
    $region12: #{ae_forward.10} parent=5 // pred_fallthru
      _
    %p155 = scmp.lt.s32.totalorder %s9, 9
    // Predicated region
    $region21: #{ae_forward.10} parent=5 // pred_check
      %p156 = pneg %p155
    $region22: #{ae_forward.10} parent=5 // pred_check_branch
      %158 = sbr.rel (%p156) target = $region24
    $region23: #{ae_forward.10} parent=5 // pred_region
      // Predicated region
      $region25: #{ae_forward.10} parent=23 // pred_check
        %p159 = pneg %p41
      $region26: #{ae_forward.10} parent=23 // pred_check_branch
        %161 = sbr.rel (%p159) target = $region28
      $region27: #{ae_forward.10} parent=23 // pred_region
        %s162 = smul.u32 64, %s16
        %p163 = scmp.lt.s32.totalorder %s162, 575
        %s164 = scalar_select %p163, %s162, 575
        %s165 = smul.addr %s164, 4
        %s166 = scalar_lea.vmem %s0, %s165
        %s167 = smul.u32 64, %s16
      $region28: #{ae_forward.10} parent=23 // pred_fallthru
        _
    $region24: #{ae_forward.10} parent=5 // pred_fallthru
      _
    %p168 = scmp.le.s32.totalorder 1, %s9
    %p169 = scmp.lt.s32.totalorder %s9, 10
    %p170 = pnand %p168, %p169
    %p171 = pneg %p170
    // Predicated region
    $region29: #{ae_forward.10} parent=5 // pred_check
      _
    $region30: #{ae_forward.10} parent=5 // pred_check_branch
      %173 = sbr.rel (%p170) target = $region32
    $region31: #{ae_forward.10} parent=5 // pred_region
      %s174 = ssub.s32 %s9, 1
      %s175 = smul.u32 64, %s18
      %p176 = scmp.lt.s32.totalorder %s175, 575
      %s177 = scalar_select %p176, %s175, 575
      %s178 = smul.addr %s177, 4
      %s179 = scalar_lea.vmem %s0, %s178
      %p180 = pneg %p47
      %p181 = pneg %p44
      %p182 = scmp.lt.s32.totalorder %s19, 0
      %s183 = scalar_select %p182, %s19, 0
      %s184 = smul.addr %s183, 4
      %s185 = scalar_lea.vmem %s1, %s184
      %p186 = pneg %p73
      %p187 = pneg %p70
      %p188 = scmp.lt.s32.totalorder %s19, 0
      %s189 = scalar_select %p188, %s19, 0
      %s190 = scalar_lea.vmem %s2, %s189
      %p191 = pneg %p99
      %p192 = pneg %p96
      %p193 = pneg %p127
      %p194 = pneg %p124
      %s195 = smul.u32 64, %s18
      %p196 = scmp.lt.s32.totalorder %s195, 575
      %s197 = scalar_select %p196, %s195, 575
      %p198 = scmp.lt.s32.totalorder %s19, 0
      %s199 = scalar_select %p198, %s19, 0
      %s200 = sadd.s32 %s199, %s197
      %s201 = smul.addr %s200, 8
      %s202 = scalar_lea.vmem %s3, %s201
      %s203 = smul.u32 64, %s18
      %p204 = scmp.lt.s32.totalorder %s203, 575
      %s205 = scalar_select %p204, %s203, 575
      %s206 = smul.addr %s205, 4
      %s207 = scalar_lea.vmem %s0, %s206
      %s208 = smul.u32 64, %s18
      %p209 = scmp.lt.s32.totalorder %s19, 0
      %s210 = scalar_select %p209, %s19, 0
      %s211 = smul.addr %s210, 4
      %s212 = scalar_lea.vmem %s1, %s211
      %p213 = scmp.lt.s32.totalorder %s19, 0
      %s214 = scalar_select %p213, %s19, 0
      %s215 = scalar_lea.vmem %s2, %s214
      %s216 = smul.u32 64, %s18
      %p217 = scmp.lt.s32.totalorder %s216, 575
      %s218 = scalar_select %p217, %s216, 575
      %p219 = scmp.lt.s32.totalorder %s19, 0
      %s220 = scalar_select %p219, %s19, 0
      %s221 = sadd.s32 %s220, %s218
      %s222 = smul.addr %s221, 8
      %s223 = scalar_lea.vmem %s3, %s222
      %s224 = smul.u32 64, %s18
      %v226 = vld [vmem:[%s207] sm:$0xf]
      %v227 = vld [vmem:[%s207 + $0x4] sm:$0xf]
      %v228 = vld [vmem:[%s207 + $0x8] sm:$0xf]
      %v229 = vld [vmem:[%s207 + $0xc] sm:$0xf]
      %v230 = vld [vmem:[%s207 + $0x10] sm:$0xf]
      %v231 = vld [vmem:[%s207 + $0x14] sm:$0xf]
      %v232 = vld [vmem:[%s207 + $0x18] sm:$0xf]
      %v233 = vld [vmem:[%s207 + $0x1c] sm:$0xf]
      %v234 = vld [vmem:[%s207 + $0x20] sm:$0xf]
      %v235 = vld [vmem:[%s207 + $0x24] sm:$0xf]
      %v236 = vld [vmem:[%s207 + $0x28] sm:$0xf]
      %v237 = vld [vmem:[%s207 + $0x2c] sm:$0xf]
      %v238 = vld [vmem:[%s207 + $0x30] sm:$0xf]
      %v239 = vld [vmem:[%s207 + $0x34] sm:$0xf]
      %v240 = vld [vmem:[%s207 + $0x38] sm:$0xf]
      %v241 = vld [vmem:[%s207 + $0x3c] sm:$0xf]
      %v242 = vld [vmem:[%s207 + $0x40] sm:$0xf]
      %v243 = vld [vmem:[%s207 + $0x44] sm:$0xf]
      %v244 = vld [vmem:[%s207 + $0x48] sm:$0xf]
      %v245 = vld [vmem:[%s207 + $0x4c] sm:$0xf]
      %v246 = vld [vmem:[%s207 + $0x50] sm:$0xf]
      %v247 = vld [vmem:[%s207 + $0x54] sm:$0xf]
      %v248 = vld [vmem:[%s207 + $0x58] sm:$0xf]
      %v249 = vld [vmem:[%s207 + $0x5c] sm:$0xf]
      %v250 = vld [vmem:[%s207 + $0x60] sm:$0xf]
      %v251 = vld [vmem:[%s207 + $0x64] sm:$0xf]
      %v252 = vld [vmem:[%s207 + $0x68] sm:$0xf]
      %v253 = vld [vmem:[%s207 + $0x6c] sm:$0xf]
      %v254 = vld [vmem:[%s207 + $0x70] sm:$0xf]
      %v255 = vld [vmem:[%s207 + $0x74] sm:$0xf]
      %v256 = vld [vmem:[%s207 + $0x78] sm:$0xf]
      %v257 = vld [vmem:[%s207 + $0x7c] sm:$0xf]
      %v258 = vld [vmem:[%s207 + $0x80] sm:$0xf]
      %v259 = vld [vmem:[%s207 + $0x84] sm:$0xf]
      %v260 = vld [vmem:[%s207 + $0x88] sm:$0xf]
      %v261 = vld [vmem:[%s207 + $0x8c] sm:$0xf]
      %v262 = vld [vmem:[%s207 + $0x90] sm:$0xf]
      %v263 = vld [vmem:[%s207 + $0x94] sm:$0xf]
      %v264 = vld [vmem:[%s207 + $0x98] sm:$0xf]
      %v265 = vld [vmem:[%s207 + $0x9c] sm:$0xf]
      %v266 = vld [vmem:[%s207 + $0xa0] sm:$0xf]
      %v267 = vld [vmem:[%s207 + $0xa4] sm:$0xf]
      %v268 = vld [vmem:[%s207 + $0xa8] sm:$0xf]
      %v269 = vld [vmem:[%s207 + $0xac] sm:$0xf]
      %v270 = vld [vmem:[%s207 + $0xb0] sm:$0xf]
      %v271 = vld [vmem:[%s207 + $0xb4] sm:$0xf]
      %v272 = vld [vmem:[%s207 + $0xb8] sm:$0xf]
      %v273 = vld [vmem:[%s207 + $0xbc] sm:$0xf]
      %v274 = vld [vmem:[%s207 + $0xc0] sm:$0xf]
      %v275 = vld [vmem:[%s207 + $0xc4] sm:$0xf]
      %v276 = vld [vmem:[%s207 + $0xc8] sm:$0xf]
      %v277 = vld [vmem:[%s207 + $0xcc] sm:$0xf]
      %v278 = vld [vmem:[%s207 + $0xd0] sm:$0xf]
      %v279 = vld [vmem:[%s207 + $0xd4] sm:$0xf]
      %v280 = vld [vmem:[%s207 + $0xd8] sm:$0xf]
      %v281 = vld [vmem:[%s207 + $0xdc] sm:$0xf]
      %v282 = vld [vmem:[%s207 + $0xe0] sm:$0xf]
      %v283 = vld [vmem:[%s207 + $0xe4] sm:$0xf]
      %v284 = vld [vmem:[%s207 + $0xe8] sm:$0xf]
      %v285 = vld [vmem:[%s207 + $0xec] sm:$0xf]
      %v286 = vld [vmem:[%s207 + $0xf0] sm:$0xf]
      %v287 = vld [vmem:[%s207 + $0xf4] sm:$0xf]
      %v288 = vld [vmem:[%s207 + $0xf8] sm:$0xf]
      %v289 = vld [vmem:[%s207 + $0xfc] sm:$0xf]
      %v290 = vld [vmem:[%s212] sm:$0xf]
      %v291 = vld [vmem:[%s212 + $0x4] sm:$0xf]
      %v292 = vld [vmem:[%s212 + $0x8] sm:$0xf]
      %v293 = vld [vmem:[%s212 + $0xc] sm:$0x3]
      %v294 = vld [vmem:[%s215] sm:$0x1]
      %v296 = vlaneseq
      %v297 = vshrl.u32 %v296, 7
      %v298 = vsub.s32 0, %v297
      %v299 = vrot.slane %v294, %v298
      %v365 = vunpack.c.l.b16 %v226
      %v366 = vunpack.c.l.b16 %v227
      %v367 = vunpack.c.l.b16 %v228
      %v368 = vunpack.c.l.b16 %v229
      %v369 = vunpack.c.l.b16 %v230
      %v370 = vunpack.c.l.b16 %v231
      %v371 = vunpack.c.l.b16 %v232
      %v372 = vunpack.c.l.b16 %v233
      %v373 = vunpack.c.l.b16 %v234
      %v374 = vunpack.c.l.b16 %v235
      %v375 = vunpack.c.l.b16 %v236
      %v376 = vunpack.c.l.b16 %v237
      %v377 = vunpack.c.l.b16 %v238
      %v378 = vunpack.c.l.b16 %v239
      %v379 = vunpack.c.l.b16 %v240
      %v380 = vunpack.c.l.b16 %v241
      %v381 = vunpack.c.l.b16 %v242
      %v382 = vunpack.c.l.b16 %v243
      %v383 = vunpack.c.l.b16 %v244
      %v384 = vunpack.c.l.b16 %v245
      %v385 = vunpack.c.l.b16 %v246
      %v386 = vunpack.c.l.b16 %v247
      %v387 = vunpack.c.l.b16 %v248
      %v388 = vunpack.c.l.b16 %v249
      %v389 = vunpack.c.l.b16 %v250
      %v390 = vunpack.c.l.b16 %v251
      %v391 = vunpack.c.l.b16 %v252
      %v392 = vunpack.c.l.b16 %v253
      %v393 = vunpack.c.l.b16 %v254
      %v394 = vunpack.c.l.b16 %v255
      %v395 = vunpack.c.l.b16 %v256
      %v396 = vunpack.c.l.b16 %v257
      %v397 = vunpack.c.l.b16 %v258
      %v398 = vunpack.c.l.b16 %v259
      %v399 = vunpack.c.l.b16 %v260
      %v400 = vunpack.c.l.b16 %v261
      %v401 = vunpack.c.l.b16 %v262
      %v402 = vunpack.c.l.b16 %v263
      %v403 = vunpack.c.l.b16 %v264
      %v404 = vunpack.c.l.b16 %v265
      %v405 = vunpack.c.l.b16 %v266
      %v406 = vunpack.c.l.b16 %v267
      %v407 = vunpack.c.l.b16 %v268
      %v408 = vunpack.c.l.b16 %v269
      %v409 = vunpack.c.l.b16 %v270
      %v410 = vunpack.c.l.b16 %v271
      %v411 = vunpack.c.l.b16 %v272
      %v412 = vunpack.c.l.b16 %v273
      %v413 = vunpack.c.l.b16 %v274
      %v414 = vunpack.c.l.b16 %v275
      %v415 = vunpack.c.l.b16 %v276
      %v416 = vunpack.c.l.b16 %v277
      %v417 = vunpack.c.l.b16 %v278
      %v418 = vunpack.c.l.b16 %v279
      %v419 = vunpack.c.l.b16 %v280
      %v420 = vunpack.c.l.b16 %v281
      %v421 = vunpack.c.l.b16 %v282
      %v422 = vunpack.c.l.b16 %v283
      %v423 = vunpack.c.l.b16 %v284
      %v424 = vunpack.c.l.b16 %v285
      %v425 = vunpack.c.l.b16 %v286
      %v426 = vunpack.c.l.b16 %v287
      %v427 = vunpack.c.l.b16 %v288
      %v428 = vunpack.c.l.b16 %v289
      %v429 = vpack.c.b16 %v366, %v365
      %v430 = vpack.c.b16 %v368, %v367
      %v431 = vpack.c.b16 %v370, %v369
      %v432 = vpack.c.b16 %v372, %v371
      %v433 = vpack.c.b16 %v374, %v373
      %v434 = vpack.c.b16 %v376, %v375
      %v435 = vpack.c.b16 %v378, %v377
      %v436 = vpack.c.b16 %v380, %v379
      %v437 = vpack.c.b16 %v382, %v381
      %v438 = vpack.c.b16 %v384, %v383
      %v439 = vpack.c.b16 %v386, %v385
      %v440 = vpack.c.b16 %v388, %v387
      %v441 = vpack.c.b16 %v390, %v389
      %v442 = vpack.c.b16 %v392, %v391
      %v443 = vpack.c.b16 %v394, %v393
      %v444 = vpack.c.b16 %v396, %v395
      %v445 = vpack.c.b16 %v398, %v397
      %v446 = vpack.c.b16 %v400, %v399
      %v447 = vpack.c.b16 %v402, %v401
      %v448 = vpack.c.b16 %v404, %v403
      %v449 = vpack.c.b16 %v406, %v405
      %v450 = vpack.c.b16 %v408, %v407
      %v451 = vpack.c.b16 %v410, %v409
      %v452 = vpack.c.b16 %v412, %v411
      %v453 = vpack.c.b16 %v414, %v413
      %v454 = vpack.c.b16 %v416, %v415
      %v455 = vpack.c.b16 %v418, %v417
      %v456 = vpack.c.b16 %v420, %v419
      %v457 = vpack.c.b16 %v422, %v421
      %v458 = vpack.c.b16 %v424, %v423
      %v459 = vpack.c.b16 %v426, %v425
      %v460 = vpack.c.b16 %v428, %v427
      %v465 = vunpack.c.l.b16 %v290
      %v466 = vunpack.c.l.b16 %v291
      %v467 = vunpack.c.l.b16 %v292
      %v468 = vunpack.c.l.b16 %v293
      %v469 = vpack.c.b16 %v466, %v465
      %v470 = vpack.c.b16 %v468, %v467
      %vm472 = vcmask 220160
      %v474 = vsel %vm472, %v429, 0
      %v477 = vsel %vm472, %v430, 0
      %v480 = vsel %vm472, %v431, 0
      %v483 = vsel %vm472, %v432, 0
      %v486 = vsel %vm472, %v433, 0
      %v489 = vsel %vm472, %v434, 0
      %v492 = vsel %vm472, %v435, 0
      %v495 = vsel %vm472, %v436, 0
      %v498 = vsel %vm472, %v437, 0
      %v501 = vsel %vm472, %v438, 0
      %v504 = vsel %vm472, %v439, 0
      %v507 = vsel %vm472, %v440, 0
      %v510 = vsel %vm472, %v441, 0
      %v513 = vsel %vm472, %v442, 0
      %v516 = vsel %vm472, %v443, 0
      %v519 = vsel %vm472, %v444, 0
      %v522 = vsel %vm472, %v445, 0
      %v525 = vsel %vm472, %v446, 0
      %v528 = vsel %vm472, %v447, 0
      %v531 = vsel %vm472, %v448, 0
      %v534 = vsel %vm472, %v449, 0
      %v537 = vsel %vm472, %v450, 0
      %v540 = vsel %vm472, %v451, 0
      %v543 = vsel %vm472, %v452, 0
      %v546 = vsel %vm472, %v453, 0
      %v549 = vsel %vm472, %v454, 0
      %v552 = vsel %vm472, %v455, 0
      %v555 = vsel %vm472, %v456, 0
      %v558 = vsel %vm472, %v457, 0
      %v561 = vsel %vm472, %v458, 0
      %v564 = vsel %vm472, %v459, 0
      %v567 = vsel %vm472, %v460, 0
      %vm569 = vcmask 1044480
      %vm570 = vcmask 1045504
      %v571 = vsel %vm569, 4294967295, 65535
      %v572 = vsel %vm570, %v571, 0
      %v574 = vand.u32 %v470, %v572
      %576 = vmatprep.subr.bf16.mxu0 0
      %577 = vmatpush1.bf16.msra.mxu0 %v469
      %578 = vmatprep.subr.bf16.mxu0 0
      %579 = vmatpush1.bf16.msra.mxu0 %v574
      %580 = vmatprep.subr.bf16.mxu0 0
      %581 = vmatpush1.bf16.msra.mxu0 0
      %582 = vmatprep.subr.bf16.mxu0 0
      %583 = vmatpush1.bf16.msra.mxu0 0
      %584 = vmatprep.subr.bf16.mxu0 0
      %585 = vmatpush1.bf16.msra.mxu0 0
      %586 = vmatprep.subr.bf16.mxu0 0
      %587 = vmatpush1.bf16.msra.mxu0 0
      %588 = vmatprep.subr.bf16.mxu0 0
      %589 = vmatpush1.bf16.msra.mxu0 0
      %590 = vmatprep.subr.bf16.mxu0 0
      %591 = vmatpush1.bf16.msra.mxu0 0
      %592 = vmatprep.subr.bf16.mxu0 0
      %593 = vmatpush1.bf16.msra.mxu0 0
      %594 = vmatprep.subr.bf16.mxu0 0
      %595 = vmatpush1.bf16.msra.mxu0 0
      %596 = vmatprep.subr.bf16.mxu0 0
      %597 = vmatpush1.bf16.msra.mxu0 0
      %598 = vmatprep.subr.bf16.mxu0 0
      %599 = vmatpush1.bf16.msra.mxu0 0
      %600 = vmatprep.subr.bf16.mxu0 0
      %601 = vmatpush1.bf16.msra.mxu0 0
      %602 = vmatprep.subr.bf16.mxu0 0
      %603 = vmatpush1.bf16.msra.mxu0 0
      %604 = vmatprep.subr.bf16.mxu0 0
      %605 = vmatpush1.bf16.msra.mxu0 0
      %606 = vmatprep.subr.bf16.mxu0 0
      %607 = vmatpush1.bf16.msra.mxu0 0
      %608 = vmatprep.mubr.bf16.mxu0 0
      %609 = vmatmul.mubr.bf16.gmra.mrb[0].mxu0 %v474
      %v610 = vpop.f32.mrb[0].mxu0
      %v611 = vadd.f32 %v299, %v610
      %v612 = vpop.f32.mrb[0].mxu0
      %v613 = vpop.f32.mrb[0].mxu0
      %v614 = vadd.f32 %v299, %v613
      %v615 = vpop.f32.mrb[0].mxu0
      %616 = vmatprep.mubr.bf16.mxu0 0
      %617 = vmatmul.mubr.bf16.gmra.mrb[0].mxu0 %v477
      %v618 = vpop.f32.mrb[0].mxu0
      %v619 = vadd.f32 %v299, %v618
      %v620 = vpop.f32.mrb[0].mxu0
      %v621 = vpop.f32.mrb[0].mxu0
      %v622 = vadd.f32 %v299, %v621
      %v623 = vpop.f32.mrb[0].mxu0
      %624 = vmatprep.mubr.bf16.mxu0 0
      %625 = vmatmul.mubr.bf16.gmra.mrb[0].mxu0 %v480
      %v626 = vpop.f32.mrb[0].mxu0
      %v627 = vadd.f32 %v299, %v626
      %v628 = vpop.f32.mrb[0].mxu0
      %v629 = vpop.f32.mrb[0].mxu0
      %v630 = vadd.f32 %v299, %v629
      %v631 = vpop.f32.mrb[0].mxu0
      %632 = vmatprep.mubr.bf16.mxu0 0
      %633 = vmatmul.mubr.bf16.gmra.mrb[0].mxu0 %v483
      %v634 = vpop.f32.mrb[0].mxu0
      %v635 = vadd.f32 %v299, %v634
      %v636 = vpop.f32.mrb[0].mxu0
      %v637 = vpop.f32.mrb[0].mxu0
      %v638 = vadd.f32 %v299, %v637
      %v639 = vpop.f32.mrb[0].mxu0
      %640 = vmatprep.mubr.bf16.mxu0 0
      %641 = vmatmul.mubr.bf16.gmra.mrb[0].mxu0 %v486
      %v642 = vpop.f32.mrb[0].mxu0
      %v643 = vadd.f32 %v299, %v642
      %v644 = vpop.f32.mrb[0].mxu0
      %v645 = vpop.f32.mrb[0].mxu0
      %v646 = vadd.f32 %v299, %v645
      %v647 = vpop.f32.mrb[0].mxu0
      %648 = vmatprep.mubr.bf16.mxu0 0
      %649 = vmatmul.mubr.bf16.gmra.mrb[0].mxu0 %v489
      %v650 = vpop.f32.mrb[0].mxu0
      %v651 = vadd.f32 %v299, %v650
      %v652 = vpop.f32.mrb[0].mxu0
      %v653 = vpop.f32.mrb[0].mxu0
      %v654 = vadd.f32 %v299, %v653
      %v655 = vpop.f32.mrb[0].mxu0
      %656 = vmatprep.mubr.bf16.mxu0 0
      %657 = vmatmul.mubr.bf16.gmra.mrb[0].mxu0 %v492
      %v658 = vpop.f32.mrb[0].mxu0
      %v659 = vadd.f32 %v299, %v658
      %v660 = vpop.f32.mrb[0].mxu0
      %v661 = vpop.f32.mrb[0].mxu0
      %v662 = vadd.f32 %v299, %v661
      %v663 = vpop.f32.mrb[0].mxu0
      %664 = vmatprep.mubr.bf16.mxu0 0
      %665 = vmatmul.mubr.bf16.gmra.mrb[0].mxu0 %v495
      %v666 = vpop.f32.mrb[0].mxu0
      %v667 = vadd.f32 %v299, %v666
      %v668 = vpop.f32.mrb[0].mxu0
      %v669 = vpop.f32.mrb[0].mxu0
      %v670 = vadd.f32 %v299, %v669
      %v671 = vpop.f32.mrb[0].mxu0
      %672 = vmatprep.mubr.bf16.mxu0 0
      %673 = vmatmul.mubr.bf16.gmra.mrb[0].mxu0 %v498
      %v674 = vpop.f32.mrb[0].mxu0
      %v675 = vadd.f32 %v299, %v674
      %v676 = vpop.f32.mrb[0].mxu0
      %v677 = vpop.f32.mrb[0].mxu0
      %v678 = vadd.f32 %v299, %v677
      %v679 = vpop.f32.mrb[0].mxu0
      %680 = vmatprep.mubr.bf16.mxu0 0
      %681 = vmatmul.mubr.bf16.gmra.mrb[0].mxu0 %v501
      %v682 = vpop.f32.mrb[0].mxu0
      %v683 = vadd.f32 %v299, %v682
      %v684 = vpop.f32.mrb[0].mxu0
      %v685 = vpop.f32.mrb[0].mxu0
      %v686 = vadd.f32 %v299, %v685
      %v687 = vpop.f32.mrb[0].mxu0
      %688 = vmatprep.mubr.bf16.mxu0 0
      %689 = vmatmul.mubr.bf16.gmra.mrb[0].mxu0 %v504
      %v690 = vpop.f32.mrb[0].mxu0
      %v691 = vadd.f32 %v299, %v690
      %v692 = vpop.f32.mrb[0].mxu0
      %v693 = vpop.f32.mrb[0].mxu0
      %v694 = vadd.f32 %v299, %v693
      %v695 = vpop.f32.mrb[0].mxu0
      %696 = vmatprep.mubr.bf16.mxu0 0
      %697 = vmatmul.mubr.bf16.gmra.mrb[0].mxu0 %v507
      %v698 = vpop.f32.mrb[0].mxu0
      %v699 = vadd.f32 %v299, %v698
      %v700 = vpop.f32.mrb[0].mxu0
      %v701 = vpop.f32.mrb[0].mxu0
      %v702 = vadd.f32 %v299, %v701
      %v703 = vpop.f32.mrb[0].mxu0
      %704 = vmatprep.mubr.bf16.mxu0 0
      %705 = vmatmul.mubr.bf16.gmra.mrb[0].mxu0 %v510
      %v706 = vpop.f32.mrb[0].mxu0
      %v707 = vadd.f32 %v299, %v706
      %v708 = vpop.f32.mrb[0].mxu0
      %v709 = vpop.f32.mrb[0].mxu0
      %v710 = vadd.f32 %v299, %v709
      %v711 = vpop.f32.mrb[0].mxu0
      %712 = vmatprep.mubr.bf16.mxu0 0
      %713 = vmatmul.mubr.bf16.gmra.mrb[0].mxu0 %v513
      %v714 = vpop.f32.mrb[0].mxu0
      %v715 = vadd.f32 %v299, %v714
      %v716 = vpop.f32.mrb[0].mxu0
      %v717 = vpop.f32.mrb[0].mxu0
      %v718 = vadd.f32 %v299, %v717
      %v719 = vpop.f32.mrb[0].mxu0
      %720 = vmatprep.mubr.bf16.mxu0 0
      %721 = vmatmul.mubr.bf16.gmra.mrb[0].mxu0 %v516
      %v722 = vpop.f32.mrb[0].mxu0
      %v723 = vadd.f32 %v299, %v722
      %v724 = vpop.f32.mrb[0].mxu0
      %v725 = vpop.f32.mrb[0].mxu0
      %v726 = vadd.f32 %v299, %v725
      %v727 = vpop.f32.mrb[0].mxu0
      %728 = vmatprep.mubr.bf16.mxu0 0
      %729 = vmatmul.mubr.bf16.gmra.mrb[0].mxu0 %v519
      %v730 = vpop.f32.mrb[0].mxu0
      %v731 = vadd.f32 %v299, %v730
      %v732 = vpop.f32.mrb[0].mxu0
      %v733 = vpop.f32.mrb[0].mxu0
      %v734 = vadd.f32 %v299, %v733
      %v735 = vpop.f32.mrb[0].mxu0
      %736 = vmatprep.mubr.bf16.mxu0 0
      %737 = vmatmul.mubr.bf16.gmra.mrb[0].mxu0 %v522
      %v738 = vpop.f32.mrb[0].mxu0
      %v739 = vadd.f32 %v299, %v738
      %v740 = vpop.f32.mrb[0].mxu0
      %v741 = vpop.f32.mrb[0].mxu0
      %v742 = vadd.f32 %v299, %v741
      %v743 = vpop.f32.mrb[0].mxu0
      %744 = vmatprep.mubr.bf16.mxu0 0
      %745 = vmatmul.mubr.bf16.gmra.mrb[0].mxu0 %v525
      %v746 = vpop.f32.mrb[0].mxu0
      %v747 = vadd.f32 %v299, %v746
      %v748 = vpop.f32.mrb[0].mxu0
      %v749 = vpop.f32.mrb[0].mxu0
      %v750 = vadd.f32 %v299, %v749
      %v751 = vpop.f32.mrb[0].mxu0
      %752 = vmatprep.mubr.bf16.mxu0 0
      %753 = vmatmul.mubr.bf16.gmra.mrb[0].mxu0 %v528
      %v754 = vpop.f32.mrb[0].mxu0
      %v755 = vadd.f32 %v299, %v754
      %v756 = vpop.f32.mrb[0].mxu0
      %v757 = vpop.f32.mrb[0].mxu0
      %v758 = vadd.f32 %v299, %v757
      %v759 = vpop.f32.mrb[0].mxu0
      %760 = vmatprep.mubr.bf16.mxu0 0
      %761 = vmatmul.mubr.bf16.gmra.mrb[0].mxu0 %v531
      %v762 = vpop.f32.mrb[0].mxu0
      %v763 = vadd.f32 %v299, %v762
      %v764 = vpop.f32.mrb[0].mxu0
      %v765 = vpop.f32.mrb[0].mxu0
      %v766 = vadd.f32 %v299, %v765
      %v767 = vpop.f32.mrb[0].mxu0
      %768 = vmatprep.mubr.bf16.mxu0 0
      %769 = vmatmul.mubr.bf16.gmra.mrb[0].mxu0 %v534
      %v770 = vpop.f32.mrb[0].mxu0
      %v771 = vadd.f32 %v299, %v770
      %v772 = vpop.f32.mrb[0].mxu0
      %v773 = vpop.f32.mrb[0].mxu0
      %v774 = vadd.f32 %v299, %v773
      %v775 = vpop.f32.mrb[0].mxu0
      %776 = vmatprep.mubr.bf16.mxu0 0
      %777 = vmatmul.mubr.bf16.gmra.mrb[0].mxu0 %v537
      %v778 = vpop.f32.mrb[0].mxu0
      %v779 = vadd.f32 %v299, %v778
      %v780 = vpop.f32.mrb[0].mxu0
      %v781 = vpop.f32.mrb[0].mxu0
      %v782 = vadd.f32 %v299, %v781
      %v783 = vpop.f32.mrb[0].mxu0
      %784 = vmatprep.mubr.bf16.mxu0 0
      %785 = vmatmul.mubr.bf16.gmra.mrb[0].mxu0 %v540
      %v786 = vpop.f32.mrb[0].mxu0
      %v787 = vadd.f32 %v299, %v786
      %v788 = vpop.f32.mrb[0].mxu0
      %v789 = vpop.f32.mrb[0].mxu0
      %v790 = vadd.f32 %v299, %v789
      %v791 = vpop.f32.mrb[0].mxu0
      %792 = vmatprep.mubr.bf16.mxu0 0
      %793 = vmatmul.mubr.bf16.gmra.mrb[0].mxu0 %v543
      %v794 = vpop.f32.mrb[0].mxu0
      %v795 = vadd.f32 %v299, %v794
      %v796 = vpop.f32.mrb[0].mxu0
      %v797 = vpop.f32.mrb[0].mxu0
      %v798 = vadd.f32 %v299, %v797
      %v799 = vpop.f32.mrb[0].mxu0
      %800 = vmatprep.mubr.bf16.mxu0 0
      %801 = vmatmul.mubr.bf16.gmra.mrb[0].mxu0 %v546
      %v802 = vpop.f32.mrb[0].mxu0
      %v803 = vadd.f32 %v299, %v802
      %v804 = vpop.f32.mrb[0].mxu0
      %v805 = vpop.f32.mrb[0].mxu0
      %v806 = vadd.f32 %v299, %v805
      %v807 = vpop.f32.mrb[0].mxu0
      %808 = vmatprep.mubr.bf16.mxu0 0
      %809 = vmatmul.mubr.bf16.gmra.mrb[0].mxu0 %v549
      %v810 = vpop.f32.mrb[0].mxu0
      %v811 = vadd.f32 %v299, %v810
      %v812 = vpop.f32.mrb[0].mxu0
      %v813 = vpop.f32.mrb[0].mxu0
      %v814 = vadd.f32 %v299, %v813
      %v815 = vpop.f32.mrb[0].mxu0
      %816 = vmatprep.mubr.bf16.mxu0 0
      %817 = vmatmul.mubr.bf16.gmra.mrb[0].mxu0 %v552
      %v818 = vpop.f32.mrb[0].mxu0
      %v819 = vadd.f32 %v299, %v818
      %v820 = vpop.f32.mrb[0].mxu0
      %v821 = vpop.f32.mrb[0].mxu0
      %v822 = vadd.f32 %v299, %v821
      %v823 = vpop.f32.mrb[0].mxu0
      %824 = vmatprep.mubr.bf16.mxu0 0
      %825 = vmatmul.mubr.bf16.gmra.mrb[0].mxu0 %v555
      %v826 = vpop.f32.mrb[0].mxu0
      %v827 = vadd.f32 %v299, %v826
      %v828 = vpop.f32.mrb[0].mxu0
      %v829 = vpop.f32.mrb[0].mxu0
      %v830 = vadd.f32 %v299, %v829
      %v831 = vpop.f32.mrb[0].mxu0
      %832 = vmatprep.mubr.bf16.mxu0 0
      %833 = vmatmul.mubr.bf16.gmra.mrb[0].mxu0 %v558
      %v834 = vpop.f32.mrb[0].mxu0
      %v835 = vadd.f32 %v299, %v834
      %v836 = vpop.f32.mrb[0].mxu0
      %v837 = vpop.f32.mrb[0].mxu0
      %v838 = vadd.f32 %v299, %v837
      %v839 = vpop.f32.mrb[0].mxu0
      %840 = vmatprep.mubr.bf16.mxu0 0
      %841 = vmatmul.mubr.bf16.gmra.mrb[0].mxu0 %v561
      %v842 = vpop.f32.mrb[0].mxu0
      %v843 = vadd.f32 %v299, %v842
      %v844 = vpop.f32.mrb[0].mxu0
      %v845 = vpop.f32.mrb[0].mxu0
      %v846 = vadd.f32 %v299, %v845
      %v847 = vpop.f32.mrb[0].mxu0
      %848 = vmatprep.mubr.bf16.mxu0 0
      %849 = vmatmul.mubr.bf16.gmra.mrb[0].mxu0 %v564
      %v850 = vpop.f32.mrb[0].mxu0
      %v851 = vadd.f32 %v299, %v850
      %v852 = vpop.f32.mrb[0].mxu0
      %v853 = vpop.f32.mrb[0].mxu0
      %v854 = vadd.f32 %v299, %v853
      %v855 = vpop.f32.mrb[0].mxu0
      %856 = vmatprep.mubr.bf16.mxu0 0
      %857 = vmatmul.mubr.bf16.gmra.mrb[0].mxu0 %v567
      %v858 = vpop.f32.mrb[0].mxu0
      %v859 = vadd.f32 %v299, %v858
      %v860 = vpop.f32.mrb[0].mxu0
      %v861 = vpop.f32.mrb[0].mxu0
      %v862 = vadd.f32 %v299, %v861
      %v863 = vpop.f32.mrb[0].mxu0
      %864 = vdwg.mxu0
      %v865 = vmax.f32 %v611, 0.0
      %v866 = vmax.f32 %v614, 0.0
      %v867 = vmax.f32 %v619, 0.0
      %v868 = vmax.f32 %v622, 0.0
      %v869 = vmax.f32 %v627, 0.0
      %v870 = vmax.f32 %v630, 0.0
      %v871 = vmax.f32 %v635, 0.0
      %v872 = vmax.f32 %v638, 0.0
      %v873 = vmax.f32 %v643, 0.0
      %v874 = vmax.f32 %v646, 0.0
      %v875 = vmax.f32 %v651, 0.0
      %v876 = vmax.f32 %v654, 0.0
      %v877 = vmax.f32 %v659, 0.0
      %v878 = vmax.f32 %v662, 0.0
      %v879 = vmax.f32 %v667, 0.0
      %v880 = vmax.f32 %v670, 0.0
      %v881 = vmax.f32 %v675, 0.0
      %v882 = vmax.f32 %v678, 0.0
      %v883 = vmax.f32 %v683, 0.0
      %v884 = vmax.f32 %v686, 0.0
      %v885 = vmax.f32 %v691, 0.0
      %v886 = vmax.f32 %v694, 0.0
      %v887 = vmax.f32 %v699, 0.0
      %v888 = vmax.f32 %v702, 0.0
      %v889 = vmax.f32 %v707, 0.0
      %v890 = vmax.f32 %v710, 0.0
      %v891 = vmax.f32 %v715, 0.0
      %v892 = vmax.f32 %v718, 0.0
      %v893 = vmax.f32 %v723, 0.0
      %v894 = vmax.f32 %v726, 0.0
      %v895 = vmax.f32 %v731, 0.0
      %v896 = vmax.f32 %v734, 0.0
      %v897 = vmax.f32 %v739, 0.0
      %v898 = vmax.f32 %v742, 0.0
      %v899 = vmax.f32 %v747, 0.0
      %v900 = vmax.f32 %v750, 0.0
      %v901 = vmax.f32 %v755, 0.0
      %v902 = vmax.f32 %v758, 0.0
      %v903 = vmax.f32 %v763, 0.0
      %v904 = vmax.f32 %v766, 0.0
      %v905 = vmax.f32 %v771, 0.0
      %v906 = vmax.f32 %v774, 0.0
      %v907 = vmax.f32 %v779, 0.0
      %v908 = vmax.f32 %v782, 0.0
      %v909 = vmax.f32 %v787, 0.0
      %v910 = vmax.f32 %v790, 0.0
      %v911 = vmax.f32 %v795, 0.0
      %v912 = vmax.f32 %v798, 0.0
      %v913 = vmax.f32 %v803, 0.0
      %v914 = vmax.f32 %v806, 0.0
      %v915 = vmax.f32 %v811, 0.0
      %v916 = vmax.f32 %v814, 0.0
      %v917 = vmax.f32 %v819, 0.0
      %v918 = vmax.f32 %v822, 0.0
      %v919 = vmax.f32 %v827, 0.0
      %v920 = vmax.f32 %v830, 0.0
      %v921 = vmax.f32 %v835, 0.0
      %v922 = vmax.f32 %v838, 0.0
      %v923 = vmax.f32 %v843, 0.0
      %v924 = vmax.f32 %v846, 0.0
      %v925 = vmax.f32 %v851, 0.0
      %v926 = vmax.f32 %v854, 0.0
      %v927 = vmax.f32 %v859, 0.0
      %v928 = vmax.f32 %v862, 0.0
      %vm929 = vcmask 130048
      %930 = vst.msk [vmem:[%s223] sm:$0xff] %vm929, %v865
      %931 = vst.msk [vmem:[%s223 + $0x8] sm:$0xff] %vm929, %v866
      %932 = vst.msk [vmem:[%s223 + $0x10] sm:$0xff] %vm929, %v867
      %933 = vst.msk [vmem:[%s223 + $0x18] sm:$0xff] %vm929, %v868
      %934 = vst.msk [vmem:[%s223 + $0x20] sm:$0xff] %vm929, %v869
      %935 = vst.msk [vmem:[%s223 + $0x28] sm:$0xff] %vm929, %v870
      %936 = vst.msk [vmem:[%s223 + $0x30] sm:$0xff] %vm929, %v871
      %937 = vst.msk [vmem:[%s223 + $0x38] sm:$0xff] %vm929, %v872
      %938 = vst.msk [vmem:[%s223 + $0x40] sm:$0xff] %vm929, %v873
      %939 = vst.msk [vmem:[%s223 + $0x48] sm:$0xff] %vm929, %v874
      %940 = vst.msk [vmem:[%s223 + $0x50] sm:$0xff] %vm929, %v875
      %941 = vst.msk [vmem:[%s223 + $0x58] sm:$0xff] %vm929, %v876
      %942 = vst.msk [vmem:[%s223 + $0x60] sm:$0xff] %vm929, %v877
      %943 = vst.msk [vmem:[%s223 + $0x68] sm:$0xff] %vm929, %v878
      %944 = vst.msk [vmem:[%s223 + $0x70] sm:$0xff] %vm929, %v879
      %945 = vst.msk [vmem:[%s223 + $0x78] sm:$0xff] %vm929, %v880
      %946 = vst.msk [vmem:[%s223 + $0x80] sm:$0xff] %vm929, %v881
      %947 = vst.msk [vmem:[%s223 + $0x88] sm:$0xff] %vm929, %v882
      %948 = vst.msk [vmem:[%s223 + $0x90] sm:$0xff] %vm929, %v883
      %949 = vst.msk [vmem:[%s223 + $0x98] sm:$0xff] %vm929, %v884
      %950 = vst.msk [vmem:[%s223 + $0xa0] sm:$0xff] %vm929, %v885
      %951 = vst.msk [vmem:[%s223 + $0xa8] sm:$0xff] %vm929, %v886
      %952 = vst.msk [vmem:[%s223 + $0xb0] sm:$0xff] %vm929, %v887
      %953 = vst.msk [vmem:[%s223 + $0xb8] sm:$0xff] %vm929, %v888
      %954 = vst.msk [vmem:[%s223 + $0xc0] sm:$0xff] %vm929, %v889
      %955 = vst.msk [vmem:[%s223 + $0xc8] sm:$0xff] %vm929, %v890
      %956 = vst.msk [vmem:[%s223 + $0xd0] sm:$0xff] %vm929, %v891
      %957 = vst.msk [vmem:[%s223 + $0xd8] sm:$0xff] %vm929, %v892
      %958 = vst.msk [vmem:[%s223 + $0xe0] sm:$0xff] %vm929, %v893
      %959 = vst.msk [vmem:[%s223 + $0xe8] sm:$0xff] %vm929, %v894
      %960 = vst.msk [vmem:[%s223 + $0xf0] sm:$0xff] %vm929, %v895
      %961 = vst.msk [vmem:[%s223 + $0xf8] sm:$0xff] %vm929, %v896
      %962 = vst.msk [vmem:[%s223 + $0x100] sm:$0xff] %vm929, %v897
      %963 = vst.msk [vmem:[%s223 + $0x108] sm:$0xff] %vm929, %v898
      %964 = vst.msk [vmem:[%s223 + $0x110] sm:$0xff] %vm929, %v899
      %965 = vst.msk [vmem:[%s223 + $0x118] sm:$0xff] %vm929, %v900
      %966 = vst.msk [vmem:[%s223 + $0x120] sm:$0xff] %vm929, %v901
      %967 = vst.msk [vmem:[%s223 + $0x128] sm:$0xff] %vm929, %v902
      %968 = vst.msk [vmem:[%s223 + $0x130] sm:$0xff] %vm929, %v903
      %969 = vst.msk [vmem:[%s223 + $0x138] sm:$0xff] %vm929, %v904
      %970 = vst.msk [vmem:[%s223 + $0x140] sm:$0xff] %vm929, %v905
      %971 = vst.msk [vmem:[%s223 + $0x148] sm:$0xff] %vm929, %v906
      %972 = vst.msk [vmem:[%s223 + $0x150] sm:$0xff] %vm929, %v907
      %973 = vst.msk [vmem:[%s223 + $0x158] sm:$0xff] %vm929, %v908
      %974 = vst.msk [vmem:[%s223 + $0x160] sm:$0xff] %vm929, %v909
      %975 = vst.msk [vmem:[%s223 + $0x168] sm:$0xff] %vm929, %v910
      %976 = vst.msk [vmem:[%s223 + $0x170] sm:$0xff] %vm929, %v911
      %977 = vst.msk [vmem:[%s223 + $0x178] sm:$0xff] %vm929, %v912
      %978 = vst.msk [vmem:[%s223 + $0x180] sm:$0xff] %vm929, %v913
      %979 = vst.msk [vmem:[%s223 + $0x188] sm:$0xff] %vm929, %v914
      %980 = vst.msk [vmem:[%s223 + $0x190] sm:$0xff] %vm929, %v915
      %981 = vst.msk [vmem:[%s223 + $0x198] sm:$0xff] %vm929, %v916
      %982 = vst.msk [vmem:[%s223 + $0x1a0] sm:$0xff] %vm929, %v917
      %983 = vst.msk [vmem:[%s223 + $0x1a8] sm:$0xff] %vm929, %v918
      %984 = vst.msk [vmem:[%s223 + $0x1b0] sm:$0xff] %vm929, %v919
      %985 = vst.msk [vmem:[%s223 + $0x1b8] sm:$0xff] %vm929, %v920
      %986 = vst.msk [vmem:[%s223 + $0x1c0] sm:$0xff] %vm929, %v921
      %987 = vst.msk [vmem:[%s223 + $0x1c8] sm:$0xff] %vm929, %v922
      %988 = vst.msk [vmem:[%s223 + $0x1d0] sm:$0xff] %vm929, %v923
      %989 = vst.msk [vmem:[%s223 + $0x1d8] sm:$0xff] %vm929, %v924
      %990 = vst.msk [vmem:[%s223 + $0x1e0] sm:$0xff] %vm929, %v925
      %991 = vst.msk [vmem:[%s223 + $0x1e8] sm:$0xff] %vm929, %v926
      %992 = vst.msk [vmem:[%s223 + $0x1f0] sm:$0xff] %vm929, %v927
      %993 = vst.msk [vmem:[%s223 + $0x1f8] sm:$0xff] %vm929, %v928
      %s994 = smul.u32 64, %s18
      %p995 = scmp.lt.s32.totalorder %s994, 575
      %s996 = scalar_select %p995, %s994, 575
      %p997 = scmp.lt.s32.totalorder %s19, 0
      %s998 = scalar_select %p997, %s19, 0
      %s999 = sadd.s32 %s998, %s996
      %s1000 = smul.addr %s999, 8
      %s1001 = scalar_lea.vmem %s3, %s1000
      // Predicated region
      $region33: #{ae_forward.10} parent=31 // pred_check
        %p1002 = pneg %p124
      $region34: #{ae_forward.10} parent=31 // pred_check_branch
        %1004 = sbr.rel (%p1002) target = $region36
      $region35: #{ae_forward.10} parent=31 // pred_region
        %s1005 = smul.u32 64, %s18
      $region36: #{ae_forward.10} parent=31 // pred_fallthru
        _
    $region32: #{ae_forward.10} parent=5 // pred_fallthru
      _
    %p1006 = scmp.le.s32.totalorder 2, %s9
    // Predicated region
    $region37: #{ae_forward.10} parent=5 // pred_check
      %p1007 = pneg %p1006
    $region38: #{ae_forward.10} parent=5 // pred_check_branch
      %1009 = sbr.rel (%p1007) target = $region40
    $region39: #{ae_forward.10} parent=5 // pred_region
      %s1010 = ssub.s32 %s9, 2
      // Predicated region
      $region41: #{ae_forward.10} parent=39 // pred_check
        %p1011 = pneg %p130
      $region42: #{ae_forward.10} parent=39 // pred_check_branch
        %1013 = sbr.rel (%p1011) target = $region44
      $region43: #{ae_forward.10} parent=39 // pred_region
        %s1014 = smul.u32 64, %s20
        %p1015 = scmp.lt.s32.totalorder %s1014, 575
        %s1016 = scalar_select %p1015, %s1014, 575
        %p1017 = scmp.lt.s32.totalorder %s21, 0
        %s1018 = scalar_select %p1017, %s21, 0
        %s1019 = sadd.s32 %s1018, %s1016
        %s1020 = smul.addr %s1019, 8
        %s1021 = scalar_lea.vmem %s3, %s1020
      $region44: #{ae_forward.10} parent=39 // pred_fallthru
        _
    $region40: #{ae_forward.10} parent=5 // pred_fallthru
      _
  $region6: #{ae_forward.10} parent=0 // loop_footer
    %s13 = sadd.s32 1, %s9
  $region7: #{ae_forward.10} parent=0 // loop_footer_branch
    %8 = sbr.rel target = $region3
  $region8: #{ae_forward.10} parent=0 // loop_exit
    _

// kernel: ae_forward.11
$region0: #{ae_forward.11}
  #allocation0 [shape = 'u32[]', space=smem, size = 0x4, offset = 0x4, fixed_abs, tag = 'smem constant byte address 0x4 - core index']
  #allocation1 [shape = 'u32[144,128]{1,0:T(1,128)}', space=vmem, size = 0x12000, scoped, tag = 'internal scratch']
  %s0 = inlined_call_operand.vmem [shape: bf16[1152,144], index: 0, kind: input, shape index: {}]
  %s1 = inlined_call_operand.vmem [shape: bf16[144,32], index: 1, kind: input, shape index: {}]
  %s2 = inlined_call_operand.vmem [shape: f32[1,32], index: 2, kind: input, shape index: {}]
  %s3 = inlined_call_operand.vmem [shape: f32[1152,32], index: 3, kind: output, shape index: {}]
  %s4 = sld [smem:[#allocation0]]
  $region45: #{ae_forward.11} parent=0
    _
  %s6 = ssub.s32 1, %s4
  %s7 = scalar_select 0, %s6, %s4
  loop: start=0, step=1, limit=5
  $region2: #{ae_forward.11} parent=0 // loop_pre_header
    _
  $region3: #{ae_forward.11} parent=0 // loop_header
    %s9 = sphi 0, %s13
    %p10 = scmp.ge.s32.totalorder %s9, 5
    %s16 = sphi 0, %s28
    %s17 = sphi 0, %s24
    %s18 = sphi 0, %s16
    %s19 = sphi 0, %s17
    %s20 = sphi 0, %s18
    %s21 = sphi 0, %s19
    %s31 = sphi 0, %s33
    %s34 = sphi 0, %s31
    %s35 = sphi 0, %s34
    %s51 = sphi 0, %s35
    %s57 = sphi 0, %s59
    %s60 = sphi 0, %s57
    %s61 = sphi 0, %s60
    %s77 = sphi 0, %s61
    %s83 = sphi 0, %s85
    %s86 = sphi 0, %s83
    %s87 = sphi 0, %s86
    %s103 = sphi 0, %s87
    %s111 = sphi 0, %s113
    %s114 = sphi 0, %s111
    %s115 = sphi 0, %s114
    %s131 = sphi 0, %s115
  $region4: #{ae_forward.11} parent=0 // loop_header_branch
    %12 = sbr.rel (%p10) target = $region8
  $region5: #{ae_forward.11} parent=0 // loop_body
    %s14 = ssub.s32 %s9, 1
    %s15 = ssub.s32 %s9, 2
    %s22 = sadd.s32 1, %s17
    %p23 = scmp.ge.s32.totalorder %s22, 1
    %s24 = scalar_select %p23, 0, %s22
    %s25 = sadd.s32 1, %s16
    %s26 = scalar_select %p23, %s25, %s16
    %p27 = scmp.ge.s32.totalorder %s26, 3
    %s28 = scalar_select %p27, 0, %s26
    %s29 = ssub.s32 %s16, %s28
    %p30 = scmp.eq.s32.totalorder %s29, 0
    %s32 = sadd.s32 %s31, 1
    %s33 = scalar_select %p30, %s31, %s32
    %p36 = pneg %p30
    %p37 = scmp.eq.s32.totalorder %s9, 2
    %p38 = por %p36, %p37
    %p39 = scmp.ne.s32.totalorder %s31, %s34
    %p40 = scmp.eq.s32.totalorder %s9, 0
    %p41 = por %p39, %p40
    %p42 = scmp.ne.s32.totalorder %s31, %s34
    %p43 = scmp.eq.s32.totalorder %s14, 2
    %p44 = por %p42, %p43
    %p45 = scmp.ne.s32.totalorder %s34, %s35
    %p46 = scmp.eq.s32.totalorder %s14, 0
    %p47 = por %p45, %p46
    %p48 = scmp.ne.s32.totalorder %s34, %s35
    %p49 = scmp.eq.s32.totalorder %s15, 2
    %p50 = por %p48, %p49
    %p52 = scmp.ne.s32.totalorder %s35, %s51
    %p53 = scmp.eq.s32.totalorder %s15, 0
    %p54 = por %p52, %p53
    %s55 = ssub.s32 %s17, %s24
    %p56 = scmp.eq.s32.totalorder %s55, 0
    %s58 = sadd.s32 %s57, 1
    %s59 = scalar_select %p56, %s57, %s58
    %p62 = pneg %p56
    %p63 = scmp.eq.s32.totalorder %s9, 2
    %p64 = por %p62, %p63
    %p65 = scmp.ne.s32.totalorder %s57, %s60
    %p66 = scmp.eq.s32.totalorder %s9, 0
    %p67 = por %p65, %p66
    %p68 = scmp.ne.s32.totalorder %s57, %s60
    %p69 = scmp.eq.s32.totalorder %s14, 2
    %p70 = por %p68, %p69
    %p71 = scmp.ne.s32.totalorder %s60, %s61
    %p72 = scmp.eq.s32.totalorder %s14, 0
    %p73 = por %p71, %p72
    %p74 = scmp.ne.s32.totalorder %s60, %s61
    %p75 = scmp.eq.s32.totalorder %s15, 2
    %p76 = por %p74, %p75
    %p78 = scmp.ne.s32.totalorder %s61, %s77
    %p79 = scmp.eq.s32.totalorder %s15, 0
    %p80 = por %p78, %p79
    %s81 = ssub.s32 %s17, %s24
    %p82 = scmp.eq.s32.totalorder %s81, 0
    %s84 = sadd.s32 %s83, 1
    %s85 = scalar_select %p82, %s83, %s84
    %p88 = pneg %p82
    %p89 = scmp.eq.s32.totalorder %s9, 2
    %p90 = por %p88, %p89
    %p91 = scmp.ne.s32.totalorder %s83, %s86
    %p92 = scmp.eq.s32.totalorder %s9, 0
    %p93 = por %p91, %p92
    %p94 = scmp.ne.s32.totalorder %s83, %s86
    %p95 = scmp.eq.s32.totalorder %s14, 2
    %p96 = por %p94, %p95
    %p97 = scmp.ne.s32.totalorder %s86, %s87
    %p98 = scmp.eq.s32.totalorder %s14, 0
    %p99 = por %p97, %p98
    %p100 = scmp.ne.s32.totalorder %s86, %s87
    %p101 = scmp.eq.s32.totalorder %s15, 2
    %p102 = por %p100, %p101
    %p104 = scmp.ne.s32.totalorder %s87, %s103
    %p105 = scmp.eq.s32.totalorder %s15, 0
    %p106 = por %p104, %p105
    %s107 = ssub.s32 %s16, %s28
    %s108 = ssub.s32 %s17, %s24
    %s109 = sor.u32 %s107, %s108
    %p110 = scmp.eq.s32.totalorder %s109, 0
    %s112 = sadd.s32 %s111, 1
    %s113 = scalar_select %p110, %s111, %s112
    %p116 = pneg %p110
    %p117 = scmp.eq.s32.totalorder %s9, 2
    %p118 = por %p116, %p117
    %p119 = scmp.ne.s32.totalorder %s111, %s114
    %p120 = scmp.eq.s32.totalorder %s9, 0
    %p121 = por %p119, %p120
    %p122 = scmp.ne.s32.totalorder %s111, %s114
    %p123 = scmp.eq.s32.totalorder %s14, 2
    %p124 = por %p122, %p123
    %p125 = scmp.ne.s32.totalorder %s114, %s115
    %p126 = scmp.eq.s32.totalorder %s14, 0
    %p127 = por %p125, %p126
    %p128 = scmp.ne.s32.totalorder %s114, %s115
    %p129 = scmp.eq.s32.totalorder %s15, 2
    %p130 = por %p128, %p129
    %p132 = scmp.ne.s32.totalorder %s115, %s131
    %p133 = scmp.eq.s32.totalorder %s15, 0
    %p134 = por %p132, %p133
    %p135 = scmp.le.s32.totalorder 1, %s9
    %p136 = scmp.lt.s32.totalorder %s9, 4
    %p137 = pnand %p135, %p136
    %p138 = pneg %p137
    // Predicated region
    $region9: #{ae_forward.11} parent=5 // pred_check
      _
    $region10: #{ae_forward.11} parent=5 // pred_check_branch
      %140 = sbr.rel (%p137) target = $region12
    $region11: #{ae_forward.11} parent=5 // pred_region
      %s141 = ssub.s32 %s9, 1
      // Predicated region
      $region13: #{ae_forward.11} parent=11 // pred_check
        %p142 = pneg %p73
      $region14: #{ae_forward.11} parent=11 // pred_check_branch
        %144 = sbr.rel (%p142) target = $region16
      $region15: #{ae_forward.11} parent=11 // pred_region
        %p145 = scmp.lt.s32.totalorder %s19, 0
        %s146 = scalar_select %p145, %s19, 0
        %s147 = smul.addr %s146, 4
        %s148 = scalar_lea.vmem %s1, %s147
      $region16: #{ae_forward.11} parent=11 // pred_fallthru
        _
      // Predicated region
      $region17: #{ae_forward.11} parent=11 // pred_check
        %p149 = pneg %p99
      $region18: #{ae_forward.11} parent=11 // pred_check_branch
        %151 = sbr.rel (%p149) target = $region20
      $region19: #{ae_forward.11} parent=11 // pred_region
        %p152 = scmp.lt.s32.totalorder %s19, 0
        %s153 = scalar_select %p152, %s19, 0
        %s154 = scalar_lea.vmem %s2, %s153
      $region20: #{ae_forward.11} parent=11 // pred_fallthru
        _
    $region12: #{ae_forward.11} parent=5 // pred_fallthru
      _
    %p155 = scmp.lt.s32.totalorder %s9, 3
    // Predicated region
    $region21: #{ae_forward.11} parent=5 // pred_check
      %p156 = pneg %p155
    $region22: #{ae_forward.11} parent=5 // pred_check_branch
      %158 = sbr.rel (%p156) target = $region24
    $region23: #{ae_forward.11} parent=5 // pred_region
      // Predicated region
      $region25: #{ae_forward.11} parent=23 // pred_check
        %p159 = pneg %p41
      $region26: #{ae_forward.11} parent=23 // pred_check_branch
        %161 = sbr.rel (%p159) target = $region28
      $region27: #{ae_forward.11} parent=23 // pred_region
        %s162 = smul.u32 48, %s16
        %p163 = scmp.lt.s32.totalorder %s162, 143
        %s164 = scalar_select %p163, %s162, 143
        %s165 = smul.addr %s164, 2
        %s166 = smul.addr %s165, 4
        %s167 = scalar_lea.vmem %s0, %s166
        %s168 = smul.u32 48, %s16
      $region28: #{ae_forward.11} parent=23 // pred_fallthru
        _
    $region24: #{ae_forward.11} parent=5 // pred_fallthru
      _
    %p169 = scmp.le.s32.totalorder 1, %s9
    %p170 = scmp.lt.s32.totalorder %s9, 4
    %p171 = pnand %p169, %p170
    %p172 = pneg %p171
    // Predicated region
    $region29: #{ae_forward.11} parent=5 // pred_check
      _
    $region30: #{ae_forward.11} parent=5 // pred_check_branch
      %174 = sbr.rel (%p171) target = $region32
    $region31: #{ae_forward.11} parent=5 // pred_region
      %s175 = ssub.s32 %s9, 1
      %s176 = smul.u32 48, %s18
      %p177 = scmp.lt.s32.totalorder %s176, 143
      %s178 = scalar_select %p177, %s176, 143
      %s179 = smul.addr %s178, 2
      %s180 = smul.addr %s179, 4
      %s181 = scalar_lea.vmem %s0, %s180
      %p182 = pneg %p47
      %p183 = pneg %p44
      %p184 = scmp.lt.s32.totalorder %s19, 0
      %s185 = scalar_select %p184, %s19, 0
      %s186 = smul.addr %s185, 4
      %s187 = scalar_lea.vmem %s1, %s186
      %p188 = pneg %p73
      %p189 = pneg %p70
      %p190 = scmp.lt.s32.totalorder %s19, 0
      %s191 = scalar_select %p190, %s19, 0
      %s192 = scalar_lea.vmem %s2, %s191
      %p193 = pneg %p99
      %p194 = pneg %p96
      %p195 = pneg %p127
      %p196 = pneg %p124
      %s197 = smul.u32 48, %s18
      %p198 = scmp.lt.s32.totalorder %s197, 143
      %s199 = scalar_select %p198, %s197, 143
      %p200 = scmp.lt.s32.totalorder %s19, 0
      %s201 = scalar_select %p200, %s19, 0
      %s202 = sadd.s32 %s201, %s199
      %s203 = smul.addr %s202, 8
      %s204 = scalar_lea.vmem %s3, %s203
      %s205 = smul.u32 48, %s18
      %p206 = scmp.lt.s32.totalorder %s205, 143
      %s207 = scalar_select %p206, %s205, 143
      %s208 = smul.addr %s207, 2
      %s209 = smul.addr %s208, 4
      %s210 = scalar_lea.vmem %s0, %s209
      %s211 = smul.u32 48, %s18
      %p212 = scmp.lt.s32.totalorder %s19, 0
      %s213 = scalar_select %p212, %s19, 0
      %s214 = smul.addr %s213, 4
      %s215 = scalar_lea.vmem %s1, %s214
      %p216 = scmp.lt.s32.totalorder %s19, 0
      %s217 = scalar_select %p216, %s19, 0
      %s218 = scalar_lea.vmem %s2, %s217
      %s219 = smul.u32 48, %s18
      %p220 = scmp.lt.s32.totalorder %s219, 143
      %s221 = scalar_select %p220, %s219, 143
      %p222 = scmp.lt.s32.totalorder %s19, 0
      %s223 = scalar_select %p222, %s19, 0
      %s224 = sadd.s32 %s223, %s221
      %s225 = smul.addr %s224, 8
      %s226 = scalar_lea.vmem %s3, %s225
      %s227 = smul.u32 48, %s18
      %v229 = vld [vmem:[%s210] sm:$0xff]
      %v230 = vld [vmem:[%s210 + $0x8] sm:$0xff]
      %v231 = vld [vmem:[%s210 + $0x10] sm:$0xff]
      %v232 = vld [vmem:[%s210 + $0x18] sm:$0xff]
      %v233 = vld [vmem:[%s210 + $0x20] sm:$0xff]
      %v234 = vld [vmem:[%s210 + $0x28] sm:$0xff]
      %v235 = vld [vmem:[%s210 + $0x30] sm:$0xff]
      %v236 = vld [vmem:[%s210 + $0x38] sm:$0xff]
      %v237 = vld [vmem:[%s210 + $0x40] sm:$0xff]
      %v238 = vld [vmem:[%s210 + $0x48] sm:$0xff]
      %v239 = vld [vmem:[%s210 + $0x50] sm:$0xff]
      %v240 = vld [vmem:[%s210 + $0x58] sm:$0xff]
      %v241 = vld [vmem:[%s210 + $0x60] sm:$0xff]
      %v242 = vld [vmem:[%s210 + $0x68] sm:$0xff]
      %v243 = vld [vmem:[%s210 + $0x70] sm:$0xff]
      %v244 = vld [vmem:[%s210 + $0x78] sm:$0xff]
      %v245 = vld [vmem:[%s210 + $0x80] sm:$0xff]
      %v246 = vld [vmem:[%s210 + $0x88] sm:$0xff]
      %v247 = vld [vmem:[%s210 + $0x90] sm:$0xff]
      %v248 = vld [vmem:[%s210 + $0x98] sm:$0xff]
      %v249 = vld [vmem:[%s210 + $0xa0] sm:$0xff]
      %v250 = vld [vmem:[%s210 + $0xa8] sm:$0xff]
      %v251 = vld [vmem:[%s210 + $0xb0] sm:$0xff]
      %v252 = vld [vmem:[%s210 + $0xb8] sm:$0xff]
      %v253 = vld [vmem:[%s210 + $0xc0] sm:$0xff]
      %v254 = vld [vmem:[%s210 + $0xc8] sm:$0xff]
      %v255 = vld [vmem:[%s210 + $0xd0] sm:$0xff]
      %v256 = vld [vmem:[%s210 + $0xd8] sm:$0xff]
      %v257 = vld [vmem:[%s210 + $0xe0] sm:$0xff]
      %v258 = vld [vmem:[%s210 + $0xe8] sm:$0xff]
      %v259 = vld [vmem:[%s210 + $0xf0] sm:$0xff]
      %v260 = vld [vmem:[%s210 + $0xf8] sm:$0xff]
      %v261 = vld [vmem:[%s210 + $0x100] sm:$0xff]
      %v262 = vld [vmem:[%s210 + $0x108] sm:$0xff]
      %v263 = vld [vmem:[%s210 + $0x110] sm:$0xff]
      %v264 = vld [vmem:[%s210 + $0x118] sm:$0xff]
      %v265 = vld [vmem:[%s210 + $0x120] sm:$0xff]
      %v266 = vld [vmem:[%s210 + $0x128] sm:$0xff]
      %v267 = vld [vmem:[%s210 + $0x130] sm:$0xff]
      %v268 = vld [vmem:[%s210 + $0x138] sm:$0xff]
      %v269 = vld [vmem:[%s210 + $0x140] sm:$0xff]
      %v270 = vld [vmem:[%s210 + $0x148] sm:$0xff]
      %v271 = vld [vmem:[%s210 + $0x150] sm:$0xff]
      %v272 = vld [vmem:[%s210 + $0x158] sm:$0xff]
      %v273 = vld [vmem:[%s210 + $0x160] sm:$0xff]
      %v274 = vld [vmem:[%s210 + $0x168] sm:$0xff]
      %v275 = vld [vmem:[%s210 + $0x170] sm:$0xff]
      %v276 = vld [vmem:[%s210 + $0x178] sm:$0xff]
      %v277 = vld [vmem:[%s215] sm:$0xf]
      %v278 = vld [vmem:[%s215 + $0x4] sm:$0xf]
      %v279 = vld [vmem:[%s215 + $0x8] sm:$0xf]
      %v280 = vld [vmem:[%s215 + $0xc] sm:$0xf]
      %v281 = vld [vmem:[%s215 + $0x10] sm:$0xf]
      %v282 = vld [vmem:[%s215 + $0x14] sm:$0xf]
      %v283 = vld [vmem:[%s215 + $0x18] sm:$0xf]
      %v284 = vld [vmem:[%s215 + $0x1c] sm:$0xf]
      %v285 = vld [vmem:[%s215 + $0x20] sm:$0xf]
      %v286 = vld [vmem:[%s215 + $0x24] sm:$0xf]
      %v287 = vld [vmem:[%s215 + $0x28] sm:$0xf]
      %v288 = vld [vmem:[%s215 + $0x2c] sm:$0xf]
      %v289 = vld [vmem:[%s215 + $0x30] sm:$0xf]
      %v290 = vld [vmem:[%s215 + $0x34] sm:$0xf]
      %v291 = vld [vmem:[%s215 + $0x38] sm:$0xf]
      %v292 = vld [vmem:[%s215 + $0x3c] sm:$0xf]
      %v293 = vld [vmem:[%s215 + $0x40] sm:$0xf]
      %v294 = vld [vmem:[%s215 + $0x44] sm:$0xf]
      %v295 = vld [vmem:[%s218] sm:$0x1]
      %v297 = vlaneseq
      %v298 = vshrl.u32 %v297, 7
      %v299 = vsub.s32 0, %v298
      %v300 = vrot.slane %v295, %v299
      %v350 = vunpack.c.l.b16 %v229
      %v351 = vunpack.c.h.b16 %v229
      %v352 = vunpack.c.l.b16 %v230
      %v353 = vunpack.c.h.b16 %v230
      %v354 = vunpack.c.l.b16 %v231
      %v355 = vunpack.c.h.b16 %v231
      %v356 = vunpack.c.l.b16 %v232
      %v357 = vunpack.c.h.b16 %v232
      %v358 = vunpack.c.l.b16 %v233
      %v359 = vunpack.c.h.b16 %v233
      %v360 = vunpack.c.l.b16 %v234
      %v361 = vunpack.c.h.b16 %v234
      %v362 = vunpack.c.l.b16 %v235
      %v363 = vunpack.c.h.b16 %v235
      %v364 = vunpack.c.l.b16 %v236
      %v365 = vunpack.c.h.b16 %v236
      %v366 = vunpack.c.l.b16 %v237
      %v367 = vunpack.c.h.b16 %v237
      %v368 = vunpack.c.l.b16 %v238
      %v369 = vunpack.c.h.b16 %v238
      %v370 = vunpack.c.l.b16 %v239
      %v371 = vunpack.c.h.b16 %v239
      %v372 = vunpack.c.l.b16 %v240
      %v373 = vunpack.c.h.b16 %v240
      %v374 = vunpack.c.l.b16 %v241
      %v375 = vunpack.c.h.b16 %v241
      %v376 = vunpack.c.l.b16 %v242
      %v377 = vunpack.c.h.b16 %v242
      %v378 = vunpack.c.l.b16 %v243
      %v379 = vunpack.c.h.b16 %v243
      %v380 = vunpack.c.l.b16 %v244
      %v381 = vunpack.c.h.b16 %v244
      %v382 = vunpack.c.l.b16 %v245
      %v383 = vunpack.c.h.b16 %v245
      %v384 = vunpack.c.l.b16 %v246
      %v385 = vunpack.c.h.b16 %v246
      %v386 = vunpack.c.l.b16 %v247
      %v387 = vunpack.c.h.b16 %v247
      %v388 = vunpack.c.l.b16 %v248
      %v389 = vunpack.c.h.b16 %v248
      %v390 = vunpack.c.l.b16 %v249
      %v391 = vunpack.c.h.b16 %v249
      %v392 = vunpack.c.l.b16 %v250
      %v393 = vunpack.c.h.b16 %v250
      %v394 = vunpack.c.l.b16 %v251
      %v395 = vunpack.c.h.b16 %v251
      %v396 = vunpack.c.l.b16 %v252
      %v397 = vunpack.c.h.b16 %v252
      %v398 = vunpack.c.l.b16 %v253
      %v399 = vunpack.c.h.b16 %v253
      %v400 = vunpack.c.l.b16 %v254
      %v401 = vunpack.c.h.b16 %v254
      %v402 = vunpack.c.l.b16 %v255
      %v403 = vunpack.c.h.b16 %v255
      %v404 = vunpack.c.l.b16 %v256
      %v405 = vunpack.c.h.b16 %v256
      %v406 = vunpack.c.l.b16 %v257
      %v407 = vunpack.c.h.b16 %v257
      %v408 = vunpack.c.l.b16 %v258
      %v409 = vunpack.c.h.b16 %v258
      %v410 = vunpack.c.l.b16 %v259
      %v411 = vunpack.c.h.b16 %v259
      %v412 = vunpack.c.l.b16 %v260
      %v413 = vunpack.c.h.b16 %v260
      %v414 = vunpack.c.l.b16 %v261
      %v415 = vunpack.c.h.b16 %v261
      %v416 = vunpack.c.l.b16 %v262
      %v417 = vunpack.c.h.b16 %v262
      %v418 = vunpack.c.l.b16 %v263
      %v419 = vunpack.c.h.b16 %v263
      %v420 = vunpack.c.l.b16 %v264
      %v421 = vunpack.c.h.b16 %v264
      %v422 = vunpack.c.l.b16 %v265
      %v423 = vunpack.c.h.b16 %v265
      %v424 = vunpack.c.l.b16 %v266
      %v425 = vunpack.c.h.b16 %v266
      %v426 = vunpack.c.l.b16 %v267
      %v427 = vunpack.c.h.b16 %v267
      %v428 = vunpack.c.l.b16 %v268
      %v429 = vunpack.c.h.b16 %v268
      %v430 = vunpack.c.l.b16 %v269
      %v431 = vunpack.c.h.b16 %v269
      %v432 = vunpack.c.l.b16 %v270
      %v433 = vunpack.c.h.b16 %v270
      %v434 = vunpack.c.l.b16 %v271
      %v435 = vunpack.c.h.b16 %v271
      %v436 = vunpack.c.l.b16 %v272
      %v437 = vunpack.c.h.b16 %v272
      %v438 = vunpack.c.l.b16 %v273
      %v439 = vunpack.c.h.b16 %v273
      %v440 = vunpack.c.l.b16 %v274
      %v441 = vunpack.c.h.b16 %v274
      %v442 = vunpack.c.l.b16 %v275
      %v443 = vunpack.c.h.b16 %v275
      %v444 = vunpack.c.l.b16 %v276
      %v445 = vunpack.c.h.b16 %v276
      %v446 = vpack.c.b16 %v352, %v350
      %v447 = vpack.c.b16 %v353, %v351
      %v448 = vpack.c.b16 %v356, %v354
      %v449 = vpack.c.b16 %v357, %v355
      %v450 = vpack.c.b16 %v360, %v358
      %v451 = vpack.c.b16 %v361, %v359
      %v452 = vpack.c.b16 %v364, %v362
      %v453 = vpack.c.b16 %v365, %v363
      %v454 = vpack.c.b16 %v368, %v366
      %v455 = vpack.c.b16 %v369, %v367
      %v456 = vpack.c.b16 %v372, %v370
      %v457 = vpack.c.b16 %v373, %v371
      %v458 = vpack.c.b16 %v376, %v374
      %v459 = vpack.c.b16 %v377, %v375
      %v460 = vpack.c.b16 %v380, %v378
      %v461 = vpack.c.b16 %v381, %v379
      %v462 = vpack.c.b16 %v384, %v382
      %v463 = vpack.c.b16 %v385, %v383
      %v464 = vpack.c.b16 %v388, %v386
      %v465 = vpack.c.b16 %v389, %v387
      %v466 = vpack.c.b16 %v392, %v390
      %v467 = vpack.c.b16 %v393, %v391
      %v468 = vpack.c.b16 %v396, %v394
      %v469 = vpack.c.b16 %v397, %v395
      %v470 = vpack.c.b16 %v400, %v398
      %v471 = vpack.c.b16 %v401, %v399
      %v472 = vpack.c.b16 %v404, %v402
      %v473 = vpack.c.b16 %v405, %v403
      %v474 = vpack.c.b16 %v408, %v406
      %v475 = vpack.c.b16 %v409, %v407
      %v476 = vpack.c.b16 %v412, %v410
      %v477 = vpack.c.b16 %v413, %v411
      %v478 = vpack.c.b16 %v416, %v414
      %v479 = vpack.c.b16 %v417, %v415
      %v480 = vpack.c.b16 %v420, %v418
      %v481 = vpack.c.b16 %v421, %v419
      %v482 = vpack.c.b16 %v424, %v422
      %v483 = vpack.c.b16 %v425, %v423
      %v484 = vpack.c.b16 %v428, %v426
      %v485 = vpack.c.b16 %v429, %v427
      %v486 = vpack.c.b16 %v432, %v430
      %v487 = vpack.c.b16 %v433, %v431
      %v488 = vpack.c.b16 %v436, %v434
      %v489 = vpack.c.b16 %v437, %v435
      %v490 = vpack.c.b16 %v440, %v438
      %v491 = vpack.c.b16 %v441, %v439
      %v492 = vpack.c.b16 %v444, %v442
      %v493 = vpack.c.b16 %v445, %v443
      %v536 = vunpack.c.l.b16 %v277
      %v537 = vunpack.c.l.b16 %v278
      %v538 = vunpack.c.l.b16 %v279
      %v539 = vunpack.c.l.b16 %v280
      %v540 = vunpack.c.l.b16 %v281
      %v541 = vunpack.c.l.b16 %v282
      %v542 = vunpack.c.l.b16 %v283
      %v543 = vunpack.c.l.b16 %v284
      %v544 = vunpack.c.l.b16 %v285
      %v545 = vunpack.c.l.b16 %v286
      %v546 = vunpack.c.l.b16 %v287
      %v547 = vunpack.c.l.b16 %v288
      %v548 = vunpack.c.l.b16 %v289
      %v549 = vunpack.c.l.b16 %v290
      %v550 = vunpack.c.l.b16 %v291
      %v551 = vunpack.c.l.b16 %v292
      %v552 = vunpack.c.l.b16 %v293
      %v553 = vunpack.c.l.b16 %v294
      %v554 = vpack.c.b16 %v537, %v536
      %v555 = vpack.c.b16 %v539, %v538
      %v556 = vpack.c.b16 %v541, %v540
      %v557 = vpack.c.b16 %v543, %v542
      %v558 = vpack.c.b16 %v545, %v544
      %v559 = vpack.c.b16 %v547, %v546
      %v560 = vpack.c.b16 %v549, %v548
      %v561 = vpack.c.b16 %v551, %v550
      %v562 = vpack.c.b16 %v553, %v552
      %vm572 = vcmask 130048
      %v574 = vsel %vm572, %v447, 0
      %v577 = vsel %vm572, %v449, 0
      %v580 = vsel %vm572, %v451, 0
      %v583 = vsel %vm572, %v453, 0
      %v586 = vsel %vm572, %v455, 0
      %v589 = vsel %vm572, %v457, 0
      %v592 = vsel %vm572, %v459, 0
      %v595 = vsel %vm572, %v461, 0
      %v598 = vsel %vm572, %v463, 0
      %v601 = vsel %vm572, %v465, 0
      %v604 = vsel %vm572, %v467, 0
      %v607 = vsel %vm572, %v469, 0
      %v610 = vsel %vm572, %v471, 0
      %v613 = vsel %vm572, %v473, 0
      %v616 = vsel %vm572, %v475, 0
      %v619 = vsel %vm572, %v477, 0
      %v622 = vsel %vm572, %v479, 0
      %v625 = vsel %vm572, %v481, 0
      %v628 = vsel %vm572, %v483, 0
      %v631 = vsel %vm572, %v485, 0
      %v634 = vsel %vm572, %v487, 0
      %v637 = vsel %vm572, %v489, 0
      %v640 = vsel %vm572, %v491, 0
      %v643 = vsel %vm572, %v493, 0
      %645 = vmatprep.subr.bf16.mxu0 0
      %646 = vmatpush1.bf16.msra.mxu0 %v554
      %647 = vmatprep.subr.bf16.mxu0 0
      %648 = vmatpush1.bf16.msra.mxu0 %v555
      %649 = vmatprep.subr.bf16.mxu0 0
      %650 = vmatpush1.bf16.msra.mxu0 %v556
      %651 = vmatprep.subr.bf16.mxu0 0
      %652 = vmatpush1.bf16.msra.mxu0 %v557
      %653 = vmatprep.subr.bf16.mxu0 0
      %654 = vmatpush1.bf16.msra.mxu0 %v558
      %655 = vmatprep.subr.bf16.mxu0 0
      %656 = vmatpush1.bf16.msra.mxu0 %v559
      %657 = vmatprep.subr.bf16.mxu0 0
      %658 = vmatpush1.bf16.msra.mxu0 %v560
      %659 = vmatprep.subr.bf16.mxu0 0
      %660 = vmatpush1.bf16.msra.mxu0 %v561
      %661 = vmatprep.subr.bf16.mxu0 0
      %662 = vmatpush1.bf16.msra.mxu0 %v562
      %663 = vmatprep.subr.bf16.mxu0 0
      %664 = vmatpush1.bf16.msra.mxu0 0
      %665 = vmatprep.subr.bf16.mxu0 0
      %666 = vmatpush1.bf16.msra.mxu0 0
      %667 = vmatprep.subr.bf16.mxu0 0
      %668 = vmatpush1.bf16.msra.mxu0 0
      %669 = vmatprep.subr.bf16.mxu0 0
      %670 = vmatpush1.bf16.msra.mxu0 0
      %671 = vmatprep.subr.bf16.mxu0 0
      %672 = vmatpush1.bf16.msra.mxu0 0
      %673 = vmatprep.subr.bf16.mxu0 0
      %674 = vmatpush1.bf16.msra.mxu0 0
      %675 = vmatprep.subr.bf16.mxu0 0
      %676 = vmatpush1.bf16.msra.mxu0 0
      %677 = vmatprep.mubr.bf16.mxu0 %v574
      %678 = vmatmul.mubr.bf16.gmra.mrb[0].mxu0 %v446
      %v679 = vpop.f32.mrb[0].mxu0
      %v680 = vadd.f32 %v300, %v679
      %v681 = vpop.f32.mrb[0].mxu0
      %v682 = vpop.f32.mrb[0].mxu0
      %v683 = vadd.f32 %v300, %v682
      %v684 = vpop.f32.mrb[0].mxu0
      %685 = vmatprep.mubr.bf16.mxu0 %v577
      %686 = vmatmul.mubr.bf16.gmra.mrb[0].mxu0 %v448
      %v687 = vpop.f32.mrb[0].mxu0
      %v688 = vadd.f32 %v300, %v687
      %v689 = vpop.f32.mrb[0].mxu0
      %v690 = vpop.f32.mrb[0].mxu0
      %v691 = vadd.f32 %v300, %v690
      %v692 = vpop.f32.mrb[0].mxu0
      %693 = vmatprep.mubr.bf16.mxu0 %v580
      %694 = vmatmul.mubr.bf16.gmra.mrb[0].mxu0 %v450
      %v695 = vpop.f32.mrb[0].mxu0
      %v696 = vadd.f32 %v300, %v695
      %v697 = vpop.f32.mrb[0].mxu0
      %v698 = vpop.f32.mrb[0].mxu0
      %v699 = vadd.f32 %v300, %v698
      %v700 = vpop.f32.mrb[0].mxu0
      %701 = vmatprep.mubr.bf16.mxu0 %v583
      %702 = vmatmul.mubr.bf16.gmra.mrb[0].mxu0 %v452
      %v703 = vpop.f32.mrb[0].mxu0
      %v704 = vadd.f32 %v300, %v703
      %v705 = vpop.f32.mrb[0].mxu0
      %v706 = vpop.f32.mrb[0].mxu0
      %v707 = vadd.f32 %v300, %v706
      %v708 = vpop.f32.mrb[0].mxu0
      %709 = vmatprep.mubr.bf16.mxu0 %v586
      %710 = vmatmul.mubr.bf16.gmra.mrb[0].mxu0 %v454
      %v711 = vpop.f32.mrb[0].mxu0
      %v712 = vadd.f32 %v300, %v711
      %v713 = vpop.f32.mrb[0].mxu0
      %v714 = vpop.f32.mrb[0].mxu0
      %v715 = vadd.f32 %v300, %v714
      %v716 = vpop.f32.mrb[0].mxu0
      %717 = vmatprep.mubr.bf16.mxu0 %v589
      %718 = vmatmul.mubr.bf16.gmra.mrb[0].mxu0 %v456
      %v719 = vpop.f32.mrb[0].mxu0
      %v720 = vadd.f32 %v300, %v719
      %v721 = vpop.f32.mrb[0].mxu0
      %v722 = vpop.f32.mrb[0].mxu0
      %v723 = vadd.f32 %v300, %v722
      %v724 = vpop.f32.mrb[0].mxu0
      %725 = vmatprep.mubr.bf16.mxu0 %v592
      %726 = vmatmul.mubr.bf16.gmra.mrb[0].mxu0 %v458
      %v727 = vpop.f32.mrb[0].mxu0
      %v728 = vadd.f32 %v300, %v727
      %v729 = vpop.f32.mrb[0].mxu0
      %v730 = vpop.f32.mrb[0].mxu0
      %v731 = vadd.f32 %v300, %v730
      %v732 = vpop.f32.mrb[0].mxu0
      %733 = vmatprep.mubr.bf16.mxu0 %v595
      %734 = vmatmul.mubr.bf16.gmra.mrb[0].mxu0 %v460
      %v735 = vpop.f32.mrb[0].mxu0
      %v736 = vadd.f32 %v300, %v735
      %v737 = vpop.f32.mrb[0].mxu0
      %v738 = vpop.f32.mrb[0].mxu0
      %v739 = vadd.f32 %v300, %v738
      %v740 = vpop.f32.mrb[0].mxu0
      %741 = vmatprep.mubr.bf16.mxu0 %v598
      %742 = vmatmul.mubr.bf16.gmra.mrb[0].mxu0 %v462
      %v743 = vpop.f32.mrb[0].mxu0
      %v744 = vadd.f32 %v300, %v743
      %v745 = vpop.f32.mrb[0].mxu0
      %v746 = vpop.f32.mrb[0].mxu0
      %v747 = vadd.f32 %v300, %v746
      %v748 = vpop.f32.mrb[0].mxu0
      %749 = vmatprep.mubr.bf16.mxu0 %v601
      %750 = vmatmul.mubr.bf16.gmra.mrb[0].mxu0 %v464
      %v751 = vpop.f32.mrb[0].mxu0
      %v752 = vadd.f32 %v300, %v751
      %v753 = vpop.f32.mrb[0].mxu0
      %v754 = vpop.f32.mrb[0].mxu0
      %v755 = vadd.f32 %v300, %v754
      %v756 = vpop.f32.mrb[0].mxu0
      %757 = vmatprep.mubr.bf16.mxu0 %v604
      %758 = vmatmul.mubr.bf16.gmra.mrb[0].mxu0 %v466
      %v759 = vpop.f32.mrb[0].mxu0
      %v760 = vadd.f32 %v300, %v759
      %v761 = vpop.f32.mrb[0].mxu0
      %v762 = vpop.f32.mrb[0].mxu0
      %v763 = vadd.f32 %v300, %v762
      %v764 = vpop.f32.mrb[0].mxu0
      %765 = vmatprep.mubr.bf16.mxu0 %v607
      %766 = vmatmul.mubr.bf16.gmra.mrb[0].mxu0 %v468
      %v767 = vpop.f32.mrb[0].mxu0
      %v768 = vadd.f32 %v300, %v767
      %v769 = vpop.f32.mrb[0].mxu0
      %v770 = vpop.f32.mrb[0].mxu0
      %v771 = vadd.f32 %v300, %v770
      %v772 = vpop.f32.mrb[0].mxu0
      %773 = vmatprep.mubr.bf16.mxu0 %v610
      %774 = vmatmul.mubr.bf16.gmra.mrb[0].mxu0 %v470
      %v775 = vpop.f32.mrb[0].mxu0
      %v776 = vadd.f32 %v300, %v775
      %v777 = vpop.f32.mrb[0].mxu0
      %v778 = vpop.f32.mrb[0].mxu0
      %v779 = vadd.f32 %v300, %v778
      %v780 = vpop.f32.mrb[0].mxu0
      %781 = vmatprep.mubr.bf16.mxu0 %v613
      %782 = vmatmul.mubr.bf16.gmra.mrb[0].mxu0 %v472
      %v783 = vpop.f32.mrb[0].mxu0
      %v784 = vadd.f32 %v300, %v783
      %v785 = vpop.f32.mrb[0].mxu0
      %v786 = vpop.f32.mrb[0].mxu0
      %v787 = vadd.f32 %v300, %v786
      %v788 = vpop.f32.mrb[0].mxu0
      %789 = vmatprep.mubr.bf16.mxu0 %v616
      %790 = vmatmul.mubr.bf16.gmra.mrb[0].mxu0 %v474
      %v791 = vpop.f32.mrb[0].mxu0
      %v792 = vadd.f32 %v300, %v791
      %v793 = vpop.f32.mrb[0].mxu0
      %v794 = vpop.f32.mrb[0].mxu0
      %v795 = vadd.f32 %v300, %v794
      %v796 = vpop.f32.mrb[0].mxu0
      %797 = vmatprep.mubr.bf16.mxu0 %v619
      %798 = vmatmul.mubr.bf16.gmra.mrb[0].mxu0 %v476
      %v799 = vpop.f32.mrb[0].mxu0
      %v800 = vadd.f32 %v300, %v799
      %v801 = vpop.f32.mrb[0].mxu0
      %v802 = vpop.f32.mrb[0].mxu0
      %v803 = vadd.f32 %v300, %v802
      %v804 = vpop.f32.mrb[0].mxu0
      %805 = vmatprep.mubr.bf16.mxu0 %v622
      %806 = vmatmul.mubr.bf16.gmra.mrb[0].mxu0 %v478
      %v807 = vpop.f32.mrb[0].mxu0
      %v808 = vadd.f32 %v300, %v807
      %v809 = vpop.f32.mrb[0].mxu0
      %v810 = vpop.f32.mrb[0].mxu0
      %v811 = vadd.f32 %v300, %v810
      %v812 = vpop.f32.mrb[0].mxu0
      %813 = vmatprep.mubr.bf16.mxu0 %v625
      %814 = vmatmul.mubr.bf16.gmra.mrb[0].mxu0 %v480
      %v815 = vpop.f32.mrb[0].mxu0
      %v816 = vadd.f32 %v300, %v815
      %v817 = vpop.f32.mrb[0].mxu0
      %v818 = vpop.f32.mrb[0].mxu0
      %v819 = vadd.f32 %v300, %v818
      %v820 = vpop.f32.mrb[0].mxu0
      %821 = vmatprep.mubr.bf16.mxu0 %v628
      %822 = vmatmul.mubr.bf16.gmra.mrb[0].mxu0 %v482
      %v823 = vpop.f32.mrb[0].mxu0
      %v824 = vadd.f32 %v300, %v823
      %v825 = vpop.f32.mrb[0].mxu0
      %v826 = vpop.f32.mrb[0].mxu0
      %v827 = vadd.f32 %v300, %v826
      %v828 = vpop.f32.mrb[0].mxu0
      %829 = vmatprep.mubr.bf16.mxu0 %v631
      %830 = vmatmul.mubr.bf16.gmra.mrb[0].mxu0 %v484
      %v831 = vpop.f32.mrb[0].mxu0
      %v832 = vadd.f32 %v300, %v831
      %v833 = vpop.f32.mrb[0].mxu0
      %v834 = vpop.f32.mrb[0].mxu0
      %v835 = vadd.f32 %v300, %v834
      %v836 = vpop.f32.mrb[0].mxu0
      %837 = vmatprep.mubr.bf16.mxu0 %v634
      %838 = vmatmul.mubr.bf16.gmra.mrb[0].mxu0 %v486
      %v839 = vpop.f32.mrb[0].mxu0
      %v840 = vadd.f32 %v300, %v839
      %v841 = vpop.f32.mrb[0].mxu0
      %v842 = vpop.f32.mrb[0].mxu0
      %v843 = vadd.f32 %v300, %v842
      %v844 = vpop.f32.mrb[0].mxu0
      %845 = vmatprep.mubr.bf16.mxu0 %v637
      %846 = vmatmul.mubr.bf16.gmra.mrb[0].mxu0 %v488
      %v847 = vpop.f32.mrb[0].mxu0
      %v848 = vadd.f32 %v300, %v847
      %v849 = vpop.f32.mrb[0].mxu0
      %v850 = vpop.f32.mrb[0].mxu0
      %v851 = vadd.f32 %v300, %v850
      %v852 = vpop.f32.mrb[0].mxu0
      %853 = vmatprep.mubr.bf16.mxu0 %v640
      %854 = vmatmul.mubr.bf16.gmra.mrb[0].mxu0 %v490
      %v855 = vpop.f32.mrb[0].mxu0
      %v856 = vadd.f32 %v300, %v855
      %v857 = vpop.f32.mrb[0].mxu0
      %v858 = vpop.f32.mrb[0].mxu0
      %v859 = vadd.f32 %v300, %v858
      %v860 = vpop.f32.mrb[0].mxu0
      %861 = vmatprep.mubr.bf16.mxu0 %v643
      %862 = vmatmul.mubr.bf16.gmra.mrb[0].mxu0 %v492
      %v863 = vpop.f32.mrb[0].mxu0
      %v864 = vadd.f32 %v300, %v863
      %v865 = vpop.f32.mrb[0].mxu0
      %v866 = vpop.f32.mrb[0].mxu0
      %v867 = vadd.f32 %v300, %v866
      %v868 = vpop.f32.mrb[0].mxu0
      %869 = vdwg.mxu0
      %v870 = vmax.f32 %v680, 0.0
      %v871 = vmax.f32 %v683, 0.0
      %v872 = vmax.f32 %v688, 0.0
      %v873 = vmax.f32 %v691, 0.0
      %v874 = vmax.f32 %v696, 0.0
      %v875 = vmax.f32 %v699, 0.0
      %v876 = vmax.f32 %v704, 0.0
      %v877 = vmax.f32 %v707, 0.0
      %v878 = vmax.f32 %v712, 0.0
      %v879 = vmax.f32 %v715, 0.0
      %v880 = vmax.f32 %v720, 0.0
      %v881 = vmax.f32 %v723, 0.0
      %v882 = vmax.f32 %v728, 0.0
      %v883 = vmax.f32 %v731, 0.0
      %v884 = vmax.f32 %v736, 0.0
      %v885 = vmax.f32 %v739, 0.0
      %v886 = vmax.f32 %v744, 0.0
      %v887 = vmax.f32 %v747, 0.0
      %v888 = vmax.f32 %v752, 0.0
      %v889 = vmax.f32 %v755, 0.0
      %v890 = vmax.f32 %v760, 0.0
      %v891 = vmax.f32 %v763, 0.0
      %v892 = vmax.f32 %v768, 0.0
      %v893 = vmax.f32 %v771, 0.0
      %v894 = vmax.f32 %v776, 0.0
      %v895 = vmax.f32 %v779, 0.0
      %v896 = vmax.f32 %v784, 0.0
      %v897 = vmax.f32 %v787, 0.0
      %v898 = vmax.f32 %v792, 0.0
      %v899 = vmax.f32 %v795, 0.0
      %v900 = vmax.f32 %v800, 0.0
      %v901 = vmax.f32 %v803, 0.0
      %v902 = vmax.f32 %v808, 0.0
      %v903 = vmax.f32 %v811, 0.0
      %v904 = vmax.f32 %v816, 0.0
      %v905 = vmax.f32 %v819, 0.0
      %v906 = vmax.f32 %v824, 0.0
      %v907 = vmax.f32 %v827, 0.0
      %v908 = vmax.f32 %v832, 0.0
      %v909 = vmax.f32 %v835, 0.0
      %v910 = vmax.f32 %v840, 0.0
      %v911 = vmax.f32 %v843, 0.0
      %v912 = vmax.f32 %v848, 0.0
      %v913 = vmax.f32 %v851, 0.0
      %v914 = vmax.f32 %v856, 0.0
      %v915 = vmax.f32 %v859, 0.0
      %v916 = vmax.f32 %v864, 0.0
      %v917 = vmax.f32 %v867, 0.0
      %vm918 = vcmask 261120
      %919 = vst.msk [vmem:[%s226] sm:$0xff] %vm918, %v870
      %920 = vst.msk [vmem:[%s226 + $0x8] sm:$0xff] %vm918, %v871
      %921 = vst.msk [vmem:[%s226 + $0x10] sm:$0xff] %vm918, %v872
      %922 = vst.msk [vmem:[%s226 + $0x18] sm:$0xff] %vm918, %v873
      %923 = vst.msk [vmem:[%s226 + $0x20] sm:$0xff] %vm918, %v874
      %924 = vst.msk [vmem:[%s226 + $0x28] sm:$0xff] %vm918, %v875
      %925 = vst.msk [vmem:[%s226 + $0x30] sm:$0xff] %vm918, %v876
      %926 = vst.msk [vmem:[%s226 + $0x38] sm:$0xff] %vm918, %v877
      %927 = vst.msk [vmem:[%s226 + $0x40] sm:$0xff] %vm918, %v878
      %928 = vst.msk [vmem:[%s226 + $0x48] sm:$0xff] %vm918, %v879
      %929 = vst.msk [vmem:[%s226 + $0x50] sm:$0xff] %vm918, %v880
      %930 = vst.msk [vmem:[%s226 + $0x58] sm:$0xff] %vm918, %v881
      %931 = vst.msk [vmem:[%s226 + $0x60] sm:$0xff] %vm918, %v882
      %932 = vst.msk [vmem:[%s226 + $0x68] sm:$0xff] %vm918, %v883
      %933 = vst.msk [vmem:[%s226 + $0x70] sm:$0xff] %vm918, %v884
      %934 = vst.msk [vmem:[%s226 + $0x78] sm:$0xff] %vm918, %v885
      %935 = vst.msk [vmem:[%s226 + $0x80] sm:$0xff] %vm918, %v886
      %936 = vst.msk [vmem:[%s226 + $0x88] sm:$0xff] %vm918, %v887
      %937 = vst.msk [vmem:[%s226 + $0x90] sm:$0xff] %vm918, %v888
      %938 = vst.msk [vmem:[%s226 + $0x98] sm:$0xff] %vm918, %v889
      %939 = vst.msk [vmem:[%s226 + $0xa0] sm:$0xff] %vm918, %v890
      %940 = vst.msk [vmem:[%s226 + $0xa8] sm:$0xff] %vm918, %v891
      %941 = vst.msk [vmem:[%s226 + $0xb0] sm:$0xff] %vm918, %v892
      %942 = vst.msk [vmem:[%s226 + $0xb8] sm:$0xff] %vm918, %v893
      %943 = vst.msk [vmem:[%s226 + $0xc0] sm:$0xff] %vm918, %v894
      %944 = vst.msk [vmem:[%s226 + $0xc8] sm:$0xff] %vm918, %v895
      %945 = vst.msk [vmem:[%s226 + $0xd0] sm:$0xff] %vm918, %v896
      %946 = vst.msk [vmem:[%s226 + $0xd8] sm:$0xff] %vm918, %v897
      %947 = vst.msk [vmem:[%s226 + $0xe0] sm:$0xff] %vm918, %v898
      %948 = vst.msk [vmem:[%s226 + $0xe8] sm:$0xff] %vm918, %v899
      %949 = vst.msk [vmem:[%s226 + $0xf0] sm:$0xff] %vm918, %v900
      %950 = vst.msk [vmem:[%s226 + $0xf8] sm:$0xff] %vm918, %v901
      %951 = vst.msk [vmem:[%s226 + $0x100] sm:$0xff] %vm918, %v902
      %952 = vst.msk [vmem:[%s226 + $0x108] sm:$0xff] %vm918, %v903
      %953 = vst.msk [vmem:[%s226 + $0x110] sm:$0xff] %vm918, %v904
      %954 = vst.msk [vmem:[%s226 + $0x118] sm:$0xff] %vm918, %v905
      %955 = vst.msk [vmem:[%s226 + $0x120] sm:$0xff] %vm918, %v906
      %956 = vst.msk [vmem:[%s226 + $0x128] sm:$0xff] %vm918, %v907
      %957 = vst.msk [vmem:[%s226 + $0x130] sm:$0xff] %vm918, %v908
      %958 = vst.msk [vmem:[%s226 + $0x138] sm:$0xff] %vm918, %v909
      %959 = vst.msk [vmem:[%s226 + $0x140] sm:$0xff] %vm918, %v910
      %960 = vst.msk [vmem:[%s226 + $0x148] sm:$0xff] %vm918, %v911
      %961 = vst.msk [vmem:[%s226 + $0x150] sm:$0xff] %vm918, %v912
      %962 = vst.msk [vmem:[%s226 + $0x158] sm:$0xff] %vm918, %v913
      %963 = vst.msk [vmem:[%s226 + $0x160] sm:$0xff] %vm918, %v914
      %964 = vst.msk [vmem:[%s226 + $0x168] sm:$0xff] %vm918, %v915
      %965 = vst.msk [vmem:[%s226 + $0x170] sm:$0xff] %vm918, %v916
      %966 = vst.msk [vmem:[%s226 + $0x178] sm:$0xff] %vm918, %v917
      %s967 = smul.u32 48, %s18
      %p968 = scmp.lt.s32.totalorder %s967, 143
      %s969 = scalar_select %p968, %s967, 143
      %p970 = scmp.lt.s32.totalorder %s19, 0
      %s971 = scalar_select %p970, %s19, 0
      %s972 = sadd.s32 %s971, %s969
      %s973 = smul.addr %s972, 8
      %s974 = scalar_lea.vmem %s3, %s973
      // Predicated region
      $region33: #{ae_forward.11} parent=31 // pred_check
        %p975 = pneg %p124
      $region34: #{ae_forward.11} parent=31 // pred_check_branch
        %977 = sbr.rel (%p975) target = $region36
      $region35: #{ae_forward.11} parent=31 // pred_region
        %s978 = smul.u32 48, %s18
      $region36: #{ae_forward.11} parent=31 // pred_fallthru
        _
    $region32: #{ae_forward.11} parent=5 // pred_fallthru
      _
    %p979 = scmp.le.s32.totalorder 2, %s9
    // Predicated region
    $region37: #{ae_forward.11} parent=5 // pred_check
      %p980 = pneg %p979
    $region38: #{ae_forward.11} parent=5 // pred_check_branch
      %982 = sbr.rel (%p980) target = $region40
    $region39: #{ae_forward.11} parent=5 // pred_region
      %s983 = ssub.s32 %s9, 2
      // Predicated region
      $region41: #{ae_forward.11} parent=39 // pred_check
        %p984 = pneg %p130
      $region42: #{ae_forward.11} parent=39 // pred_check_branch
        %986 = sbr.rel (%p984) target = $region44
      $region43: #{ae_forward.11} parent=39 // pred_region
        %s987 = smul.u32 48, %s20
        %p988 = scmp.lt.s32.totalorder %s987, 143
        %s989 = scalar_select %p988, %s987, 143
        %p990 = scmp.lt.s32.totalorder %s21, 0
        %s991 = scalar_select %p990, %s21, 0
        %s992 = sadd.s32 %s991, %s989
        %s993 = smul.addr %s992, 8
        %s994 = scalar_lea.vmem %s3, %s993
      $region44: #{ae_forward.11} parent=39 // pred_fallthru
        _
    $region40: #{ae_forward.11} parent=5 // pred_fallthru
      _
  $region6: #{ae_forward.11} parent=0 // loop_footer
    %s13 = sadd.s32 1, %s9
  $region7: #{ae_forward.11} parent=0 // loop_footer_branch
    %8 = sbr.rel target = $region3
  $region8: #{ae_forward.11} parent=0 // loop_exit
    _

// kernel: ae_forward.12
$region0: #{ae_forward.12}
  #allocation0 [shape = 'u32[]', space=smem, size = 0x4, offset = 0x4, fixed_abs, tag = 'smem constant byte address 0x4 - core index']
  #allocation1 [shape = 'u32[144,128]{1,0:T(1,128)}', space=vmem, size = 0x12000, scoped, tag = 'internal scratch']
  %s0 = inlined_call_operand.vmem [shape: bf16[288,288], index: 0, kind: input, shape index: {}]
  %s1 = inlined_call_operand.vmem [shape: bf16[288,64], index: 1, kind: input, shape index: {}]
  %s2 = inlined_call_operand.vmem [shape: f32[1,64], index: 2, kind: input, shape index: {}]
  %s3 = inlined_call_operand.vmem [shape: f32[288,64], index: 3, kind: output, shape index: {}]
  %s4 = sld [smem:[#allocation0]]
  $region45: #{ae_forward.12} parent=0
    _
  %s6 = ssub.s32 1, %s4
  %s7 = scalar_select 0, %s6, %s4
  loop: start=0, step=1, limit=4
  $region2: #{ae_forward.12} parent=0 // loop_pre_header
    _
  $region3: #{ae_forward.12} parent=0 // loop_header
    %s9 = sphi 0, %s13
    %p10 = scmp.ge.s32.totalorder %s9, 4
    %s16 = sphi 0, %s28
    %s17 = sphi 0, %s24
    %s18 = sphi 0, %s16
    %s19 = sphi 0, %s17
    %s20 = sphi 0, %s18
    %s21 = sphi 0, %s19
    %s31 = sphi 0, %s33
    %s34 = sphi 0, %s31
    %s35 = sphi 0, %s34
    %s51 = sphi 0, %s35
    %s57 = sphi 0, %s59
    %s60 = sphi 0, %s57
    %s61 = sphi 0, %s60
    %s77 = sphi 0, %s61
    %s83 = sphi 0, %s85
    %s86 = sphi 0, %s83
    %s87 = sphi 0, %s86
    %s103 = sphi 0, %s87
    %s111 = sphi 0, %s113
    %s114 = sphi 0, %s111
    %s115 = sphi 0, %s114
    %s131 = sphi 0, %s115
  $region4: #{ae_forward.12} parent=0 // loop_header_branch
    %12 = sbr.rel (%p10) target = $region8
  $region5: #{ae_forward.12} parent=0 // loop_body
    %s14 = ssub.s32 %s9, 1
    %s15 = ssub.s32 %s9, 2
    %s22 = sadd.s32 1, %s17
    %p23 = scmp.ge.s32.totalorder %s22, 1
    %s24 = scalar_select %p23, 0, %s22
    %s25 = sadd.s32 1, %s16
    %s26 = scalar_select %p23, %s25, %s16
    %p27 = scmp.ge.s32.totalorder %s26, 2
    %s28 = scalar_select %p27, 0, %s26
    %s29 = ssub.s32 %s16, %s28
    %p30 = scmp.eq.s32.totalorder %s29, 0
    %s32 = sadd.s32 %s31, 1
    %s33 = scalar_select %p30, %s31, %s32
    %p36 = pneg %p30
    %p37 = scmp.eq.s32.totalorder %s9, 1
    %p38 = por %p36, %p37
    %p39 = scmp.ne.s32.totalorder %s31, %s34
    %p40 = scmp.eq.s32.totalorder %s9, 0
    %p41 = por %p39, %p40
    %p42 = scmp.ne.s32.totalorder %s31, %s34
    %p43 = scmp.eq.s32.totalorder %s14, 1
    %p44 = por %p42, %p43
    %p45 = scmp.ne.s32.totalorder %s34, %s35
    %p46 = scmp.eq.s32.totalorder %s14, 0
    %p47 = por %p45, %p46
    %p48 = scmp.ne.s32.totalorder %s34, %s35
    %p49 = scmp.eq.s32.totalorder %s15, 1
    %p50 = por %p48, %p49
    %p52 = scmp.ne.s32.totalorder %s35, %s51
    %p53 = scmp.eq.s32.totalorder %s15, 0
    %p54 = por %p52, %p53
    %s55 = ssub.s32 %s17, %s24
    %p56 = scmp.eq.s32.totalorder %s55, 0
    %s58 = sadd.s32 %s57, 1
    %s59 = scalar_select %p56, %s57, %s58
    %p62 = pneg %p56
    %p63 = scmp.eq.s32.totalorder %s9, 1
    %p64 = por %p62, %p63
    %p65 = scmp.ne.s32.totalorder %s57, %s60
    %p66 = scmp.eq.s32.totalorder %s9, 0
    %p67 = por %p65, %p66
    %p68 = scmp.ne.s32.totalorder %s57, %s60
    %p69 = scmp.eq.s32.totalorder %s14, 1
    %p70 = por %p68, %p69
    %p71 = scmp.ne.s32.totalorder %s60, %s61
    %p72 = scmp.eq.s32.totalorder %s14, 0
    %p73 = por %p71, %p72
    %p74 = scmp.ne.s32.totalorder %s60, %s61
    %p75 = scmp.eq.s32.totalorder %s15, 1
    %p76 = por %p74, %p75
    %p78 = scmp.ne.s32.totalorder %s61, %s77
    %p79 = scmp.eq.s32.totalorder %s15, 0
    %p80 = por %p78, %p79
    %s81 = ssub.s32 %s17, %s24
    %p82 = scmp.eq.s32.totalorder %s81, 0
    %s84 = sadd.s32 %s83, 1
    %s85 = scalar_select %p82, %s83, %s84
    %p88 = pneg %p82
    %p89 = scmp.eq.s32.totalorder %s9, 1
    %p90 = por %p88, %p89
    %p91 = scmp.ne.s32.totalorder %s83, %s86
    %p92 = scmp.eq.s32.totalorder %s9, 0
    %p93 = por %p91, %p92
    %p94 = scmp.ne.s32.totalorder %s83, %s86
    %p95 = scmp.eq.s32.totalorder %s14, 1
    %p96 = por %p94, %p95
    %p97 = scmp.ne.s32.totalorder %s86, %s87
    %p98 = scmp.eq.s32.totalorder %s14, 0
    %p99 = por %p97, %p98
    %p100 = scmp.ne.s32.totalorder %s86, %s87
    %p101 = scmp.eq.s32.totalorder %s15, 1
    %p102 = por %p100, %p101
    %p104 = scmp.ne.s32.totalorder %s87, %s103
    %p105 = scmp.eq.s32.totalorder %s15, 0
    %p106 = por %p104, %p105
    %s107 = ssub.s32 %s16, %s28
    %s108 = ssub.s32 %s17, %s24
    %s109 = sor.u32 %s107, %s108
    %p110 = scmp.eq.s32.totalorder %s109, 0
    %s112 = sadd.s32 %s111, 1
    %s113 = scalar_select %p110, %s111, %s112
    %p116 = pneg %p110
    %p117 = scmp.eq.s32.totalorder %s9, 1
    %p118 = por %p116, %p117
    %p119 = scmp.ne.s32.totalorder %s111, %s114
    %p120 = scmp.eq.s32.totalorder %s9, 0
    %p121 = por %p119, %p120
    %p122 = scmp.ne.s32.totalorder %s111, %s114
    %p123 = scmp.eq.s32.totalorder %s14, 1
    %p124 = por %p122, %p123
    %p125 = scmp.ne.s32.totalorder %s114, %s115
    %p126 = scmp.eq.s32.totalorder %s14, 0
    %p127 = por %p125, %p126
    %p128 = scmp.ne.s32.totalorder %s114, %s115
    %p129 = scmp.eq.s32.totalorder %s15, 1
    %p130 = por %p128, %p129
    %p132 = scmp.ne.s32.totalorder %s115, %s131
    %p133 = scmp.eq.s32.totalorder %s15, 0
    %p134 = por %p132, %p133
    %p135 = scmp.le.s32.totalorder 1, %s9
    %p136 = scmp.lt.s32.totalorder %s9, 3
    %p137 = pnand %p135, %p136
    %p138 = pneg %p137
    // Predicated region
    $region9: #{ae_forward.12} parent=5 // pred_check
      _
    $region10: #{ae_forward.12} parent=5 // pred_check_branch
      %140 = sbr.rel (%p137) target = $region12
    $region11: #{ae_forward.12} parent=5 // pred_region
      %s141 = ssub.s32 %s9, 1
      // Predicated region
      $region13: #{ae_forward.12} parent=11 // pred_check
        %p142 = pneg %p73
      $region14: #{ae_forward.12} parent=11 // pred_check_branch
        %144 = sbr.rel (%p142) target = $region16
      $region15: #{ae_forward.12} parent=11 // pred_region
        %p145 = scmp.lt.s32.totalorder %s19, 0
        %s146 = scalar_select %p145, %s19, 0
        %s147 = smul.addr %s146, 4
        %s148 = scalar_lea.vmem %s1, %s147
      $region16: #{ae_forward.12} parent=11 // pred_fallthru
        _
      // Predicated region
      $region17: #{ae_forward.12} parent=11 // pred_check
        %p149 = pneg %p99
      $region18: #{ae_forward.12} parent=11 // pred_check_branch
        %151 = sbr.rel (%p149) target = $region20
      $region19: #{ae_forward.12} parent=11 // pred_region
        %p152 = scmp.lt.s32.totalorder %s19, 0
        %s153 = scalar_select %p152, %s19, 0
        %s154 = scalar_lea.vmem %s2, %s153
      $region20: #{ae_forward.12} parent=11 // pred_fallthru
        _
    $region12: #{ae_forward.12} parent=5 // pred_fallthru
      _
    %p155 = scmp.lt.s32.totalorder %s9, 2
    // Predicated region
    $region21: #{ae_forward.12} parent=5 // pred_check
      %p156 = pneg %p155
    $region22: #{ae_forward.12} parent=5 // pred_check_branch
      %158 = sbr.rel (%p156) target = $region24
    $region23: #{ae_forward.12} parent=5 // pred_region
      // Predicated region
      $region25: #{ae_forward.12} parent=23 // pred_check
        %p159 = pneg %p41
      $region26: #{ae_forward.12} parent=23 // pred_check_branch
        %161 = sbr.rel (%p159) target = $region28
      $region27: #{ae_forward.12} parent=23 // pred_region
        %s162 = smul.u32 18, %s16
        %p163 = scmp.lt.s32.totalorder %s162, 35
        %s164 = scalar_select %p163, %s162, 35
        %s165 = smul.addr %s164, 3
        %s166 = smul.addr %s165, 4
        %s167 = scalar_lea.vmem %s0, %s166
        %s168 = smul.u32 18, %s16
      $region28: #{ae_forward.12} parent=23 // pred_fallthru
        _
    $region24: #{ae_forward.12} parent=5 // pred_fallthru
      _
    %p169 = scmp.le.s32.totalorder 1, %s9
    %p170 = scmp.lt.s32.totalorder %s9, 3
    %p171 = pnand %p169, %p170
    %p172 = pneg %p171
    // Predicated region
    $region29: #{ae_forward.12} parent=5 // pred_check
      _
    $region30: #{ae_forward.12} parent=5 // pred_check_branch
      %174 = sbr.rel (%p171) target = $region32
    $region31: #{ae_forward.12} parent=5 // pred_region
      %s175 = ssub.s32 %s9, 1
      %s176 = smul.u32 18, %s18
      %p177 = scmp.lt.s32.totalorder %s176, 35
      %s178 = scalar_select %p177, %s176, 35
      %s179 = smul.addr %s178, 3
      %s180 = smul.addr %s179, 4
      %s181 = scalar_lea.vmem %s0, %s180
      %p182 = pneg %p47
      %p183 = pneg %p44
      %p184 = scmp.lt.s32.totalorder %s19, 0
      %s185 = scalar_select %p184, %s19, 0
      %s186 = smul.addr %s185, 4
      %s187 = scalar_lea.vmem %s1, %s186
      %p188 = pneg %p73
      %p189 = pneg %p70
      %p190 = scmp.lt.s32.totalorder %s19, 0
      %s191 = scalar_select %p190, %s19, 0
      %s192 = scalar_lea.vmem %s2, %s191
      %p193 = pneg %p99
      %p194 = pneg %p96
      %p195 = pneg %p127
      %p196 = pneg %p124
      %s197 = smul.u32 18, %s18
      %p198 = scmp.lt.s32.totalorder %s197, 35
      %s199 = scalar_select %p198, %s197, 35
      %p200 = scmp.lt.s32.totalorder %s19, 0
      %s201 = scalar_select %p200, %s19, 0
      %s202 = sadd.s32 %s201, %s199
      %s203 = smul.addr %s202, 8
      %s204 = scalar_lea.vmem %s3, %s203
      %s205 = smul.u32 18, %s18
      %p206 = scmp.lt.s32.totalorder %s205, 35
      %s207 = scalar_select %p206, %s205, 35
      %s208 = smul.addr %s207, 3
      %s209 = smul.addr %s208, 4
      %s210 = scalar_lea.vmem %s0, %s209
      %s211 = smul.u32 18, %s18
      %p212 = scmp.lt.s32.totalorder %s19, 0
      %s213 = scalar_select %p212, %s19, 0
      %s214 = smul.addr %s213, 4
      %s215 = scalar_lea.vmem %s1, %s214
      %p216 = scmp.lt.s32.totalorder %s19, 0
      %s217 = scalar_select %p216, %s19, 0
      %s218 = scalar_lea.vmem %s2, %s217
      %s219 = smul.u32 18, %s18
      %p220 = scmp.lt.s32.totalorder %s219, 35
      %s221 = scalar_select %p220, %s219, 35
      %p222 = scmp.lt.s32.totalorder %s19, 0
      %s223 = scalar_select %p222, %s19, 0
      %s224 = sadd.s32 %s223, %s221
      %s225 = smul.addr %s224, 8
      %s226 = scalar_lea.vmem %s3, %s225
      %s227 = smul.u32 18, %s18
      %v229 = vld [vmem:[%s210] sm:$0xff]
      %v230 = vld [vmem:[%s210 + $0x8] sm:$0xf]
      %v231 = vld [vmem:[%s210 + $0xc] sm:$0xff]
      %v232 = vld [vmem:[%s210 + $0x14] sm:$0xf]
      %v233 = vld [vmem:[%s210 + $0x18] sm:$0xff]
      %v234 = vld [vmem:[%s210 + $0x20] sm:$0xf]
      %v235 = vld [vmem:[%s210 + $0x24] sm:$0xff]
      %v236 = vld [vmem:[%s210 + $0x2c] sm:$0xf]
      %v237 = vld [vmem:[%s210 + $0x30] sm:$0xff]
      %v238 = vld [vmem:[%s210 + $0x38] sm:$0xf]
      %v239 = vld [vmem:[%s210 + $0x3c] sm:$0xff]
      %v240 = vld [vmem:[%s210 + $0x44] sm:$0xf]
      %v241 = vld [vmem:[%s210 + $0x48] sm:$0xff]
      %v242 = vld [vmem:[%s210 + $0x50] sm:$0xf]
      %v243 = vld [vmem:[%s210 + $0x54] sm:$0xff]
      %v244 = vld [vmem:[%s210 + $0x5c] sm:$0xf]
      %v245 = vld [vmem:[%s210 + $0x60] sm:$0xff]
      %v246 = vld [vmem:[%s210 + $0x68] sm:$0xf]
      %v247 = vld [vmem:[%s210 + $0x6c] sm:$0xff]
      %v248 = vld [vmem:[%s210 + $0x74] sm:$0xf]
      %v249 = vld [vmem:[%s210 + $0x78] sm:$0xff]
      %v250 = vld [vmem:[%s210 + $0x80] sm:$0xf]
      %v251 = vld [vmem:[%s210 + $0x84] sm:$0xff]
      %v252 = vld [vmem:[%s210 + $0x8c] sm:$0xf]
      %v253 = vld [vmem:[%s210 + $0x90] sm:$0xff]
      %v254 = vld [vmem:[%s210 + $0x98] sm:$0xf]
      %v255 = vld [vmem:[%s210 + $0x9c] sm:$0xff]
      %v256 = vld [vmem:[%s210 + $0xa4] sm:$0xf]
      %v257 = vld [vmem:[%s210 + $0xa8] sm:$0xff]
      %v258 = vld [vmem:[%s210 + $0xb0] sm:$0xf]
      %v259 = vld [vmem:[%s210 + $0xb4] sm:$0xff]
      %v260 = vld [vmem:[%s210 + $0xbc] sm:$0xf]
      %v261 = vld [vmem:[%s210 + $0xc0] sm:$0xff]
      %v262 = vld [vmem:[%s210 + $0xc8] sm:$0xf]
      %v263 = vld [vmem:[%s210 + $0xcc] sm:$0xff]
      %v264 = vld [vmem:[%s210 + $0xd4] sm:$0xf]
      %v265 = vld [vmem:[%s215] sm:$0xf]
      %v266 = vld [vmem:[%s215 + $0x4] sm:$0xf]
      %v267 = vld [vmem:[%s215 + $0x8] sm:$0xf]
      %v268 = vld [vmem:[%s215 + $0xc] sm:$0xf]
      %v269 = vld [vmem:[%s215 + $0x10] sm:$0xf]
      %v270 = vld [vmem:[%s215 + $0x14] sm:$0xf]
      %v271 = vld [vmem:[%s215 + $0x18] sm:$0xf]
      %v272 = vld [vmem:[%s215 + $0x1c] sm:$0xf]
      %v273 = vld [vmem:[%s215 + $0x20] sm:$0xf]
      %v274 = vld [vmem:[%s215 + $0x24] sm:$0xf]
      %v275 = vld [vmem:[%s215 + $0x28] sm:$0xf]
      %v276 = vld [vmem:[%s215 + $0x2c] sm:$0xf]
      %v277 = vld [vmem:[%s215 + $0x30] sm:$0xf]
      %v278 = vld [vmem:[%s215 + $0x34] sm:$0xf]
      %v279 = vld [vmem:[%s215 + $0x38] sm:$0xf]
      %v280 = vld [vmem:[%s215 + $0x3c] sm:$0xf]
      %v281 = vld [vmem:[%s215 + $0x40] sm:$0xf]
      %v282 = vld [vmem:[%s215 + $0x44] sm:$0xf]
      %v283 = vld [vmem:[%s215 + $0x48] sm:$0xf]
      %v284 = vld [vmem:[%s215 + $0x4c] sm:$0xf]
      %v285 = vld [vmem:[%s215 + $0x50] sm:$0xf]
      %v286 = vld [vmem:[%s215 + $0x54] sm:$0xf]
      %v287 = vld [vmem:[%s215 + $0x58] sm:$0xf]
      %v288 = vld [vmem:[%s215 + $0x5c] sm:$0xf]
      %v289 = vld [vmem:[%s215 + $0x60] sm:$0xf]
      %v290 = vld [vmem:[%s215 + $0x64] sm:$0xf]
      %v291 = vld [vmem:[%s215 + $0x68] sm:$0xf]
      %v292 = vld [vmem:[%s215 + $0x6c] sm:$0xf]
      %v293 = vld [vmem:[%s215 + $0x70] sm:$0xf]
      %v294 = vld [vmem:[%s215 + $0x74] sm:$0xf]
      %v295 = vld [vmem:[%s215 + $0x78] sm:$0xf]
      %v296 = vld [vmem:[%s215 + $0x7c] sm:$0xf]
      %v297 = vld [vmem:[%s215 + $0x80] sm:$0xf]
      %v298 = vld [vmem:[%s215 + $0x84] sm:$0xf]
      %v299 = vld [vmem:[%s215 + $0x88] sm:$0xf]
      %v300 = vld [vmem:[%s215 + $0x8c] sm:$0xf]
      %v301 = vld [vmem:[%s218] sm:$0x1]
      %v303 = vlaneseq
      %v304 = vshrl.u32 %v303, 7
      %v305 = vsub.s32 0, %v304
      %v306 = vrot.slane %v301, %v305
      %v344 = vunpack.c.l.b16 %v229
      %v345 = vunpack.c.h.b16 %v229
      %v346 = vunpack.c.l.b16 %v230
      %v347 = vunpack.c.l.b16 %v231
      %v348 = vunpack.c.h.b16 %v231
      %v349 = vunpack.c.l.b16 %v232
      %v350 = vunpack.c.l.b16 %v233
      %v351 = vunpack.c.h.b16 %v233
      %v352 = vunpack.c.l.b16 %v234
      %v353 = vunpack.c.l.b16 %v235
      %v354 = vunpack.c.h.b16 %v235
      %v355 = vunpack.c.l.b16 %v236
      %v356 = vunpack.c.l.b16 %v237
      %v357 = vunpack.c.h.b16 %v237
      %v358 = vunpack.c.l.b16 %v238
      %v359 = vunpack.c.l.b16 %v239
      %v360 = vunpack.c.h.b16 %v239
      %v361 = vunpack.c.l.b16 %v240
      %v362 = vunpack.c.l.b16 %v241
      %v363 = vunpack.c.h.b16 %v241
      %v364 = vunpack.c.l.b16 %v242
      %v365 = vunpack.c.l.b16 %v243
      %v366 = vunpack.c.h.b16 %v243
      %v367 = vunpack.c.l.b16 %v244
      %v368 = vunpack.c.l.b16 %v245
      %v369 = vunpack.c.h.b16 %v245
      %v370 = vunpack.c.l.b16 %v246
      %v371 = vunpack.c.l.b16 %v247
      %v372 = vunpack.c.h.b16 %v247
      %v373 = vunpack.c.l.b16 %v248
      %v374 = vunpack.c.l.b16 %v249
      %v375 = vunpack.c.h.b16 %v249
      %v376 = vunpack.c.l.b16 %v250
      %v377 = vunpack.c.l.b16 %v251
      %v378 = vunpack.c.h.b16 %v251
      %v379 = vunpack.c.l.b16 %v252
      %v380 = vunpack.c.l.b16 %v253
      %v381 = vunpack.c.h.b16 %v253
      %v382 = vunpack.c.l.b16 %v254
      %v383 = vunpack.c.l.b16 %v255
      %v384 = vunpack.c.h.b16 %v255
      %v385 = vunpack.c.l.b16 %v256
      %v386 = vunpack.c.l.b16 %v257
      %v387 = vunpack.c.h.b16 %v257
      %v388 = vunpack.c.l.b16 %v258
      %v389 = vunpack.c.l.b16 %v259
      %v390 = vunpack.c.h.b16 %v259
      %v391 = vunpack.c.l.b16 %v260
      %v392 = vunpack.c.l.b16 %v261
      %v393 = vunpack.c.h.b16 %v261
      %v394 = vunpack.c.l.b16 %v262
      %v395 = vunpack.c.l.b16 %v263
      %v396 = vunpack.c.h.b16 %v263
      %v397 = vunpack.c.l.b16 %v264
      %v398 = vpack.c.b16 %v347, %v344
      %v399 = vpack.c.b16 %v348, %v345
      %v400 = vpack.c.b16 %v349, %v346
      %v401 = vpack.c.b16 %v353, %v350
      %v402 = vpack.c.b16 %v354, %v351
      %v403 = vpack.c.b16 %v355, %v352
      %v404 = vpack.c.b16 %v359, %v356
      %v405 = vpack.c.b16 %v360, %v357
      %v406 = vpack.c.b16 %v361, %v358
      %v407 = vpack.c.b16 %v365, %v362
      %v408 = vpack.c.b16 %v366, %v363
      %v409 = vpack.c.b16 %v367, %v364
      %v410 = vpack.c.b16 %v371, %v368
      %v411 = vpack.c.b16 %v372, %v369
      %v412 = vpack.c.b16 %v373, %v370
      %v413 = vpack.c.b16 %v377, %v374
      %v414 = vpack.c.b16 %v378, %v375
      %v415 = vpack.c.b16 %v379, %v376
      %v416 = vpack.c.b16 %v383, %v380
      %v417 = vpack.c.b16 %v384, %v381
      %v418 = vpack.c.b16 %v385, %v382
      %v419 = vpack.c.b16 %v389, %v386
      %v420 = vpack.c.b16 %v390, %v387
      %v421 = vpack.c.b16 %v391, %v388
      %v422 = vpack.c.b16 %v395, %v392
      %v423 = vpack.c.b16 %v396, %v393
      %v424 = vpack.c.b16 %v397, %v394
      %v479 = vunpack.c.l.b16 %v265
      %v480 = vunpack.c.l.b16 %v266
      %v481 = vunpack.c.l.b16 %v267
      %v482 = vunpack.c.l.b16 %v268
      %v483 = vunpack.c.l.b16 %v269
      %v484 = vunpack.c.l.b16 %v270
      %v485 = vunpack.c.l.b16 %v271
      %v486 = vunpack.c.l.b16 %v272
      %v487 = vunpack.c.l.b16 %v273
      %v488 = vunpack.c.l.b16 %v274
      %v489 = vunpack.c.l.b16 %v275
      %v490 = vunpack.c.l.b16 %v276
      %v491 = vunpack.c.l.b16 %v277
      %v492 = vunpack.c.l.b16 %v278
      %v493 = vunpack.c.l.b16 %v279
      %v494 = vunpack.c.l.b16 %v280
      %v495 = vunpack.c.l.b16 %v281
      %v496 = vunpack.c.l.b16 %v282
      %v497 = vunpack.c.l.b16 %v283
      %v498 = vunpack.c.l.b16 %v284
      %v499 = vunpack.c.l.b16 %v285
      %v500 = vunpack.c.l.b16 %v286
      %v501 = vunpack.c.l.b16 %v287
      %v502 = vunpack.c.l.b16 %v288
      %v503 = vunpack.c.l.b16 %v289
      %v504 = vunpack.c.l.b16 %v290
      %v505 = vunpack.c.l.b16 %v291
      %v506 = vunpack.c.l.b16 %v292
      %v507 = vunpack.c.l.b16 %v293
      %v508 = vunpack.c.l.b16 %v294
      %v509 = vunpack.c.l.b16 %v295
      %v510 = vunpack.c.l.b16 %v296
      %v511 = vunpack.c.l.b16 %v297
      %v512 = vunpack.c.l.b16 %v298
      %v513 = vunpack.c.l.b16 %v299
      %v514 = vunpack.c.l.b16 %v300
      %v515 = vpack.c.b16 %v480, %v479
      %v516 = vpack.c.b16 %v482, %v481
      %v517 = vpack.c.b16 %v484, %v483
      %v518 = vpack.c.b16 %v486, %v485
      %v519 = vpack.c.b16 %v488, %v487
      %v520 = vpack.c.b16 %v490, %v489
      %v521 = vpack.c.b16 %v492, %v491
      %v522 = vpack.c.b16 %v494, %v493
      %v523 = vpack.c.b16 %v496, %v495
      %v524 = vpack.c.b16 %v498, %v497
      %v525 = vpack.c.b16 %v500, %v499
      %v526 = vpack.c.b16 %v502, %v501
      %v527 = vpack.c.b16 %v504, %v503
      %v528 = vpack.c.b16 %v506, %v505
      %v529 = vpack.c.b16 %v508, %v507
      %v530 = vpack.c.b16 %v510, %v509
      %v531 = vpack.c.b16 %v512, %v511
      %v532 = vpack.c.b16 %v514, %v513
      %vm551 = vcmask 261120
      %v553 = vsel %vm551, %v400, 0
      %v556 = vsel %vm551, %v403, 0
      %v559 = vsel %vm551, %v406, 0
      %v562 = vsel %vm551, %v409, 0
      %v565 = vsel %vm551, %v412, 0
      %v568 = vsel %vm551, %v415, 0
      %v571 = vsel %vm551, %v418, 0
      %v574 = vsel %vm551, %v421, 0
      %v577 = vsel %vm551, %v424, 0
      %579 = vmatprep.subr.bf16.mxu0 0
      %580 = vmatpush1.bf16.msra.mxu0 %v515
      %581 = vmatprep.subr.bf16.mxu0 0
      %582 = vmatpush1.bf16.msra.mxu0 %v516
      %583 = vmatprep.subr.bf16.mxu0 0
      %584 = vmatpush1.bf16.msra.mxu0 %v517
      %585 = vmatprep.subr.bf16.mxu0 0
      %586 = vmatpush1.bf16.msra.mxu0 %v518
      %587 = vmatprep.subr.bf16.mxu0 0
      %588 = vmatpush1.bf16.msra.mxu0 %v519
      %589 = vmatprep.subr.bf16.mxu0 0
      %590 = vmatpush1.bf16.msra.mxu0 %v520
      %591 = vmatprep.subr.bf16.mxu0 0
      %592 = vmatpush1.bf16.msra.mxu0 %v521
      %593 = vmatprep.subr.bf16.mxu0 0
      %594 = vmatpush1.bf16.msra.mxu0 %v522
      %595 = vmatprep.subr.bf16.mxu0 0
      %596 = vmatpush1.bf16.msra.mxu0 %v523
      %597 = vmatprep.subr.bf16.mxu0 0
      %598 = vmatpush1.bf16.msra.mxu0 %v524
      %599 = vmatprep.subr.bf16.mxu0 0
      %600 = vmatpush1.bf16.msra.mxu0 %v525
      %601 = vmatprep.subr.bf16.mxu0 0
      %602 = vmatpush1.bf16.msra.mxu0 %v526
      %603 = vmatprep.subr.bf16.mxu0 0
      %604 = vmatpush1.bf16.msra.mxu0 %v527
      %605 = vmatprep.subr.bf16.mxu0 0
      %606 = vmatpush1.bf16.msra.mxu0 %v528
      %607 = vmatprep.subr.bf16.mxu0 0
      %608 = vmatpush1.bf16.msra.mxu0 %v529
      %609 = vmatprep.subr.bf16.mxu0 0
      %610 = vmatpush1.bf16.msra.mxu0 %v530
      %611 = vmatprep.mubr.bf16.mxu0 %v399
      %612 = vmatmul.mubr.bf16.gmra.mrb[0].mxu0 %v398
      %v613 = vpop.f32.mrb[0].mxu0
      %v614 = vadd.f32 %v306, %v613
      %v615 = vpop.f32.mrb[0].mxu0
      %v616 = vpop.f32.mrb[0].mxu0
      %v617 = vadd.f32 %v306, %v616
      %v618 = vpop.f32.mrb[0].mxu0
      %619 = vmatprep.mubr.bf16.mxu0 %v402
      %620 = vmatmul.mubr.bf16.gmra.mrb[0].mxu0 %v401
      %v621 = vpop.f32.mrb[0].mxu0
      %v622 = vadd.f32 %v306, %v621
      %v623 = vpop.f32.mrb[0].mxu0
      %v624 = vpop.f32.mrb[0].mxu0
      %v625 = vadd.f32 %v306, %v624
      %v626 = vpop.f32.mrb[0].mxu0
      %627 = vmatprep.mubr.bf16.mxu0 %v405
      %628 = vmatmul.mubr.bf16.gmra.mrb[0].mxu0 %v404
      %v629 = vpop.f32.mrb[0].mxu0
      %v630 = vadd.f32 %v306, %v629
      %v631 = vpop.f32.mrb[0].mxu0
      %v632 = vpop.f32.mrb[0].mxu0
      %v633 = vadd.f32 %v306, %v632
      %v634 = vpop.f32.mrb[0].mxu0
      %635 = vmatprep.mubr.bf16.mxu0 %v408
      %636 = vmatmul.mubr.bf16.gmra.mrb[0].mxu0 %v407
      %v637 = vpop.f32.mrb[0].mxu0
      %v638 = vadd.f32 %v306, %v637
      %v639 = vpop.f32.mrb[0].mxu0
      %v640 = vpop.f32.mrb[0].mxu0
      %v641 = vadd.f32 %v306, %v640
      %v642 = vpop.f32.mrb[0].mxu0
      %643 = vmatprep.mubr.bf16.mxu0 %v411
      %644 = vmatmul.mubr.bf16.gmra.mrb[0].mxu0 %v410
      %v645 = vpop.f32.mrb[0].mxu0
      %v646 = vadd.f32 %v306, %v645
      %v647 = vpop.f32.mrb[0].mxu0
      %v648 = vpop.f32.mrb[0].mxu0
      %v649 = vadd.f32 %v306, %v648
      %v650 = vpop.f32.mrb[0].mxu0
      %651 = vmatprep.mubr.bf16.mxu0 %v414
      %652 = vmatmul.mubr.bf16.gmra.mrb[0].mxu0 %v413
      %v653 = vpop.f32.mrb[0].mxu0
      %v654 = vadd.f32 %v306, %v653
      %v655 = vpop.f32.mrb[0].mxu0
      %v656 = vpop.f32.mrb[0].mxu0
      %v657 = vadd.f32 %v306, %v656
      %v658 = vpop.f32.mrb[0].mxu0
      %659 = vmatprep.mubr.bf16.mxu0 %v417
      %660 = vmatmul.mubr.bf16.gmra.mrb[0].mxu0 %v416
      %v661 = vpop.f32.mrb[0].mxu0
      %v662 = vadd.f32 %v306, %v661
      %v663 = vpop.f32.mrb[0].mxu0
      %v664 = vpop.f32.mrb[0].mxu0
      %v665 = vadd.f32 %v306, %v664
      %v666 = vpop.f32.mrb[0].mxu0
      %667 = vmatprep.mubr.bf16.mxu0 %v420
      %668 = vmatmul.mubr.bf16.gmra.mrb[0].mxu0 %v419
      %v669 = vpop.f32.mrb[0].mxu0
      %v670 = vadd.f32 %v306, %v669
      %v671 = vpop.f32.mrb[0].mxu0
      %v672 = vpop.f32.mrb[0].mxu0
      %v673 = vadd.f32 %v306, %v672
      %v674 = vpop.f32.mrb[0].mxu0
      %675 = vmatprep.mubr.bf16.mxu0 %v423
      %676 = vmatmul.mubr.bf16.gmra.mrb[0].mxu0 %v422
      %v677 = vpop.f32.mrb[0].mxu0
      %v678 = vadd.f32 %v306, %v677
      %v679 = vpop.f32.mrb[0].mxu0
      %v680 = vpop.f32.mrb[0].mxu0
      %v681 = vadd.f32 %v306, %v680
      %v682 = vpop.f32.mrb[0].mxu0
      %683 = vdwg.mxu0
      %684 = vmatprep.subr.bf16.mxu0 0
      %685 = vmatpush1.bf16.msra.mxu0 %v531
      %686 = vmatprep.subr.bf16.mxu0 0
      %687 = vmatpush1.bf16.msra.mxu0 %v532
      %688 = vmatprep.subr.bf16.mxu0 0
      %689 = vmatpush1.bf16.msra.mxu0 0
      %690 = vmatprep.subr.bf16.mxu0 0
      %691 = vmatpush1.bf16.msra.mxu0 0
      %692 = vmatprep.subr.bf16.mxu0 0
      %693 = vmatpush1.bf16.msra.mxu0 0
      %694 = vmatprep.subr.bf16.mxu0 0
      %695 = vmatpush1.bf16.msra.mxu0 0
      %696 = vmatprep.subr.bf16.mxu0 0
      %697 = vmatpush1.bf16.msra.mxu0 0
      %698 = vmatprep.subr.bf16.mxu0 0
      %699 = vmatpush1.bf16.msra.mxu0 0
      %700 = vmatprep.subr.bf16.mxu0 0
      %701 = vmatpush1.bf16.msra.mxu0 0
      %702 = vmatprep.subr.bf16.mxu0 0
      %703 = vmatpush1.bf16.msra.mxu0 0
      %704 = vmatprep.subr.bf16.mxu0 0
      %705 = vmatpush1.bf16.msra.mxu0 0
      %706 = vmatprep.subr.bf16.mxu0 0
      %707 = vmatpush1.bf16.msra.mxu0 0
      %708 = vmatprep.subr.bf16.mxu0 0
      %709 = vmatpush1.bf16.msra.mxu0 0
      %710 = vmatprep.subr.bf16.mxu0 0
      %711 = vmatpush1.bf16.msra.mxu0 0
      %712 = vmatprep.subr.bf16.mxu0 0
      %713 = vmatpush1.bf16.msra.mxu0 0
      %714 = vmatprep.subr.bf16.mxu0 0
      %715 = vmatpush1.bf16.msra.mxu0 0
      %716 = vmatprep.mubr.bf16.mxu0 0
      %717 = vmatmul.mubr.bf16.gmra.mrb[0].mxu0 %v553
      %v718 = vpop.f32.mrb[0].mxu0
      %v719 = vadd.f32 %v614, %v718
      %v720 = vpop.f32.mrb[0].mxu0
      %v721 = vpop.f32.mrb[0].mxu0
      %v722 = vadd.f32 %v617, %v721
      %v723 = vpop.f32.mrb[0].mxu0
      %724 = vmatprep.mubr.bf16.mxu0 0
      %725 = vmatmul.mubr.bf16.gmra.mrb[0].mxu0 %v556
      %v726 = vpop.f32.mrb[0].mxu0
      %v727 = vadd.f32 %v622, %v726
      %v728 = vpop.f32.mrb[0].mxu0
      %v729 = vpop.f32.mrb[0].mxu0
      %v730 = vadd.f32 %v625, %v729
      %v731 = vpop.f32.mrb[0].mxu0
      %732 = vmatprep.mubr.bf16.mxu0 0
      %733 = vmatmul.mubr.bf16.gmra.mrb[0].mxu0 %v559
      %v734 = vpop.f32.mrb[0].mxu0
      %v735 = vadd.f32 %v630, %v734
      %v736 = vpop.f32.mrb[0].mxu0
      %v737 = vpop.f32.mrb[0].mxu0
      %v738 = vadd.f32 %v633, %v737
      %v739 = vpop.f32.mrb[0].mxu0
      %740 = vmatprep.mubr.bf16.mxu0 0
      %741 = vmatmul.mubr.bf16.gmra.mrb[0].mxu0 %v562
      %v742 = vpop.f32.mrb[0].mxu0
      %v743 = vadd.f32 %v638, %v742
      %v744 = vpop.f32.mrb[0].mxu0
      %v745 = vpop.f32.mrb[0].mxu0
      %v746 = vadd.f32 %v641, %v745
      %v747 = vpop.f32.mrb[0].mxu0
      %748 = vmatprep.mubr.bf16.mxu0 0
      %749 = vmatmul.mubr.bf16.gmra.mrb[0].mxu0 %v565
      %v750 = vpop.f32.mrb[0].mxu0
      %v751 = vadd.f32 %v646, %v750
      %v752 = vpop.f32.mrb[0].mxu0
      %v753 = vpop.f32.mrb[0].mxu0
      %v754 = vadd.f32 %v649, %v753
      %v755 = vpop.f32.mrb[0].mxu0
      %756 = vmatprep.mubr.bf16.mxu0 0
      %757 = vmatmul.mubr.bf16.gmra.mrb[0].mxu0 %v568
      %v758 = vpop.f32.mrb[0].mxu0
      %v759 = vadd.f32 %v654, %v758
      %v760 = vpop.f32.mrb[0].mxu0
      %v761 = vpop.f32.mrb[0].mxu0
      %v762 = vadd.f32 %v657, %v761
      %v763 = vpop.f32.mrb[0].mxu0
      %764 = vmatprep.mubr.bf16.mxu0 0
      %765 = vmatmul.mubr.bf16.gmra.mrb[0].mxu0 %v571
      %v766 = vpop.f32.mrb[0].mxu0
      %v767 = vadd.f32 %v662, %v766
      %v768 = vpop.f32.mrb[0].mxu0
      %v769 = vpop.f32.mrb[0].mxu0
      %v770 = vadd.f32 %v665, %v769
      %v771 = vpop.f32.mrb[0].mxu0
      %772 = vmatprep.mubr.bf16.mxu0 0
      %773 = vmatmul.mubr.bf16.gmra.mrb[0].mxu0 %v574
      %v774 = vpop.f32.mrb[0].mxu0
      %v775 = vadd.f32 %v670, %v774
      %v776 = vpop.f32.mrb[0].mxu0
      %v777 = vpop.f32.mrb[0].mxu0
      %v778 = vadd.f32 %v673, %v777
      %v779 = vpop.f32.mrb[0].mxu0
      %780 = vmatprep.mubr.bf16.mxu0 0
      %781 = vmatmul.mubr.bf16.gmra.mrb[0].mxu0 %v577
      %v782 = vpop.f32.mrb[0].mxu0
      %v783 = vadd.f32 %v678, %v782
      %v784 = vpop.f32.mrb[0].mxu0
      %v785 = vpop.f32.mrb[0].mxu0
      %v786 = vadd.f32 %v681, %v785
      %v787 = vpop.f32.mrb[0].mxu0
      %788 = vdwg.mxu0
      %v789 = vmax.f32 %v719, 0.0
      %v790 = vmax.f32 %v722, 0.0
      %v791 = vmax.f32 %v727, 0.0
      %v792 = vmax.f32 %v730, 0.0
      %v793 = vmax.f32 %v735, 0.0
      %v794 = vmax.f32 %v738, 0.0
      %v795 = vmax.f32 %v743, 0.0
      %v796 = vmax.f32 %v746, 0.0
      %v797 = vmax.f32 %v751, 0.0
      %v798 = vmax.f32 %v754, 0.0
      %v799 = vmax.f32 %v759, 0.0
      %v800 = vmax.f32 %v762, 0.0
      %v801 = vmax.f32 %v767, 0.0
      %v802 = vmax.f32 %v770, 0.0
      %v803 = vmax.f32 %v775, 0.0
      %v804 = vmax.f32 %v778, 0.0
      %v805 = vmax.f32 %v783, 0.0
      %v806 = vmax.f32 %v786, 0.0
      %vm807 = vcmask 523264
      %808 = vst.msk [vmem:[%s226] sm:$0xff] %vm807, %v789
      %809 = vst.msk [vmem:[%s226 + $0x8] sm:$0xff] %vm807, %v790
      %810 = vst.msk [vmem:[%s226 + $0x10] sm:$0xff] %vm807, %v791
      %811 = vst.msk [vmem:[%s226 + $0x18] sm:$0xff] %vm807, %v792
      %812 = vst.msk [vmem:[%s226 + $0x20] sm:$0xff] %vm807, %v793
      %813 = vst.msk [vmem:[%s226 + $0x28] sm:$0xff] %vm807, %v794
      %814 = vst.msk [vmem:[%s226 + $0x30] sm:$0xff] %vm807, %v795
      %815 = vst.msk [vmem:[%s226 + $0x38] sm:$0xff] %vm807, %v796
      %816 = vst.msk [vmem:[%s226 + $0x40] sm:$0xff] %vm807, %v797
      %817 = vst.msk [vmem:[%s226 + $0x48] sm:$0xff] %vm807, %v798
      %818 = vst.msk [vmem:[%s226 + $0x50] sm:$0xff] %vm807, %v799
      %819 = vst.msk [vmem:[%s226 + $0x58] sm:$0xff] %vm807, %v800
      %820 = vst.msk [vmem:[%s226 + $0x60] sm:$0xff] %vm807, %v801
      %821 = vst.msk [vmem:[%s226 + $0x68] sm:$0xff] %vm807, %v802
      %822 = vst.msk [vmem:[%s226 + $0x70] sm:$0xff] %vm807, %v803
      %823 = vst.msk [vmem:[%s226 + $0x78] sm:$0xff] %vm807, %v804
      %824 = vst.msk [vmem:[%s226 + $0x80] sm:$0xff] %vm807, %v805
      %825 = vst.msk [vmem:[%s226 + $0x88] sm:$0xff] %vm807, %v806
      %s826 = smul.u32 18, %s18
      %p827 = scmp.lt.s32.totalorder %s826, 35
      %s828 = scalar_select %p827, %s826, 35
      %p829 = scmp.lt.s32.totalorder %s19, 0
      %s830 = scalar_select %p829, %s19, 0
      %s831 = sadd.s32 %s830, %s828
      %s832 = smul.addr %s831, 8
      %s833 = scalar_lea.vmem %s3, %s832
      // Predicated region
      $region33: #{ae_forward.12} parent=31 // pred_check
        %p834 = pneg %p124
      $region34: #{ae_forward.12} parent=31 // pred_check_branch
        %836 = sbr.rel (%p834) target = $region36
      $region35: #{ae_forward.12} parent=31 // pred_region
        %s837 = smul.u32 18, %s18
      $region36: #{ae_forward.12} parent=31 // pred_fallthru
        _
    $region32: #{ae_forward.12} parent=5 // pred_fallthru
      _
    %p838 = scmp.le.s32.totalorder 2, %s9
    // Predicated region
    $region37: #{ae_forward.12} parent=5 // pred_check
      %p839 = pneg %p838
    $region38: #{ae_forward.12} parent=5 // pred_check_branch
      %841 = sbr.rel (%p839) target = $region40
    $region39: #{ae_forward.12} parent=5 // pred_region
      %s842 = ssub.s32 %s9, 2
      // Predicated region
      $region41: #{ae_forward.12} parent=39 // pred_check
        %p843 = pneg %p130
      $region42: #{ae_forward.12} parent=39 // pred_check_branch
        %845 = sbr.rel (%p843) target = $region44
      $region43: #{ae_forward.12} parent=39 // pred_region
        %s846 = smul.u32 18, %s20
        %p847 = scmp.lt.s32.totalorder %s846, 35
        %s848 = scalar_select %p847, %s846, 35
        %p849 = scmp.lt.s32.totalorder %s21, 0
        %s850 = scalar_select %p849, %s21, 0
        %s851 = sadd.s32 %s850, %s848
        %s852 = smul.addr %s851, 8
        %s853 = scalar_lea.vmem %s3, %s852
      $region44: #{ae_forward.12} parent=39 // pred_fallthru
        _
    $region40: #{ae_forward.12} parent=5 // pred_fallthru
      _
  $region6: #{ae_forward.12} parent=0 // loop_footer
    %s13 = sadd.s32 1, %s9
  $region7: #{ae_forward.12} parent=0 // loop_footer_branch
    %8 = sbr.rel target = $region3
  $region8: #{ae_forward.12} parent=0 // loop_exit
    _

// kernel: ae_forward.13
$region0: #{ae_forward.13}
  #allocation0 [shape = 'u32[]', space=smem, size = 0x4, offset = 0x4, fixed_abs, tag = 'smem constant byte address 0x4 - core index']
  #allocation1 [shape = 'u32[144,128]{1,0:T(1,128)}', space=vmem, size = 0x12000, scoped, tag = 'internal scratch']
  %s0 = inlined_call_operand.vmem [shape: bf16[72,576], index: 0, kind: input, shape index: {}]
  %s1 = inlined_call_operand.vmem [shape: bf16[576,128], index: 1, kind: input, shape index: {}]
  %s2 = inlined_call_operand.vmem [shape: f32[1,128], index: 2, kind: input, shape index: {}]
  %s3 = inlined_call_operand.vmem [shape: f32[72,128], index: 3, kind: output, shape index: {}]
  %s4 = sld [smem:[#allocation0]]
  $region22: #{ae_forward.13} parent=0
    _
  %s6 = ssub.s32 1, %s4
  %s7 = scalar_select 0, %s6, %s4
  // Predicated region
  $region2: #{ae_forward.13} parent=0 // pred_check
    _
  $region3: #{ae_forward.13} parent=0 // pred_check_branch
    %9 = sbr.rel (0) target = $region5
  $region4: #{ae_forward.13} parent=0 // pred_region
    _
  $region5: #{ae_forward.13} parent=0 // pred_fallthru
    _
  // Predicated region
  $region6: #{ae_forward.13} parent=0 // pred_check
    _
  $region7: #{ae_forward.13} parent=0 // pred_check_branch
    %11 = sbr.rel (0) target = $region9
  $region8: #{ae_forward.13} parent=0 // pred_region
    _
  $region9: #{ae_forward.13} parent=0 // pred_fallthru
    _
  // Predicated region
  $region10: #{ae_forward.13} parent=0 // pred_check
    _
  $region11: #{ae_forward.13} parent=0 // pred_check_branch
    %13 = sbr.rel (0) target = $region13
  $region12: #{ae_forward.13} parent=0 // pred_region
    _
  $region13: #{ae_forward.13} parent=0 // pred_fallthru
    _
  %v15 = vld [vmem:[%s0] sm:$0xff]
  %v16 = vld [vmem:[%s0 + $0x8] sm:$0xff]
  %v17 = vld [vmem:[%s0 + $0x10] sm:$0xf]
  %v18 = vld [vmem:[%s0 + $0x14] sm:$0xff]
  %v19 = vld [vmem:[%s0 + $0x1c] sm:$0xff]
  %v20 = vld [vmem:[%s0 + $0x24] sm:$0xf]
  %v21 = vld [vmem:[%s0 + $0x28] sm:$0xff]
  %v22 = vld [vmem:[%s0 + $0x30] sm:$0xff]
  %v23 = vld [vmem:[%s0 + $0x38] sm:$0xf]
  %v24 = vld [vmem:[%s0 + $0x3c] sm:$0xff]
  %v25 = vld [vmem:[%s0 + $0x44] sm:$0xff]
  %v26 = vld [vmem:[%s0 + $0x4c] sm:$0xf]
  %v27 = vld [vmem:[%s0 + $0x50] sm:$0xff]
  %v28 = vld [vmem:[%s0 + $0x58] sm:$0xff]
  %v29 = vld [vmem:[%s0 + $0x60] sm:$0xf]
  %v30 = vld [vmem:[%s0 + $0x64] sm:$0xff]
  %v31 = vld [vmem:[%s0 + $0x6c] sm:$0xff]
  %v32 = vld [vmem:[%s0 + $0x74] sm:$0xf]
  %v33 = vld [vmem:[%s0 + $0x78] sm:$0xff]
  %v34 = vld [vmem:[%s0 + $0x80] sm:$0xff]
  %v35 = vld [vmem:[%s0 + $0x88] sm:$0xf]
  %v36 = vld [vmem:[%s0 + $0x8c] sm:$0xff]
  %v37 = vld [vmem:[%s0 + $0x94] sm:$0xff]
  %v38 = vld [vmem:[%s0 + $0x9c] sm:$0xf]
  %v39 = vld [vmem:[%s0 + $0xa0] sm:$0xff]
  %v40 = vld [vmem:[%s0 + $0xa8] sm:$0xff]
  %v41 = vld [vmem:[%s0 + $0xb0] sm:$0xf]
  %v42 = vld [vmem:[%s1] sm:$0xf]
  %v43 = vld [vmem:[%s1 + $0x4] sm:$0xf]
  %v44 = vld [vmem:[%s1 + $0x8] sm:$0xf]
  %v45 = vld [vmem:[%s1 + $0xc] sm:$0xf]
  %v46 = vld [vmem:[%s1 + $0x10] sm:$0xf]
  %v47 = vld [vmem:[%s1 + $0x14] sm:$0xf]
  %v48 = vld [vmem:[%s1 + $0x18] sm:$0xf]
  %v49 = vld [vmem:[%s1 + $0x1c] sm:$0xf]
  %v50 = vld [vmem:[%s1 + $0x20] sm:$0xf]
  %v51 = vld [vmem:[%s1 + $0x24] sm:$0xf]
  %v52 = vld [vmem:[%s1 + $0x28] sm:$0xf]
  %v53 = vld [vmem:[%s1 + $0x2c] sm:$0xf]
  %v54 = vld [vmem:[%s1 + $0x30] sm:$0xf]
  %v55 = vld [vmem:[%s1 + $0x34] sm:$0xf]
  %v56 = vld [vmem:[%s1 + $0x38] sm:$0xf]
  %v57 = vld [vmem:[%s1 + $0x3c] sm:$0xf]
  %v58 = vld [vmem:[%s1 + $0x40] sm:$0xf]
  %v59 = vld [vmem:[%s1 + $0x44] sm:$0xf]
  %v60 = vld [vmem:[%s1 + $0x48] sm:$0xf]
  %v61 = vld [vmem:[%s1 + $0x4c] sm:$0xf]
  %v62 = vld [vmem:[%s1 + $0x50] sm:$0xf]
  %v63 = vld [vmem:[%s1 + $0x54] sm:$0xf]
  %v64 = vld [vmem:[%s1 + $0x58] sm:$0xf]
  %v65 = vld [vmem:[%s1 + $0x5c] sm:$0xf]
  %v66 = vld [vmem:[%s1 + $0x60] sm:$0xf]
  %v67 = vld [vmem:[%s1 + $0x64] sm:$0xf]
  %v68 = vld [vmem:[%s1 + $0x68] sm:$0xf]
  %v69 = vld [vmem:[%s1 + $0x6c] sm:$0xf]
  %v70 = vld [vmem:[%s1 + $0x70] sm:$0xf]
  %v71 = vld [vmem:[%s1 + $0x74] sm:$0xf]
  %v72 = vld [vmem:[%s1 + $0x78] sm:$0xf]
  %v73 = vld [vmem:[%s1 + $0x7c] sm:$0xf]
  %v74 = vld [vmem:[%s1 + $0x80] sm:$0xf]
  %v75 = vld [vmem:[%s1 + $0x84] sm:$0xf]
  %v76 = vld [vmem:[%s1 + $0x88] sm:$0xf]
  %v77 = vld [vmem:[%s1 + $0x8c] sm:$0xf]
  %v78 = vld [vmem:[%s1 + $0x90] sm:$0xf]
  %v79 = vld [vmem:[%s1 + $0x94] sm:$0xf]
  %v80 = vld [vmem:[%s1 + $0x98] sm:$0xf]
  %v81 = vld [vmem:[%s1 + $0x9c] sm:$0xf]
  %v82 = vld [vmem:[%s1 + $0xa0] sm:$0xf]
  %v83 = vld [vmem:[%s1 + $0xa4] sm:$0xf]
  %v84 = vld [vmem:[%s1 + $0xa8] sm:$0xf]
  %v85 = vld [vmem:[%s1 + $0xac] sm:$0xf]
  %v86 = vld [vmem:[%s1 + $0xb0] sm:$0xf]
  %v87 = vld [vmem:[%s1 + $0xb4] sm:$0xf]
  %v88 = vld [vmem:[%s1 + $0xb8] sm:$0xf]
  %v89 = vld [vmem:[%s1 + $0xbc] sm:$0xf]
  %v90 = vld [vmem:[%s1 + $0xc0] sm:$0xf]
  %v91 = vld [vmem:[%s1 + $0xc4] sm:$0xf]
  %v92 = vld [vmem:[%s1 + $0xc8] sm:$0xf]
  %v93 = vld [vmem:[%s1 + $0xcc] sm:$0xf]
  %v94 = vld [vmem:[%s1 + $0xd0] sm:$0xf]
  %v95 = vld [vmem:[%s1 + $0xd4] sm:$0xf]
  %v96 = vld [vmem:[%s1 + $0xd8] sm:$0xf]
  %v97 = vld [vmem:[%s1 + $0xdc] sm:$0xf]
  %v98 = vld [vmem:[%s1 + $0xe0] sm:$0xf]
  %v99 = vld [vmem:[%s1 + $0xe4] sm:$0xf]
  %v100 = vld [vmem:[%s1 + $0xe8] sm:$0xf]
  %v101 = vld [vmem:[%s1 + $0xec] sm:$0xf]
  %v102 = vld [vmem:[%s1 + $0xf0] sm:$0xf]
  %v103 = vld [vmem:[%s1 + $0xf4] sm:$0xf]
  %v104 = vld [vmem:[%s1 + $0xf8] sm:$0xf]
  %v105 = vld [vmem:[%s1 + $0xfc] sm:$0xf]
  %v106 = vld [vmem:[%s1 + $0x100] sm:$0xf]
  %v107 = vld [vmem:[%s1 + $0x104] sm:$0xf]
  %v108 = vld [vmem:[%s1 + $0x108] sm:$0xf]
  %v109 = vld [vmem:[%s1 + $0x10c] sm:$0xf]
  %v110 = vld [vmem:[%s1 + $0x110] sm:$0xf]
  %v111 = vld [vmem:[%s1 + $0x114] sm:$0xf]
  %v112 = vld [vmem:[%s1 + $0x118] sm:$0xf]
  %v113 = vld [vmem:[%s1 + $0x11c] sm:$0xf]
  %v114 = vld [vmem:[%s2] sm:$0x1]
  %v116 = vlaneseq
  %v117 = vshrl.u32 %v116, 7
  %v118 = vsub.s32 0, %v117
  %v119 = vrot.slane %v114, %v118
  %v148 = vunpack.c.l.b16 %v15
  %v149 = vunpack.c.h.b16 %v15
  %v150 = vunpack.c.l.b16 %v16
  %v151 = vunpack.c.h.b16 %v16
  %v152 = vunpack.c.l.b16 %v17
  %v153 = vunpack.c.l.b16 %v18
  %v154 = vunpack.c.h.b16 %v18
  %v155 = vunpack.c.l.b16 %v19
  %v156 = vunpack.c.h.b16 %v19
  %v157 = vunpack.c.l.b16 %v20
  %v158 = vunpack.c.l.b16 %v21
  %v159 = vunpack.c.h.b16 %v21
  %v160 = vunpack.c.l.b16 %v22
  %v161 = vunpack.c.h.b16 %v22
  %v162 = vunpack.c.l.b16 %v23
  %v163 = vunpack.c.l.b16 %v24
  %v164 = vunpack.c.h.b16 %v24
  %v165 = vunpack.c.l.b16 %v25
  %v166 = vunpack.c.h.b16 %v25
  %v167 = vunpack.c.l.b16 %v26
  %v168 = vunpack.c.l.b16 %v27
  %v169 = vunpack.c.h.b16 %v27
  %v170 = vunpack.c.l.b16 %v28
  %v171 = vunpack.c.h.b16 %v28
  %v172 = vunpack.c.l.b16 %v29
  %v173 = vunpack.c.l.b16 %v30
  %v174 = vunpack.c.h.b16 %v30
  %v175 = vunpack.c.l.b16 %v31
  %v176 = vunpack.c.h.b16 %v31
  %v177 = vunpack.c.l.b16 %v32
  %v178 = vunpack.c.l.b16 %v33
  %v179 = vunpack.c.h.b16 %v33
  %v180 = vunpack.c.l.b16 %v34
  %v181 = vunpack.c.h.b16 %v34
  %v182 = vunpack.c.l.b16 %v35
  %v183 = vunpack.c.l.b16 %v36
  %v184 = vunpack.c.h.b16 %v36
  %v185 = vunpack.c.l.b16 %v37
  %v186 = vunpack.c.h.b16 %v37
  %v187 = vunpack.c.l.b16 %v38
  %v188 = vunpack.c.l.b16 %v39
  %v189 = vunpack.c.h.b16 %v39
  %v190 = vunpack.c.l.b16 %v40
  %v191 = vunpack.c.h.b16 %v40
  %v192 = vunpack.c.l.b16 %v41
  %v193 = vpack.c.b16 %v153, %v148
  %v194 = vpack.c.b16 %v154, %v149
  %v195 = vpack.c.b16 %v155, %v150
  %v196 = vpack.c.b16 %v156, %v151
  %v197 = vpack.c.b16 %v157, %v152
  %v198 = vpack.c.b16 %v163, %v158
  %v199 = vpack.c.b16 %v164, %v159
  %v200 = vpack.c.b16 %v165, %v160
  %v201 = vpack.c.b16 %v166, %v161
  %v202 = vpack.c.b16 %v167, %v162
  %v203 = vpack.c.b16 %v173, %v168
  %v204 = vpack.c.b16 %v174, %v169
  %v205 = vpack.c.b16 %v175, %v170
  %v206 = vpack.c.b16 %v176, %v171
  %v207 = vpack.c.b16 %v177, %v172
  %v208 = vpack.c.b16 %v183, %v178
  %v209 = vpack.c.b16 %v184, %v179
  %v210 = vpack.c.b16 %v185, %v180
  %v211 = vpack.c.b16 %v186, %v181
  %v212 = vpack.c.b16 %v187, %v182
  %v213 = vpack.c.b16 %v188, %v188
  %v214 = vpack.c.b16 %v189, %v189
  %v215 = vpack.c.b16 %v190, %v190
  %v216 = vpack.c.b16 %v191, %v191
  %v217 = vpack.c.b16 %v192, %v192
  %v310 = vunpack.c.l.b16 %v42
  %v311 = vunpack.c.l.b16 %v43
  %v312 = vunpack.c.l.b16 %v44
  %v313 = vunpack.c.l.b16 %v45
  %v314 = vunpack.c.l.b16 %v46
  %v315 = vunpack.c.l.b16 %v47
  %v316 = vunpack.c.l.b16 %v48
  %v317 = vunpack.c.l.b16 %v49
  %v318 = vunpack.c.l.b16 %v50
  %v319 = vunpack.c.l.b16 %v51
  %v320 = vunpack.c.l.b16 %v52
  %v321 = vunpack.c.l.b16 %v53
  %v322 = vunpack.c.l.b16 %v54
  %v323 = vunpack.c.l.b16 %v55
  %v324 = vunpack.c.l.b16 %v56
  %v325 = vunpack.c.l.b16 %v57
  %v326 = vunpack.c.l.b16 %v58
  %v327 = vunpack.c.l.b16 %v59
  %v328 = vunpack.c.l.b16 %v60
  %v329 = vunpack.c.l.b16 %v61
  %v330 = vunpack.c.l.b16 %v62
  %v331 = vunpack.c.l.b16 %v63
  %v332 = vunpack.c.l.b16 %v64
  %v333 = vunpack.c.l.b16 %v65
  %v334 = vunpack.c.l.b16 %v66
  %v335 = vunpack.c.l.b16 %v67
  %v336 = vunpack.c.l.b16 %v68
  %v337 = vunpack.c.l.b16 %v69
  %v338 = vunpack.c.l.b16 %v70
  %v339 = vunpack.c.l.b16 %v71
  %v340 = vunpack.c.l.b16 %v72
  %v341 = vunpack.c.l.b16 %v73
  %v342 = vunpack.c.l.b16 %v74
  %v343 = vunpack.c.l.b16 %v75
  %v344 = vunpack.c.l.b16 %v76
  %v345 = vunpack.c.l.b16 %v77
  %v346 = vunpack.c.l.b16 %v78
  %v347 = vunpack.c.l.b16 %v79
  %v348 = vunpack.c.l.b16 %v80
  %v349 = vunpack.c.l.b16 %v81
  %v350 = vunpack.c.l.b16 %v82
  %v351 = vunpack.c.l.b16 %v83
  %v352 = vunpack.c.l.b16 %v84
  %v353 = vunpack.c.l.b16 %v85
  %v354 = vunpack.c.l.b16 %v86
  %v355 = vunpack.c.l.b16 %v87
  %v356 = vunpack.c.l.b16 %v88
  %v357 = vunpack.c.l.b16 %v89
  %v358 = vunpack.c.l.b16 %v90
  %v359 = vunpack.c.l.b16 %v91
  %v360 = vunpack.c.l.b16 %v92
  %v361 = vunpack.c.l.b16 %v93
  %v362 = vunpack.c.l.b16 %v94
  %v363 = vunpack.c.l.b16 %v95
  %v364 = vunpack.c.l.b16 %v96
  %v365 = vunpack.c.l.b16 %v97
  %v366 = vunpack.c.l.b16 %v98
  %v367 = vunpack.c.l.b16 %v99
  %v368 = vunpack.c.l.b16 %v100
  %v369 = vunpack.c.l.b16 %v101
  %v370 = vunpack.c.l.b16 %v102
  %v371 = vunpack.c.l.b16 %v103
  %v372 = vunpack.c.l.b16 %v104
  %v373 = vunpack.c.l.b16 %v105
  %v374 = vunpack.c.l.b16 %v106
  %v375 = vunpack.c.l.b16 %v107
  %v376 = vunpack.c.l.b16 %v108
  %v377 = vunpack.c.l.b16 %v109
  %v378 = vunpack.c.l.b16 %v110
  %v379 = vunpack.c.l.b16 %v111
  %v380 = vunpack.c.l.b16 %v112
  %v381 = vunpack.c.l.b16 %v113
  %v382 = vpack.c.b16 %v311, %v310
  %v383 = vpack.c.b16 %v313, %v312
  %v384 = vpack.c.b16 %v315, %v314
  %v385 = vpack.c.b16 %v317, %v316
  %v386 = vpack.c.b16 %v319, %v318
  %v387 = vpack.c.b16 %v321, %v320
  %v388 = vpack.c.b16 %v323, %v322
  %v389 = vpack.c.b16 %v325, %v324
  %v390 = vpack.c.b16 %v327, %v326
  %v391 = vpack.c.b16 %v329, %v328
  %v392 = vpack.c.b16 %v331, %v330
  %v393 = vpack.c.b16 %v333, %v332
  %v394 = vpack.c.b16 %v335, %v334
  %v395 = vpack.c.b16 %v337, %v336
  %v396 = vpack.c.b16 %v339, %v338
  %v397 = vpack.c.b16 %v341, %v340
  %v398 = vpack.c.b16 %v343, %v342
  %v399 = vpack.c.b16 %v345, %v344
  %v400 = vpack.c.b16 %v347, %v346
  %v401 = vpack.c.b16 %v349, %v348
  %v402 = vpack.c.b16 %v351, %v350
  %v403 = vpack.c.b16 %v353, %v352
  %v404 = vpack.c.b16 %v355, %v354
  %v405 = vpack.c.b16 %v357, %v356
  %v406 = vpack.c.b16 %v359, %v358
  %v407 = vpack.c.b16 %v361, %v360
  %v408 = vpack.c.b16 %v363, %v362
  %v409 = vpack.c.b16 %v365, %v364
  %v410 = vpack.c.b16 %v367, %v366
  %v411 = vpack.c.b16 %v369, %v368
  %v412 = vpack.c.b16 %v371, %v370
  %v413 = vpack.c.b16 %v373, %v372
  %v414 = vpack.c.b16 %v375, %v374
  %v415 = vpack.c.b16 %v377, %v376
  %v416 = vpack.c.b16 %v379, %v378
  %v417 = vpack.c.b16 %v381, %v380
  %vm454 = vcmask 523264
  %v456 = vsel %vm454, %v197, 0
  %v459 = vsel %vm454, %v202, 0
  %v462 = vsel %vm454, %v207, 0
  %v465 = vsel %vm454, %v212, 0
  %v468 = vsel %vm454, %v217, 0
  %470 = vmatprep.subr.bf16.mxu0 0
  %471 = vmatpush1.bf16.msra.mxu0 %v382
  %472 = vmatprep.subr.bf16.mxu0 0
  %473 = vmatpush1.bf16.msra.mxu0 %v383
  %474 = vmatprep.subr.bf16.mxu0 0
  %475 = vmatpush1.bf16.msra.mxu0 %v384
  %476 = vmatprep.subr.bf16.mxu0 0
  %477 = vmatpush1.bf16.msra.mxu0 %v385
  %478 = vmatprep.subr.bf16.mxu0 0
  %479 = vmatpush1.bf16.msra.mxu0 %v386
  %480 = vmatprep.subr.bf16.mxu0 0
  %481 = vmatpush1.bf16.msra.mxu0 %v387
  %482 = vmatprep.subr.bf16.mxu0 0
  %483 = vmatpush1.bf16.msra.mxu0 %v388
  %484 = vmatprep.subr.bf16.mxu0 0
  %485 = vmatpush1.bf16.msra.mxu0 %v389
  %486 = vmatprep.subr.bf16.mxu0 0
  %487 = vmatpush1.bf16.msra.mxu0 %v390
  %488 = vmatprep.subr.bf16.mxu0 0
  %489 = vmatpush1.bf16.msra.mxu0 %v391
  %490 = vmatprep.subr.bf16.mxu0 0
  %491 = vmatpush1.bf16.msra.mxu0 %v392
  %492 = vmatprep.subr.bf16.mxu0 0
  %493 = vmatpush1.bf16.msra.mxu0 %v393
  %494 = vmatprep.subr.bf16.mxu0 0
  %495 = vmatpush1.bf16.msra.mxu0 %v394
  %496 = vmatprep.subr.bf16.mxu0 0
  %497 = vmatpush1.bf16.msra.mxu0 %v395
  %498 = vmatprep.subr.bf16.mxu0 0
  %499 = vmatpush1.bf16.msra.mxu0 %v396
  %500 = vmatprep.subr.bf16.mxu0 0
  %501 = vmatpush1.bf16.msra.mxu0 %v397
  %502 = vmatprep.mubr.bf16.mxu0 %v194
  %503 = vmatmul.mubr.bf16.gmra.mrb[0].mxu0 %v193
  %v504 = vpop.f32.mrb[0].mxu0
  %v505 = vadd.f32 %v119, %v504
  %v506 = vpop.f32.mrb[0].mxu0
  %v507 = vpop.f32.mrb[0].mxu0
  %v508 = vadd.f32 %v119, %v507
  %v509 = vpop.f32.mrb[0].mxu0
  %510 = vmatprep.mubr.bf16.mxu0 %v199
  %511 = vmatmul.mubr.bf16.gmra.mrb[0].mxu0 %v198
  %v512 = vpop.f32.mrb[0].mxu0
  %v513 = vadd.f32 %v119, %v512
  %v514 = vpop.f32.mrb[0].mxu0
  %v515 = vpop.f32.mrb[0].mxu0
  %v516 = vadd.f32 %v119, %v515
  %v517 = vpop.f32.mrb[0].mxu0
  %518 = vmatprep.mubr.bf16.mxu0 %v204
  %519 = vmatmul.mubr.bf16.gmra.mrb[0].mxu0 %v203
  %v520 = vpop.f32.mrb[0].mxu0
  %v521 = vadd.f32 %v119, %v520
  %v522 = vpop.f32.mrb[0].mxu0
  %v523 = vpop.f32.mrb[0].mxu0
  %v524 = vadd.f32 %v119, %v523
  %v525 = vpop.f32.mrb[0].mxu0
  %526 = vmatprep.mubr.bf16.mxu0 %v209
  %527 = vmatmul.mubr.bf16.gmra.mrb[0].mxu0 %v208
  %v528 = vpop.f32.mrb[0].mxu0
  %v529 = vadd.f32 %v119, %v528
  %v530 = vpop.f32.mrb[0].mxu0
  %v531 = vpop.f32.mrb[0].mxu0
  %v532 = vadd.f32 %v119, %v531
  %v533 = vpop.f32.mrb[0].mxu0
  %534 = vmatprep.mubr.bf16.mxu0 %v214
  %535 = vmatmul.mubr.bf16.gmra.mrb[0].mxu0 %v213
  %v536 = vpop.f32.mrb[0].mxu0
  %v537 = vadd.f32 %v119, %v536
  %v538 = vpop.f32.mrb[0].mxu0
  %v539 = vpop.f32.mrb[0].mxu0
  %v540 = vpop.f32.mrb[0].mxu0
  %541 = vdwg.mxu0
  %542 = vmatprep.subr.bf16.mxu0 0
  %543 = vmatpush1.bf16.msra.mxu0 %v398
  %544 = vmatprep.subr.bf16.mxu0 0
  %545 = vmatpush1.bf16.msra.mxu0 %v399
  %546 = vmatprep.subr.bf16.mxu0 0
  %547 = vmatpush1.bf16.msra.mxu0 %v400
  %548 = vmatprep.subr.bf16.mxu0 0
  %549 = vmatpush1.bf16.msra.mxu0 %v401
  %550 = vmatprep.subr.bf16.mxu0 0
  %551 = vmatpush1.bf16.msra.mxu0 %v402
  %552 = vmatprep.subr.bf16.mxu0 0
  %553 = vmatpush1.bf16.msra.mxu0 %v403
  %554 = vmatprep.subr.bf16.mxu0 0
  %555 = vmatpush1.bf16.msra.mxu0 %v404
  %556 = vmatprep.subr.bf16.mxu0 0
  %557 = vmatpush1.bf16.msra.mxu0 %v405
  %558 = vmatprep.subr.bf16.mxu0 0
  %559 = vmatpush1.bf16.msra.mxu0 %v406
  %560 = vmatprep.subr.bf16.mxu0 0
  %561 = vmatpush1.bf16.msra.mxu0 %v407
  %562 = vmatprep.subr.bf16.mxu0 0
  %563 = vmatpush1.bf16.msra.mxu0 %v408
  %564 = vmatprep.subr.bf16.mxu0 0
  %565 = vmatpush1.bf16.msra.mxu0 %v409
  %566 = vmatprep.subr.bf16.mxu0 0
  %567 = vmatpush1.bf16.msra.mxu0 %v410
  %568 = vmatprep.subr.bf16.mxu0 0
  %569 = vmatpush1.bf16.msra.mxu0 %v411
  %570 = vmatprep.subr.bf16.mxu0 0
  %571 = vmatpush1.bf16.msra.mxu0 %v412
  %572 = vmatprep.subr.bf16.mxu0 0
  %573 = vmatpush1.bf16.msra.mxu0 %v413
  %574 = vmatprep.mubr.bf16.mxu0 %v196
  %575 = vmatmul.mubr.bf16.gmra.mrb[0].mxu0 %v195
  %v576 = vpop.f32.mrb[0].mxu0
  %v577 = vadd.f32 %v505, %v576
  %v578 = vpop.f32.mrb[0].mxu0
  %v579 = vpop.f32.mrb[0].mxu0
  %v580 = vadd.f32 %v508, %v579
  %v581 = vpop.f32.mrb[0].mxu0
  %582 = vmatprep.mubr.bf16.mxu0 %v201
  %583 = vmatmul.mubr.bf16.gmra.mrb[0].mxu0 %v200
  %v584 = vpop.f32.mrb[0].mxu0
  %v585 = vadd.f32 %v513, %v584
  %v586 = vpop.f32.mrb[0].mxu0
  %v587 = vpop.f32.mrb[0].mxu0
  %v588 = vadd.f32 %v516, %v587
  %v589 = vpop.f32.mrb[0].mxu0
  %590 = vmatprep.mubr.bf16.mxu0 %v206
  %591 = vmatmul.mubr.bf16.gmra.mrb[0].mxu0 %v205
  %v592 = vpop.f32.mrb[0].mxu0
  %v593 = vadd.f32 %v521, %v592
  %v594 = vpop.f32.mrb[0].mxu0
  %v595 = vpop.f32.mrb[0].mxu0
  %v596 = vadd.f32 %v524, %v595
  %v597 = vpop.f32.mrb[0].mxu0
  %598 = vmatprep.mubr.bf16.mxu0 %v211
  %599 = vmatmul.mubr.bf16.gmra.mrb[0].mxu0 %v210
  %v600 = vpop.f32.mrb[0].mxu0
  %v601 = vadd.f32 %v529, %v600
  %v602 = vpop.f32.mrb[0].mxu0
  %v603 = vpop.f32.mrb[0].mxu0
  %v604 = vadd.f32 %v532, %v603
  %v605 = vpop.f32.mrb[0].mxu0
  %606 = vmatprep.mubr.bf16.mxu0 %v216
  %607 = vmatmul.mubr.bf16.gmra.mrb[0].mxu0 %v215
  %v608 = vpop.f32.mrb[0].mxu0
  %v609 = vadd.f32 %v537, %v608
  %v610 = vpop.f32.mrb[0].mxu0
  %v611 = vpop.f32.mrb[0].mxu0
  %v612 = vpop.f32.mrb[0].mxu0
  %613 = vdwg.mxu0
  %614 = vmatprep.subr.bf16.mxu0 0
  %615 = vmatpush1.bf16.msra.mxu0 %v414
  %616 = vmatprep.subr.bf16.mxu0 0
  %617 = vmatpush1.bf16.msra.mxu0 %v415
  %618 = vmatprep.subr.bf16.mxu0 0
  %619 = vmatpush1.bf16.msra.mxu0 %v416
  %620 = vmatprep.subr.bf16.mxu0 0
  %621 = vmatpush1.bf16.msra.mxu0 %v417
  %622 = vmatprep.subr.bf16.mxu0 0
  %623 = vmatpush1.bf16.msra.mxu0 0
  %624 = vmatprep.subr.bf16.mxu0 0
  %625 = vmatpush1.bf16.msra.mxu0 0
  %626 = vmatprep.subr.bf16.mxu0 0
  %627 = vmatpush1.bf16.msra.mxu0 0
  %628 = vmatprep.subr.bf16.mxu0 0
  %629 = vmatpush1.bf16.msra.mxu0 0
  %630 = vmatprep.subr.bf16.mxu0 0
  %631 = vmatpush1.bf16.msra.mxu0 0
  %632 = vmatprep.subr.bf16.mxu0 0
  %633 = vmatpush1.bf16.msra.mxu0 0
  %634 = vmatprep.subr.bf16.mxu0 0
  %635 = vmatpush1.bf16.msra.mxu0 0
  %636 = vmatprep.subr.bf16.mxu0 0
  %637 = vmatpush1.bf16.msra.mxu0 0
  %638 = vmatprep.subr.bf16.mxu0 0
  %639 = vmatpush1.bf16.msra.mxu0 0
  %640 = vmatprep.subr.bf16.mxu0 0
  %641 = vmatpush1.bf16.msra.mxu0 0
  %642 = vmatprep.subr.bf16.mxu0 0
  %643 = vmatpush1.bf16.msra.mxu0 0
  %644 = vmatprep.subr.bf16.mxu0 0
  %645 = vmatpush1.bf16.msra.mxu0 0
  %646 = vmatprep.mubr.bf16.mxu0 0
  %647 = vmatmul.mubr.bf16.gmra.mrb[0].mxu0 %v456
  %v648 = vpop.f32.mrb[0].mxu0
  %v649 = vadd.f32 %v577, %v648
  %v650 = vpop.f32.mrb[0].mxu0
  %v651 = vpop.f32.mrb[0].mxu0
  %v652 = vadd.f32 %v580, %v651
  %v653 = vpop.f32.mrb[0].mxu0
  %654 = vmatprep.mubr.bf16.mxu0 0
  %655 = vmatmul.mubr.bf16.gmra.mrb[0].mxu0 %v459
  %v656 = vpop.f32.mrb[0].mxu0
  %v657 = vadd.f32 %v585, %v656
  %v658 = vpop.f32.mrb[0].mxu0
  %v659 = vpop.f32.mrb[0].mxu0
  %v660 = vadd.f32 %v588, %v659
  %v661 = vpop.f32.mrb[0].mxu0
  %662 = vmatprep.mubr.bf16.mxu0 0
  %663 = vmatmul.mubr.bf16.gmra.mrb[0].mxu0 %v462
  %v664 = vpop.f32.mrb[0].mxu0
  %v665 = vadd.f32 %v593, %v664
  %v666 = vpop.f32.mrb[0].mxu0
  %v667 = vpop.f32.mrb[0].mxu0
  %v668 = vadd.f32 %v596, %v667
  %v669 = vpop.f32.mrb[0].mxu0
  %670 = vmatprep.mubr.bf16.mxu0 0
  %671 = vmatmul.mubr.bf16.gmra.mrb[0].mxu0 %v465
  %v672 = vpop.f32.mrb[0].mxu0
  %v673 = vadd.f32 %v601, %v672
  %v674 = vpop.f32.mrb[0].mxu0
  %v675 = vpop.f32.mrb[0].mxu0
  %v676 = vadd.f32 %v604, %v675
  %v677 = vpop.f32.mrb[0].mxu0
  %678 = vmatprep.mubr.bf16.mxu0 0
  %679 = vmatmul.mubr.bf16.gmra.mrb[0].mxu0 %v468
  %v680 = vpop.f32.mrb[0].mxu0
  %v681 = vadd.f32 %v609, %v680
  %v682 = vpop.f32.mrb[0].mxu0
  %v683 = vpop.f32.mrb[0].mxu0
  %v684 = vpop.f32.mrb[0].mxu0
  %685 = vdwg.mxu0
  %v686 = vmax.f32 %v649, 0.0
  %v687 = vmax.f32 %v652, 0.0
  %v688 = vmax.f32 %v657, 0.0
  %v689 = vmax.f32 %v660, 0.0
  %v690 = vmax.f32 %v665, 0.0
  %v691 = vmax.f32 %v668, 0.0
  %v692 = vmax.f32 %v673, 0.0
  %v693 = vmax.f32 %v676, 0.0
  %v694 = vmax.f32 %v681, 0.0
  %695 = vst [vmem:[%s3] sm:$0xff] %v686
  %696 = vst [vmem:[%s3 + $0x8] sm:$0xff] %v687
  %697 = vst [vmem:[%s3 + $0x10] sm:$0xff] %v688
  %698 = vst [vmem:[%s3 + $0x18] sm:$0xff] %v689
  %699 = vst [vmem:[%s3 + $0x20] sm:$0xff] %v690
  %700 = vst [vmem:[%s3 + $0x28] sm:$0xff] %v691
  %701 = vst [vmem:[%s3 + $0x30] sm:$0xff] %v692
  %702 = vst [vmem:[%s3 + $0x38] sm:$0xff] %v693
  %703 = vst [vmem:[%s3 + $0x40] sm:$0xff] %v694
  // Predicated region
  $region14: #{ae_forward.13} parent=0 // pred_check
    _
  $region15: #{ae_forward.13} parent=0 // pred_check_branch
    %705 = sbr.rel (0) target = $region17
  $region16: #{ae_forward.13} parent=0 // pred_region
    _
  $region17: #{ae_forward.13} parent=0 // pred_fallthru
    _
  // Predicated region
  $region18: #{ae_forward.13} parent=0 // pred_check
    _
  $region19: #{ae_forward.13} parent=0 // pred_check_branch
    %707 = sbr.rel (0) target = $region21
  $region20: #{ae_forward.13} parent=0 // pred_region
    _
  $region21: #{ae_forward.13} parent=0 // pred_fallthru
    _

// kernel: ae_forward.15
$region0: #{ae_forward.15}
  #allocation0 [shape = 'u32[]', space=smem, size = 0x4, offset = 0x4, fixed_abs, tag = 'smem constant byte address 0x4 - core index']
  #allocation1 [shape = 'u32[144,128]{1,0:T(1,128)}', space=vmem, size = 0x12000, scoped, tag = 'internal scratch']
  %s0 = inlined_call_operand.vmem [shape: bf16[2,32], index: 0, kind: input, shape index: {}]
  %s1 = inlined_call_operand.vmem [shape: bf16[32,4608], index: 1, kind: input, shape index: {}]
  %s2 = inlined_call_operand.vmem [shape: f32[1,4608], index: 2, kind: input, shape index: {}]
  %s3 = inlined_call_operand.vmem [shape: f32[2,4608], index: 3, kind: output, shape index: {}]
  %s4 = sld [smem:[#allocation0]]
  $region68: #{ae_forward.15} parent=0
    _
  %s6 = ssub.s32 1, %s4
  %s7 = scalar_select 0, %s6, %s4
  $region1: #{ae_forward.15} parent=0
    #allocation2 [shape = 'u8[65536]{0}', space=vmem, size = 0x10000, scoped, tag = 'input window, operand 1']
    loop: start=0, step=1, limit=11
    $region2: #{ae_forward.15} parent=1 // loop_pre_header
      _
    $region3: #{ae_forward.15} parent=1 // loop_header
      %s9 = sphi 0, %s13
      %p10 = scmp.ge.s32.totalorder %s9, 11
      %s16 = sphi 0, %s28
      %s17 = sphi 0, %s24
      %s18 = sphi 0, %s16
      %s19 = sphi 0, %s17
      %s20 = sphi 0, %s18
      %s21 = sphi 0, %s19
      %s31 = sphi 0, %s33
      %s34 = sphi 0, %s31
      %s35 = sphi 0, %s34
      %s51 = sphi 0, %s35
      %s57 = sphi 0, %s59
      %s60 = sphi 0, %s57
      %s61 = sphi 0, %s60
      %s77 = sphi 0, %s61
      %s83 = sphi 0, %s85
      %s86 = sphi 0, %s83
      %s87 = sphi 0, %s86
      %s103 = sphi 0, %s87
      %s111 = sphi 0, %s113
      %s114 = sphi 0, %s111
      %s115 = sphi 0, %s114
      %s131 = sphi 0, %s115
    $region4: #{ae_forward.15} parent=1 // loop_header_branch
      %12 = sbr.rel (%p10) target = $region8
    $region5: #{ae_forward.15} parent=1 // loop_body
      %s14 = ssub.s32 %s9, 1
      %s15 = ssub.s32 %s9, 2
      %s22 = sadd.s32 1, %s17
      %p23 = scmp.ge.s32.totalorder %s22, 9
      %s24 = scalar_select %p23, 0, %s22
      %s25 = sadd.s32 1, %s16
      %s26 = scalar_select %p23, %s25, %s16
      %p27 = scmp.ge.s32.totalorder %s26, 1
      %s28 = scalar_select %p27, 0, %s26
      %s29 = ssub.s32 %s16, %s28
      %p30 = scmp.eq.s32.totalorder %s29, 0
      %s32 = sadd.s32 %s31, 1
      %s33 = scalar_select %p30, %s31, %s32
      %p36 = pneg %p30
      %p37 = scmp.eq.s32.totalorder %s9, 8
      %p38 = por %p36, %p37
      %p39 = scmp.ne.s32.totalorder %s31, %s34
      %p40 = scmp.eq.s32.totalorder %s9, 0
      %p41 = por %p39, %p40
      %p42 = scmp.ne.s32.totalorder %s31, %s34
      %p43 = scmp.eq.s32.totalorder %s14, 8
      %p44 = por %p42, %p43
      %p45 = scmp.ne.s32.totalorder %s34, %s35
      %p46 = scmp.eq.s32.totalorder %s14, 0
      %p47 = por %p45, %p46
      %p48 = scmp.ne.s32.totalorder %s34, %s35
      %p49 = scmp.eq.s32.totalorder %s15, 8
      %p50 = por %p48, %p49
      %p52 = scmp.ne.s32.totalorder %s35, %s51
      %p53 = scmp.eq.s32.totalorder %s15, 0
      %p54 = por %p52, %p53
      %s55 = ssub.s32 %s17, %s24
      %p56 = scmp.eq.s32.totalorder %s55, 0
      %s58 = sadd.s32 %s57, 1
      %s59 = scalar_select %p56, %s57, %s58
      %p62 = pneg %p56
      %p63 = scmp.eq.s32.totalorder %s9, 8
      %p64 = por %p62, %p63
      %p65 = scmp.ne.s32.totalorder %s57, %s60
      %p66 = scmp.eq.s32.totalorder %s9, 0
      %p67 = por %p65, %p66
      %p68 = scmp.ne.s32.totalorder %s57, %s60
      %p69 = scmp.eq.s32.totalorder %s14, 8
      %p70 = por %p68, %p69
      %p71 = scmp.ne.s32.totalorder %s60, %s61
      %p72 = scmp.eq.s32.totalorder %s14, 0
      %p73 = por %p71, %p72
      %p74 = scmp.ne.s32.totalorder %s60, %s61
      %p75 = scmp.eq.s32.totalorder %s15, 8
      %p76 = por %p74, %p75
      %p78 = scmp.ne.s32.totalorder %s61, %s77
      %p79 = scmp.eq.s32.totalorder %s15, 0
      %p80 = por %p78, %p79
      %s81 = ssub.s32 %s17, %s24
      %p82 = scmp.eq.s32.totalorder %s81, 0
      %s84 = sadd.s32 %s83, 1
      %s85 = scalar_select %p82, %s83, %s84
      %p88 = pneg %p82
      %p89 = scmp.eq.s32.totalorder %s9, 8
      %p90 = por %p88, %p89
      %p91 = scmp.ne.s32.totalorder %s83, %s86
      %p92 = scmp.eq.s32.totalorder %s9, 0
      %p93 = por %p91, %p92
      %p94 = scmp.ne.s32.totalorder %s83, %s86
      %p95 = scmp.eq.s32.totalorder %s14, 8
      %p96 = por %p94, %p95
      %p97 = scmp.ne.s32.totalorder %s86, %s87
      %p98 = scmp.eq.s32.totalorder %s14, 0
      %p99 = por %p97, %p98
      %p100 = scmp.ne.s32.totalorder %s86, %s87
      %p101 = scmp.eq.s32.totalorder %s15, 8
      %p102 = por %p100, %p101
      %p104 = scmp.ne.s32.totalorder %s87, %s103
      %p105 = scmp.eq.s32.totalorder %s15, 0
      %p106 = por %p104, %p105
      %s107 = ssub.s32 %s16, %s28
      %s108 = ssub.s32 %s17, %s24
      %s109 = sor.u32 %s107, %s108
      %p110 = scmp.eq.s32.totalorder %s109, 0
      %s112 = sadd.s32 %s111, 1
      %s113 = scalar_select %p110, %s111, %s112
      %p116 = pneg %p110
      %p117 = scmp.eq.s32.totalorder %s9, 8
      %p118 = por %p116, %p117
      %p119 = scmp.ne.s32.totalorder %s111, %s114
      %p120 = scmp.eq.s32.totalorder %s9, 0
      %p121 = por %p119, %p120
      %p122 = scmp.ne.s32.totalorder %s111, %s114
      %p123 = scmp.eq.s32.totalorder %s14, 8
      %p124 = por %p122, %p123
      %p125 = scmp.ne.s32.totalorder %s114, %s115
      %p126 = scmp.eq.s32.totalorder %s14, 0
      %p127 = por %p125, %p126
      %p128 = scmp.ne.s32.totalorder %s114, %s115
      %p129 = scmp.eq.s32.totalorder %s15, 8
      %p130 = por %p128, %p129
      %p132 = scmp.ne.s32.totalorder %s115, %s131
      %p133 = scmp.eq.s32.totalorder %s15, 0
      %p134 = por %p132, %p133
      %p135 = scmp.le.s32.totalorder 1, %s9
      %p136 = scmp.lt.s32.totalorder %s9, 10
      %p137 = pnand %p135, %p136
      %p138 = pneg %p137
      // Predicated region
      $region9: #{ae_forward.15} parent=5 // pred_check
        _
      $region10: #{ae_forward.15} parent=5 // pred_check_branch
        %140 = sbr.rel (%p137) target = $region12
      $region11: #{ae_forward.15} parent=5 // pred_region
        %s141 = ssub.s32 %s9, 1
        // Predicated region
        $region13: #{ae_forward.15} parent=11 // pred_check
          %p142 = pneg %p47
        $region14: #{ae_forward.15} parent=11 // pred_check_branch
          %144 = sbr.rel (%p142) target = $region16
        $region15: #{ae_forward.15} parent=11 // pred_region
          %p145 = scmp.lt.s32.totalorder %s18, 0
          %s146 = scalar_select %p145, %s18, 0
          %s147 = scalar_lea.vmem %s0, %s146
        $region16: #{ae_forward.15} parent=11 // pred_fallthru
          _
      $region12: #{ae_forward.15} parent=5 // pred_fallthru
        _
      %p148 = scmp.lt.s32.totalorder %s9, 9
      // Predicated region
      $region17: #{ae_forward.15} parent=5 // pred_check
        %p149 = pneg %p148
      $region18: #{ae_forward.15} parent=5 // pred_check_branch
        %151 = sbr.rel (%p149) target = $region20
      $region19: #{ae_forward.15} parent=5 // pred_region
        // Predicated region
        $region21: #{ae_forward.15} parent=19 // pred_check
          %p152 = pneg %p67
        $region22: #{ae_forward.15} parent=19 // pred_check_branch
          %154 = sbr.rel (%p152) target = $region24
        $region23: #{ae_forward.15} parent=19 // pred_region
          %s155 = sand.u32 %s57, 1
          %s156 = sand.u32 %s57, 1
          %s157 = smul.addr %s156, 64
          %s158 = scalar_lea.vmem [#allocation2], %s157
          %s159 = smul.u32 4, %s17
          %s160 = smul.addr %s159, 4
          %s161 = scalar_lea.vmem %s1, %s160
          // Predicated region
          $region25: #{ae_forward.15} parent=23 // pred_check
            _
          $region26: #{ae_forward.15} parent=23 // pred_check_branch
            %163 = sbr.rel (0) target = $region28
          $region27: #{ae_forward.15} parent=23 // pred_region
            // Predicated region
            $region29: #{ae_forward.15} parent=27 // pred_check
              _
            $region30: #{ae_forward.15} parent=27 // pred_check_branch
              %165 = sbr.rel (0) target = $region32
            $region31: #{ae_forward.15} parent=27 // pred_region
              loop: start=0, step=1, limit=1
              $region33: #{ae_forward.15} parent=31 // loop_pre_header
                _
              $region34: #{ae_forward.15} parent=31 // loop_header
                %s167 = sphi 0, %s171
                %p168 = scmp.ge.s32.totalorder %s167, 1
                %s172 = sphi %s161, %s161
                %s173 = sphi %s158, %s158
              $region35: #{ae_forward.15} parent=31 // loop_header_branch
                %170 = sbr.rel (%p168) target = $region39
              $region36: #{ae_forward.15} parent=31 // loop_body
                %v174 = vld [vmem:[%s172] sm:$0xff]
                %175 = vst [vmem:[%s173] sm:$0xff] %v174
                %v176 = vld [vmem:[%s172 + $0x8] sm:$0xff]
                %177 = vst [vmem:[%s173 + $0x8] sm:$0xff] %v176
                %v178 = vld [vmem:[%s172 + $0x90] sm:$0xff]
                %179 = vst [vmem:[%s173 + $0x10] sm:$0xff] %v178
                %v180 = vld [vmem:[%s172 + $0x98] sm:$0xff]
                %181 = vst [vmem:[%s173 + $0x18] sm:$0xff] %v180
                %v182 = vld [vmem:[%s172 + $0x120] sm:$0xff]
                %183 = vst [vmem:[%s173 + $0x20] sm:$0xff] %v182
                %v184 = vld [vmem:[%s172 + $0x128] sm:$0xff]
                %185 = vst [vmem:[%s173 + $0x28] sm:$0xff] %v184
                %v186 = vld [vmem:[%s172 + $0x1b0] sm:$0xff]
                %187 = vst [vmem:[%s173 + $0x30] sm:$0xff] %v186
                %v188 = vld [vmem:[%s172 + $0x1b8] sm:$0xff]
                %189 = vst [vmem:[%s173 + $0x38] sm:$0xff] %v188
              $region37: #{ae_forward.15} parent=31 // loop_footer
                %s171 = sadd.s32 1, %s167
              $region38: #{ae_forward.15} parent=31 // loop_footer_branch
                %166 = sbr.rel target = $region34
              $region39: #{ae_forward.15} parent=31 // loop_exit
                _
            $region32: #{ae_forward.15} parent=27 // pred_fallthru
              _
            // Predicated region
            $region40: #{ae_forward.15} parent=27 // pred_check
              _
            $region41: #{ae_forward.15} parent=27 // pred_check_branch
              %191 = sbr.rel target = $region43
            $region42: #{ae_forward.15} parent=27 // pred_region
              _
            $region43: #{ae_forward.15} parent=27 // pred_fallthru
              _
          $region28: #{ae_forward.15} parent=23 // pred_fallthru
            _
          %192 = vnop
        $region24: #{ae_forward.15} parent=19 // pred_fallthru
          _
        // Predicated region
        $region44: #{ae_forward.15} parent=19 // pred_check
          %p193 = pneg %p93
        $region45: #{ae_forward.15} parent=19 // pred_check_branch
          %195 = sbr.rel (%p193) target = $region47
        $region46: #{ae_forward.15} parent=19 // pred_region
          %s196 = smul.u32 4, %s17
          %p197 = scmp.lt.s32.totalorder %s196, 35
          %s198 = scalar_select %p197, %s196, 35
          %s199 = scalar_lea.vmem %s2, %s198
          %s200 = smul.u32 4, %s17
        $region47: #{ae_forward.15} parent=19 // pred_fallthru
          _
      $region20: #{ae_forward.15} parent=5 // pred_fallthru
        _
      %p201 = scmp.le.s32.totalorder 1, %s9
      %p202 = scmp.lt.s32.totalorder %s9, 10
      %p203 = pnand %p201, %p202
      %p204 = pneg %p203
      // Predicated region
      $region48: #{ae_forward.15} parent=5 // pred_check
        _
      $region49: #{ae_forward.15} parent=5 // pred_check_branch
        %206 = sbr.rel (%p203) target = $region51
      $region50: #{ae_forward.15} parent=5 // pred_region
        %s207 = ssub.s32 %s9, 1
        %s208 = sand.u32 %s60, 1
        %s209 = sand.u32 %s60, 1
        %s210 = smul.addr %s209, 64
        %s211 = scalar_lea.vmem [#allocation2], %s210
        // Predicated region
        $region52: #{ae_forward.15} parent=50 // pred_check
          %p212 = pneg %p73
        $region53: #{ae_forward.15} parent=50 // pred_check_branch
          %214 = sbr.rel (%p212) target = $region55
        $region54: #{ae_forward.15} parent=50 // pred_region
          _
        $region55: #{ae_forward.15} parent=50 // pred_fallthru
          _
        %p215 = scmp.lt.s32.totalorder %s18, 0
        %s216 = scalar_select %p215, %s18, 0
        %s217 = scalar_lea.vmem %s0, %s216
        %p218 = pneg %p47
        %p219 = pneg %p44
        %s220 = sand.u32 %s60, 1
        %s221 = sand.u32 %s60, 1
        %s222 = smul.addr %s221, 64
        %s223 = scalar_lea.vmem [#allocation2], %s222
        %p224 = pneg %p73
        %p225 = pneg %p70
        %s226 = smul.u32 4, %s19
        %p227 = scmp.lt.s32.totalorder %s226, 35
        %s228 = scalar_select %p227, %s226, 35
        %s229 = scalar_lea.vmem %s2, %s228
        %p230 = pneg %p99
        %p231 = pneg %p96
        %p232 = pneg %p127
        %p233 = pneg %p124
        %s234 = smul.u32 4, %s19
        %p235 = scmp.lt.s32.totalorder %s18, 0
        %s236 = scalar_select %p235, %s18, 0
        %p237 = scmp.lt.s32.totalorder %s234, 35
        %s238 = scalar_select %p237, %s234, 35
        %s239 = smul.addr %s236, 36
        %s240 = sadd.s32 %s238, %s239
        %s241 = smul.addr %s240, 2
        %s242 = scalar_lea.vmem %s3, %s241
        %p243 = scmp.lt.s32.totalorder %s18, 0
        %s244 = scalar_select %p243, %s18, 0
        %s245 = scalar_lea.vmem %s0, %s244
        %s246 = smul.u32 4, %s19
        %s247 = smul.u32 4, %s19
        %p248 = scmp.lt.s32.totalorder %s247, 35
        %s249 = scalar_select %p248, %s247, 35
        %s250 = scalar_lea.vmem %s2, %s249
        %s251 = smul.u32 4, %s19
        %s252 = smul.u32 4, %s19
        %p253 = scmp.lt.s32.totalorder %s18, 0
        %s254 = scalar_select %p253, %s18, 0
        %p255 = scmp.lt.s32.totalorder %s252, 35
        %s256 = scalar_select %p255, %s252, 35
        %s257 = smul.addr %s254, 36
        %s258 = sadd.s32 %s256, %s257
        %s259 = smul.addr %s258, 2
        %s260 = scalar_lea.vmem %s3, %s259
        %s261 = smul.u32 4, %s19
        %v263 = vld [vmem:[%s245] sm:$0x1]
        %v264 = vld [vmem:[%s211] sm:$0xff]
        %v265 = vld [vmem:[%s211 + $0x8] sm:$0xff]
        %v266 = vld [vmem:[%s211 + $0x10] sm:$0xff]
        %v267 = vld [vmem:[%s211 + $0x18] sm:$0xff]
        %v268 = vld [vmem:[%s211 + $0x20] sm:$0xff]
        %v269 = vld [vmem:[%s211 + $0x28] sm:$0xff]
        %v270 = vld [vmem:[%s211 + $0x30] sm:$0xff]
        %v271 = vld [vmem:[%s211 + $0x38] sm:$0xff]
        %v272 = vld [vmem:[%s250] sm:$0xf]
        %v274 = vlaneseq
        %v275 = vshrl.u32 %v274, 7
        %v276 = vsub.s32 0, %v275
        %v277 = vrot.slane %v272, %v276
        %v278 = vlaneseq
        %v279 = vshrl.u32 %v278, 7
        %v280 = vsub.s32 1, %v279
        %v281 = vrot.slane %v272, %v280
        %v282 = vlaneseq
        %v283 = vshrl.u32 %v282, 7
        %v284 = vsub.s32 2, %v283
        %v285 = vrot.slane %v272, %v284
        %v286 = vlaneseq
        %v287 = vshrl.u32 %v286, 7
        %v288 = vsub.s32 3, %v287
        %v289 = vrot.slane %v272, %v288
        %v302 = vunpack.c.l.b16 %v264
        %v303 = vunpack.c.h.b16 %v264
        %v304 = vunpack.c.l.b16 %v265
        %v305 = vunpack.c.h.b16 %v265
        %v306 = vunpack.c.l.b16 %v266
        %v307 = vunpack.c.h.b16 %v266
        %v308 = vunpack.c.l.b16 %v267
        %v309 = vunpack.c.h.b16 %v267
        %v310 = vunpack.c.l.b16 %v268
        %v311 = vunpack.c.h.b16 %v268
        %v312 = vunpack.c.l.b16 %v269
        %v313 = vunpack.c.h.b16 %v269
        %v314 = vunpack.c.l.b16 %v270
        %v315 = vunpack.c.h.b16 %v270
        %v316 = vunpack.c.l.b16 %v271
        %v317 = vunpack.c.h.b16 %v271
        %v318 = vpack.c.b16 %v306, %v302
        %v319 = vpack.c.b16 %v307, %v303
        %v320 = vpack.c.b16 %v308, %v304
        %v321 = vpack.c.b16 %v309, %v305
        %v322 = vpack.c.b16 %v314, %v310
        %v323 = vpack.c.b16 %v315, %v311
        %v324 = vpack.c.b16 %v316, %v312
        %v325 = vpack.c.b16 %v317, %v313
        %vm334 = vcmask 261120
        %v336 = vsel %vm334, %v263, 0
        %338 = vmatprep.subr.bf16.mxu0 %v319
        %339 = vmatpush1.bf16.msra.mxu0 %v318
        %340 = vmatprep.subr.bf16.mxu0 %v323
        %341 = vmatpush1.bf16.msra.mxu0 %v322
        %342 = vmatprep.subr.bf16.mxu0 0
        %343 = vmatpush1.bf16.msra.mxu0 0
        %344 = vmatprep.subr.bf16.mxu0 0
        %345 = vmatpush1.bf16.msra.mxu0 0
        %346 = vmatprep.subr.bf16.mxu0 0
        %347 = vmatpush1.bf16.msra.mxu0 0
        %348 = vmatprep.subr.bf16.mxu0 0
        %349 = vmatpush1.bf16.msra.mxu0 0
        %350 = vmatprep.subr.bf16.mxu0 0
        %351 = vmatpush1.bf16.msra.mxu0 0
        %352 = vmatprep.subr.bf16.mxu0 0
        %353 = vmatpush1.bf16.msra.mxu0 0
        %354 = vmatprep.subr.bf16.mxu0 0
        %355 = vmatpush1.bf16.msra.mxu0 0
        %356 = vmatprep.subr.bf16.mxu0 0
        %357 = vmatpush1.bf16.msra.mxu0 0
        %358 = vmatprep.subr.bf16.mxu0 0
        %359 = vmatpush1.bf16.msra.mxu0 0
        %360 = vmatprep.subr.bf16.mxu0 0
        %361 = vmatpush1.bf16.msra.mxu0 0
        %362 = vmatprep.subr.bf16.mxu0 0
        %363 = vmatpush1.bf16.msra.mxu0 0
        %364 = vmatprep.subr.bf16.mxu0 0
        %365 = vmatpush1.bf16.msra.mxu0 0
        %366 = vmatprep.subr.bf16.mxu0 0
        %367 = vmatpush1.bf16.msra.mxu0 0
        %368 = vmatprep.subr.bf16.mxu0 0
        %369 = vmatpush1.bf16.msra.mxu0 0
        %370 = vmatprep.mubr.bf16.mxu0 0
        %371 = vmatmul.mubr.bf16.gmra.mrb[0].mxu0 %v336
        %v372 = vpop.f32.mrb[0].mxu0
        %v373 = vadd.f32 %v277, %v372
        %v374 = vpop.f32.mrb[0].mxu0
        %v375 = vadd.f32 %v281, %v374
        %v376 = vpop.f32.mrb[0].mxu0
        %v377 = vpop.f32.mrb[0].mxu0
        %378 = vdwg.mxu0
        %379 = vmatprep.subr.bf16.mxu0 %v321
        %380 = vmatpush1.bf16.msra.mxu0 %v320
        %381 = vmatprep.subr.bf16.mxu0 %v325
        %382 = vmatpush1.bf16.msra.mxu0 %v324
        %383 = vmatprep.subr.bf16.mxu0 0
        %384 = vmatpush1.bf16.msra.mxu0 0
        %385 = vmatprep.subr.bf16.mxu0 0
        %386 = vmatpush1.bf16.msra.mxu0 0
        %387 = vmatprep.subr.bf16.mxu0 0
        %388 = vmatpush1.bf16.msra.mxu0 0
        %389 = vmatprep.subr.bf16.mxu0 0
        %390 = vmatpush1.bf16.msra.mxu0 0
        %391 = vmatprep.subr.bf16.mxu0 0
        %392 = vmatpush1.bf16.msra.mxu0 0
        %393 = vmatprep.subr.bf16.mxu0 0
        %394 = vmatpush1.bf16.msra.mxu0 0
        %395 = vmatprep.subr.bf16.mxu0 0
        %396 = vmatpush1.bf16.msra.mxu0 0
        %397 = vmatprep.subr.bf16.mxu0 0
        %398 = vmatpush1.bf16.msra.mxu0 0
        %399 = vmatprep.subr.bf16.mxu0 0
        %400 = vmatpush1.bf16.msra.mxu0 0
        %401 = vmatprep.subr.bf16.mxu0 0
        %402 = vmatpush1.bf16.msra.mxu0 0
        %403 = vmatprep.subr.bf16.mxu0 0
        %404 = vmatpush1.bf16.msra.mxu0 0
        %405 = vmatprep.subr.bf16.mxu0 0
        %406 = vmatpush1.bf16.msra.mxu0 0
        %407 = vmatprep.subr.bf16.mxu0 0
        %408 = vmatpush1.bf16.msra.mxu0 0
        %409 = vmatprep.subr.bf16.mxu0 0
        %410 = vmatpush1.bf16.msra.mxu0 0
        %411 = vmatprep.mubr.bf16.mxu0 0
        %412 = vmatmul.mubr.bf16.gmra.mrb[0].mxu0 %v336
        %v413 = vpop.f32.mrb[0].mxu0
        %v414 = vadd.f32 %v285, %v413
        %v415 = vpop.f32.mrb[0].mxu0
        %v416 = vadd.f32 %v289, %v415
        %v417 = vpop.f32.mrb[0].mxu0
        %v418 = vpop.f32.mrb[0].mxu0
        %419 = vdwg.mxu0
        %v420 = vmax.f32 %v373, 0.0
        %v421 = vmax.f32 %v375, 0.0
        %v422 = vmax.f32 %v414, 0.0
        %v423 = vmax.f32 %v416, 0.0
        %v428 = vcombine.low %v420, %v421
        %v429 = vcombine.low %v422, %v423
        %v431 = vunpack.c.l.s4 1983009808
        %v432 = vunpack.c.0.s8 %v431
        %v433 = vlaneseq
        %v434 = vshrl.u32 %v433, 7
        %v435 = vsub.s32 %v432, %v434
        %v436 = vrot.slane %v428, %v435
        %v438 = vunpack.c.l.s4 1983009808
        %v439 = vunpack.c.0.s8 %v438
        %v440 = vlaneseq
        %v441 = vshrl.u32 %v440, 7
        %v442 = vsub.s32 %v439, %v441
        %v443 = vrot.slane %v429, %v442
        %v444 = vcombine.low %v436, %v443
        %446 = vst [vmem:[%s260] sm:$0xff] %v444
        %s447 = smul.u32 4, %s19
        %p448 = scmp.lt.s32.totalorder %s18, 0
        %s449 = scalar_select %p448, %s18, 0
        %p450 = scmp.lt.s32.totalorder %s447, 35
        %s451 = scalar_select %p450, %s447, 35
        %s452 = smul.addr %s449, 36
        %s453 = sadd.s32 %s451, %s452
        %s454 = smul.addr %s453, 2
        %s455 = scalar_lea.vmem %s3, %s454
        // Predicated region
        $region56: #{ae_forward.15} parent=50 // pred_check
          %p456 = pneg %p124
        $region57: #{ae_forward.15} parent=50 // pred_check_branch
          %458 = sbr.rel (%p456) target = $region59
        $region58: #{ae_forward.15} parent=50 // pred_region
          %s459 = smul.u32 4, %s19
        $region59: #{ae_forward.15} parent=50 // pred_fallthru
          _
      $region51: #{ae_forward.15} parent=5 // pred_fallthru
        _
      %p460 = scmp.le.s32.totalorder 2, %s9
      // Predicated region
      $region60: #{ae_forward.15} parent=5 // pred_check
        %p461 = pneg %p460
      $region61: #{ae_forward.15} parent=5 // pred_check_branch
        %463 = sbr.rel (%p461) target = $region63
      $region62: #{ae_forward.15} parent=5 // pred_region
        %s464 = ssub.s32 %s9, 2
        // Predicated region
        $region64: #{ae_forward.15} parent=62 // pred_check
          %p465 = pneg %p130
        $region65: #{ae_forward.15} parent=62 // pred_check_branch
          %467 = sbr.rel (%p465) target = $region67
        $region66: #{ae_forward.15} parent=62 // pred_region
          %s468 = smul.u32 4, %s21
          %p469 = scmp.lt.s32.totalorder %s20, 0
          %s470 = scalar_select %p469, %s20, 0
          %p471 = scmp.lt.s32.totalorder %s468, 35
          %s472 = scalar_select %p471, %s468, 35
          %s473 = smul.addr %s470, 36
          %s474 = sadd.s32 %s472, %s473
          %s475 = smul.addr %s474, 2
          %s476 = scalar_lea.vmem %s3, %s475
        $region67: #{ae_forward.15} parent=62 // pred_fallthru
          _
      $region63: #{ae_forward.15} parent=5 // pred_fallthru
        _
    $region6: #{ae_forward.15} parent=1 // loop_footer
      %s13 = sadd.s32 1, %s9
    $region7: #{ae_forward.15} parent=1 // loop_footer_branch
      %8 = sbr.rel target = $region3
    $region8: #{ae_forward.15} parent=1 // loop_exit
      _

// kernel: ae_forward.14
$region0: #{ae_forward.14}
  #allocation0 [shape = 'u32[]', space=smem, size = 0x4, offset = 0x4, fixed_abs, tag = 'smem constant byte address 0x4 - core index']
  #allocation1 [shape = 'u32[144,128]{1,0:T(1,128)}', space=vmem, size = 0x12000, scoped, tag = 'internal scratch']
  %s0 = inlined_call_operand.vmem [shape: bf16[2,4608], index: 0, kind: input, shape index: {}]
  %s1 = inlined_call_operand.vmem [shape: bf16[4608,32], index: 1, kind: input, shape index: {}]
  %s2 = inlined_call_operand.vmem [shape: f32[1,32], index: 2, kind: input, shape index: {}]
  %s3 = inlined_call_operand.vmem [shape: f32[2,32], index: 3, kind: output, shape index: {}]
  %s4 = sld [smem:[#allocation0]]
  $region22: #{ae_forward.14} parent=0
    _
  %s6 = ssub.s32 1, %s4
  %s7 = scalar_select 0, %s6, %s4
  // Predicated region
  $region2: #{ae_forward.14} parent=0 // pred_check
    _
  $region3: #{ae_forward.14} parent=0 // pred_check_branch
    %9 = sbr.rel (0) target = $region5
  $region4: #{ae_forward.14} parent=0 // pred_region
    _
  $region5: #{ae_forward.14} parent=0 // pred_fallthru
    _
  // Predicated region
  $region6: #{ae_forward.14} parent=0 // pred_check
    _
  $region7: #{ae_forward.14} parent=0 // pred_check_branch
    %11 = sbr.rel (0) target = $region9
  $region8: #{ae_forward.14} parent=0 // pred_region
    _
  $region9: #{ae_forward.14} parent=0 // pred_fallthru
    _
  // Predicated region
  $region10: #{ae_forward.14} parent=0 // pred_check
    _
  $region11: #{ae_forward.14} parent=0 // pred_check_branch
    %13 = sbr.rel (0) target = $region13
  $region12: #{ae_forward.14} parent=0 // pred_region
    _
  $region13: #{ae_forward.14} parent=0 // pred_fallthru
    _
  %v15 = vld [vmem:[%s0] sm:$0xff]
  %v16 = vld [vmem:[%s0 + $0x8] sm:$0xff]
  %v17 = vld [vmem:[%s0 + $0x10] sm:$0xff]
  %v18 = vld [vmem:[%s0 + $0x18] sm:$0xff]
  %v19 = vld [vmem:[%s0 + $0x20] sm:$0xf]
  %v20 = vld [vmem:[%s1] sm:$0xf]
  %v21 = vld [vmem:[%s1 + $0x4] sm:$0xf]
  %v22 = vld [vmem:[%s1 + $0x8] sm:$0xf]
  %v23 = vld [vmem:[%s1 + $0xc] sm:$0xf]
  %v24 = vld [vmem:[%s1 + $0x10] sm:$0xf]
  %v25 = vld [vmem:[%s1 + $0x14] sm:$0xf]
  %v26 = vld [vmem:[%s1 + $0x18] sm:$0xf]
  %v27 = vld [vmem:[%s1 + $0x1c] sm:$0xf]
  %v28 = vld [vmem:[%s1 + $0x20] sm:$0xf]
  %v29 = vld [vmem:[%s1 + $0x24] sm:$0xf]
  %v30 = vld [vmem:[%s1 + $0x28] sm:$0xf]
  %v31 = vld [vmem:[%s1 + $0x2c] sm:$0xf]
  %v32 = vld [vmem:[%s1 + $0x30] sm:$0xf]
  %v33 = vld [vmem:[%s1 + $0x34] sm:$0xf]
  %v34 = vld [vmem:[%s1 + $0x38] sm:$0xf]
  %v35 = vld [vmem:[%s1 + $0x3c] sm:$0xf]
  %v36 = vld [vmem:[%s1 + $0x40] sm:$0xf]
  %v37 = vld [vmem:[%s1 + $0x44] sm:$0xf]
  %v38 = vld [vmem:[%s1 + $0x48] sm:$0xf]
  %v39 = vld [vmem:[%s1 + $0x4c] sm:$0xf]
  %v40 = vld [vmem:[%s1 + $0x50] sm:$0xf]
  %v41 = vld [vmem:[%s1 + $0x54] sm:$0xf]
  %v42 = vld [vmem:[%s1 + $0x58] sm:$0xf]
  %v43 = vld [vmem:[%s1 + $0x5c] sm:$0xf]
  %v44 = vld [vmem:[%s1 + $0x60] sm:$0xf]
  %v45 = vld [vmem:[%s1 + $0x64] sm:$0xf]
  %v46 = vld [vmem:[%s1 + $0x68] sm:$0xf]
  %v47 = vld [vmem:[%s1 + $0x6c] sm:$0xf]
  %v48 = vld [vmem:[%s1 + $0x70] sm:$0xf]
  %v49 = vld [vmem:[%s1 + $0x74] sm:$0xf]
  %v50 = vld [vmem:[%s1 + $0x78] sm:$0xf]
  %v51 = vld [vmem:[%s1 + $0x7c] sm:$0xf]
  %v52 = vld [vmem:[%s1 + $0x80] sm:$0xf]
  %v53 = vld [vmem:[%s1 + $0x84] sm:$0xf]
  %v54 = vld [vmem:[%s1 + $0x88] sm:$0xf]
  %v55 = vld [vmem:[%s1 + $0x8c] sm:$0xf]
  %v56 = vld [vmem:[%s1 + $0x90] sm:$0xf]
  %v57 = vld [vmem:[%s1 + $0x94] sm:$0xf]
  %v58 = vld [vmem:[%s1 + $0x98] sm:$0xf]
  %v59 = vld [vmem:[%s1 + $0x9c] sm:$0xf]
  %v60 = vld [vmem:[%s1 + $0xa0] sm:$0xf]
  %v61 = vld [vmem:[%s1 + $0xa4] sm:$0xf]
  %v62 = vld [vmem:[%s1 + $0xa8] sm:$0xf]
  %v63 = vld [vmem:[%s1 + $0xac] sm:$0xf]
  %v64 = vld [vmem:[%s1 + $0xb0] sm:$0xf]
  %v65 = vld [vmem:[%s1 + $0xb4] sm:$0xf]
  %v66 = vld [vmem:[%s1 + $0xb8] sm:$0xf]
  %v67 = vld [vmem:[%s1 + $0xbc] sm:$0xf]
  %v68 = vld [vmem:[%s1 + $0xc0] sm:$0xf]
  %v69 = vld [vmem:[%s1 + $0xc4] sm:$0xf]
  %v70 = vld [vmem:[%s1 + $0xc8] sm:$0xf]
  %v71 = vld [vmem:[%s1 + $0xcc] sm:$0xf]
  %v72 = vld [vmem:[%s1 + $0xd0] sm:$0xf]
  %v73 = vld [vmem:[%s1 + $0xd4] sm:$0xf]
  %v74 = vld [vmem:[%s1 + $0xd8] sm:$0xf]
  %v75 = vld [vmem:[%s1 + $0xdc] sm:$0xf]
  %v76 = vld [vmem:[%s1 + $0xe0] sm:$0xf]
  %v77 = vld [vmem:[%s1 + $0xe4] sm:$0xf]
  %v78 = vld [vmem:[%s1 + $0xe8] sm:$0xf]
  %v79 = vld [vmem:[%s1 + $0xec] sm:$0xf]
  %v80 = vld [vmem:[%s1 + $0xf0] sm:$0xf]
  %v81 = vld [vmem:[%s1 + $0xf4] sm:$0xf]
  %v82 = vld [vmem:[%s1 + $0xf8] sm:$0xf]
  %v83 = vld [vmem:[%s1 + $0xfc] sm:$0xf]
  %v84 = vld [vmem:[%s1 + $0x100] sm:$0xf]
  %v85 = vld [vmem:[%s1 + $0x104] sm:$0xf]
  %v86 = vld [vmem:[%s1 + $0x108] sm:$0xf]
  %v87 = vld [vmem:[%s1 + $0x10c] sm:$0xf]
  %v88 = vld [vmem:[%s1 + $0x110] sm:$0xf]
  %v89 = vld [vmem:[%s1 + $0x114] sm:$0xf]
  %v90 = vld [vmem:[%s1 + $0x118] sm:$0xf]
  %v91 = vld [vmem:[%s1 + $0x11c] sm:$0xf]
  %v92 = vld [vmem:[%s1 + $0x120] sm:$0xf]
  %v93 = vld [vmem:[%s1 + $0x124] sm:$0xf]
  %v94 = vld [vmem:[%s1 + $0x128] sm:$0xf]
  %v95 = vld [vmem:[%s1 + $0x12c] sm:$0xf]
  %v96 = vld [vmem:[%s1 + $0x130] sm:$0xf]
  %v97 = vld [vmem:[%s1 + $0x134] sm:$0xf]
  %v98 = vld [vmem:[%s1 + $0x138] sm:$0xf]
  %v99 = vld [vmem:[%s1 + $0x13c] sm:$0xf]
  %v100 = vld [vmem:[%s1 + $0x140] sm:$0xf]
  %v101 = vld [vmem:[%s1 + $0x144] sm:$0xf]
  %v102 = vld [vmem:[%s1 + $0x148] sm:$0xf]
  %v103 = vld [vmem:[%s1 + $0x14c] sm:$0xf]
  %v104 = vld [vmem:[%s1 + $0x150] sm:$0xf]
  %v105 = vld [vmem:[%s1 + $0x154] sm:$0xf]
  %v106 = vld [vmem:[%s1 + $0x158] sm:$0xf]
  %v107 = vld [vmem:[%s1 + $0x15c] sm:$0xf]
  %v108 = vld [vmem:[%s1 + $0x160] sm:$0xf]
  %v109 = vld [vmem:[%s1 + $0x164] sm:$0xf]
  %v110 = vld [vmem:[%s1 + $0x168] sm:$0xf]
  %v111 = vld [vmem:[%s1 + $0x16c] sm:$0xf]
  %v112 = vld [vmem:[%s1 + $0x170] sm:$0xf]
  %v113 = vld [vmem:[%s1 + $0x174] sm:$0xf]
  %v114 = vld [vmem:[%s1 + $0x178] sm:$0xf]
  %v115 = vld [vmem:[%s1 + $0x17c] sm:$0xf]
  %v116 = vld [vmem:[%s1 + $0x180] sm:$0xf]
  %v117 = vld [vmem:[%s1 + $0x184] sm:$0xf]
  %v118 = vld [vmem:[%s1 + $0x188] sm:$0xf]
  %v119 = vld [vmem:[%s1 + $0x18c] sm:$0xf]
  %v120 = vld [vmem:[%s1 + $0x190] sm:$0xf]
  %v121 = vld [vmem:[%s1 + $0x194] sm:$0xf]
  %v122 = vld [vmem:[%s1 + $0x198] sm:$0xf]
  %v123 = vld [vmem:[%s1 + $0x19c] sm:$0xf]
  %v124 = vld [vmem:[%s1 + $0x1a0] sm:$0xf]
  %v125 = vld [vmem:[%s1 + $0x1a4] sm:$0xf]
  %v126 = vld [vmem:[%s1 + $0x1a8] sm:$0xf]
  %v127 = vld [vmem:[%s1 + $0x1ac] sm:$0xf]
  %v128 = vld [vmem:[%s1 + $0x1b0] sm:$0xf]
  %v129 = vld [vmem:[%s1 + $0x1b4] sm:$0xf]
  %v130 = vld [vmem:[%s1 + $0x1b8] sm:$0xf]
  %v131 = vld [vmem:[%s1 + $0x1bc] sm:$0xf]
  %v132 = vld [vmem:[%s1 + $0x1c0] sm:$0xf]
  %v133 = vld [vmem:[%s1 + $0x1c4] sm:$0xf]
  %v134 = vld [vmem:[%s1 + $0x1c8] sm:$0xf]
  %v135 = vld [vmem:[%s1 + $0x1cc] sm:$0xf]
  %v136 = vld [vmem:[%s1 + $0x1d0] sm:$0xf]
  %v137 = vld [vmem:[%s1 + $0x1d4] sm:$0xf]
  %v138 = vld [vmem:[%s1 + $0x1d8] sm:$0xf]
  %v139 = vld [vmem:[%s1 + $0x1dc] sm:$0xf]
  %v140 = vld [vmem:[%s1 + $0x1e0] sm:$0xf]
  %v141 = vld [vmem:[%s1 + $0x1e4] sm:$0xf]
  %v142 = vld [vmem:[%s1 + $0x1e8] sm:$0xf]
  %v143 = vld [vmem:[%s1 + $0x1ec] sm:$0xf]
  %v144 = vld [vmem:[%s1 + $0x1f0] sm:$0xf]
  %v145 = vld [vmem:[%s1 + $0x1f4] sm:$0xf]
  %v146 = vld [vmem:[%s1 + $0x1f8] sm:$0xf]
  %v147 = vld [vmem:[%s1 + $0x1fc] sm:$0xf]
  %v148 = vld [vmem:[%s1 + $0x200] sm:$0xf]
  %v149 = vld [vmem:[%s1 + $0x204] sm:$0xf]
  %v150 = vld [vmem:[%s1 + $0x208] sm:$0xf]
  %v151 = vld [vmem:[%s1 + $0x20c] sm:$0xf]
  %v152 = vld [vmem:[%s1 + $0x210] sm:$0xf]
  %v153 = vld [vmem:[%s1 + $0x214] sm:$0xf]
  %v154 = vld [vmem:[%s1 + $0x218] sm:$0xf]
  %v155 = vld [vmem:[%s1 + $0x21c] sm:$0xf]
  %v156 = vld [vmem:[%s1 + $0x220] sm:$0xf]
  %v157 = vld [vmem:[%s1 + $0x224] sm:$0xf]
  %v158 = vld [vmem:[%s1 + $0x228] sm:$0xf]
  %v159 = vld [vmem:[%s1 + $0x22c] sm:$0xf]
  %v160 = vld [vmem:[%s1 + $0x230] sm:$0xf]
  %v161 = vld [vmem:[%s1 + $0x234] sm:$0xf]
  %v162 = vld [vmem:[%s1 + $0x238] sm:$0xf]
  %v163 = vld [vmem:[%s1 + $0x23c] sm:$0xf]
  %v164 = vld [vmem:[%s1 + $0x240] sm:$0xf]
  %v165 = vld [vmem:[%s1 + $0x244] sm:$0xf]
  %v166 = vld [vmem:[%s1 + $0x248] sm:$0xf]
  %v167 = vld [vmem:[%s1 + $0x24c] sm:$0xf]
  %v168 = vld [vmem:[%s1 + $0x250] sm:$0xf]
  %v169 = vld [vmem:[%s1 + $0x254] sm:$0xf]
  %v170 = vld [vmem:[%s1 + $0x258] sm:$0xf]
  %v171 = vld [vmem:[%s1 + $0x25c] sm:$0xf]
  %v172 = vld [vmem:[%s1 + $0x260] sm:$0xf]
  %v173 = vld [vmem:[%s1 + $0x264] sm:$0xf]
  %v174 = vld [vmem:[%s1 + $0x268] sm:$0xf]
  %v175 = vld [vmem:[%s1 + $0x26c] sm:$0xf]
  %v176 = vld [vmem:[%s1 + $0x270] sm:$0xf]
  %v177 = vld [vmem:[%s1 + $0x274] sm:$0xf]
  %v178 = vld [vmem:[%s1 + $0x278] sm:$0xf]
  %v179 = vld [vmem:[%s1 + $0x27c] sm:$0xf]
  %v180 = vld [vmem:[%s1 + $0x280] sm:$0xf]
  %v181 = vld [vmem:[%s1 + $0x284] sm:$0xf]
  %v182 = vld [vmem:[%s1 + $0x288] sm:$0xf]
  %v183 = vld [vmem:[%s1 + $0x28c] sm:$0xf]
  %v184 = vld [vmem:[%s1 + $0x290] sm:$0xf]
  %v185 = vld [vmem:[%s1 + $0x294] sm:$0xf]
  %v186 = vld [vmem:[%s1 + $0x298] sm:$0xf]
  %v187 = vld [vmem:[%s1 + $0x29c] sm:$0xf]
  %v188 = vld [vmem:[%s1 + $0x2a0] sm:$0xf]
  %v189 = vld [vmem:[%s1 + $0x2a4] sm:$0xf]
  %v190 = vld [vmem:[%s1 + $0x2a8] sm:$0xf]
  %v191 = vld [vmem:[%s1 + $0x2ac] sm:$0xf]
  %v192 = vld [vmem:[%s1 + $0x2b0] sm:$0xf]
  %v193 = vld [vmem:[%s1 + $0x2b4] sm:$0xf]
  %v194 = vld [vmem:[%s1 + $0x2b8] sm:$0xf]
  %v195 = vld [vmem:[%s1 + $0x2bc] sm:$0xf]
  %v196 = vld [vmem:[%s1 + $0x2c0] sm:$0xf]
  %v197 = vld [vmem:[%s1 + $0x2c4] sm:$0xf]
  %v198 = vld [vmem:[%s1 + $0x2c8] sm:$0xf]
  %v199 = vld [vmem:[%s1 + $0x2cc] sm:$0xf]
  %v200 = vld [vmem:[%s1 + $0x2d0] sm:$0xf]
  %v201 = vld [vmem:[%s1 + $0x2d4] sm:$0xf]
  %v202 = vld [vmem:[%s1 + $0x2d8] sm:$0xf]
  %v203 = vld [vmem:[%s1 + $0x2dc] sm:$0xf]
  %v204 = vld [vmem:[%s1 + $0x2e0] sm:$0xf]
  %v205 = vld [vmem:[%s1 + $0x2e4] sm:$0xf]
  %v206 = vld [vmem:[%s1 + $0x2e8] sm:$0xf]
  %v207 = vld [vmem:[%s1 + $0x2ec] sm:$0xf]
  %v208 = vld [vmem:[%s1 + $0x2f0] sm:$0xf]
  %v209 = vld [vmem:[%s1 + $0x2f4] sm:$0xf]
  %v210 = vld [vmem:[%s1 + $0x2f8] sm:$0xf]
  %v211 = vld [vmem:[%s1 + $0x2fc] sm:$0xf]
  %v212 = vld [vmem:[%s1 + $0x300] sm:$0xf]
  %v213 = vld [vmem:[%s1 + $0x304] sm:$0xf]
  %v214 = vld [vmem:[%s1 + $0x308] sm:$0xf]
  %v215 = vld [vmem:[%s1 + $0x30c] sm:$0xf]
  %v216 = vld [vmem:[%s1 + $0x310] sm:$0xf]
  %v217 = vld [vmem:[%s1 + $0x314] sm:$0xf]
  %v218 = vld [vmem:[%s1 + $0x318] sm:$0xf]
  %v219 = vld [vmem:[%s1 + $0x31c] sm:$0xf]
  %v220 = vld [vmem:[%s1 + $0x320] sm:$0xf]
  %v221 = vld [vmem:[%s1 + $0x324] sm:$0xf]
  %v222 = vld [vmem:[%s1 + $0x328] sm:$0xf]
  %v223 = vld [vmem:[%s1 + $0x32c] sm:$0xf]
  %v224 = vld [vmem:[%s1 + $0x330] sm:$0xf]
  %v225 = vld [vmem:[%s1 + $0x334] sm:$0xf]
  %v226 = vld [vmem:[%s1 + $0x338] sm:$0xf]
  %v227 = vld [vmem:[%s1 + $0x33c] sm:$0xf]
  %v228 = vld [vmem:[%s1 + $0x340] sm:$0xf]
  %v229 = vld [vmem:[%s1 + $0x344] sm:$0xf]
  %v230 = vld [vmem:[%s1 + $0x348] sm:$0xf]
  %v231 = vld [vmem:[%s1 + $0x34c] sm:$0xf]
  %v232 = vld [vmem:[%s1 + $0x350] sm:$0xf]
  %v233 = vld [vmem:[%s1 + $0x354] sm:$0xf]
  %v234 = vld [vmem:[%s1 + $0x358] sm:$0xf]
  %v235 = vld [vmem:[%s1 + $0x35c] sm:$0xf]
  %v236 = vld [vmem:[%s1 + $0x360] sm:$0xf]
  %v237 = vld [vmem:[%s1 + $0x364] sm:$0xf]
  %v238 = vld [vmem:[%s1 + $0x368] sm:$0xf]
  %v239 = vld [vmem:[%s1 + $0x36c] sm:$0xf]
  %v240 = vld [vmem:[%s1 + $0x370] sm:$0xf]
  %v241 = vld [vmem:[%s1 + $0x374] sm:$0xf]
  %v242 = vld [vmem:[%s1 + $0x378] sm:$0xf]
  %v243 = vld [vmem:[%s1 + $0x37c] sm:$0xf]
  %v244 = vld [vmem:[%s1 + $0x380] sm:$0xf]
  %v245 = vld [vmem:[%s1 + $0x384] sm:$0xf]
  %v246 = vld [vmem:[%s1 + $0x388] sm:$0xf]
  %v247 = vld [vmem:[%s1 + $0x38c] sm:$0xf]
  %v248 = vld [vmem:[%s1 + $0x390] sm:$0xf]
  %v249 = vld [vmem:[%s1 + $0x394] sm:$0xf]
  %v250 = vld [vmem:[%s1 + $0x398] sm:$0xf]
  %v251 = vld [vmem:[%s1 + $0x39c] sm:$0xf]
  %v252 = vld [vmem:[%s1 + $0x3a0] sm:$0xf]
  %v253 = vld [vmem:[%s1 + $0x3a4] sm:$0xf]
  %v254 = vld [vmem:[%s1 + $0x3a8] sm:$0xf]
  %v255 = vld [vmem:[%s1 + $0x3ac] sm:$0xf]
  %v256 = vld [vmem:[%s1 + $0x3b0] sm:$0xf]
  %v257 = vld [vmem:[%s1 + $0x3b4] sm:$0xf]
  %v258 = vld [vmem:[%s1 + $0x3b8] sm:$0xf]
  %v259 = vld [vmem:[%s1 + $0x3bc] sm:$0xf]
  %v260 = vld [vmem:[%s1 + $0x3c0] sm:$0xf]
  %v261 = vld [vmem:[%s1 + $0x3c4] sm:$0xf]
  %v262 = vld [vmem:[%s1 + $0x3c8] sm:$0xf]
  %v263 = vld [vmem:[%s1 + $0x3cc] sm:$0xf]
  %v264 = vld [vmem:[%s1 + $0x3d0] sm:$0xf]
  %v265 = vld [vmem:[%s1 + $0x3d4] sm:$0xf]
  %v266 = vld [vmem:[%s1 + $0x3d8] sm:$0xf]
  %v267 = vld [vmem:[%s1 + $0x3dc] sm:$0xf]
  %v268 = vld [vmem:[%s1 + $0x3e0] sm:$0xf]
  %v269 = vld [vmem:[%s1 + $0x3e4] sm:$0xf]
  %v270 = vld [vmem:[%s1 + $0x3e8] sm:$0xf]
  %v271 = vld [vmem:[%s1 + $0x3ec] sm:$0xf]
  %v272 = vld [vmem:[%s1 + $0x3f0] sm:$0xf]
  %v273 = vld [vmem:[%s1 + $0x3f4] sm:$0xf]
  %v274 = vld [vmem:[%s1 + $0x3f8] sm:$0xf]
  %v275 = vld [vmem:[%s1 + $0x3fc] sm:$0xf]
  %v276 = vld [vmem:[%s1 + $0x400] sm:$0xf]
  %v277 = vld [vmem:[%s1 + $0x404] sm:$0xf]
  %v278 = vld [vmem:[%s1 + $0x408] sm:$0xf]
  %v279 = vld [vmem:[%s1 + $0x40c] sm:$0xf]
  %v280 = vld [vmem:[%s1 + $0x410] sm:$0xf]
  %v281 = vld [vmem:[%s1 + $0x414] sm:$0xf]
  %v282 = vld [vmem:[%s1 + $0x418] sm:$0xf]
  %v283 = vld [vmem:[%s1 + $0x41c] sm:$0xf]
  %v284 = vld [vmem:[%s1 + $0x420] sm:$0xf]
  %v285 = vld [vmem:[%s1 + $0x424] sm:$0xf]
  %v286 = vld [vmem:[%s1 + $0x428] sm:$0xf]
  %v287 = vld [vmem:[%s1 + $0x42c] sm:$0xf]
  %v288 = vld [vmem:[%s1 + $0x430] sm:$0xf]
  %v289 = vld [vmem:[%s1 + $0x434] sm:$0xf]
  %v290 = vld [vmem:[%s1 + $0x438] sm:$0xf]
  %v291 = vld [vmem:[%s1 + $0x43c] sm:$0xf]
  %v292 = vld [vmem:[%s1 + $0x440] sm:$0xf]
  %v293 = vld [vmem:[%s1 + $0x444] sm:$0xf]
  %v294 = vld [vmem:[%s1 + $0x448] sm:$0xf]
  %v295 = vld [vmem:[%s1 + $0x44c] sm:$0xf]
  %v296 = vld [vmem:[%s1 + $0x450] sm:$0xf]
  %v297 = vld [vmem:[%s1 + $0x454] sm:$0xf]
  %v298 = vld [vmem:[%s1 + $0x458] sm:$0xf]
  %v299 = vld [vmem:[%s1 + $0x45c] sm:$0xf]
  %v300 = vld [vmem:[%s1 + $0x460] sm:$0xf]
  %v301 = vld [vmem:[%s1 + $0x464] sm:$0xf]
  %v302 = vld [vmem:[%s1 + $0x468] sm:$0xf]
  %v303 = vld [vmem:[%s1 + $0x46c] sm:$0xf]
  %v304 = vld [vmem:[%s1 + $0x470] sm:$0xf]
  %v305 = vld [vmem:[%s1 + $0x474] sm:$0xf]
  %v306 = vld [vmem:[%s1 + $0x478] sm:$0xf]
  %v307 = vld [vmem:[%s1 + $0x47c] sm:$0xf]
  %v308 = vld [vmem:[%s1 + $0x480] sm:$0xf]
  %v309 = vld [vmem:[%s1 + $0x484] sm:$0xf]
  %v310 = vld [vmem:[%s1 + $0x488] sm:$0xf]
  %v311 = vld [vmem:[%s1 + $0x48c] sm:$0xf]
  %v312 = vld [vmem:[%s1 + $0x490] sm:$0xf]
  %v313 = vld [vmem:[%s1 + $0x494] sm:$0xf]
  %v314 = vld [vmem:[%s1 + $0x498] sm:$0xf]
  %v315 = vld [vmem:[%s1 + $0x49c] sm:$0xf]
  %v316 = vld [vmem:[%s1 + $0x4a0] sm:$0xf]
  %v317 = vld [vmem:[%s1 + $0x4a4] sm:$0xf]
  %v318 = vld [vmem:[%s1 + $0x4a8] sm:$0xf]
  %v319 = vld [vmem:[%s1 + $0x4ac] sm:$0xf]
  %v320 = vld [vmem:[%s1 + $0x4b0] sm:$0xf]
  %v321 = vld [vmem:[%s1 + $0x4b4] sm:$0xf]
  %v322 = vld [vmem:[%s1 + $0x4b8] sm:$0xf]
  %v323 = vld [vmem:[%s1 + $0x4bc] sm:$0xf]
  %v324 = vld [vmem:[%s1 + $0x4c0] sm:$0xf]
  %v325 = vld [vmem:[%s1 + $0x4c4] sm:$0xf]
  %v326 = vld [vmem:[%s1 + $0x4c8] sm:$0xf]
  %v327 = vld [vmem:[%s1 + $0x4cc] sm:$0xf]
  %v328 = vld [vmem:[%s1 + $0x4d0] sm:$0xf]
  %v329 = vld [vmem:[%s1 + $0x4d4] sm:$0xf]
  %v330 = vld [vmem:[%s1 + $0x4d8] sm:$0xf]
  %v331 = vld [vmem:[%s1 + $0x4dc] sm:$0xf]
  %v332 = vld [vmem:[%s1 + $0x4e0] sm:$0xf]
  %v333 = vld [vmem:[%s1 + $0x4e4] sm:$0xf]
  %v334 = vld [vmem:[%s1 + $0x4e8] sm:$0xf]
  %v335 = vld [vmem:[%s1 + $0x4ec] sm:$0xf]
  %v336 = vld [vmem:[%s1 + $0x4f0] sm:$0xf]
  %v337 = vld [vmem:[%s1 + $0x4f4] sm:$0xf]
  %v338 = vld [vmem:[%s1 + $0x4f8] sm:$0xf]
  %v339 = vld [vmem:[%s1 + $0x4fc] sm:$0xf]
  %v340 = vld [vmem:[%s1 + $0x500] sm:$0xf]
  %v341 = vld [vmem:[%s1 + $0x504] sm:$0xf]
  %v342 = vld [vmem:[%s1 + $0x508] sm:$0xf]
  %v343 = vld [vmem:[%s1 + $0x50c] sm:$0xf]
  %v344 = vld [vmem:[%s1 + $0x510] sm:$0xf]
  %v345 = vld [vmem:[%s1 + $0x514] sm:$0xf]
  %v346 = vld [vmem:[%s1 + $0x518] sm:$0xf]
  %v347 = vld [vmem:[%s1 + $0x51c] sm:$0xf]
  %v348 = vld [vmem:[%s1 + $0x520] sm:$0xf]
  %v349 = vld [vmem:[%s1 + $0x524] sm:$0xf]
  %v350 = vld [vmem:[%s1 + $0x528] sm:$0xf]
  %v351 = vld [vmem:[%s1 + $0x52c] sm:$0xf]
  %v352 = vld [vmem:[%s1 + $0x530] sm:$0xf]
  %v353 = vld [vmem:[%s1 + $0x534] sm:$0xf]
  %v354 = vld [vmem:[%s1 + $0x538] sm:$0xf]
  %v355 = vld [vmem:[%s1 + $0x53c] sm:$0xf]
  %v356 = vld [vmem:[%s1 + $0x540] sm:$0xf]
  %v357 = vld [vmem:[%s1 + $0x544] sm:$0xf]
  %v358 = vld [vmem:[%s1 + $0x548] sm:$0xf]
  %v359 = vld [vmem:[%s1 + $0x54c] sm:$0xf]
  %v360 = vld [vmem:[%s1 + $0x550] sm:$0xf]
  %v361 = vld [vmem:[%s1 + $0x554] sm:$0xf]
  %v362 = vld [vmem:[%s1 + $0x558] sm:$0xf]
  %v363 = vld [vmem:[%s1 + $0x55c] sm:$0xf]
  %v364 = vld [vmem:[%s1 + $0x560] sm:$0xf]
  %v365 = vld [vmem:[%s1 + $0x564] sm:$0xf]
  %v366 = vld [vmem:[%s1 + $0x568] sm:$0xf]
  %v367 = vld [vmem:[%s1 + $0x56c] sm:$0xf]
  %v368 = vld [vmem:[%s1 + $0x570] sm:$0xf]
  %v369 = vld [vmem:[%s1 + $0x574] sm:$0xf]
  %v370 = vld [vmem:[%s1 + $0x578] sm:$0xf]
  %v371 = vld [vmem:[%s1 + $0x57c] sm:$0xf]
  %v372 = vld [vmem:[%s1 + $0x580] sm:$0xf]
  %v373 = vld [vmem:[%s1 + $0x584] sm:$0xf]
  %v374 = vld [vmem:[%s1 + $0x588] sm:$0xf]
  %v375 = vld [vmem:[%s1 + $0x58c] sm:$0xf]
  %v376 = vld [vmem:[%s1 + $0x590] sm:$0xf]
  %v377 = vld [vmem:[%s1 + $0x594] sm:$0xf]
  %v378 = vld [vmem:[%s1 + $0x598] sm:$0xf]
  %v379 = vld [vmem:[%s1 + $0x59c] sm:$0xf]
  %v380 = vld [vmem:[%s1 + $0x5a0] sm:$0xf]
  %v381 = vld [vmem:[%s1 + $0x5a4] sm:$0xf]
  %v382 = vld [vmem:[%s1 + $0x5a8] sm:$0xf]
  %v383 = vld [vmem:[%s1 + $0x5ac] sm:$0xf]
  %v384 = vld [vmem:[%s1 + $0x5b0] sm:$0xf]
  %v385 = vld [vmem:[%s1 + $0x5b4] sm:$0xf]
  %v386 = vld [vmem:[%s1 + $0x5b8] sm:$0xf]
  %v387 = vld [vmem:[%s1 + $0x5bc] sm:$0xf]
  %v388 = vld [vmem:[%s1 + $0x5c0] sm:$0xf]
  %v389 = vld [vmem:[%s1 + $0x5c4] sm:$0xf]
  %v390 = vld [vmem:[%s1 + $0x5c8] sm:$0xf]
  %v391 = vld [vmem:[%s1 + $0x5cc] sm:$0xf]
  %v392 = vld [vmem:[%s1 + $0x5d0] sm:$0xf]
  %v393 = vld [vmem:[%s1 + $0x5d4] sm:$0xf]
  %v394 = vld [vmem:[%s1 + $0x5d8] sm:$0xf]
  %v395 = vld [vmem:[%s1 + $0x5dc] sm:$0xf]
  %v396 = vld [vmem:[%s1 + $0x5e0] sm:$0xf]
  %v397 = vld [vmem:[%s1 + $0x5e4] sm:$0xf]
  %v398 = vld [vmem:[%s1 + $0x5e8] sm:$0xf]
  %v399 = vld [vmem:[%s1 + $0x5ec] sm:$0xf]
  %v400 = vld [vmem:[%s1 + $0x5f0] sm:$0xf]
  %v401 = vld [vmem:[%s1 + $0x5f4] sm:$0xf]
  %v402 = vld [vmem:[%s1 + $0x5f8] sm:$0xf]
  %v403 = vld [vmem:[%s1 + $0x5fc] sm:$0xf]
  %v404 = vld [vmem:[%s1 + $0x600] sm:$0xf]
  %v405 = vld [vmem:[%s1 + $0x604] sm:$0xf]
  %v406 = vld [vmem:[%s1 + $0x608] sm:$0xf]
  %v407 = vld [vmem:[%s1 + $0x60c] sm:$0xf]
  %v408 = vld [vmem:[%s1 + $0x610] sm:$0xf]
  %v409 = vld [vmem:[%s1 + $0x614] sm:$0xf]
  %v410 = vld [vmem:[%s1 + $0x618] sm:$0xf]
  %v411 = vld [vmem:[%s1 + $0x61c] sm:$0xf]
  %v412 = vld [vmem:[%s1 + $0x620] sm:$0xf]
  %v413 = vld [vmem:[%s1 + $0x624] sm:$0xf]
  %v414 = vld [vmem:[%s1 + $0x628] sm:$0xf]
  %v415 = vld [vmem:[%s1 + $0x62c] sm:$0xf]
  %v416 = vld [vmem:[%s1 + $0x630] sm:$0xf]
  %v417 = vld [vmem:[%s1 + $0x634] sm:$0xf]
  %v418 = vld [vmem:[%s1 + $0x638] sm:$0xf]
  %v419 = vld [vmem:[%s1 + $0x63c] sm:$0xf]
  %v420 = vld [vmem:[%s1 + $0x640] sm:$0xf]
  %v421 = vld [vmem:[%s1 + $0x644] sm:$0xf]
  %v422 = vld [vmem:[%s1 + $0x648] sm:$0xf]
  %v423 = vld [vmem:[%s1 + $0x64c] sm:$0xf]
  %v424 = vld [vmem:[%s1 + $0x650] sm:$0xf]
  %v425 = vld [vmem:[%s1 + $0x654] sm:$0xf]
  %v426 = vld [vmem:[%s1 + $0x658] sm:$0xf]
  %v427 = vld [vmem:[%s1 + $0x65c] sm:$0xf]
  %v428 = vld [vmem:[%s1 + $0x660] sm:$0xf]
  %v429 = vld [vmem:[%s1 + $0x664] sm:$0xf]
  %v430 = vld [vmem:[%s1 + $0x668] sm:$0xf]
  %v431 = vld [vmem:[%s1 + $0x66c] sm:$0xf]
  %v432 = vld [vmem:[%s1 + $0x670] sm:$0xf]
  %v433 = vld [vmem:[%s1 + $0x674] sm:$0xf]
  %v434 = vld [vmem:[%s1 + $0x678] sm:$0xf]
  %v435 = vld [vmem:[%s1 + $0x67c] sm:$0xf]
  %v436 = vld [vmem:[%s1 + $0x680] sm:$0xf]
  %v437 = vld [vmem:[%s1 + $0x684] sm:$0xf]
  %v438 = vld [vmem:[%s1 + $0x688] sm:$0xf]
  %v439 = vld [vmem:[%s1 + $0x68c] sm:$0xf]
  %v440 = vld [vmem:[%s1 + $0x690] sm:$0xf]
  %v441 = vld [vmem:[%s1 + $0x694] sm:$0xf]
  %v442 = vld [vmem:[%s1 + $0x698] sm:$0xf]
  %v443 = vld [vmem:[%s1 + $0x69c] sm:$0xf]
  %v444 = vld [vmem:[%s1 + $0x6a0] sm:$0xf]
  %v445 = vld [vmem:[%s1 + $0x6a4] sm:$0xf]
  %v446 = vld [vmem:[%s1 + $0x6a8] sm:$0xf]
  %v447 = vld [vmem:[%s1 + $0x6ac] sm:$0xf]
  %v448 = vld [vmem:[%s1 + $0x6b0] sm:$0xf]
  %v449 = vld [vmem:[%s1 + $0x6b4] sm:$0xf]
  %v450 = vld [vmem:[%s1 + $0x6b8] sm:$0xf]
  %v451 = vld [vmem:[%s1 + $0x6bc] sm:$0xf]
  %v452 = vld [vmem:[%s1 + $0x6c0] sm:$0xf]
  %v453 = vld [vmem:[%s1 + $0x6c4] sm:$0xf]
  %v454 = vld [vmem:[%s1 + $0x6c8] sm:$0xf]
  %v455 = vld [vmem:[%s1 + $0x6cc] sm:$0xf]
  %v456 = vld [vmem:[%s1 + $0x6d0] sm:$0xf]
  %v457 = vld [vmem:[%s1 + $0x6d4] sm:$0xf]
  %v458 = vld [vmem:[%s1 + $0x6d8] sm:$0xf]
  %v459 = vld [vmem:[%s1 + $0x6dc] sm:$0xf]
  %v460 = vld [vmem:[%s1 + $0x6e0] sm:$0xf]
  %v461 = vld [vmem:[%s1 + $0x6e4] sm:$0xf]
  %v462 = vld [vmem:[%s1 + $0x6e8] sm:$0xf]
  %v463 = vld [vmem:[%s1 + $0x6ec] sm:$0xf]
  %v464 = vld [vmem:[%s1 + $0x6f0] sm:$0xf]
  %v465 = vld [vmem:[%s1 + $0x6f4] sm:$0xf]
  %v466 = vld [vmem:[%s1 + $0x6f8] sm:$0xf]
  %v467 = vld [vmem:[%s1 + $0x6fc] sm:$0xf]
  %v468 = vld [vmem:[%s1 + $0x700] sm:$0xf]
  %v469 = vld [vmem:[%s1 + $0x704] sm:$0xf]
  %v470 = vld [vmem:[%s1 + $0x708] sm:$0xf]
  %v471 = vld [vmem:[%s1 + $0x70c] sm:$0xf]
  %v472 = vld [vmem:[%s1 + $0x710] sm:$0xf]
  %v473 = vld [vmem:[%s1 + $0x714] sm:$0xf]
  %v474 = vld [vmem:[%s1 + $0x718] sm:$0xf]
  %v475 = vld [vmem:[%s1 + $0x71c] sm:$0xf]
  %v476 = vld [vmem:[%s1 + $0x720] sm:$0xf]
  %v477 = vld [vmem:[%s1 + $0x724] sm:$0xf]
  %v478 = vld [vmem:[%s1 + $0x728] sm:$0xf]
  %v479 = vld [vmem:[%s1 + $0x72c] sm:$0xf]
  %v480 = vld [vmem:[%s1 + $0x730] sm:$0xf]
  %v481 = vld [vmem:[%s1 + $0x734] sm:$0xf]
  %v482 = vld [vmem:[%s1 + $0x738] sm:$0xf]
  %v483 = vld [vmem:[%s1 + $0x73c] sm:$0xf]
  %v484 = vld [vmem:[%s1 + $0x740] sm:$0xf]
  %v485 = vld [vmem:[%s1 + $0x744] sm:$0xf]
  %v486 = vld [vmem:[%s1 + $0x748] sm:$0xf]
  %v487 = vld [vmem:[%s1 + $0x74c] sm:$0xf]
  %v488 = vld [vmem:[%s1 + $0x750] sm:$0xf]
  %v489 = vld [vmem:[%s1 + $0x754] sm:$0xf]
  %v490 = vld [vmem:[%s1 + $0x758] sm:$0xf]
  %v491 = vld [vmem:[%s1 + $0x75c] sm:$0xf]
  %v492 = vld [vmem:[%s1 + $0x760] sm:$0xf]
  %v493 = vld [vmem:[%s1 + $0x764] sm:$0xf]
  %v494 = vld [vmem:[%s1 + $0x768] sm:$0xf]
  %v495 = vld [vmem:[%s1 + $0x76c] sm:$0xf]
  %v496 = vld [vmem:[%s1 + $0x770] sm:$0xf]
  %v497 = vld [vmem:[%s1 + $0x774] sm:$0xf]
  %v498 = vld [vmem:[%s1 + $0x778] sm:$0xf]
  %v499 = vld [vmem:[%s1 + $0x77c] sm:$0xf]
  %v500 = vld [vmem:[%s1 + $0x780] sm:$0xf]
  %v501 = vld [vmem:[%s1 + $0x784] sm:$0xf]
  %v502 = vld [vmem:[%s1 + $0x788] sm:$0xf]
  %v503 = vld [vmem:[%s1 + $0x78c] sm:$0xf]
  %v504 = vld [vmem:[%s1 + $0x790] sm:$0xf]
  %v505 = vld [vmem:[%s1 + $0x794] sm:$0xf]
  %v506 = vld [vmem:[%s1 + $0x798] sm:$0xf]
  %v507 = vld [vmem:[%s1 + $0x79c] sm:$0xf]
  %v508 = vld [vmem:[%s1 + $0x7a0] sm:$0xf]
  %v509 = vld [vmem:[%s1 + $0x7a4] sm:$0xf]
  %v510 = vld [vmem:[%s1 + $0x7a8] sm:$0xf]
  %v511 = vld [vmem:[%s1 + $0x7ac] sm:$0xf]
  %v512 = vld [vmem:[%s1 + $0x7b0] sm:$0xf]
  %v513 = vld [vmem:[%s1 + $0x7b4] sm:$0xf]
  %v514 = vld [vmem:[%s1 + $0x7b8] sm:$0xf]
  %v515 = vld [vmem:[%s1 + $0x7bc] sm:$0xf]
  %v516 = vld [vmem:[%s1 + $0x7c0] sm:$0xf]
  %v517 = vld [vmem:[%s1 + $0x7c4] sm:$0xf]
  %v518 = vld [vmem:[%s1 + $0x7c8] sm:$0xf]
  %v519 = vld [vmem:[%s1 + $0x7cc] sm:$0xf]
  %v520 = vld [vmem:[%s1 + $0x7d0] sm:$0xf]
  %v521 = vld [vmem:[%s1 + $0x7d4] sm:$0xf]
  %v522 = vld [vmem:[%s1 + $0x7d8] sm:$0xf]
  %v523 = vld [vmem:[%s1 + $0x7dc] sm:$0xf]
  %v524 = vld [vmem:[%s1 + $0x7e0] sm:$0xf]
  %v525 = vld [vmem:[%s1 + $0x7e4] sm:$0xf]
  %v526 = vld [vmem:[%s1 + $0x7e8] sm:$0xf]
  %v527 = vld [vmem:[%s1 + $0x7ec] sm:$0xf]
  %v528 = vld [vmem:[%s1 + $0x7f0] sm:$0xf]
  %v529 = vld [vmem:[%s1 + $0x7f4] sm:$0xf]
  %v530 = vld [vmem:[%s1 + $0x7f8] sm:$0xf]
  %v531 = vld [vmem:[%s1 + $0x7fc] sm:$0xf]
  %v532 = vld [vmem:[%s1 + $0x800] sm:$0xf]
  %v533 = vld [vmem:[%s1 + $0x804] sm:$0xf]
  %v534 = vld [vmem:[%s1 + $0x808] sm:$0xf]
  %v535 = vld [vmem:[%s1 + $0x80c] sm:$0xf]
  %v536 = vld [vmem:[%s1 + $0x810] sm:$0xf]
  %v537 = vld [vmem:[%s1 + $0x814] sm:$0xf]
  %v538 = vld [vmem:[%s1 + $0x818] sm:$0xf]
  %v539 = vld [vmem:[%s1 + $0x81c] sm:$0xf]
  %v540 = vld [vmem:[%s1 + $0x820] sm:$0xf]
  %v541 = vld [vmem:[%s1 + $0x824] sm:$0xf]
  %v542 = vld [vmem:[%s1 + $0x828] sm:$0xf]
  %v543 = vld [vmem:[%s1 + $0x82c] sm:$0xf]
  %v544 = vld [vmem:[%s1 + $0x830] sm:$0xf]
  %v545 = vld [vmem:[%s1 + $0x834] sm:$0xf]
  %v546 = vld [vmem:[%s1 + $0x838] sm:$0xf]
  %v547 = vld [vmem:[%s1 + $0x83c] sm:$0xf]
  %v548 = vld [vmem:[%s1 + $0x840] sm:$0xf]
  %v549 = vld [vmem:[%s1 + $0x844] sm:$0xf]
  %v550 = vld [vmem:[%s1 + $0x848] sm:$0xf]
  %v551 = vld [vmem:[%s1 + $0x84c] sm:$0xf]
  %v552 = vld [vmem:[%s1 + $0x850] sm:$0xf]
  %v553 = vld [vmem:[%s1 + $0x854] sm:$0xf]
  %v554 = vld [vmem:[%s1 + $0x858] sm:$0xf]
  %v555 = vld [vmem:[%s1 + $0x85c] sm:$0xf]
  %v556 = vld [vmem:[%s1 + $0x860] sm:$0xf]
  %v557 = vld [vmem:[%s1 + $0x864] sm:$0xf]
  %v558 = vld [vmem:[%s1 + $0x868] sm:$0xf]
  %v559 = vld [vmem:[%s1 + $0x86c] sm:$0xf]
  %v560 = vld [vmem:[%s1 + $0x870] sm:$0xf]
  %v561 = vld [vmem:[%s1 + $0x874] sm:$0xf]
  %v562 = vld [vmem:[%s1 + $0x878] sm:$0xf]
  %v563 = vld [vmem:[%s1 + $0x87c] sm:$0xf]
  %v564 = vld [vmem:[%s1 + $0x880] sm:$0xf]
  %v565 = vld [vmem:[%s1 + $0x884] sm:$0xf]
  %v566 = vld [vmem:[%s1 + $0x888] sm:$0xf]
  %v567 = vld [vmem:[%s1 + $0x88c] sm:$0xf]
  %v568 = vld [vmem:[%s1 + $0x890] sm:$0xf]
  %v569 = vld [vmem:[%s1 + $0x894] sm:$0xf]
  %v570 = vld [vmem:[%s1 + $0x898] sm:$0xf]
  %v571 = vld [vmem:[%s1 + $0x89c] sm:$0xf]
  %v572 = vld [vmem:[%s1 + $0x8a0] sm:$0xf]
  %v573 = vld [vmem:[%s1 + $0x8a4] sm:$0xf]
  %v574 = vld [vmem:[%s1 + $0x8a8] sm:$0xf]
  %v575 = vld [vmem:[%s1 + $0x8ac] sm:$0xf]
  %v576 = vld [vmem:[%s1 + $0x8b0] sm:$0xf]
  %v577 = vld [vmem:[%s1 + $0x8b4] sm:$0xf]
  %v578 = vld [vmem:[%s1 + $0x8b8] sm:$0xf]
  %v579 = vld [vmem:[%s1 + $0x8bc] sm:$0xf]
  %v580 = vld [vmem:[%s1 + $0x8c0] sm:$0xf]
  %v581 = vld [vmem:[%s1 + $0x8c4] sm:$0xf]
  %v582 = vld [vmem:[%s1 + $0x8c8] sm:$0xf]
  %v583 = vld [vmem:[%s1 + $0x8cc] sm:$0xf]
  %v584 = vld [vmem:[%s1 + $0x8d0] sm:$0xf]
  %v585 = vld [vmem:[%s1 + $0x8d4] sm:$0xf]
  %v586 = vld [vmem:[%s1 + $0x8d8] sm:$0xf]
  %v587 = vld [vmem:[%s1 + $0x8dc] sm:$0xf]
  %v588 = vld [vmem:[%s1 + $0x8e0] sm:$0xf]
  %v589 = vld [vmem:[%s1 + $0x8e4] sm:$0xf]
  %v590 = vld [vmem:[%s1 + $0x8e8] sm:$0xf]
  %v591 = vld [vmem:[%s1 + $0x8ec] sm:$0xf]
  %v592 = vld [vmem:[%s1 + $0x8f0] sm:$0xf]
  %v593 = vld [vmem:[%s1 + $0x8f4] sm:$0xf]
  %v594 = vld [vmem:[%s1 + $0x8f8] sm:$0xf]
  %v595 = vld [vmem:[%s1 + $0x8fc] sm:$0xf]
  %v596 = vld [vmem:[%s2] sm:$0x1]
  %v598 = vlaneseq
  %v599 = vshrl.u32 %v598, 7
  %v600 = vsub.s32 0, %v599
  %v601 = vrot.slane %v596, %v600
  %v608 = vcombine.high %v15, %v15
  %v610 = vunpack.c.l.s4 1966171168
  %v611 = vunpack.c.0.s8 %v610
  %v612 = vlaneseq
  %v613 = vshrl.u32 %v612, 7
  %v614 = vsub.s32 %v611, %v613
  %v615 = vrot.slane %v15, %v614
  %v617 = vunpack.c.l.s4 1966171168
  %v618 = vunpack.c.0.s8 %v617
  %v619 = vlaneseq
  %v620 = vshrl.u32 %v619, 7
  %v621 = vsub.s32 %v618, %v620
  %v622 = vrot.slane %v608, %v621
  %v623 = vcombine.high %v615, %v615
  %v624 = vcombine.high %v622, %v622
  %v626 = vunpack.c.l.s4 1966171168
  %v627 = vunpack.c.0.s8 %v626
  %v628 = vlaneseq
  %v629 = vshrl.u32 %v628, 7
  %v630 = vsub.s32 %v627, %v629
  %v631 = vrot.slane %v615, %v630
  %v633 = vunpack.c.l.s4 1966171168
  %v634 = vunpack.c.0.s8 %v633
  %v635 = vlaneseq
  %v636 = vshrl.u32 %v635, 7
  %v637 = vsub.s32 %v634, %v636
  %v638 = vrot.slane %v622, %v637
  %v640 = vunpack.c.l.s4 1966171168
  %v641 = vunpack.c.0.s8 %v640
  %v642 = vlaneseq
  %v643 = vshrl.u32 %v642, 7
  %v644 = vsub.s32 %v641, %v643
  %v645 = vrot.slane %v623, %v644
  %v647 = vunpack.c.l.s4 1966171168
  %v648 = vunpack.c.0.s8 %v647
  %v649 = vlaneseq
  %v650 = vshrl.u32 %v649, 7
  %v651 = vsub.s32 %v648, %v650
  %v652 = vrot.slane %v624, %v651
  %v653 = vcombine.high %v631, %v631
  %v654 = vcombine.high %v638, %v638
  %v655 = vcombine.high %v645, %v645
  %v656 = vcombine.high %v652, %v652
  %v657 = vcombine.high %v16, %v16
  %v659 = vunpack.c.l.s4 1966171168
  %v660 = vunpack.c.0.s8 %v659
  %v661 = vlaneseq
  %v662 = vshrl.u32 %v661, 7
  %v663 = vsub.s32 %v660, %v662
  %v664 = vrot.slane %v16, %v663
  %v666 = vunpack.c.l.s4 1966171168
  %v667 = vunpack.c.0.s8 %v666
  %v668 = vlaneseq
  %v669 = vshrl.u32 %v668, 7
  %v670 = vsub.s32 %v667, %v669
  %v671 = vrot.slane %v657, %v670
  %v672 = vcombine.high %v664, %v664
  %v673 = vcombine.high %v671, %v671
  %v675 = vunpack.c.l.s4 1966171168
  %v676 = vunpack.c.0.s8 %v675
  %v677 = vlaneseq
  %v678 = vshrl.u32 %v677, 7
  %v679 = vsub.s32 %v676, %v678
  %v680 = vrot.slane %v664, %v679
  %v682 = vunpack.c.l.s4 1966171168
  %v683 = vunpack.c.0.s8 %v682
  %v684 = vlaneseq
  %v685 = vshrl.u32 %v684, 7
  %v686 = vsub.s32 %v683, %v685
  %v687 = vrot.slane %v671, %v686
  %v689 = vunpack.c.l.s4 1966171168
  %v690 = vunpack.c.0.s8 %v689
  %v691 = vlaneseq
  %v692 = vshrl.u32 %v691, 7
  %v693 = vsub.s32 %v690, %v692
  %v694 = vrot.slane %v672, %v693
  %v696 = vunpack.c.l.s4 1966171168
  %v697 = vunpack.c.0.s8 %v696
  %v698 = vlaneseq
  %v699 = vshrl.u32 %v698, 7
  %v700 = vsub.s32 %v697, %v699
  %v701 = vrot.slane %v673, %v700
  %v702 = vcombine.high %v680, %v680
  %v703 = vcombine.high %v687, %v687
  %v704 = vcombine.high %v694, %v694
  %v705 = vcombine.high %v701, %v701
  %v706 = vcombine.high %v17, %v17
  %v708 = vunpack.c.l.s4 1966171168
  %v709 = vunpack.c.0.s8 %v708
  %v710 = vlaneseq
  %v711 = vshrl.u32 %v710, 7
  %v712 = vsub.s32 %v709, %v711
  %v713 = vrot.slane %v17, %v712
  %v715 = vunpack.c.l.s4 1966171168
  %v716 = vunpack.c.0.s8 %v715
  %v717 = vlaneseq
  %v718 = vshrl.u32 %v717, 7
  %v719 = vsub.s32 %v716, %v718
  %v720 = vrot.slane %v706, %v719
  %v721 = vcombine.high %v713, %v713
  %v722 = vcombine.high %v720, %v720
  %v724 = vunpack.c.l.s4 1966171168
  %v725 = vunpack.c.0.s8 %v724
  %v726 = vlaneseq
  %v727 = vshrl.u32 %v726, 7
  %v728 = vsub.s32 %v725, %v727
  %v729 = vrot.slane %v713, %v728
  %v731 = vunpack.c.l.s4 1966171168
  %v732 = vunpack.c.0.s8 %v731
  %v733 = vlaneseq
  %v734 = vshrl.u32 %v733, 7
  %v735 = vsub.s32 %v732, %v734
  %v736 = vrot.slane %v720, %v735
  %v738 = vunpack.c.l.s4 1966171168
  %v739 = vunpack.c.0.s8 %v738
  %v740 = vlaneseq
  %v741 = vshrl.u32 %v740, 7
  %v742 = vsub.s32 %v739, %v741
  %v743 = vrot.slane %v721, %v742
  %v745 = vunpack.c.l.s4 1966171168
  %v746 = vunpack.c.0.s8 %v745
  %v747 = vlaneseq
  %v748 = vshrl.u32 %v747, 7
  %v749 = vsub.s32 %v746, %v748
  %v750 = vrot.slane %v722, %v749
  %v751 = vcombine.high %v729, %v729
  %v752 = vcombine.high %v736, %v736
  %v753 = vcombine.high %v743, %v743
  %v754 = vcombine.high %v750, %v750
  %v755 = vcombine.high %v18, %v18
  %v757 = vunpack.c.l.s4 1966171168
  %v758 = vunpack.c.0.s8 %v757
  %v759 = vlaneseq
  %v760 = vshrl.u32 %v759, 7
  %v761 = vsub.s32 %v758, %v760
  %v762 = vrot.slane %v18, %v761
  %v764 = vunpack.c.l.s4 1966171168
  %v765 = vunpack.c.0.s8 %v764
  %v766 = vlaneseq
  %v767 = vshrl.u32 %v766, 7
  %v768 = vsub.s32 %v765, %v767
  %v769 = vrot.slane %v755, %v768
  %v770 = vcombine.high %v762, %v762
  %v771 = vcombine.high %v769, %v769
  %v773 = vunpack.c.l.s4 1966171168
  %v774 = vunpack.c.0.s8 %v773
  %v775 = vlaneseq
  %v776 = vshrl.u32 %v775, 7
  %v777 = vsub.s32 %v774, %v776
  %v778 = vrot.slane %v762, %v777
  %v780 = vunpack.c.l.s4 1966171168
  %v781 = vunpack.c.0.s8 %v780
  %v782 = vlaneseq
  %v783 = vshrl.u32 %v782, 7
  %v784 = vsub.s32 %v781, %v783
  %v785 = vrot.slane %v769, %v784
  %v787 = vunpack.c.l.s4 1966171168
  %v788 = vunpack.c.0.s8 %v787
  %v789 = vlaneseq
  %v790 = vshrl.u32 %v789, 7
  %v791 = vsub.s32 %v788, %v790
  %v792 = vrot.slane %v770, %v791
  %v794 = vunpack.c.l.s4 1966171168
  %v795 = vunpack.c.0.s8 %v794
  %v796 = vlaneseq
  %v797 = vshrl.u32 %v796, 7
  %v798 = vsub.s32 %v795, %v797
  %v799 = vrot.slane %v771, %v798
  %v800 = vcombine.high %v778, %v778
  %v801 = vcombine.high %v785, %v785
  %v802 = vcombine.high %v792, %v792
  %v803 = vcombine.high %v799, %v799
  %v805 = vunpack.c.l.s4 1966171168
  %v806 = vunpack.c.0.s8 %v805
  %v807 = vlaneseq
  %v808 = vshrl.u32 %v807, 7
  %v809 = vsub.s32 %v806, %v808
  %v810 = vrot.slane %v19, %v809
  %v811 = vcombine.high %v810, %v810
  %v813 = vunpack.c.l.s4 1966171168
  %v814 = vunpack.c.0.s8 %v813
  %v815 = vlaneseq
  %v816 = vshrl.u32 %v815, 7
  %v817 = vsub.s32 %v814, %v816
  %v818 = vrot.slane %v810, %v817
  %v820 = vunpack.c.l.s4 1966171168
  %v821 = vunpack.c.0.s8 %v820
  %v822 = vlaneseq
  %v823 = vshrl.u32 %v822, 7
  %v824 = vsub.s32 %v821, %v823
  %v825 = vrot.slane %v811, %v824
  %v826 = vcombine.high %v818, %v818
  %v827 = vcombine.high %v825, %v825
  %v1440 = vunpack.c.l.b16 %v20
  %v1441 = vunpack.c.l.b16 %v21
  %v1442 = vunpack.c.l.b16 %v22
  %v1443 = vunpack.c.l.b16 %v23
  %v1444 = vunpack.c.l.b16 %v24
  %v1445 = vunpack.c.l.b16 %v25
  %v1446 = vunpack.c.l.b16 %v26
  %v1447 = vunpack.c.l.b16 %v27
  %v1448 = vunpack.c.l.b16 %v28
  %v1449 = vunpack.c.l.b16 %v29
  %v1450 = vunpack.c.l.b16 %v30
  %v1451 = vunpack.c.l.b16 %v31
  %v1452 = vunpack.c.l.b16 %v32
  %v1453 = vunpack.c.l.b16 %v33
  %v1454 = vunpack.c.l.b16 %v34
  %v1455 = vunpack.c.l.b16 %v35
  %v1456 = vunpack.c.l.b16 %v36
  %v1457 = vunpack.c.l.b16 %v37
  %v1458 = vunpack.c.l.b16 %v38
  %v1459 = vunpack.c.l.b16 %v39
  %v1460 = vunpack.c.l.b16 %v40
  %v1461 = vunpack.c.l.b16 %v41
  %v1462 = vunpack.c.l.b16 %v42
  %v1463 = vunpack.c.l.b16 %v43
  %v1464 = vunpack.c.l.b16 %v44
  %v1465 = vunpack.c.l.b16 %v45
  %v1466 = vunpack.c.l.b16 %v46
  %v1467 = vunpack.c.l.b16 %v47
  %v1468 = vunpack.c.l.b16 %v48
  %v1469 = vunpack.c.l.b16 %v49
  %v1470 = vunpack.c.l.b16 %v50
  %v1471 = vunpack.c.l.b16 %v51
  %v1472 = vunpack.c.l.b16 %v52
  %v1473 = vunpack.c.l.b16 %v53
  %v1474 = vunpack.c.l.b16 %v54
  %v1475 = vunpack.c.l.b16 %v55
  %v1476 = vunpack.c.l.b16 %v56
  %v1477 = vunpack.c.l.b16 %v57
  %v1478 = vunpack.c.l.b16 %v58
  %v1479 = vunpack.c.l.b16 %v59
  %v1480 = vunpack.c.l.b16 %v60
  %v1481 = vunpack.c.l.b16 %v61
  %v1482 = vunpack.c.l.b16 %v62
  %v1483 = vunpack.c.l.b16 %v63
  %v1484 = vunpack.c.l.b16 %v64
  %v1485 = vunpack.c.l.b16 %v65
  %v1486 = vunpack.c.l.b16 %v66
  %v1487 = vunpack.c.l.b16 %v67
  %v1488 = vunpack.c.l.b16 %v68
  %v1489 = vunpack.c.l.b16 %v69
  %v1490 = vunpack.c.l.b16 %v70
  %v1491 = vunpack.c.l.b16 %v71
  %v1492 = vunpack.c.l.b16 %v72
  %v1493 = vunpack.c.l.b16 %v73
  %v1494 = vunpack.c.l.b16 %v74
  %v1495 = vunpack.c.l.b16 %v75
  %v1496 = vunpack.c.l.b16 %v76
  %v1497 = vunpack.c.l.b16 %v77
  %v1498 = vunpack.c.l.b16 %v78
  %v1499 = vunpack.c.l.b16 %v79
  %v1500 = vunpack.c.l.b16 %v80
  %v1501 = vunpack.c.l.b16 %v81
  %v1502 = vunpack.c.l.b16 %v82
  %v1503 = vunpack.c.l.b16 %v83
  %v1504 = vunpack.c.l.b16 %v84
  %v1505 = vunpack.c.l.b16 %v85
  %v1506 = vunpack.c.l.b16 %v86
  %v1507 = vunpack.c.l.b16 %v87
  %v1508 = vunpack.c.l.b16 %v88
  %v1509 = vunpack.c.l.b16 %v89
  %v1510 = vunpack.c.l.b16 %v90
  %v1511 = vunpack.c.l.b16 %v91
  %v1512 = vunpack.c.l.b16 %v92
  %v1513 = vunpack.c.l.b16 %v93
  %v1514 = vunpack.c.l.b16 %v94
  %v1515 = vunpack.c.l.b16 %v95
  %v1516 = vunpack.c.l.b16 %v96
  %v1517 = vunpack.c.l.b16 %v97
  %v1518 = vunpack.c.l.b16 %v98
  %v1519 = vunpack.c.l.b16 %v99
  %v1520 = vunpack.c.l.b16 %v100
  %v1521 = vunpack.c.l.b16 %v101
  %v1522 = vunpack.c.l.b16 %v102
  %v1523 = vunpack.c.l.b16 %v103
  %v1524 = vunpack.c.l.b16 %v104
  %v1525 = vunpack.c.l.b16 %v105
  %v1526 = vunpack.c.l.b16 %v106
  %v1527 = vunpack.c.l.b16 %v107
  %v1528 = vunpack.c.l.b16 %v108
  %v1529 = vunpack.c.l.b16 %v109
  %v1530 = vunpack.c.l.b16 %v110
  %v1531 = vunpack.c.l.b16 %v111
  %v1532 = vunpack.c.l.b16 %v112
  %v1533 = vunpack.c.l.b16 %v113
  %v1534 = vunpack.c.l.b16 %v114
  %v1535 = vunpack.c.l.b16 %v115
  %v1536 = vunpack.c.l.b16 %v116
  %v1537 = vunpack.c.l.b16 %v117
  %v1538 = vunpack.c.l.b16 %v118
  %v1539 = vunpack.c.l.b16 %v119
  %v1540 = vunpack.c.l.b16 %v120
  %v1541 = vunpack.c.l.b16 %v121
  %v1542 = vunpack.c.l.b16 %v122
  %v1543 = vunpack.c.l.b16 %v123
  %v1544 = vunpack.c.l.b16 %v124
  %v1545 = vunpack.c.l.b16 %v125
  %v1546 = vunpack.c.l.b16 %v126
  %v1547 = vunpack.c.l.b16 %v127
  %v1548 = vunpack.c.l.b16 %v128
  %v1549 = vunpack.c.l.b16 %v129
  %v1550 = vunpack.c.l.b16 %v130
  %v1551 = vunpack.c.l.b16 %v131
  %v1552 = vunpack.c.l.b16 %v132
  %v1553 = vunpack.c.l.b16 %v133
  %v1554 = vunpack.c.l.b16 %v134
  %v1555 = vunpack.c.l.b16 %v135
  %v1556 = vunpack.c.l.b16 %v136
  %v1557 = vunpack.c.l.b16 %v137
  %v1558 = vunpack.c.l.b16 %v138
  %v1559 = vunpack.c.l.b16 %v139
  %v1560 = vunpack.c.l.b16 %v140
  %v1561 = vunpack.c.l.b16 %v141
  %v1562 = vunpack.c.l.b16 %v142
  %v1563 = vunpack.c.l.b16 %v143
  %v1564 = vunpack.c.l.b16 %v144
  %v1565 = vunpack.c.l.b16 %v145
  %v1566 = vunpack.c.l.b16 %v146
  %v1567 = vunpack.c.l.b16 %v147
  %v1568 = vunpack.c.l.b16 %v148
  %v1569 = vunpack.c.l.b16 %v149
  %v1570 = vunpack.c.l.b16 %v150
  %v1571 = vunpack.c.l.b16 %v151
  %v1572 = vunpack.c.l.b16 %v152
  %v1573 = vunpack.c.l.b16 %v153
  %v1574 = vunpack.c.l.b16 %v154
  %v1575 = vunpack.c.l.b16 %v155
  %v1576 = vunpack.c.l.b16 %v156
  %v1577 = vunpack.c.l.b16 %v157
  %v1578 = vunpack.c.l.b16 %v158
  %v1579 = vunpack.c.l.b16 %v159
  %v1580 = vunpack.c.l.b16 %v160
  %v1581 = vunpack.c.l.b16 %v161
  %v1582 = vunpack.c.l.b16 %v162
  %v1583 = vunpack.c.l.b16 %v163
  %v1584 = vunpack.c.l.b16 %v164
  %v1585 = vunpack.c.l.b16 %v165
  %v1586 = vunpack.c.l.b16 %v166
  %v1587 = vunpack.c.l.b16 %v167
  %v1588 = vunpack.c.l.b16 %v168
  %v1589 = vunpack.c.l.b16 %v169
  %v1590 = vunpack.c.l.b16 %v170
  %v1591 = vunpack.c.l.b16 %v171
  %v1592 = vunpack.c.l.b16 %v172
  %v1593 = vunpack.c.l.b16 %v173
  %v1594 = vunpack.c.l.b16 %v174
  %v1595 = vunpack.c.l.b16 %v175
  %v1596 = vunpack.c.l.b16 %v176
  %v1597 = vunpack.c.l.b16 %v177
  %v1598 = vunpack.c.l.b16 %v178
  %v1599 = vunpack.c.l.b16 %v179
  %v1600 = vunpack.c.l.b16 %v180
  %v1601 = vunpack.c.l.b16 %v181
  %v1602 = vunpack.c.l.b16 %v182
  %v1603 = vunpack.c.l.b16 %v183
  %v1604 = vunpack.c.l.b16 %v184
  %v1605 = vunpack.c.l.b16 %v185
  %v1606 = vunpack.c.l.b16 %v186
  %v1607 = vunpack.c.l.b16 %v187
  %v1608 = vunpack.c.l.b16 %v188
  %v1609 = vunpack.c.l.b16 %v189
  %v1610 = vunpack.c.l.b16 %v190
  %v1611 = vunpack.c.l.b16 %v191
  %v1612 = vunpack.c.l.b16 %v192
  %v1613 = vunpack.c.l.b16 %v193
  %v1614 = vunpack.c.l.b16 %v194
  %v1615 = vunpack.c.l.b16 %v195
  %v1616 = vunpack.c.l.b16 %v196
  %v1617 = vunpack.c.l.b16 %v197
  %v1618 = vunpack.c.l.b16 %v198
  %v1619 = vunpack.c.l.b16 %v199
  %v1620 = vunpack.c.l.b16 %v200
  %v1621 = vunpack.c.l.b16 %v201
  %v1622 = vunpack.c.l.b16 %v202
  %v1623 = vunpack.c.l.b16 %v203
  %v1624 = vunpack.c.l.b16 %v204
  %v1625 = vunpack.c.l.b16 %v205
  %v1626 = vunpack.c.l.b16 %v206
  %v1627 = vunpack.c.l.b16 %v207
  %v1628 = vunpack.c.l.b16 %v208
  %v1629 = vunpack.c.l.b16 %v209
  %v1630 = vunpack.c.l.b16 %v210
  %v1631 = vunpack.c.l.b16 %v211
  %v1632 = vunpack.c.l.b16 %v212
  %v1633 = vunpack.c.l.b16 %v213
  %v1634 = vunpack.c.l.b16 %v214
  %v1635 = vunpack.c.l.b16 %v215
  %v1636 = vunpack.c.l.b16 %v216
  %v1637 = vunpack.c.l.b16 %v217
  %v1638 = vunpack.c.l.b16 %v218
  %v1639 = vunpack.c.l.b16 %v219
  %v1640 = vunpack.c.l.b16 %v220
  %v1641 = vunpack.c.l.b16 %v221
  %v1642 = vunpack.c.l.b16 %v222
  %v1643 = vunpack.c.l.b16 %v223
  %v1644 = vunpack.c.l.b16 %v224
  %v1645 = vunpack.c.l.b16 %v225
  %v1646 = vunpack.c.l.b16 %v226
  %v1647 = vunpack.c.l.b16 %v227
  %v1648 = vunpack.c.l.b16 %v228
  %v1649 = vunpack.c.l.b16 %v229
  %v1650 = vunpack.c.l.b16 %v230
  %v1651 = vunpack.c.l.b16 %v231
  %v1652 = vunpack.c.l.b16 %v232
  %v1653 = vunpack.c.l.b16 %v233
  %v1654 = vunpack.c.l.b16 %v234
  %v1655 = vunpack.c.l.b16 %v235
  %v1656 = vunpack.c.l.b16 %v236
  %v1657 = vunpack.c.l.b16 %v237
  %v1658 = vunpack.c.l.b16 %v238
  %v1659 = vunpack.c.l.b16 %v239
  %v1660 = vunpack.c.l.b16 %v240
  %v1661 = vunpack.c.l.b16 %v241
  %v1662 = vunpack.c.l.b16 %v242
  %v1663 = vunpack.c.l.b16 %v243
  %v1664 = vunpack.c.l.b16 %v244
  %v1665 = vunpack.c.l.b16 %v245
  %v1666 = vunpack.c.l.b16 %v246
  %v1667 = vunpack.c.l.b16 %v247
  %v1668 = vunpack.c.l.b16 %v248
  %v1669 = vunpack.c.l.b16 %v249
  %v1670 = vunpack.c.l.b16 %v250
  %v1671 = vunpack.c.l.b16 %v251
  %v1672 = vunpack.c.l.b16 %v252
  %v1673 = vunpack.c.l.b16 %v253
  %v1674 = vunpack.c.l.b16 %v254
  %v1675 = vunpack.c.l.b16 %v255
  %v1676 = vunpack.c.l.b16 %v256
  %v1677 = vunpack.c.l.b16 %v257
  %v1678 = vunpack.c.l.b16 %v258
  %v1679 = vunpack.c.l.b16 %v259
  %v1680 = vunpack.c.l.b16 %v260
  %v1681 = vunpack.c.l.b16 %v261
  %v1682 = vunpack.c.l.b16 %v262
  %v1683 = vunpack.c.l.b16 %v263
  %v1684 = vunpack.c.l.b16 %v264
  %v1685 = vunpack.c.l.b16 %v265
  %v1686 = vunpack.c.l.b16 %v266
  %v1687 = vunpack.c.l.b16 %v267
  %v1688 = vunpack.c.l.b16 %v268
  %v1689 = vunpack.c.l.b16 %v269
  %v1690 = vunpack.c.l.b16 %v270
  %v1691 = vunpack.c.l.b16 %v271
  %v1692 = vunpack.c.l.b16 %v272
  %v1693 = vunpack.c.l.b16 %v273
  %v1694 = vunpack.c.l.b16 %v274
  %v1695 = vunpack.c.l.b16 %v275
  %v1696 = vunpack.c.l.b16 %v276
  %v1697 = vunpack.c.l.b16 %v277
  %v1698 = vunpack.c.l.b16 %v278
  %v1699 = vunpack.c.l.b16 %v279
  %v1700 = vunpack.c.l.b16 %v280
  %v1701 = vunpack.c.l.b16 %v281
  %v1702 = vunpack.c.l.b16 %v282
  %v1703 = vunpack.c.l.b16 %v283
  %v1704 = vunpack.c.l.b16 %v284
  %v1705 = vunpack.c.l.b16 %v285
  %v1706 = vunpack.c.l.b16 %v286
  %v1707 = vunpack.c.l.b16 %v287
  %v1708 = vunpack.c.l.b16 %v288
  %v1709 = vunpack.c.l.b16 %v289
  %v1710 = vunpack.c.l.b16 %v290
  %v1711 = vunpack.c.l.b16 %v291
  %v1712 = vunpack.c.l.b16 %v292
  %v1713 = vunpack.c.l.b16 %v293
  %v1714 = vunpack.c.l.b16 %v294
  %v1715 = vunpack.c.l.b16 %v295
  %v1716 = vunpack.c.l.b16 %v296
  %v1717 = vunpack.c.l.b16 %v297
  %v1718 = vunpack.c.l.b16 %v298
  %v1719 = vunpack.c.l.b16 %v299
  %v1720 = vunpack.c.l.b16 %v300
  %v1721 = vunpack.c.l.b16 %v301
  %v1722 = vunpack.c.l.b16 %v302
  %v1723 = vunpack.c.l.b16 %v303
  %v1724 = vunpack.c.l.b16 %v304
  %v1725 = vunpack.c.l.b16 %v305
  %v1726 = vunpack.c.l.b16 %v306
  %v1727 = vunpack.c.l.b16 %v307
  %v1728 = vunpack.c.l.b16 %v308
  %v1729 = vunpack.c.l.b16 %v309
  %v1730 = vunpack.c.l.b16 %v310
  %v1731 = vunpack.c.l.b16 %v311
  %v1732 = vunpack.c.l.b16 %v312
  %v1733 = vunpack.c.l.b16 %v313
  %v1734 = vunpack.c.l.b16 %v314
  %v1735 = vunpack.c.l.b16 %v315
  %v1736 = vunpack.c.l.b16 %v316
  %v1737 = vunpack.c.l.b16 %v317
  %v1738 = vunpack.c.l.b16 %v318
  %v1739 = vunpack.c.l.b16 %v319
  %v1740 = vunpack.c.l.b16 %v320
  %v1741 = vunpack.c.l.b16 %v321
  %v1742 = vunpack.c.l.b16 %v322
  %v1743 = vunpack.c.l.b16 %v323
  %v1744 = vunpack.c.l.b16 %v324
  %v1745 = vunpack.c.l.b16 %v325
  %v1746 = vunpack.c.l.b16 %v326
  %v1747 = vunpack.c.l.b16 %v327
  %v1748 = vunpack.c.l.b16 %v328
  %v1749 = vunpack.c.l.b16 %v329
  %v1750 = vunpack.c.l.b16 %v330
  %v1751 = vunpack.c.l.b16 %v331
  %v1752 = vunpack.c.l.b16 %v332
  %v1753 = vunpack.c.l.b16 %v333
  %v1754 = vunpack.c.l.b16 %v334
  %v1755 = vunpack.c.l.b16 %v335
  %v1756 = vunpack.c.l.b16 %v336
  %v1757 = vunpack.c.l.b16 %v337
  %v1758 = vunpack.c.l.b16 %v338
  %v1759 = vunpack.c.l.b16 %v339
  %v1760 = vunpack.c.l.b16 %v340
  %v1761 = vunpack.c.l.b16 %v341
  %v1762 = vunpack.c.l.b16 %v342
  %v1763 = vunpack.c.l.b16 %v343
  %v1764 = vunpack.c.l.b16 %v344
  %v1765 = vunpack.c.l.b16 %v345
  %v1766 = vunpack.c.l.b16 %v346
  %v1767 = vunpack.c.l.b16 %v347
  %v1768 = vunpack.c.l.b16 %v348
  %v1769 = vunpack.c.l.b16 %v349
  %v1770 = vunpack.c.l.b16 %v350
  %v1771 = vunpack.c.l.b16 %v351
  %v1772 = vunpack.c.l.b16 %v352
  %v1773 = vunpack.c.l.b16 %v353
  %v1774 = vunpack.c.l.b16 %v354
  %v1775 = vunpack.c.l.b16 %v355
  %v1776 = vunpack.c.l.b16 %v356
  %v1777 = vunpack.c.l.b16 %v357
  %v1778 = vunpack.c.l.b16 %v358
  %v1779 = vunpack.c.l.b16 %v359
  %v1780 = vunpack.c.l.b16 %v360
  %v1781 = vunpack.c.l.b16 %v361
  %v1782 = vunpack.c.l.b16 %v362
  %v1783 = vunpack.c.l.b16 %v363
  %v1784 = vunpack.c.l.b16 %v364
  %v1785 = vunpack.c.l.b16 %v365
  %v1786 = vunpack.c.l.b16 %v366
  %v1787 = vunpack.c.l.b16 %v367
  %v1788 = vunpack.c.l.b16 %v368
  %v1789 = vunpack.c.l.b16 %v369
  %v1790 = vunpack.c.l.b16 %v370
  %v1791 = vunpack.c.l.b16 %v371
  %v1792 = vunpack.c.l.b16 %v372
  %v1793 = vunpack.c.l.b16 %v373
  %v1794 = vunpack.c.l.b16 %v374
  %v1795 = vunpack.c.l.b16 %v375
  %v1796 = vunpack.c.l.b16 %v376
  %v1797 = vunpack.c.l.b16 %v377
  %v1798 = vunpack.c.l.b16 %v378
  %v1799 = vunpack.c.l.b16 %v379
  %v1800 = vunpack.c.l.b16 %v380
  %v1801 = vunpack.c.l.b16 %v381
  %v1802 = vunpack.c.l.b16 %v382
  %v1803 = vunpack.c.l.b16 %v383
  %v1804 = vunpack.c.l.b16 %v384
  %v1805 = vunpack.c.l.b16 %v385
  %v1806 = vunpack.c.l.b16 %v386
  %v1807 = vunpack.c.l.b16 %v387
  %v1808 = vunpack.c.l.b16 %v388
  %v1809 = vunpack.c.l.b16 %v389
  %v1810 = vunpack.c.l.b16 %v390
  %v1811 = vunpack.c.l.b16 %v391
  %v1812 = vunpack.c.l.b16 %v392
  %v1813 = vunpack.c.l.b16 %v393
  %v1814 = vunpack.c.l.b16 %v394
  %v1815 = vunpack.c.l.b16 %v395
  %v1816 = vunpack.c.l.b16 %v396
  %v1817 = vunpack.c.l.b16 %v397
  %v1818 = vunpack.c.l.b16 %v398
  %v1819 = vunpack.c.l.b16 %v399
  %v1820 = vunpack.c.l.b16 %v400
  %v1821 = vunpack.c.l.b16 %v401
  %v1822 = vunpack.c.l.b16 %v402
  %v1823 = vunpack.c.l.b16 %v403
  %v1824 = vunpack.c.l.b16 %v404
  %v1825 = vunpack.c.l.b16 %v405
  %v1826 = vunpack.c.l.b16 %v406
  %v1827 = vunpack.c.l.b16 %v407
  %v1828 = vunpack.c.l.b16 %v408
  %v1829 = vunpack.c.l.b16 %v409
  %v1830 = vunpack.c.l.b16 %v410
  %v1831 = vunpack.c.l.b16 %v411
  %v1832 = vunpack.c.l.b16 %v412
  %v1833 = vunpack.c.l.b16 %v413
  %v1834 = vunpack.c.l.b16 %v414
  %v1835 = vunpack.c.l.b16 %v415
  %v1836 = vunpack.c.l.b16 %v416
  %v1837 = vunpack.c.l.b16 %v417
  %v1838 = vunpack.c.l.b16 %v418
  %v1839 = vunpack.c.l.b16 %v419
  %v1840 = vunpack.c.l.b16 %v420
  %v1841 = vunpack.c.l.b16 %v421
  %v1842 = vunpack.c.l.b16 %v422
  %v1843 = vunpack.c.l.b16 %v423
  %v1844 = vunpack.c.l.b16 %v424
  %v1845 = vunpack.c.l.b16 %v425
  %v1846 = vunpack.c.l.b16 %v426
  %v1847 = vunpack.c.l.b16 %v427
  %v1848 = vunpack.c.l.b16 %v428
  %v1849 = vunpack.c.l.b16 %v429
  %v1850 = vunpack.c.l.b16 %v430
  %v1851 = vunpack.c.l.b16 %v431
  %v1852 = vunpack.c.l.b16 %v432
  %v1853 = vunpack.c.l.b16 %v433
  %v1854 = vunpack.c.l.b16 %v434
  %v1855 = vunpack.c.l.b16 %v435
  %v1856 = vunpack.c.l.b16 %v436
  %v1857 = vunpack.c.l.b16 %v437
  %v1858 = vunpack.c.l.b16 %v438
  %v1859 = vunpack.c.l.b16 %v439
  %v1860 = vunpack.c.l.b16 %v440
  %v1861 = vunpack.c.l.b16 %v441
  %v1862 = vunpack.c.l.b16 %v442
  %v1863 = vunpack.c.l.b16 %v443
  %v1864 = vunpack.c.l.b16 %v444
  %v1865 = vunpack.c.l.b16 %v445
  %v1866 = vunpack.c.l.b16 %v446
  %v1867 = vunpack.c.l.b16 %v447
  %v1868 = vunpack.c.l.b16 %v448
  %v1869 = vunpack.c.l.b16 %v449
  %v1870 = vunpack.c.l.b16 %v450
  %v1871 = vunpack.c.l.b16 %v451
  %v1872 = vunpack.c.l.b16 %v452
  %v1873 = vunpack.c.l.b16 %v453
  %v1874 = vunpack.c.l.b16 %v454
  %v1875 = vunpack.c.l.b16 %v455
  %v1876 = vunpack.c.l.b16 %v456
  %v1877 = vunpack.c.l.b16 %v457
  %v1878 = vunpack.c.l.b16 %v458
  %v1879 = vunpack.c.l.b16 %v459
  %v1880 = vunpack.c.l.b16 %v460
  %v1881 = vunpack.c.l.b16 %v461
  %v1882 = vunpack.c.l.b16 %v462
  %v1883 = vunpack.c.l.b16 %v463
  %v1884 = vunpack.c.l.b16 %v464
  %v1885 = vunpack.c.l.b16 %v465
  %v1886 = vunpack.c.l.b16 %v466
  %v1887 = vunpack.c.l.b16 %v467
  %v1888 = vunpack.c.l.b16 %v468
  %v1889 = vunpack.c.l.b16 %v469
  %v1890 = vunpack.c.l.b16 %v470
  %v1891 = vunpack.c.l.b16 %v471
  %v1892 = vunpack.c.l.b16 %v472
  %v1893 = vunpack.c.l.b16 %v473
  %v1894 = vunpack.c.l.b16 %v474
  %v1895 = vunpack.c.l.b16 %v475
  %v1896 = vunpack.c.l.b16 %v476
  %v1897 = vunpack.c.l.b16 %v477
  %v1898 = vunpack.c.l.b16 %v478
  %v1899 = vunpack.c.l.b16 %v479
  %v1900 = vunpack.c.l.b16 %v480
  %v1901 = vunpack.c.l.b16 %v481
  %v1902 = vunpack.c.l.b16 %v482
  %v1903 = vunpack.c.l.b16 %v483
  %v1904 = vunpack.c.l.b16 %v484
  %v1905 = vunpack.c.l.b16 %v485
  %v1906 = vunpack.c.l.b16 %v486
  %v1907 = vunpack.c.l.b16 %v487
  %v1908 = vunpack.c.l.b16 %v488
  %v1909 = vunpack.c.l.b16 %v489
  %v1910 = vunpack.c.l.b16 %v490
  %v1911 = vunpack.c.l.b16 %v491
  %v1912 = vunpack.c.l.b16 %v492
  %v1913 = vunpack.c.l.b16 %v493
  %v1914 = vunpack.c.l.b16 %v494
  %v1915 = vunpack.c.l.b16 %v495
  %v1916 = vunpack.c.l.b16 %v496
  %v1917 = vunpack.c.l.b16 %v497
  %v1918 = vunpack.c.l.b16 %v498
  %v1919 = vunpack.c.l.b16 %v499
  %v1920 = vunpack.c.l.b16 %v500
  %v1921 = vunpack.c.l.b16 %v501
  %v1922 = vunpack.c.l.b16 %v502
  %v1923 = vunpack.c.l.b16 %v503
  %v1924 = vunpack.c.l.b16 %v504
  %v1925 = vunpack.c.l.b16 %v505
  %v1926 = vunpack.c.l.b16 %v506
  %v1927 = vunpack.c.l.b16 %v507
  %v1928 = vunpack.c.l.b16 %v508
  %v1929 = vunpack.c.l.b16 %v509
  %v1930 = vunpack.c.l.b16 %v510
  %v1931 = vunpack.c.l.b16 %v511
  %v1932 = vunpack.c.l.b16 %v512
  %v1933 = vunpack.c.l.b16 %v513
  %v1934 = vunpack.c.l.b16 %v514
  %v1935 = vunpack.c.l.b16 %v515
  %v1936 = vunpack.c.l.b16 %v516
  %v1937 = vunpack.c.l.b16 %v517
  %v1938 = vunpack.c.l.b16 %v518
  %v1939 = vunpack.c.l.b16 %v519
  %v1940 = vunpack.c.l.b16 %v520
  %v1941 = vunpack.c.l.b16 %v521
  %v1942 = vunpack.c.l.b16 %v522
  %v1943 = vunpack.c.l.b16 %v523
  %v1944 = vunpack.c.l.b16 %v524
  %v1945 = vunpack.c.l.b16 %v525
  %v1946 = vunpack.c.l.b16 %v526
  %v1947 = vunpack.c.l.b16 %v527
  %v1948 = vunpack.c.l.b16 %v528
  %v1949 = vunpack.c.l.b16 %v529
  %v1950 = vunpack.c.l.b16 %v530
  %v1951 = vunpack.c.l.b16 %v531
  %v1952 = vunpack.c.l.b16 %v532
  %v1953 = vunpack.c.l.b16 %v533
  %v1954 = vunpack.c.l.b16 %v534
  %v1955 = vunpack.c.l.b16 %v535
  %v1956 = vunpack.c.l.b16 %v536
  %v1957 = vunpack.c.l.b16 %v537
  %v1958 = vunpack.c.l.b16 %v538
  %v1959 = vunpack.c.l.b16 %v539
  %v1960 = vunpack.c.l.b16 %v540
  %v1961 = vunpack.c.l.b16 %v541
  %v1962 = vunpack.c.l.b16 %v542
  %v1963 = vunpack.c.l.b16 %v543
  %v1964 = vunpack.c.l.b16 %v544
  %v1965 = vunpack.c.l.b16 %v545
  %v1966 = vunpack.c.l.b16 %v546
  %v1967 = vunpack.c.l.b16 %v547
  %v1968 = vunpack.c.l.b16 %v548
  %v1969 = vunpack.c.l.b16 %v549
  %v1970 = vunpack.c.l.b16 %v550
  %v1971 = vunpack.c.l.b16 %v551
  %v1972 = vunpack.c.l.b16 %v552
  %v1973 = vunpack.c.l.b16 %v553
  %v1974 = vunpack.c.l.b16 %v554
  %v1975 = vunpack.c.l.b16 %v555
  %v1976 = vunpack.c.l.b16 %v556
  %v1977 = vunpack.c.l.b16 %v557
  %v1978 = vunpack.c.l.b16 %v558
  %v1979 = vunpack.c.l.b16 %v559
  %v1980 = vunpack.c.l.b16 %v560
  %v1981 = vunpack.c.l.b16 %v561
  %v1982 = vunpack.c.l.b16 %v562
  %v1983 = vunpack.c.l.b16 %v563
  %v1984 = vunpack.c.l.b16 %v564
  %v1985 = vunpack.c.l.b16 %v565
  %v1986 = vunpack.c.l.b16 %v566
  %v1987 = vunpack.c.l.b16 %v567
  %v1988 = vunpack.c.l.b16 %v568
  %v1989 = vunpack.c.l.b16 %v569
  %v1990 = vunpack.c.l.b16 %v570
  %v1991 = vunpack.c.l.b16 %v571
  %v1992 = vunpack.c.l.b16 %v572
  %v1993 = vunpack.c.l.b16 %v573
  %v1994 = vunpack.c.l.b16 %v574
  %v1995 = vunpack.c.l.b16 %v575
  %v1996 = vunpack.c.l.b16 %v576
  %v1997 = vunpack.c.l.b16 %v577
  %v1998 = vunpack.c.l.b16 %v578
  %v1999 = vunpack.c.l.b16 %v579
  %v2000 = vunpack.c.l.b16 %v580
  %v2001 = vunpack.c.l.b16 %v581
  %v2002 = vunpack.c.l.b16 %v582
  %v2003 = vunpack.c.l.b16 %v583
  %v2004 = vunpack.c.l.b16 %v584
  %v2005 = vunpack.c.l.b16 %v585
  %v2006 = vunpack.c.l.b16 %v586
  %v2007 = vunpack.c.l.b16 %v587
  %v2008 = vunpack.c.l.b16 %v588
  %v2009 = vunpack.c.l.b16 %v589
  %v2010 = vunpack.c.l.b16 %v590
  %v2011 = vunpack.c.l.b16 %v591
  %v2012 = vunpack.c.l.b16 %v592
  %v2013 = vunpack.c.l.b16 %v593
  %v2014 = vunpack.c.l.b16 %v594
  %v2015 = vunpack.c.l.b16 %v595
  %v2016 = vpack.c.b16 %v1441, %v1440
  %v2017 = vpack.c.b16 %v1443, %v1442
  %v2018 = vpack.c.b16 %v1445, %v1444
  %v2019 = vpack.c.b16 %v1447, %v1446
  %v2020 = vpack.c.b16 %v1449, %v1448
  %v2021 = vpack.c.b16 %v1451, %v1450
  %v2022 = vpack.c.b16 %v1453, %v1452
  %v2023 = vpack.c.b16 %v1455, %v1454
  %v2024 = vpack.c.b16 %v1457, %v1456
  %v2025 = vpack.c.b16 %v1459, %v1458
  %v2026 = vpack.c.b16 %v1461, %v1460
  %v2027 = vpack.c.b16 %v1463, %v1462
  %v2028 = vpack.c.b16 %v1465, %v1464
  %v2029 = vpack.c.b16 %v1467, %v1466
  %v2030 = vpack.c.b16 %v1469, %v1468
  %v2031 = vpack.c.b16 %v1471, %v1470
  %v2032 = vpack.c.b16 %v1473, %v1472
  %v2033 = vpack.c.b16 %v1475, %v1474
  %v2034 = vpack.c.b16 %v1477, %v1476
  %v2035 = vpack.c.b16 %v1479, %v1478
  %v2036 = vpack.c.b16 %v1481, %v1480
  %v2037 = vpack.c.b16 %v1483, %v1482
  %v2038 = vpack.c.b16 %v1485, %v1484
  %v2039 = vpack.c.b16 %v1487, %v1486
  %v2040 = vpack.c.b16 %v1489, %v1488
  %v2041 = vpack.c.b16 %v1491, %v1490
  %v2042 = vpack.c.b16 %v1493, %v1492
  %v2043 = vpack.c.b16 %v1495, %v1494
  %v2044 = vpack.c.b16 %v1497, %v1496
  %v2045 = vpack.c.b16 %v1499, %v1498
  %v2046 = vpack.c.b16 %v1501, %v1500
  %v2047 = vpack.c.b16 %v1503, %v1502
  %v2048 = vpack.c.b16 %v1505, %v1504
  %v2049 = vpack.c.b16 %v1507, %v1506
  %v2050 = vpack.c.b16 %v1509, %v1508
  %v2051 = vpack.c.b16 %v1511, %v1510
  %v2052 = vpack.c.b16 %v1513, %v1512
  %v2053 = vpack.c.b16 %v1515, %v1514
  %v2054 = vpack.c.b16 %v1517, %v1516
  %v2055 = vpack.c.b16 %v1519, %v1518
  %v2056 = vpack.c.b16 %v1521, %v1520
  %v2057 = vpack.c.b16 %v1523, %v1522
  %v2058 = vpack.c.b16 %v1525, %v1524
  %v2059 = vpack.c.b16 %v1527, %v1526
  %v2060 = vpack.c.b16 %v1529, %v1528
  %v2061 = vpack.c.b16 %v1531, %v1530
  %v2062 = vpack.c.b16 %v1533, %v1532
  %v2063 = vpack.c.b16 %v1535, %v1534
  %v2064 = vpack.c.b16 %v1537, %v1536
  %v2065 = vpack.c.b16 %v1539, %v1538
  %v2066 = vpack.c.b16 %v1541, %v1540
  %v2067 = vpack.c.b16 %v1543, %v1542
  %v2068 = vpack.c.b16 %v1545, %v1544
  %v2069 = vpack.c.b16 %v1547, %v1546
  %v2070 = vpack.c.b16 %v1549, %v1548
  %v2071 = vpack.c.b16 %v1551, %v1550
  %v2072 = vpack.c.b16 %v1553, %v1552
  %v2073 = vpack.c.b16 %v1555, %v1554
  %v2074 = vpack.c.b16 %v1557, %v1556
  %v2075 = vpack.c.b16 %v1559, %v1558
  %v2076 = vpack.c.b16 %v1561, %v1560
  %v2077 = vpack.c.b16 %v1563, %v1562
  %v2078 = vpack.c.b16 %v1565, %v1564
  %v2079 = vpack.c.b16 %v1567, %v1566
  %v2080 = vpack.c.b16 %v1569, %v1568
  %v2081 = vpack.c.b16 %v1571, %v1570
  %v2082 = vpack.c.b16 %v1573, %v1572
  %v2083 = vpack.c.b16 %v1575, %v1574
  %v2084 = vpack.c.b16 %v1577, %v1576
  %v2085 = vpack.c.b16 %v1579, %v1578
  %v2086 = vpack.c.b16 %v1581, %v1580
  %v2087 = vpack.c.b16 %v1583, %v1582
  %v2088 = vpack.c.b16 %v1585, %v1584
  %v2089 = vpack.c.b16 %v1587, %v1586
  %v2090 = vpack.c.b16 %v1589, %v1588
  %v2091 = vpack.c.b16 %v1591, %v1590
  %v2092 = vpack.c.b16 %v1593, %v1592
  %v2093 = vpack.c.b16 %v1595, %v1594
  %v2094 = vpack.c.b16 %v1597, %v1596
  %v2095 = vpack.c.b16 %v1599, %v1598
  %v2096 = vpack.c.b16 %v1601, %v1600
  %v2097 = vpack.c.b16 %v1603, %v1602
  %v2098 = vpack.c.b16 %v1605, %v1604
  %v2099 = vpack.c.b16 %v1607, %v1606
  %v2100 = vpack.c.b16 %v1609, %v1608
  %v2101 = vpack.c.b16 %v1611, %v1610
  %v2102 = vpack.c.b16 %v1613, %v1612
  %v2103 = vpack.c.b16 %v1615, %v1614
  %v2104 = vpack.c.b16 %v1617, %v1616
  %v2105 = vpack.c.b16 %v1619, %v1618
  %v2106 = vpack.c.b16 %v1621, %v1620
  %v2107 = vpack.c.b16 %v1623, %v1622
  %v2108 = vpack.c.b16 %v1625, %v1624
  %v2109 = vpack.c.b16 %v1627, %v1626
  %v2110 = vpack.c.b16 %v1629, %v1628
  %v2111 = vpack.c.b16 %v1631, %v1630
  %v2112 = vpack.c.b16 %v1633, %v1632
  %v2113 = vpack.c.b16 %v1635, %v1634
  %v2114 = vpack.c.b16 %v1637, %v1636
  %v2115 = vpack.c.b16 %v1639, %v1638
  %v2116 = vpack.c.b16 %v1641, %v1640
  %v2117 = vpack.c.b16 %v1643, %v1642
  %v2118 = vpack.c.b16 %v1645, %v1644
  %v2119 = vpack.c.b16 %v1647, %v1646
  %v2120 = vpack.c.b16 %v1649, %v1648
  %v2121 = vpack.c.b16 %v1651, %v1650
  %v2122 = vpack.c.b16 %v1653, %v1652
  %v2123 = vpack.c.b16 %v1655, %v1654
  %v2124 = vpack.c.b16 %v1657, %v1656
  %v2125 = vpack.c.b16 %v1659, %v1658
  %v2126 = vpack.c.b16 %v1661, %v1660
  %v2127 = vpack.c.b16 %v1663, %v1662
  %v2128 = vpack.c.b16 %v1665, %v1664
  %v2129 = vpack.c.b16 %v1667, %v1666
  %v2130 = vpack.c.b16 %v1669, %v1668
  %v2131 = vpack.c.b16 %v1671, %v1670
  %v2132 = vpack.c.b16 %v1673, %v1672
  %v2133 = vpack.c.b16 %v1675, %v1674
  %v2134 = vpack.c.b16 %v1677, %v1676
  %v2135 = vpack.c.b16 %v1679, %v1678
  %v2136 = vpack.c.b16 %v1681, %v1680
  %v2137 = vpack.c.b16 %v1683, %v1682
  %v2138 = vpack.c.b16 %v1685, %v1684
  %v2139 = vpack.c.b16 %v1687, %v1686
  %v2140 = vpack.c.b16 %v1689, %v1688
  %v2141 = vpack.c.b16 %v1691, %v1690
  %v2142 = vpack.c.b16 %v1693, %v1692
  %v2143 = vpack.c.b16 %v1695, %v1694
  %v2144 = vpack.c.b16 %v1697, %v1696
  %v2145 = vpack.c.b16 %v1699, %v1698
  %v2146 = vpack.c.b16 %v1701, %v1700
  %v2147 = vpack.c.b16 %v1703, %v1702
  %v2148 = vpack.c.b16 %v1705, %v1704
  %v2149 = vpack.c.b16 %v1707, %v1706
  %v2150 = vpack.c.b16 %v1709, %v1708
  %v2151 = vpack.c.b16 %v1711, %v1710
  %v2152 = vpack.c.b16 %v1713, %v1712
  %v2153 = vpack.c.b16 %v1715, %v1714
  %v2154 = vpack.c.b16 %v1717, %v1716
  %v2155 = vpack.c.b16 %v1719, %v1718
  %v2156 = vpack.c.b16 %v1721, %v1720
  %v2157 = vpack.c.b16 %v1723, %v1722
  %v2158 = vpack.c.b16 %v1725, %v1724
  %v2159 = vpack.c.b16 %v1727, %v1726
  %v2160 = vpack.c.b16 %v1729, %v1728
  %v2161 = vpack.c.b16 %v1731, %v1730
  %v2162 = vpack.c.b16 %v1733, %v1732
  %v2163 = vpack.c.b16 %v1735, %v1734
  %v2164 = vpack.c.b16 %v1737, %v1736
  %v2165 = vpack.c.b16 %v1739, %v1738
  %v2166 = vpack.c.b16 %v1741, %v1740
  %v2167 = vpack.c.b16 %v1743, %v1742
  %v2168 = vpack.c.b16 %v1745, %v1744
  %v2169 = vpack.c.b16 %v1747, %v1746
  %v2170 = vpack.c.b16 %v1749, %v1748
  %v2171 = vpack.c.b16 %v1751, %v1750
  %v2172 = vpack.c.b16 %v1753, %v1752
  %v2173 = vpack.c.b16 %v1755, %v1754
  %v2174 = vpack.c.b16 %v1757, %v1756
  %v2175 = vpack.c.b16 %v1759, %v1758
  %v2176 = vpack.c.b16 %v1761, %v1760
  %v2177 = vpack.c.b16 %v1763, %v1762
  %v2178 = vpack.c.b16 %v1765, %v1764
  %v2179 = vpack.c.b16 %v1767, %v1766
  %v2180 = vpack.c.b16 %v1769, %v1768
  %v2181 = vpack.c.b16 %v1771, %v1770
  %v2182 = vpack.c.b16 %v1773, %v1772
  %v2183 = vpack.c.b16 %v1775, %v1774
  %v2184 = vpack.c.b16 %v1777, %v1776
  %v2185 = vpack.c.b16 %v1779, %v1778
  %v2186 = vpack.c.b16 %v1781, %v1780
  %v2187 = vpack.c.b16 %v1783, %v1782
  %v2188 = vpack.c.b16 %v1785, %v1784
  %v2189 = vpack.c.b16 %v1787, %v1786
  %v2190 = vpack.c.b16 %v1789, %v1788
  %v2191 = vpack.c.b16 %v1791, %v1790
  %v2192 = vpack.c.b16 %v1793, %v1792
  %v2193 = vpack.c.b16 %v1795, %v1794
  %v2194 = vpack.c.b16 %v1797, %v1796
  %v2195 = vpack.c.b16 %v1799, %v1798
  %v2196 = vpack.c.b16 %v1801, %v1800
  %v2197 = vpack.c.b16 %v1803, %v1802
  %v2198 = vpack.c.b16 %v1805, %v1804
  %v2199 = vpack.c.b16 %v1807, %v1806
  %v2200 = vpack.c.b16 %v1809, %v1808
  %v2201 = vpack.c.b16 %v1811, %v1810
  %v2202 = vpack.c.b16 %v1813, %v1812
  %v2203 = vpack.c.b16 %v1815, %v1814
  %v2204 = vpack.c.b16 %v1817, %v1816
  %v2205 = vpack.c.b16 %v1819, %v1818
  %v2206 = vpack.c.b16 %v1821, %v1820
  %v2207 = vpack.c.b16 %v1823, %v1822
  %v2208 = vpack.c.b16 %v1825, %v1824
  %v2209 = vpack.c.b16 %v1827, %v1826
  %v2210 = vpack.c.b16 %v1829, %v1828
  %v2211 = vpack.c.b16 %v1831, %v1830
  %v2212 = vpack.c.b16 %v1833, %v1832
  %v2213 = vpack.c.b16 %v1835, %v1834
  %v2214 = vpack.c.b16 %v1837, %v1836
  %v2215 = vpack.c.b16 %v1839, %v1838
  %v2216 = vpack.c.b16 %v1841, %v1840
  %v2217 = vpack.c.b16 %v1843, %v1842
  %v2218 = vpack.c.b16 %v1845, %v1844
  %v2219 = vpack.c.b16 %v1847, %v1846
  %v2220 = vpack.c.b16 %v1849, %v1848
  %v2221 = vpack.c.b16 %v1851, %v1850
  %v2222 = vpack.c.b16 %v1853, %v1852
  %v2223 = vpack.c.b16 %v1855, %v1854
  %v2224 = vpack.c.b16 %v1857, %v1856
  %v2225 = vpack.c.b16 %v1859, %v1858
  %v2226 = vpack.c.b16 %v1861, %v1860
  %v2227 = vpack.c.b16 %v1863, %v1862
  %v2228 = vpack.c.b16 %v1865, %v1864
  %v2229 = vpack.c.b16 %v1867, %v1866
  %v2230 = vpack.c.b16 %v1869, %v1868
  %v2231 = vpack.c.b16 %v1871, %v1870
  %v2232 = vpack.c.b16 %v1873, %v1872
  %v2233 = vpack.c.b16 %v1875, %v1874
  %v2234 = vpack.c.b16 %v1877, %v1876
  %v2235 = vpack.c.b16 %v1879, %v1878
  %v2236 = vpack.c.b16 %v1881, %v1880
  %v2237 = vpack.c.b16 %v1883, %v1882
  %v2238 = vpack.c.b16 %v1885, %v1884
  %v2239 = vpack.c.b16 %v1887, %v1886
  %v2240 = vpack.c.b16 %v1889, %v1888
  %v2241 = vpack.c.b16 %v1891, %v1890
  %v2242 = vpack.c.b16 %v1893, %v1892
  %v2243 = vpack.c.b16 %v1895, %v1894
  %v2244 = vpack.c.b16 %v1897, %v1896
  %v2245 = vpack.c.b16 %v1899, %v1898
  %v2246 = vpack.c.b16 %v1901, %v1900
  %v2247 = vpack.c.b16 %v1903, %v1902
  %v2248 = vpack.c.b16 %v1905, %v1904
  %v2249 = vpack.c.b16 %v1907, %v1906
  %v2250 = vpack.c.b16 %v1909, %v1908
  %v2251 = vpack.c.b16 %v1911, %v1910
  %v2252 = vpack.c.b16 %v1913, %v1912
  %v2253 = vpack.c.b16 %v1915, %v1914
  %v2254 = vpack.c.b16 %v1917, %v1916
  %v2255 = vpack.c.b16 %v1919, %v1918
  %v2256 = vpack.c.b16 %v1921, %v1920
  %v2257 = vpack.c.b16 %v1923, %v1922
  %v2258 = vpack.c.b16 %v1925, %v1924
  %v2259 = vpack.c.b16 %v1927, %v1926
  %v2260 = vpack.c.b16 %v1929, %v1928
  %v2261 = vpack.c.b16 %v1931, %v1930
  %v2262 = vpack.c.b16 %v1933, %v1932
  %v2263 = vpack.c.b16 %v1935, %v1934
  %v2264 = vpack.c.b16 %v1937, %v1936
  %v2265 = vpack.c.b16 %v1939, %v1938
  %v2266 = vpack.c.b16 %v1941, %v1940
  %v2267 = vpack.c.b16 %v1943, %v1942
  %v2268 = vpack.c.b16 %v1945, %v1944
  %v2269 = vpack.c.b16 %v1947, %v1946
  %v2270 = vpack.c.b16 %v1949, %v1948
  %v2271 = vpack.c.b16 %v1951, %v1950
  %v2272 = vpack.c.b16 %v1953, %v1952
  %v2273 = vpack.c.b16 %v1955, %v1954
  %v2274 = vpack.c.b16 %v1957, %v1956
  %v2275 = vpack.c.b16 %v1959, %v1958
  %v2276 = vpack.c.b16 %v1961, %v1960
  %v2277 = vpack.c.b16 %v1963, %v1962
  %v2278 = vpack.c.b16 %v1965, %v1964
  %v2279 = vpack.c.b16 %v1967, %v1966
  %v2280 = vpack.c.b16 %v1969, %v1968
  %v2281 = vpack.c.b16 %v1971, %v1970
  %v2282 = vpack.c.b16 %v1973, %v1972
  %v2283 = vpack.c.b16 %v1975, %v1974
  %v2284 = vpack.c.b16 %v1977, %v1976
  %v2285 = vpack.c.b16 %v1979, %v1978
  %v2286 = vpack.c.b16 %v1981, %v1980
  %v2287 = vpack.c.b16 %v1983, %v1982
  %v2288 = vpack.c.b16 %v1985, %v1984
  %v2289 = vpack.c.b16 %v1987, %v1986
  %v2290 = vpack.c.b16 %v1989, %v1988
  %v2291 = vpack.c.b16 %v1991, %v1990
  %v2292 = vpack.c.b16 %v1993, %v1992
  %v2293 = vpack.c.b16 %v1995, %v1994
  %v2294 = vpack.c.b16 %v1997, %v1996
  %v2295 = vpack.c.b16 %v1999, %v1998
  %v2296 = vpack.c.b16 %v2001, %v2000
  %v2297 = vpack.c.b16 %v2003, %v2002
  %v2298 = vpack.c.b16 %v2005, %v2004
  %v2299 = vpack.c.b16 %v2007, %v2006
  %v2300 = vpack.c.b16 %v2009, %v2008
  %v2301 = vpack.c.b16 %v2011, %v2010
  %v2302 = vpack.c.b16 %v2013, %v2012
  %v2303 = vpack.c.b16 %v2015, %v2014
  %2592 = vmatprep.subr.bf16.mxu0 0
  %2593 = vmatpush1.bf16.msra.mxu0 %v2016
  %2594 = vmatprep.subr.bf16.mxu0 0
  %2595 = vmatpush1.bf16.msra.mxu0 %v2017
  %2596 = vmatprep.subr.bf16.mxu0 0
  %2597 = vmatpush1.bf16.msra.mxu0 %v2018
  %2598 = vmatprep.subr.bf16.mxu0 0
  %2599 = vmatpush1.bf16.msra.mxu0 %v2019
  %2600 = vmatprep.subr.bf16.mxu0 0
  %2601 = vmatpush1.bf16.msra.mxu0 %v2020
  %2602 = vmatprep.subr.bf16.mxu0 0
  %2603 = vmatpush1.bf16.msra.mxu0 %v2021
  %2604 = vmatprep.subr.bf16.mxu0 0
  %2605 = vmatpush1.bf16.msra.mxu0 %v2022
  %2606 = vmatprep.subr.bf16.mxu0 0
  %2607 = vmatpush1.bf16.msra.mxu0 %v2023
  %2608 = vmatprep.subr.bf16.mxu0 0
  %2609 = vmatpush1.bf16.msra.mxu0 %v2024
  %2610 = vmatprep.subr.bf16.mxu0 0
  %2611 = vmatpush1.bf16.msra.mxu0 %v2025
  %2612 = vmatprep.subr.bf16.mxu0 0
  %2613 = vmatpush1.bf16.msra.mxu0 %v2026
  %2614 = vmatprep.subr.bf16.mxu0 0
  %2615 = vmatpush1.bf16.msra.mxu0 %v2027
  %2616 = vmatprep.subr.bf16.mxu0 0
  %2617 = vmatpush1.bf16.msra.mxu0 %v2028
  %2618 = vmatprep.subr.bf16.mxu0 0
  %2619 = vmatpush1.bf16.msra.mxu0 %v2029
  %2620 = vmatprep.subr.bf16.mxu0 0
  %2621 = vmatpush1.bf16.msra.mxu0 %v2030
  %2622 = vmatprep.subr.bf16.mxu0 0
  %2623 = vmatpush1.bf16.msra.mxu0 %v2031
  %2624 = vmatprep.mubr.bf16.mxu0 %v645
  %2625 = vmatmul.mubr.bf16.gmra.mrb[0].mxu0 %v631
  %v2626 = vpop.f32.mrb[0].mxu0
  %v2627 = vadd.f32 %v601, %v2626
  %v2628 = vpop.f32.mrb[0].mxu0
  %v2629 = vpop.f32.mrb[0].mxu0
  %v2630 = vpop.f32.mrb[0].mxu0
  %2631 = vdwg.mxu0
  %2632 = vmatprep.subr.bf16.mxu0 0
  %2633 = vmatpush1.bf16.msra.mxu0 %v2032
  %2634 = vmatprep.subr.bf16.mxu0 0
  %2635 = vmatpush1.bf16.msra.mxu0 %v2033
  %2636 = vmatprep.subr.bf16.mxu0 0
  %2637 = vmatpush1.bf16.msra.mxu0 %v2034
  %2638 = vmatprep.subr.bf16.mxu0 0
  %2639 = vmatpush1.bf16.msra.mxu0 %v2035
  %2640 = vmatprep.subr.bf16.mxu0 0
  %2641 = vmatpush1.bf16.msra.mxu0 %v2036
  %2642 = vmatprep.subr.bf16.mxu0 0
  %2643 = vmatpush1.bf16.msra.mxu0 %v2037
  %2644 = vmatprep.subr.bf16.mxu0 0
  %2645 = vmatpush1.bf16.msra.mxu0 %v2038
  %2646 = vmatprep.subr.bf16.mxu0 0
  %2647 = vmatpush1.bf16.msra.mxu0 %v2039
  %2648 = vmatprep.subr.bf16.mxu0 0
  %2649 = vmatpush1.bf16.msra.mxu0 %v2040
  %2650 = vmatprep.subr.bf16.mxu0 0
  %2651 = vmatpush1.bf16.msra.mxu0 %v2041
  %2652 = vmatprep.subr.bf16.mxu0 0
  %2653 = vmatpush1.bf16.msra.mxu0 %v2042
  %2654 = vmatprep.subr.bf16.mxu0 0
  %2655 = vmatpush1.bf16.msra.mxu0 %v2043
  %2656 = vmatprep.subr.bf16.mxu0 0
  %2657 = vmatpush1.bf16.msra.mxu0 %v2044
  %2658 = vmatprep.subr.bf16.mxu0 0
  %2659 = vmatpush1.bf16.msra.mxu0 %v2045
  %2660 = vmatprep.subr.bf16.mxu0 0
  %2661 = vmatpush1.bf16.msra.mxu0 %v2046
  %2662 = vmatprep.subr.bf16.mxu0 0
  %2663 = vmatpush1.bf16.msra.mxu0 %v2047
  %2664 = vmatprep.mubr.bf16.mxu0 %v655
  %2665 = vmatmul.mubr.bf16.gmra.mrb[0].mxu0 %v653
  %v2666 = vpop.f32.mrb[0].mxu0
  %v2667 = vadd.f32 %v2627, %v2666
  %v2668 = vpop.f32.mrb[0].mxu0
  %v2669 = vpop.f32.mrb[0].mxu0
  %v2670 = vpop.f32.mrb[0].mxu0
  %2671 = vdwg.mxu0
  %2672 = vmatprep.subr.bf16.mxu0 0
  %2673 = vmatpush1.bf16.msra.mxu0 %v2048
  %2674 = vmatprep.subr.bf16.mxu0 0
  %2675 = vmatpush1.bf16.msra.mxu0 %v2049
  %2676 = vmatprep.subr.bf16.mxu0 0
  %2677 = vmatpush1.bf16.msra.mxu0 %v2050
  %2678 = vmatprep.subr.bf16.mxu0 0
  %2679 = vmatpush1.bf16.msra.mxu0 %v2051
  %2680 = vmatprep.subr.bf16.mxu0 0
  %2681 = vmatpush1.bf16.msra.mxu0 %v2052
  %2682 = vmatprep.subr.bf16.mxu0 0
  %2683 = vmatpush1.bf16.msra.mxu0 %v2053
  %2684 = vmatprep.subr.bf16.mxu0 0
  %2685 = vmatpush1.bf16.msra.mxu0 %v2054
  %2686 = vmatprep.subr.bf16.mxu0 0
  %2687 = vmatpush1.bf16.msra.mxu0 %v2055
  %2688 = vmatprep.subr.bf16.mxu0 0
  %2689 = vmatpush1.bf16.msra.mxu0 %v2056
  %2690 = vmatprep.subr.bf16.mxu0 0
  %2691 = vmatpush1.bf16.msra.mxu0 %v2057
  %2692 = vmatprep.subr.bf16.mxu0 0
  %2693 = vmatpush1.bf16.msra.mxu0 %v2058
  %2694 = vmatprep.subr.bf16.mxu0 0
  %2695 = vmatpush1.bf16.msra.mxu0 %v2059
  %2696 = vmatprep.subr.bf16.mxu0 0
  %2697 = vmatpush1.bf16.msra.mxu0 %v2060
  %2698 = vmatprep.subr.bf16.mxu0 0
  %2699 = vmatpush1.bf16.msra.mxu0 %v2061
  %2700 = vmatprep.subr.bf16.mxu0 0
  %2701 = vmatpush1.bf16.msra.mxu0 %v2062
  %2702 = vmatprep.subr.bf16.mxu0 0
  %2703 = vmatpush1.bf16.msra.mxu0 %v2063
  %2704 = vmatprep.mubr.bf16.mxu0 %v652
  %2705 = vmatmul.mubr.bf16.gmra.mrb[0].mxu0 %v638
  %v2706 = vpop.f32.mrb[0].mxu0
  %v2707 = vadd.f32 %v2667, %v2706
  %v2708 = vpop.f32.mrb[0].mxu0
  %v2709 = vpop.f32.mrb[0].mxu0
  %v2710 = vpop.f32.mrb[0].mxu0
  %2711 = vdwg.mxu0
  %2712 = vmatprep.subr.bf16.mxu0 0
  %2713 = vmatpush1.bf16.msra.mxu0 %v2064
  %2714 = vmatprep.subr.bf16.mxu0 0
  %2715 = vmatpush1.bf16.msra.mxu0 %v2065
  %2716 = vmatprep.subr.bf16.mxu0 0
  %2717 = vmatpush1.bf16.msra.mxu0 %v2066
  %2718 = vmatprep.subr.bf16.mxu0 0
  %2719 = vmatpush1.bf16.msra.mxu0 %v2067
  %2720 = vmatprep.subr.bf16.mxu0 0
  %2721 = vmatpush1.bf16.msra.mxu0 %v2068
  %2722 = vmatprep.subr.bf16.mxu0 0
  %2723 = vmatpush1.bf16.msra.mxu0 %v2069
  %2724 = vmatprep.subr.bf16.mxu0 0
  %2725 = vmatpush1.bf16.msra.mxu0 %v2070
  %2726 = vmatprep.subr.bf16.mxu0 0
  %2727 = vmatpush1.bf16.msra.mxu0 %v2071
  %2728 = vmatprep.subr.bf16.mxu0 0
  %2729 = vmatpush1.bf16.msra.mxu0 %v2072
  %2730 = vmatprep.subr.bf16.mxu0 0
  %2731 = vmatpush1.bf16.msra.mxu0 %v2073
  %2732 = vmatprep.subr.bf16.mxu0 0
  %2733 = vmatpush1.bf16.msra.mxu0 %v2074
  %2734 = vmatprep.subr.bf16.mxu0 0
  %2735 = vmatpush1.bf16.msra.mxu0 %v2075
  %2736 = vmatprep.subr.bf16.mxu0 0
  %2737 = vmatpush1.bf16.msra.mxu0 %v2076
  %2738 = vmatprep.subr.bf16.mxu0 0
  %2739 = vmatpush1.bf16.msra.mxu0 %v2077
  %2740 = vmatprep.subr.bf16.mxu0 0
  %2741 = vmatpush1.bf16.msra.mxu0 %v2078
  %2742 = vmatprep.subr.bf16.mxu0 0
  %2743 = vmatpush1.bf16.msra.mxu0 %v2079
  %2744 = vmatprep.mubr.bf16.mxu0 %v656
  %2745 = vmatmul.mubr.bf16.gmra.mrb[0].mxu0 %v654
  %v2746 = vpop.f32.mrb[0].mxu0
  %v2747 = vadd.f32 %v2707, %v2746
  %v2748 = vpop.f32.mrb[0].mxu0
  %v2749 = vpop.f32.mrb[0].mxu0
  %v2750 = vpop.f32.mrb[0].mxu0
  %2751 = vdwg.mxu0
  %2752 = vmatprep.subr.bf16.mxu0 0
  %2753 = vmatpush1.bf16.msra.mxu0 %v2080
  %2754 = vmatprep.subr.bf16.mxu0 0
  %2755 = vmatpush1.bf16.msra.mxu0 %v2081
  %2756 = vmatprep.subr.bf16.mxu0 0
  %2757 = vmatpush1.bf16.msra.mxu0 %v2082
  %2758 = vmatprep.subr.bf16.mxu0 0
  %2759 = vmatpush1.bf16.msra.mxu0 %v2083
  %2760 = vmatprep.subr.bf16.mxu0 0
  %2761 = vmatpush1.bf16.msra.mxu0 %v2084
  %2762 = vmatprep.subr.bf16.mxu0 0
  %2763 = vmatpush1.bf16.msra.mxu0 %v2085
  %2764 = vmatprep.subr.bf16.mxu0 0
  %2765 = vmatpush1.bf16.msra.mxu0 %v2086
  %2766 = vmatprep.subr.bf16.mxu0 0
  %2767 = vmatpush1.bf16.msra.mxu0 %v2087
  %2768 = vmatprep.subr.bf16.mxu0 0
  %2769 = vmatpush1.bf16.msra.mxu0 %v2088
  %2770 = vmatprep.subr.bf16.mxu0 0
  %2771 = vmatpush1.bf16.msra.mxu0 %v2089
  %2772 = vmatprep.subr.bf16.mxu0 0
  %2773 = vmatpush1.bf16.msra.mxu0 %v2090
  %2774 = vmatprep.subr.bf16.mxu0 0
  %2775 = vmatpush1.bf16.msra.mxu0 %v2091
  %2776 = vmatprep.subr.bf16.mxu0 0
  %2777 = vmatpush1.bf16.msra.mxu0 %v2092
  %2778 = vmatprep.subr.bf16.mxu0 0
  %2779 = vmatpush1.bf16.msra.mxu0 %v2093
  %2780 = vmatprep.subr.bf16.mxu0 0
  %2781 = vmatpush1.bf16.msra.mxu0 %v2094
  %2782 = vmatprep.subr.bf16.mxu0 0
  %2783 = vmatpush1.bf16.msra.mxu0 %v2095
  %2784 = vmatprep.mubr.bf16.mxu0 %v694
  %2785 = vmatmul.mubr.bf16.gmra.mrb[0].mxu0 %v680
  %v2786 = vpop.f32.mrb[0].mxu0
  %v2787 = vadd.f32 %v2747, %v2786
  %v2788 = vpop.f32.mrb[0].mxu0
  %v2789 = vpop.f32.mrb[0].mxu0
  %v2790 = vpop.f32.mrb[0].mxu0
  %2791 = vdwg.mxu0
  %2792 = vmatprep.subr.bf16.mxu0 0
  %2793 = vmatpush1.bf16.msra.mxu0 %v2096
  %2794 = vmatprep.subr.bf16.mxu0 0
  %2795 = vmatpush1.bf16.msra.mxu0 %v2097
  %2796 = vmatprep.subr.bf16.mxu0 0
  %2797 = vmatpush1.bf16.msra.mxu0 %v2098
  %2798 = vmatprep.subr.bf16.mxu0 0
  %2799 = vmatpush1.bf16.msra.mxu0 %v2099
  %2800 = vmatprep.subr.bf16.mxu0 0
  %2801 = vmatpush1.bf16.msra.mxu0 %v2100
  %2802 = vmatprep.subr.bf16.mxu0 0
  %2803 = vmatpush1.bf16.msra.mxu0 %v2101
  %2804 = vmatprep.subr.bf16.mxu0 0
  %2805 = vmatpush1.bf16.msra.mxu0 %v2102
  %2806 = vmatprep.subr.bf16.mxu0 0
  %2807 = vmatpush1.bf16.msra.mxu0 %v2103
  %2808 = vmatprep.subr.bf16.mxu0 0
  %2809 = vmatpush1.bf16.msra.mxu0 %v2104
  %2810 = vmatprep.subr.bf16.mxu0 0
  %2811 = vmatpush1.bf16.msra.mxu0 %v2105
  %2812 = vmatprep.subr.bf16.mxu0 0
  %2813 = vmatpush1.bf16.msra.mxu0 %v2106
  %2814 = vmatprep.subr.bf16.mxu0 0
  %2815 = vmatpush1.bf16.msra.mxu0 %v2107
  %2816 = vmatprep.subr.bf16.mxu0 0
  %2817 = vmatpush1.bf16.msra.mxu0 %v2108
  %2818 = vmatprep.subr.bf16.mxu0 0
  %2819 = vmatpush1.bf16.msra.mxu0 %v2109
  %2820 = vmatprep.subr.bf16.mxu0 0
  %2821 = vmatpush1.bf16.msra.mxu0 %v2110
  %2822 = vmatprep.subr.bf16.mxu0 0
  %2823 = vmatpush1.bf16.msra.mxu0 %v2111
  %2824 = vmatprep.mubr.bf16.mxu0 %v704
  %2825 = vmatmul.mubr.bf16.gmra.mrb[0].mxu0 %v702
  %v2826 = vpop.f32.mrb[0].mxu0
  %v2827 = vadd.f32 %v2787, %v2826
  %v2828 = vpop.f32.mrb[0].mxu0
  %v2829 = vpop.f32.mrb[0].mxu0
  %v2830 = vpop.f32.mrb[0].mxu0
  %2831 = vdwg.mxu0
  %2832 = vmatprep.subr.bf16.mxu0 0
  %2833 = vmatpush1.bf16.msra.mxu0 %v2112
  %2834 = vmatprep.subr.bf16.mxu0 0
  %2835 = vmatpush1.bf16.msra.mxu0 %v2113
  %2836 = vmatprep.subr.bf16.mxu0 0
  %2837 = vmatpush1.bf16.msra.mxu0 %v2114
  %2838 = vmatprep.subr.bf16.mxu0 0
  %2839 = vmatpush1.bf16.msra.mxu0 %v2115
  %2840 = vmatprep.subr.bf16.mxu0 0
  %2841 = vmatpush1.bf16.msra.mxu0 %v2116
  %2842 = vmatprep.subr.bf16.mxu0 0
  %2843 = vmatpush1.bf16.msra.mxu0 %v2117
  %2844 = vmatprep.subr.bf16.mxu0 0
  %2845 = vmatpush1.bf16.msra.mxu0 %v2118
  %2846 = vmatprep.subr.bf16.mxu0 0
  %2847 = vmatpush1.bf16.msra.mxu0 %v2119
  %2848 = vmatprep.subr.bf16.mxu0 0
  %2849 = vmatpush1.bf16.msra.mxu0 %v2120
  %2850 = vmatprep.subr.bf16.mxu0 0
  %2851 = vmatpush1.bf16.msra.mxu0 %v2121
  %2852 = vmatprep.subr.bf16.mxu0 0
  %2853 = vmatpush1.bf16.msra.mxu0 %v2122
  %2854 = vmatprep.subr.bf16.mxu0 0
  %2855 = vmatpush1.bf16.msra.mxu0 %v2123
  %2856 = vmatprep.subr.bf16.mxu0 0
  %2857 = vmatpush1.bf16.msra.mxu0 %v2124
  %2858 = vmatprep.subr.bf16.mxu0 0
  %2859 = vmatpush1.bf16.msra.mxu0 %v2125
  %2860 = vmatprep.subr.bf16.mxu0 0
  %2861 = vmatpush1.bf16.msra.mxu0 %v2126
  %2862 = vmatprep.subr.bf16.mxu0 0
  %2863 = vmatpush1.bf16.msra.mxu0 %v2127
  %2864 = vmatprep.mubr.bf16.mxu0 %v701
  %2865 = vmatmul.mubr.bf16.gmra.mrb[0].mxu0 %v687
  %v2866 = vpop.f32.mrb[0].mxu0
  %v2867 = vadd.f32 %v2827, %v2866
  %v2868 = vpop.f32.mrb[0].mxu0
  %v2869 = vpop.f32.mrb[0].mxu0
  %v2870 = vpop.f32.mrb[0].mxu0
  %2871 = vdwg.mxu0
  %2872 = vmatprep.subr.bf16.mxu0 0
  %2873 = vmatpush1.bf16.msra.mxu0 %v2128
  %2874 = vmatprep.subr.bf16.mxu0 0
  %2875 = vmatpush1.bf16.msra.mxu0 %v2129
  %2876 = vmatprep.subr.bf16.mxu0 0
  %2877 = vmatpush1.bf16.msra.mxu0 %v2130
  %2878 = vmatprep.subr.bf16.mxu0 0
  %2879 = vmatpush1.bf16.msra.mxu0 %v2131
  %2880 = vmatprep.subr.bf16.mxu0 0
  %2881 = vmatpush1.bf16.msra.mxu0 %v2132
  %2882 = vmatprep.subr.bf16.mxu0 0
  %2883 = vmatpush1.bf16.msra.mxu0 %v2133
  %2884 = vmatprep.subr.bf16.mxu0 0
  %2885 = vmatpush1.bf16.msra.mxu0 %v2134
  %2886 = vmatprep.subr.bf16.mxu0 0
  %2887 = vmatpush1.bf16.msra.mxu0 %v2135
  %2888 = vmatprep.subr.bf16.mxu0 0
  %2889 = vmatpush1.bf16.msra.mxu0 %v2136
  %2890 = vmatprep.subr.bf16.mxu0 0
  %2891 = vmatpush1.bf16.msra.mxu0 %v2137
  %2892 = vmatprep.subr.bf16.mxu0 0
  %2893 = vmatpush1.bf16.msra.mxu0 %v2138
  %2894 = vmatprep.subr.bf16.mxu0 0
  %2895 = vmatpush1.bf16.msra.mxu0 %v2139
  %2896 = vmatprep.subr.bf16.mxu0 0
  %2897 = vmatpush1.bf16.msra.mxu0 %v2140
  %2898 = vmatprep.subr.bf16.mxu0 0
  %2899 = vmatpush1.bf16.msra.mxu0 %v2141
  %2900 = vmatprep.subr.bf16.mxu0 0
  %2901 = vmatpush1.bf16.msra.mxu0 %v2142
  %2902 = vmatprep.subr.bf16.mxu0 0
  %2903 = vmatpush1.bf16.msra.mxu0 %v2143
  %2904 = vmatprep.mubr.bf16.mxu0 %v705
  %2905 = vmatmul.mubr.bf16.gmra.mrb[0].mxu0 %v703
  %v2906 = vpop.f32.mrb[0].mxu0
  %v2907 = vadd.f32 %v2867, %v2906
  %v2908 = vpop.f32.mrb[0].mxu0
  %v2909 = vpop.f32.mrb[0].mxu0
  %v2910 = vpop.f32.mrb[0].mxu0
  %2911 = vdwg.mxu0
  %2912 = vmatprep.subr.bf16.mxu0 0
  %2913 = vmatpush1.bf16.msra.mxu0 %v2144
  %2914 = vmatprep.subr.bf16.mxu0 0
  %2915 = vmatpush1.bf16.msra.mxu0 %v2145
  %2916 = vmatprep.subr.bf16.mxu0 0
  %2917 = vmatpush1.bf16.msra.mxu0 %v2146
  %2918 = vmatprep.subr.bf16.mxu0 0
  %2919 = vmatpush1.bf16.msra.mxu0 %v2147
  %2920 = vmatprep.subr.bf16.mxu0 0
  %2921 = vmatpush1.bf16.msra.mxu0 %v2148
  %2922 = vmatprep.subr.bf16.mxu0 0
  %2923 = vmatpush1.bf16.msra.mxu0 %v2149
  %2924 = vmatprep.subr.bf16.mxu0 0
  %2925 = vmatpush1.bf16.msra.mxu0 %v2150
  %2926 = vmatprep.subr.bf16.mxu0 0
  %2927 = vmatpush1.bf16.msra.mxu0 %v2151
  %2928 = vmatprep.subr.bf16.mxu0 0
  %2929 = vmatpush1.bf16.msra.mxu0 %v2152
  %2930 = vmatprep.subr.bf16.mxu0 0
  %2931 = vmatpush1.bf16.msra.mxu0 %v2153
  %2932 = vmatprep.subr.bf16.mxu0 0
  %2933 = vmatpush1.bf16.msra.mxu0 %v2154
  %2934 = vmatprep.subr.bf16.mxu0 0
  %2935 = vmatpush1.bf16.msra.mxu0 %v2155
  %2936 = vmatprep.subr.bf16.mxu0 0
  %2937 = vmatpush1.bf16.msra.mxu0 %v2156
  %2938 = vmatprep.subr.bf16.mxu0 0
  %2939 = vmatpush1.bf16.msra.mxu0 %v2157
  %2940 = vmatprep.subr.bf16.mxu0 0
  %2941 = vmatpush1.bf16.msra.mxu0 %v2158
  %2942 = vmatprep.subr.bf16.mxu0 0
  %2943 = vmatpush1.bf16.msra.mxu0 %v2159
  %2944 = vmatprep.mubr.bf16.mxu0 %v743
  %2945 = vmatmul.mubr.bf16.gmra.mrb[0].mxu0 %v729
  %v2946 = vpop.f32.mrb[0].mxu0
  %v2947 = vadd.f32 %v2907, %v2946
  %v2948 = vpop.f32.mrb[0].mxu0
  %v2949 = vpop.f32.mrb[0].mxu0
  %v2950 = vpop.f32.mrb[0].mxu0
  %2951 = vdwg.mxu0
  %2952 = vmatprep.subr.bf16.mxu0 0
  %2953 = vmatpush1.bf16.msra.mxu0 %v2160
  %2954 = vmatprep.subr.bf16.mxu0 0
  %2955 = vmatpush1.bf16.msra.mxu0 %v2161
  %2956 = vmatprep.subr.bf16.mxu0 0
  %2957 = vmatpush1.bf16.msra.mxu0 %v2162
  %2958 = vmatprep.subr.bf16.mxu0 0
  %2959 = vmatpush1.bf16.msra.mxu0 %v2163
  %2960 = vmatprep.subr.bf16.mxu0 0
  %2961 = vmatpush1.bf16.msra.mxu0 %v2164
  %2962 = vmatprep.subr.bf16.mxu0 0
  %2963 = vmatpush1.bf16.msra.mxu0 %v2165
  %2964 = vmatprep.subr.bf16.mxu0 0
  %2965 = vmatpush1.bf16.msra.mxu0 %v2166
  %2966 = vmatprep.subr.bf16.mxu0 0
  %2967 = vmatpush1.bf16.msra.mxu0 %v2167
  %2968 = vmatprep.subr.bf16.mxu0 0
  %2969 = vmatpush1.bf16.msra.mxu0 %v2168
  %2970 = vmatprep.subr.bf16.mxu0 0
  %2971 = vmatpush1.bf16.msra.mxu0 %v2169
  %2972 = vmatprep.subr.bf16.mxu0 0
  %2973 = vmatpush1.bf16.msra.mxu0 %v2170
  %2974 = vmatprep.subr.bf16.mxu0 0
  %2975 = vmatpush1.bf16.msra.mxu0 %v2171
  %2976 = vmatprep.subr.bf16.mxu0 0
  %2977 = vmatpush1.bf16.msra.mxu0 %v2172
  %2978 = vmatprep.subr.bf16.mxu0 0
  %2979 = vmatpush1.bf16.msra.mxu0 %v2173
  %2980 = vmatprep.subr.bf16.mxu0 0
  %2981 = vmatpush1.bf16.msra.mxu0 %v2174
  %2982 = vmatprep.subr.bf16.mxu0 0
  %2983 = vmatpush1.bf16.msra.mxu0 %v2175
  %2984 = vmatprep.mubr.bf16.mxu0 %v753
  %2985 = vmatmul.mubr.bf16.gmra.mrb[0].mxu0 %v751
  %v2986 = vpop.f32.mrb[0].mxu0
  %v2987 = vadd.f32 %v2947, %v2986
  %v2988 = vpop.f32.mrb[0].mxu0
  %v2989 = vpop.f32.mrb[0].mxu0
  %v2990 = vpop.f32.mrb[0].mxu0
  %2991 = vdwg.mxu0
  %2992 = vmatprep.subr.bf16.mxu0 0
  %2993 = vmatpush1.bf16.msra.mxu0 %v2176
  %2994 = vmatprep.subr.bf16.mxu0 0
  %2995 = vmatpush1.bf16.msra.mxu0 %v2177
  %2996 = vmatprep.subr.bf16.mxu0 0
  %2997 = vmatpush1.bf16.msra.mxu0 %v2178
  %2998 = vmatprep.subr.bf16.mxu0 0
  %2999 = vmatpush1.bf16.msra.mxu0 %v2179
  %3000 = vmatprep.subr.bf16.mxu0 0
  %3001 = vmatpush1.bf16.msra.mxu0 %v2180
  %3002 = vmatprep.subr.bf16.mxu0 0
  %3003 = vmatpush1.bf16.msra.mxu0 %v2181
  %3004 = vmatprep.subr.bf16.mxu0 0
  %3005 = vmatpush1.bf16.msra.mxu0 %v2182
  %3006 = vmatprep.subr.bf16.mxu0 0
  %3007 = vmatpush1.bf16.msra.mxu0 %v2183
  %3008 = vmatprep.subr.bf16.mxu0 0
  %3009 = vmatpush1.bf16.msra.mxu0 %v2184
  %3010 = vmatprep.subr.bf16.mxu0 0
  %3011 = vmatpush1.bf16.msra.mxu0 %v2185
  %3012 = vmatprep.subr.bf16.mxu0 0
  %3013 = vmatpush1.bf16.msra.mxu0 %v2186
  %3014 = vmatprep.subr.bf16.mxu0 0
  %3015 = vmatpush1.bf16.msra.mxu0 %v2187
  %3016 = vmatprep.subr.bf16.mxu0 0
  %3017 = vmatpush1.bf16.msra.mxu0 %v2188
  %3018 = vmatprep.subr.bf16.mxu0 0
  %3019 = vmatpush1.bf16.msra.mxu0 %v2189
  %3020 = vmatprep.subr.bf16.mxu0 0
  %3021 = vmatpush1.bf16.msra.mxu0 %v2190
  %3022 = vmatprep.subr.bf16.mxu0 0
  %3023 = vmatpush1.bf16.msra.mxu0 %v2191
  %3024 = vmatprep.mubr.bf16.mxu0 %v750
  %3025 = vmatmul.mubr.bf16.gmra.mrb[0].mxu0 %v736
  %v3026 = vpop.f32.mrb[0].mxu0
  %v3027 = vadd.f32 %v2987, %v3026
  %v3028 = vpop.f32.mrb[0].mxu0
  %v3029 = vpop.f32.mrb[0].mxu0
  %v3030 = vpop.f32.mrb[0].mxu0
  %3031 = vdwg.mxu0
  %3032 = vmatprep.subr.bf16.mxu0 0
  %3033 = vmatpush1.bf16.msra.mxu0 %v2192
  %3034 = vmatprep.subr.bf16.mxu0 0
  %3035 = vmatpush1.bf16.msra.mxu0 %v2193
  %3036 = vmatprep.subr.bf16.mxu0 0
  %3037 = vmatpush1.bf16.msra.mxu0 %v2194
  %3038 = vmatprep.subr.bf16.mxu0 0
  %3039 = vmatpush1.bf16.msra.mxu0 %v2195
  %3040 = vmatprep.subr.bf16.mxu0 0
  %3041 = vmatpush1.bf16.msra.mxu0 %v2196
  %3042 = vmatprep.subr.bf16.mxu0 0
  %3043 = vmatpush1.bf16.msra.mxu0 %v2197
  %3044 = vmatprep.subr.bf16.mxu0 0
  %3045 = vmatpush1.bf16.msra.mxu0 %v2198
  %3046 = vmatprep.subr.bf16.mxu0 0
  %3047 = vmatpush1.bf16.msra.mxu0 %v2199
  %3048 = vmatprep.subr.bf16.mxu0 0
  %3049 = vmatpush1.bf16.msra.mxu0 %v2200
  %3050 = vmatprep.subr.bf16.mxu0 0
  %3051 = vmatpush1.bf16.msra.mxu0 %v2201
  %3052 = vmatprep.subr.bf16.mxu0 0
  %3053 = vmatpush1.bf16.msra.mxu0 %v2202
  %3054 = vmatprep.subr.bf16.mxu0 0
  %3055 = vmatpush1.bf16.msra.mxu0 %v2203
  %3056 = vmatprep.subr.bf16.mxu0 0
  %3057 = vmatpush1.bf16.msra.mxu0 %v2204
  %3058 = vmatprep.subr.bf16.mxu0 0
  %3059 = vmatpush1.bf16.msra.mxu0 %v2205
  %3060 = vmatprep.subr.bf16.mxu0 0
  %3061 = vmatpush1.bf16.msra.mxu0 %v2206
  %3062 = vmatprep.subr.bf16.mxu0 0
  %3063 = vmatpush1.bf16.msra.mxu0 %v2207
  %3064 = vmatprep.mubr.bf16.mxu0 %v754
  %3065 = vmatmul.mubr.bf16.gmra.mrb[0].mxu0 %v752
  %v3066 = vpop.f32.mrb[0].mxu0
  %v3067 = vadd.f32 %v3027, %v3066
  %v3068 = vpop.f32.mrb[0].mxu0
  %v3069 = vpop.f32.mrb[0].mxu0
  %v3070 = vpop.f32.mrb[0].mxu0
  %3071 = vdwg.mxu0
  %3072 = vmatprep.subr.bf16.mxu0 0
  %3073 = vmatpush1.bf16.msra.mxu0 %v2208
  %3074 = vmatprep.subr.bf16.mxu0 0
  %3075 = vmatpush1.bf16.msra.mxu0 %v2209
  %3076 = vmatprep.subr.bf16.mxu0 0
  %3077 = vmatpush1.bf16.msra.mxu0 %v2210
  %3078 = vmatprep.subr.bf16.mxu0 0
  %3079 = vmatpush1.bf16.msra.mxu0 %v2211
  %3080 = vmatprep.subr.bf16.mxu0 0
  %3081 = vmatpush1.bf16.msra.mxu0 %v2212
  %3082 = vmatprep.subr.bf16.mxu0 0
  %3083 = vmatpush1.bf16.msra.mxu0 %v2213
  %3084 = vmatprep.subr.bf16.mxu0 0
  %3085 = vmatpush1.bf16.msra.mxu0 %v2214
  %3086 = vmatprep.subr.bf16.mxu0 0
  %3087 = vmatpush1.bf16.msra.mxu0 %v2215
  %3088 = vmatprep.subr.bf16.mxu0 0
  %3089 = vmatpush1.bf16.msra.mxu0 %v2216
  %3090 = vmatprep.subr.bf16.mxu0 0
  %3091 = vmatpush1.bf16.msra.mxu0 %v2217
  %3092 = vmatprep.subr.bf16.mxu0 0
  %3093 = vmatpush1.bf16.msra.mxu0 %v2218
  %3094 = vmatprep.subr.bf16.mxu0 0
  %3095 = vmatpush1.bf16.msra.mxu0 %v2219
  %3096 = vmatprep.subr.bf16.mxu0 0
  %3097 = vmatpush1.bf16.msra.mxu0 %v2220
  %3098 = vmatprep.subr.bf16.mxu0 0
  %3099 = vmatpush1.bf16.msra.mxu0 %v2221
  %3100 = vmatprep.subr.bf16.mxu0 0
  %3101 = vmatpush1.bf16.msra.mxu0 %v2222
  %3102 = vmatprep.subr.bf16.mxu0 0
  %3103 = vmatpush1.bf16.msra.mxu0 %v2223
  %3104 = vmatprep.mubr.bf16.mxu0 %v792
  %3105 = vmatmul.mubr.bf16.gmra.mrb[0].mxu0 %v778
  %v3106 = vpop.f32.mrb[0].mxu0
  %v3107 = vadd.f32 %v3067, %v3106
  %v3108 = vpop.f32.mrb[0].mxu0
  %v3109 = vpop.f32.mrb[0].mxu0
  %v3110 = vpop.f32.mrb[0].mxu0
  %3111 = vdwg.mxu0
  %3112 = vmatprep.subr.bf16.mxu0 0
  %3113 = vmatpush1.bf16.msra.mxu0 %v2224
  %3114 = vmatprep.subr.bf16.mxu0 0
  %3115 = vmatpush1.bf16.msra.mxu0 %v2225
  %3116 = vmatprep.subr.bf16.mxu0 0
  %3117 = vmatpush1.bf16.msra.mxu0 %v2226
  %3118 = vmatprep.subr.bf16.mxu0 0
  %3119 = vmatpush1.bf16.msra.mxu0 %v2227
  %3120 = vmatprep.subr.bf16.mxu0 0
  %3121 = vmatpush1.bf16.msra.mxu0 %v2228
  %3122 = vmatprep.subr.bf16.mxu0 0
  %3123 = vmatpush1.bf16.msra.mxu0 %v2229
  %3124 = vmatprep.subr.bf16.mxu0 0
  %3125 = vmatpush1.bf16.msra.mxu0 %v2230
  %3126 = vmatprep.subr.bf16.mxu0 0
  %3127 = vmatpush1.bf16.msra.mxu0 %v2231
  %3128 = vmatprep.subr.bf16.mxu0 0
  %3129 = vmatpush1.bf16.msra.mxu0 %v2232
  %3130 = vmatprep.subr.bf16.mxu0 0
  %3131 = vmatpush1.bf16.msra.mxu0 %v2233
  %3132 = vmatprep.subr.bf16.mxu0 0
  %3133 = vmatpush1.bf16.msra.mxu0 %v2234
  %3134 = vmatprep.subr.bf16.mxu0 0
  %3135 = vmatpush1.bf16.msra.mxu0 %v2235
  %3136 = vmatprep.subr.bf16.mxu0 0
  %3137 = vmatpush1.bf16.msra.mxu0 %v2236
  %3138 = vmatprep.subr.bf16.mxu0 0
  %3139 = vmatpush1.bf16.msra.mxu0 %v2237
  %3140 = vmatprep.subr.bf16.mxu0 0
  %3141 = vmatpush1.bf16.msra.mxu0 %v2238
  %3142 = vmatprep.subr.bf16.mxu0 0
  %3143 = vmatpush1.bf16.msra.mxu0 %v2239
  %3144 = vmatprep.mubr.bf16.mxu0 %v802
  %3145 = vmatmul.mubr.bf16.gmra.mrb[0].mxu0 %v800
  %v3146 = vpop.f32.mrb[0].mxu0
  %v3147 = vadd.f32 %v3107, %v3146
  %v3148 = vpop.f32.mrb[0].mxu0
  %v3149 = vpop.f32.mrb[0].mxu0
  %v3150 = vpop.f32.mrb[0].mxu0
  %3151 = vdwg.mxu0
  %3152 = vmatprep.subr.bf16.mxu0 0
  %3153 = vmatpush1.bf16.msra.mxu0 %v2240
  %3154 = vmatprep.subr.bf16.mxu0 0
  %3155 = vmatpush1.bf16.msra.mxu0 %v2241
  %3156 = vmatprep.subr.bf16.mxu0 0
  %3157 = vmatpush1.bf16.msra.mxu0 %v2242
  %3158 = vmatprep.subr.bf16.mxu0 0
  %3159 = vmatpush1.bf16.msra.mxu0 %v2243
  %3160 = vmatprep.subr.bf16.mxu0 0
  %3161 = vmatpush1.bf16.msra.mxu0 %v2244
  %3162 = vmatprep.subr.bf16.mxu0 0
  %3163 = vmatpush1.bf16.msra.mxu0 %v2245
  %3164 = vmatprep.subr.bf16.mxu0 0
  %3165 = vmatpush1.bf16.msra.mxu0 %v2246
  %3166 = vmatprep.subr.bf16.mxu0 0
  %3167 = vmatpush1.bf16.msra.mxu0 %v2247
  %3168 = vmatprep.subr.bf16.mxu0 0
  %3169 = vmatpush1.bf16.msra.mxu0 %v2248
  %3170 = vmatprep.subr.bf16.mxu0 0
  %3171 = vmatpush1.bf16.msra.mxu0 %v2249
  %3172 = vmatprep.subr.bf16.mxu0 0
  %3173 = vmatpush1.bf16.msra.mxu0 %v2250
  %3174 = vmatprep.subr.bf16.mxu0 0
  %3175 = vmatpush1.bf16.msra.mxu0 %v2251
  %3176 = vmatprep.subr.bf16.mxu0 0
  %3177 = vmatpush1.bf16.msra.mxu0 %v2252
  %3178 = vmatprep.subr.bf16.mxu0 0
  %3179 = vmatpush1.bf16.msra.mxu0 %v2253
  %3180 = vmatprep.subr.bf16.mxu0 0
  %3181 = vmatpush1.bf16.msra.mxu0 %v2254
  %3182 = vmatprep.subr.bf16.mxu0 0
  %3183 = vmatpush1.bf16.msra.mxu0 %v2255
  %3184 = vmatprep.mubr.bf16.mxu0 %v799
  %3185 = vmatmul.mubr.bf16.gmra.mrb[0].mxu0 %v785
  %v3186 = vpop.f32.mrb[0].mxu0
  %v3187 = vadd.f32 %v3147, %v3186
  %v3188 = vpop.f32.mrb[0].mxu0
  %v3189 = vpop.f32.mrb[0].mxu0
  %v3190 = vpop.f32.mrb[0].mxu0
  %3191 = vdwg.mxu0
  %3192 = vmatprep.subr.bf16.mxu0 0
  %3193 = vmatpush1.bf16.msra.mxu0 %v2256
  %3194 = vmatprep.subr.bf16.mxu0 0
  %3195 = vmatpush1.bf16.msra.mxu0 %v2257
  %3196 = vmatprep.subr.bf16.mxu0 0
  %3197 = vmatpush1.bf16.msra.mxu0 %v2258
  %3198 = vmatprep.subr.bf16.mxu0 0
  %3199 = vmatpush1.bf16.msra.mxu0 %v2259
  %3200 = vmatprep.subr.bf16.mxu0 0
  %3201 = vmatpush1.bf16.msra.mxu0 %v2260
  %3202 = vmatprep.subr.bf16.mxu0 0
  %3203 = vmatpush1.bf16.msra.mxu0 %v2261
  %3204 = vmatprep.subr.bf16.mxu0 0
  %3205 = vmatpush1.bf16.msra.mxu0 %v2262
  %3206 = vmatprep.subr.bf16.mxu0 0
  %3207 = vmatpush1.bf16.msra.mxu0 %v2263
  %3208 = vmatprep.subr.bf16.mxu0 0
  %3209 = vmatpush1.bf16.msra.mxu0 %v2264
  %3210 = vmatprep.subr.bf16.mxu0 0
  %3211 = vmatpush1.bf16.msra.mxu0 %v2265
  %3212 = vmatprep.subr.bf16.mxu0 0
  %3213 = vmatpush1.bf16.msra.mxu0 %v2266
  %3214 = vmatprep.subr.bf16.mxu0 0
  %3215 = vmatpush1.bf16.msra.mxu0 %v2267
  %3216 = vmatprep.subr.bf16.mxu0 0
  %3217 = vmatpush1.bf16.msra.mxu0 %v2268
  %3218 = vmatprep.subr.bf16.mxu0 0
  %3219 = vmatpush1.bf16.msra.mxu0 %v2269
  %3220 = vmatprep.subr.bf16.mxu0 0
  %3221 = vmatpush1.bf16.msra.mxu0 %v2270
  %3222 = vmatprep.subr.bf16.mxu0 0
  %3223 = vmatpush1.bf16.msra.mxu0 %v2271
  %3224 = vmatprep.mubr.bf16.mxu0 %v803
  %3225 = vmatmul.mubr.bf16.gmra.mrb[0].mxu0 %v801
  %v3226 = vpop.f32.mrb[0].mxu0
  %v3227 = vadd.f32 %v3187, %v3226
  %v3228 = vpop.f32.mrb[0].mxu0
  %v3229 = vpop.f32.mrb[0].mxu0
  %v3230 = vpop.f32.mrb[0].mxu0
  %3231 = vdwg.mxu0
  %3232 = vmatprep.subr.bf16.mxu0 0
  %3233 = vmatpush1.bf16.msra.mxu0 %v2272
  %3234 = vmatprep.subr.bf16.mxu0 0
  %3235 = vmatpush1.bf16.msra.mxu0 %v2273
  %3236 = vmatprep.subr.bf16.mxu0 0
  %3237 = vmatpush1.bf16.msra.mxu0 %v2274
  %3238 = vmatprep.subr.bf16.mxu0 0
  %3239 = vmatpush1.bf16.msra.mxu0 %v2275
  %3240 = vmatprep.subr.bf16.mxu0 0
  %3241 = vmatpush1.bf16.msra.mxu0 %v2276
  %3242 = vmatprep.subr.bf16.mxu0 0
  %3243 = vmatpush1.bf16.msra.mxu0 %v2277
  %3244 = vmatprep.subr.bf16.mxu0 0
  %3245 = vmatpush1.bf16.msra.mxu0 %v2278
  %3246 = vmatprep.subr.bf16.mxu0 0
  %3247 = vmatpush1.bf16.msra.mxu0 %v2279
  %3248 = vmatprep.subr.bf16.mxu0 0
  %3249 = vmatpush1.bf16.msra.mxu0 %v2280
  %3250 = vmatprep.subr.bf16.mxu0 0
  %3251 = vmatpush1.bf16.msra.mxu0 %v2281
  %3252 = vmatprep.subr.bf16.mxu0 0
  %3253 = vmatpush1.bf16.msra.mxu0 %v2282
  %3254 = vmatprep.subr.bf16.mxu0 0
  %3255 = vmatpush1.bf16.msra.mxu0 %v2283
  %3256 = vmatprep.subr.bf16.mxu0 0
  %3257 = vmatpush1.bf16.msra.mxu0 %v2284
  %3258 = vmatprep.subr.bf16.mxu0 0
  %3259 = vmatpush1.bf16.msra.mxu0 %v2285
  %3260 = vmatprep.subr.bf16.mxu0 0
  %3261 = vmatpush1.bf16.msra.mxu0 %v2286
  %3262 = vmatprep.subr.bf16.mxu0 0
  %3263 = vmatpush1.bf16.msra.mxu0 %v2287
  %3264 = vmatprep.mubr.bf16.mxu0 %v825
  %3265 = vmatmul.mubr.bf16.gmra.mrb[0].mxu0 %v818
  %v3266 = vpop.f32.mrb[0].mxu0
  %v3267 = vadd.f32 %v3227, %v3266
  %v3268 = vpop.f32.mrb[0].mxu0
  %v3269 = vpop.f32.mrb[0].mxu0
  %v3270 = vpop.f32.mrb[0].mxu0
  %3271 = vdwg.mxu0
  %3272 = vmatprep.subr.bf16.mxu0 0
  %3273 = vmatpush1.bf16.msra.mxu0 %v2288
  %3274 = vmatprep.subr.bf16.mxu0 0
  %3275 = vmatpush1.bf16.msra.mxu0 %v2289
  %3276 = vmatprep.subr.bf16.mxu0 0
  %3277 = vmatpush1.bf16.msra.mxu0 %v2290
  %3278 = vmatprep.subr.bf16.mxu0 0
  %3279 = vmatpush1.bf16.msra.mxu0 %v2291
  %3280 = vmatprep.subr.bf16.mxu0 0
  %3281 = vmatpush1.bf16.msra.mxu0 %v2292
  %3282 = vmatprep.subr.bf16.mxu0 0
  %3283 = vmatpush1.bf16.msra.mxu0 %v2293
  %3284 = vmatprep.subr.bf16.mxu0 0
  %3285 = vmatpush1.bf16.msra.mxu0 %v2294
  %3286 = vmatprep.subr.bf16.mxu0 0
  %3287 = vmatpush1.bf16.msra.mxu0 %v2295
  %3288 = vmatprep.subr.bf16.mxu0 0
  %3289 = vmatpush1.bf16.msra.mxu0 %v2296
  %3290 = vmatprep.subr.bf16.mxu0 0
  %3291 = vmatpush1.bf16.msra.mxu0 %v2297
  %3292 = vmatprep.subr.bf16.mxu0 0
  %3293 = vmatpush1.bf16.msra.mxu0 %v2298
  %3294 = vmatprep.subr.bf16.mxu0 0
  %3295 = vmatpush1.bf16.msra.mxu0 %v2299
  %3296 = vmatprep.subr.bf16.mxu0 0
  %3297 = vmatpush1.bf16.msra.mxu0 %v2300
  %3298 = vmatprep.subr.bf16.mxu0 0
  %3299 = vmatpush1.bf16.msra.mxu0 %v2301
  %3300 = vmatprep.subr.bf16.mxu0 0
  %3301 = vmatpush1.bf16.msra.mxu0 %v2302
  %3302 = vmatprep.subr.bf16.mxu0 0
  %3303 = vmatpush1.bf16.msra.mxu0 %v2303
  %3304 = vmatprep.mubr.bf16.mxu0 %v827
  %3305 = vmatmul.mubr.bf16.gmra.mrb[0].mxu0 %v826
  %v3306 = vpop.f32.mrb[0].mxu0
  %v3307 = vadd.f32 %v3267, %v3306
  %v3308 = vpop.f32.mrb[0].mxu0
  %v3309 = vpop.f32.mrb[0].mxu0
  %v3310 = vpop.f32.mrb[0].mxu0
  %3311 = vdwg.mxu0
  %v3312 = vmax.f32 %v3307, 0.0
  %vm3313 = vcmask 254976
  %3314 = vst.msk [vmem:[%s3] sm:$0x3] %vm3313, %v3312
  // Predicated region
  $region14: #{ae_forward.14} parent=0 // pred_check
    _
  $region15: #{ae_forward.14} parent=0 // pred_check_branch
    %3316 = sbr.rel (0) target = $region17
  $region16: #{ae_forward.14} parent=0 // pred_region
    _
  $region17: #{ae_forward.14} parent=0 // pred_fallthru
    _
  // Predicated region
  $region18: #{ae_forward.14} parent=0 // pred_check
    _
  $region19: #{ae_forward.14} parent=0 // pred_check_branch
    %3318 = sbr.rel (0) target = $region21
  $region20: #{ae_forward.14} parent=0 // pred_region
    _
  $region21: #{ae_forward.14} parent=0 // pred_fallthru
    _

// kernel: ae_forward.16
$region0: #{ae_forward.16}
  #allocation0 [shape = 'u32[]', space=smem, size = 0x4, offset = 0x4, fixed_abs, tag = 'smem constant byte address 0x4 - core index']
  #allocation1 [shape = 'u32[144,128]{1,0:T(1,128)}', space=vmem, size = 0x12000, scoped, tag = 'internal scratch']
  %s0 = inlined_call_operand.vmem [shape: bf16[72,512], index: 0, kind: input, shape index: {}]
  %s1 = inlined_call_operand.vmem [shape: bf16[512,256], index: 1, kind: input, shape index: {}]
  %s2 = inlined_call_operand.vmem [shape: f32[1,256], index: 2, kind: input, shape index: {}]
  %s3 = inlined_call_operand.vmem [shape: f32[72,256], index: 3, kind: output, shape index: {}]
  %s4 = sld [smem:[#allocation0]]
  $region120: #{ae_forward.16} parent=0
    _
  %s6 = ssub.s32 1, %s4
  %s7 = scalar_select 0, %s6, %s4
  $region1: #{ae_forward.16} parent=0
    #allocation2 [shape = 'u8[262144]{0}', space=vmem, size = 0x40000, scoped, tag = 'input window, operand 1']
    #allocation3 [shape = 'u8[73728]{0}', space=vmem, size = 0x12000, scoped, tag = 'output window, operand 0']
    loop: start=0, step=1, limit=4
    $region2: #{ae_forward.16} parent=1 // loop_pre_header
      _
    $region3: #{ae_forward.16} parent=1 // loop_header
      %s9 = sphi 0, %s13
      %p10 = scmp.ge.s32.totalorder %s9, 4
      %s16 = sphi 0, %s28
      %s17 = sphi 0, %s24
      %s18 = sphi 0, %s16
      %s19 = sphi 0, %s17
      %s20 = sphi 0, %s18
      %s21 = sphi 0, %s19
      %s31 = sphi 0, %s33
      %s34 = sphi 0, %s31
      %s35 = sphi 0, %s34
      %s51 = sphi 0, %s35
      %s57 = sphi 0, %s59
      %s60 = sphi 0, %s57
      %s61 = sphi 0, %s60
      %s77 = sphi 0, %s61
      %s83 = sphi 0, %s85
      %s86 = sphi 0, %s83
      %s87 = sphi 0, %s86
      %s103 = sphi 0, %s87
      %s111 = sphi 0, %s113
      %s114 = sphi 0, %s111
      %s115 = sphi 0, %s114
      %s131 = sphi 0, %s115
    $region4: #{ae_forward.16} parent=1 // loop_header_branch
      %12 = sbr.rel (%p10) target = $region8
    $region5: #{ae_forward.16} parent=1 // loop_body
      %s14 = ssub.s32 %s9, 1
      %s15 = ssub.s32 %s9, 2
      %s22 = sadd.s32 1, %s17
      %p23 = scmp.ge.s32.totalorder %s22, 2
      %s24 = scalar_select %p23, 0, %s22
      %s25 = sadd.s32 1, %s16
      %s26 = scalar_select %p23, %s25, %s16
      %p27 = scmp.ge.s32.totalorder %s26, 1
      %s28 = scalar_select %p27, 0, %s26
      %s29 = ssub.s32 %s16, %s28
      %p30 = scmp.eq.s32.totalorder %s29, 0
      %s32 = sadd.s32 %s31, 1
      %s33 = scalar_select %p30, %s31, %s32
      %p36 = pneg %p30
      %p37 = scmp.eq.s32.totalorder %s9, 1
      %p38 = por %p36, %p37
      %p39 = scmp.ne.s32.totalorder %s31, %s34
      %p40 = scmp.eq.s32.totalorder %s9, 0
      %p41 = por %p39, %p40
      %p42 = scmp.ne.s32.totalorder %s31, %s34
      %p43 = scmp.eq.s32.totalorder %s14, 1
      %p44 = por %p42, %p43
      %p45 = scmp.ne.s32.totalorder %s34, %s35
      %p46 = scmp.eq.s32.totalorder %s14, 0
      %p47 = por %p45, %p46
      %p48 = scmp.ne.s32.totalorder %s34, %s35
      %p49 = scmp.eq.s32.totalorder %s15, 1
      %p50 = por %p48, %p49
      %p52 = scmp.ne.s32.totalorder %s35, %s51
      %p53 = scmp.eq.s32.totalorder %s15, 0
      %p54 = por %p52, %p53
      %s55 = ssub.s32 %s17, %s24
      %p56 = scmp.eq.s32.totalorder %s55, 0
      %s58 = sadd.s32 %s57, 1
      %s59 = scalar_select %p56, %s57, %s58
      %p62 = pneg %p56
      %p63 = scmp.eq.s32.totalorder %s9, 1
      %p64 = por %p62, %p63
      %p65 = scmp.ne.s32.totalorder %s57, %s60
      %p66 = scmp.eq.s32.totalorder %s9, 0
      %p67 = por %p65, %p66
      %p68 = scmp.ne.s32.totalorder %s57, %s60
      %p69 = scmp.eq.s32.totalorder %s14, 1
      %p70 = por %p68, %p69
      %p71 = scmp.ne.s32.totalorder %s60, %s61
      %p72 = scmp.eq.s32.totalorder %s14, 0
      %p73 = por %p71, %p72
      %p74 = scmp.ne.s32.totalorder %s60, %s61
      %p75 = scmp.eq.s32.totalorder %s15, 1
      %p76 = por %p74, %p75
      %p78 = scmp.ne.s32.totalorder %s61, %s77
      %p79 = scmp.eq.s32.totalorder %s15, 0
      %p80 = por %p78, %p79
      %s81 = ssub.s32 %s17, %s24
      %p82 = scmp.eq.s32.totalorder %s81, 0
      %s84 = sadd.s32 %s83, 1
      %s85 = scalar_select %p82, %s83, %s84
      %p88 = pneg %p82
      %p89 = scmp.eq.s32.totalorder %s9, 1
      %p90 = por %p88, %p89
      %p91 = scmp.ne.s32.totalorder %s83, %s86
      %p92 = scmp.eq.s32.totalorder %s9, 0
      %p93 = por %p91, %p92
      %p94 = scmp.ne.s32.totalorder %s83, %s86
      %p95 = scmp.eq.s32.totalorder %s14, 1
      %p96 = por %p94, %p95
      %p97 = scmp.ne.s32.totalorder %s86, %s87
      %p98 = scmp.eq.s32.totalorder %s14, 0
      %p99 = por %p97, %p98
      %p100 = scmp.ne.s32.totalorder %s86, %s87
      %p101 = scmp.eq.s32.totalorder %s15, 1
      %p102 = por %p100, %p101
      %p104 = scmp.ne.s32.totalorder %s87, %s103
      %p105 = scmp.eq.s32.totalorder %s15, 0
      %p106 = por %p104, %p105
      %s107 = ssub.s32 %s16, %s28
      %s108 = ssub.s32 %s17, %s24
      %s109 = sor.u32 %s107, %s108
      %p110 = scmp.eq.s32.totalorder %s109, 0
      %s112 = sadd.s32 %s111, 1
      %s113 = scalar_select %p110, %s111, %s112
      %p116 = pneg %p110
      %p117 = scmp.eq.s32.totalorder %s9, 1
      %p118 = por %p116, %p117
      %p119 = scmp.ne.s32.totalorder %s111, %s114
      %p120 = scmp.eq.s32.totalorder %s9, 0
      %p121 = por %p119, %p120
      %p122 = scmp.ne.s32.totalorder %s111, %s114
      %p123 = scmp.eq.s32.totalorder %s14, 1
      %p124 = por %p122, %p123
      %p125 = scmp.ne.s32.totalorder %s114, %s115
      %p126 = scmp.eq.s32.totalorder %s14, 0
      %p127 = por %p125, %p126
      %p128 = scmp.ne.s32.totalorder %s114, %s115
      %p129 = scmp.eq.s32.totalorder %s15, 1
      %p130 = por %p128, %p129
      %p132 = scmp.ne.s32.totalorder %s115, %s131
      %p133 = scmp.eq.s32.totalorder %s15, 0
      %p134 = por %p132, %p133
      %p135 = scmp.le.s32.totalorder 1, %s9
      %p136 = scmp.lt.s32.totalorder %s9, 3
      %p137 = pnand %p135, %p136
      %p138 = pneg %p137
      // Predicated region
      $region9: #{ae_forward.16} parent=5 // pred_check
        _
      $region10: #{ae_forward.16} parent=5 // pred_check_branch
        %140 = sbr.rel (%p137) target = $region12
      $region11: #{ae_forward.16} parent=5 // pred_region
        %s141 = ssub.s32 %s9, 1
        // Predicated region
        $region13: #{ae_forward.16} parent=11 // pred_check
          %p142 = pneg %p47
        $region14: #{ae_forward.16} parent=11 // pred_check_branch
          %144 = sbr.rel (%p142) target = $region16
        $region15: #{ae_forward.16} parent=11 // pred_region
          %s145 = smul.u32 9, %s18
          %p146 = scmp.lt.s32.totalorder %s145, 8
          %s147 = scalar_select %p146, %s145, 8
          %s148 = smul.addr %s147, 4
          %s149 = smul.addr %s148, 4
          %s150 = scalar_lea.vmem %s0, %s149
          %s151 = smul.u32 9, %s18
        $region16: #{ae_forward.16} parent=11 // pred_fallthru
          _
      $region12: #{ae_forward.16} parent=5 // pred_fallthru
        _
      %p152 = scmp.lt.s32.totalorder %s9, 2
      // Predicated region
      $region17: #{ae_forward.16} parent=5 // pred_check
        %p153 = pneg %p152
      $region18: #{ae_forward.16} parent=5 // pred_check_branch
        %155 = sbr.rel (%p153) target = $region20
      $region19: #{ae_forward.16} parent=5 // pred_region
        // Predicated region
        $region21: #{ae_forward.16} parent=19 // pred_check
          %p156 = pneg %p67
        $region22: #{ae_forward.16} parent=19 // pred_check_branch
          %158 = sbr.rel (%p156) target = $region24
        $region23: #{ae_forward.16} parent=19 // pred_region
          %s159 = sand.u32 %s57, 1
          %s160 = sand.u32 %s57, 1
          %s161 = smul.addr %s160, 256
          %s162 = scalar_lea.vmem [#allocation2], %s161
          %s163 = smul.addr %s17, 4
          %s164 = scalar_lea.vmem %s1, %s163
          // Predicated region
          $region25: #{ae_forward.16} parent=23 // pred_check
            _
          $region26: #{ae_forward.16} parent=23 // pred_check_branch
            %166 = sbr.rel (0) target = $region28
          $region27: #{ae_forward.16} parent=23 // pred_region
            // Predicated region
            $region29: #{ae_forward.16} parent=27 // pred_check
              _
            $region30: #{ae_forward.16} parent=27 // pred_check_branch
              %168 = sbr.rel target = $region32
            $region31: #{ae_forward.16} parent=27 // pred_region
              // Predicated region
              $region44: #{ae_forward.16} parent=31 // pred_check
                _
              $region45: #{ae_forward.16} parent=31 // pred_check_branch
                %309 = sbr.rel (0) target = $region47
              $region46: #{ae_forward.16} parent=31 // pred_region
                loop: start=0, step=1, limit=1
                $region48: #{ae_forward.16} parent=46 // loop_pre_header
                  _
                $region49: #{ae_forward.16} parent=46 // loop_header
                  %s311 = sphi 0, %s315
                  %p312 = scmp.ge.s32.totalorder %s311, 1
                  %s316 = sphi %s164, %s164
                  %s317 = sphi %s162, %s162
                $region50: #{ae_forward.16} parent=46 // loop_header_branch
                  %314 = sbr.rel (%p312) target = $region54
                $region51: #{ae_forward.16} parent=46 // loop_body
                  _
                $region52: #{ae_forward.16} parent=46 // loop_footer
                  %s315 = sadd.s32 1, %s311
                $region53: #{ae_forward.16} parent=46 // loop_footer_branch
                  %310 = sbr.rel target = $region49
                $region54: #{ae_forward.16} parent=46 // loop_exit
                  _
                loop: start=0, step=1, limit=1
                $region55: #{ae_forward.16} parent=46 // loop_pre_header
                  _
                $region56: #{ae_forward.16} parent=46 // loop_header
                  %s320 = sphi 0, %s324
                  %p321 = scmp.ge.s32.totalorder %s320, 1
                  %s325 = sphi %s164, %s164
                  %s326 = sphi %s162, %s162
                $region57: #{ae_forward.16} parent=46 // loop_header_branch
                  %323 = sbr.rel (%p321) target = $region61
                $region58: #{ae_forward.16} parent=46 // loop_body
                  %v327 = vld [vmem:[%s325] sm:$0xf]
                  %328 = vst [vmem:[%s326] sm:$0xf] %v327
                  %v329 = vld [vmem:[%s325 + $0x8] sm:$0xf]
                  %330 = vst [vmem:[%s326 + $0x4] sm:$0xf] %v329
                  %v331 = vld [vmem:[%s325 + $0x10] sm:$0xf]
                  %332 = vst [vmem:[%s326 + $0x8] sm:$0xf] %v331
                  %v333 = vld [vmem:[%s325 + $0x18] sm:$0xf]
                  %334 = vst [vmem:[%s326 + $0xc] sm:$0xf] %v333
                  %v335 = vld [vmem:[%s325 + $0x20] sm:$0xf]
                  %336 = vst [vmem:[%s326 + $0x10] sm:$0xf] %v335
                  %v337 = vld [vmem:[%s325 + $0x28] sm:$0xf]
                  %338 = vst [vmem:[%s326 + $0x14] sm:$0xf] %v337
                  %v339 = vld [vmem:[%s325 + $0x30] sm:$0xf]
                  %340 = vst [vmem:[%s326 + $0x18] sm:$0xf] %v339
                  %v341 = vld [vmem:[%s325 + $0x38] sm:$0xf]
                  %342 = vst [vmem:[%s326 + $0x1c] sm:$0xf] %v341
                  %v343 = vld [vmem:[%s325 + $0x40] sm:$0xf]
                  %344 = vst [vmem:[%s326 + $0x20] sm:$0xf] %v343
                  %v345 = vld [vmem:[%s325 + $0x48] sm:$0xf]
                  %346 = vst [vmem:[%s326 + $0x24] sm:$0xf] %v345
                  %v347 = vld [vmem:[%s325 + $0x50] sm:$0xf]
                  %348 = vst [vmem:[%s326 + $0x28] sm:$0xf] %v347
                  %v349 = vld [vmem:[%s325 + $0x58] sm:$0xf]
                  %350 = vst [vmem:[%s326 + $0x2c] sm:$0xf] %v349
                  %v351 = vld [vmem:[%s325 + $0x60] sm:$0xf]
                  %352 = vst [vmem:[%s326 + $0x30] sm:$0xf] %v351
                  %v353 = vld [vmem:[%s325 + $0x68] sm:$0xf]
                  %354 = vst [vmem:[%s326 + $0x34] sm:$0xf] %v353
                  %v355 = vld [vmem:[%s325 + $0x70] sm:$0xf]
                  %356 = vst [vmem:[%s326 + $0x38] sm:$0xf] %v355
                  %v357 = vld [vmem:[%s325 + $0x78] sm:$0xf]
                  %358 = vst [vmem:[%s326 + $0x3c] sm:$0xf] %v357
                  %v359 = vld [vmem:[%s325 + $0x80] sm:$0xf]
                  %360 = vst [vmem:[%s326 + $0x40] sm:$0xf] %v359
                  %v361 = vld [vmem:[%s325 + $0x88] sm:$0xf]
                  %362 = vst [vmem:[%s326 + $0x44] sm:$0xf] %v361
                  %v363 = vld [vmem:[%s325 + $0x90] sm:$0xf]
                  %364 = vst [vmem:[%s326 + $0x48] sm:$0xf] %v363
                  %v365 = vld [vmem:[%s325 + $0x98] sm:$0xf]
                  %366 = vst [vmem:[%s326 + $0x4c] sm:$0xf] %v365
                  %v367 = vld [vmem:[%s325 + $0xa0] sm:$0xf]
                  %368 = vst [vmem:[%s326 + $0x50] sm:$0xf] %v367
                  %v369 = vld [vmem:[%s325 + $0xa8] sm:$0xf]
                  %370 = vst [vmem:[%s326 + $0x54] sm:$0xf] %v369
                  %v371 = vld [vmem:[%s325 + $0xb0] sm:$0xf]
                  %372 = vst [vmem:[%s326 + $0x58] sm:$0xf] %v371
                  %v373 = vld [vmem:[%s325 + $0xb8] sm:$0xf]
                  %374 = vst [vmem:[%s326 + $0x5c] sm:$0xf] %v373
                  %v375 = vld [vmem:[%s325 + $0xc0] sm:$0xf]
                  %376 = vst [vmem:[%s326 + $0x60] sm:$0xf] %v375
                  %v377 = vld [vmem:[%s325 + $0xc8] sm:$0xf]
                  %378 = vst [vmem:[%s326 + $0x64] sm:$0xf] %v377
                  %v379 = vld [vmem:[%s325 + $0xd0] sm:$0xf]
                  %380 = vst [vmem:[%s326 + $0x68] sm:$0xf] %v379
                  %v381 = vld [vmem:[%s325 + $0xd8] sm:$0xf]
                  %382 = vst [vmem:[%s326 + $0x6c] sm:$0xf] %v381
                  %v383 = vld [vmem:[%s325 + $0xe0] sm:$0xf]
                  %384 = vst [vmem:[%s326 + $0x70] sm:$0xf] %v383
                  %v385 = vld [vmem:[%s325 + $0xe8] sm:$0xf]
                  %386 = vst [vmem:[%s326 + $0x74] sm:$0xf] %v385
                  %v387 = vld [vmem:[%s325 + $0xf0] sm:$0xf]
                  %388 = vst [vmem:[%s326 + $0x78] sm:$0xf] %v387
                  %v389 = vld [vmem:[%s325 + $0xf8] sm:$0xf]
                  %390 = vst [vmem:[%s326 + $0x7c] sm:$0xf] %v389
                  %v391 = vld [vmem:[%s325 + $0x100] sm:$0xf]
                  %392 = vst [vmem:[%s326 + $0x80] sm:$0xf] %v391
                  %v393 = vld [vmem:[%s325 + $0x108] sm:$0xf]
                  %394 = vst [vmem:[%s326 + $0x84] sm:$0xf] %v393
                  %v395 = vld [vmem:[%s325 + $0x110] sm:$0xf]
                  %396 = vst [vmem:[%s326 + $0x88] sm:$0xf] %v395
                  %v397 = vld [vmem:[%s325 + $0x118] sm:$0xf]
                  %398 = vst [vmem:[%s326 + $0x8c] sm:$0xf] %v397
                  %v399 = vld [vmem:[%s325 + $0x120] sm:$0xf]
                  %400 = vst [vmem:[%s326 + $0x90] sm:$0xf] %v399
                  %v401 = vld [vmem:[%s325 + $0x128] sm:$0xf]
                  %402 = vst [vmem:[%s326 + $0x94] sm:$0xf] %v401
                  %v403 = vld [vmem:[%s325 + $0x130] sm:$0xf]
                  %404 = vst [vmem:[%s326 + $0x98] sm:$0xf] %v403
                  %v405 = vld [vmem:[%s325 + $0x138] sm:$0xf]
                  %406 = vst [vmem:[%s326 + $0x9c] sm:$0xf] %v405
                  %v407 = vld [vmem:[%s325 + $0x140] sm:$0xf]
                  %408 = vst [vmem:[%s326 + $0xa0] sm:$0xf] %v407
                  %v409 = vld [vmem:[%s325 + $0x148] sm:$0xf]
                  %410 = vst [vmem:[%s326 + $0xa4] sm:$0xf] %v409
                  %v411 = vld [vmem:[%s325 + $0x150] sm:$0xf]
                  %412 = vst [vmem:[%s326 + $0xa8] sm:$0xf] %v411
                  %v413 = vld [vmem:[%s325 + $0x158] sm:$0xf]
                  %414 = vst [vmem:[%s326 + $0xac] sm:$0xf] %v413
                  %v415 = vld [vmem:[%s325 + $0x160] sm:$0xf]
                  %416 = vst [vmem:[%s326 + $0xb0] sm:$0xf] %v415
                  %v417 = vld [vmem:[%s325 + $0x168] sm:$0xf]
                  %418 = vst [vmem:[%s326 + $0xb4] sm:$0xf] %v417
                  %v419 = vld [vmem:[%s325 + $0x170] sm:$0xf]
                  %420 = vst [vmem:[%s326 + $0xb8] sm:$0xf] %v419
                  %v421 = vld [vmem:[%s325 + $0x178] sm:$0xf]
                  %422 = vst [vmem:[%s326 + $0xbc] sm:$0xf] %v421
                  %v423 = vld [vmem:[%s325 + $0x180] sm:$0xf]
                  %424 = vst [vmem:[%s326 + $0xc0] sm:$0xf] %v423
                  %v425 = vld [vmem:[%s325 + $0x188] sm:$0xf]
                  %426 = vst [vmem:[%s326 + $0xc4] sm:$0xf] %v425
                  %v427 = vld [vmem:[%s325 + $0x190] sm:$0xf]
                  %428 = vst [vmem:[%s326 + $0xc8] sm:$0xf] %v427
                  %v429 = vld [vmem:[%s325 + $0x198] sm:$0xf]
                  %430 = vst [vmem:[%s326 + $0xcc] sm:$0xf] %v429
                  %v431 = vld [vmem:[%s325 + $0x1a0] sm:$0xf]
                  %432 = vst [vmem:[%s326 + $0xd0] sm:$0xf] %v431
                  %v433 = vld [vmem:[%s325 + $0x1a8] sm:$0xf]
                  %434 = vst [vmem:[%s326 + $0xd4] sm:$0xf] %v433
                  %v435 = vld [vmem:[%s325 + $0x1b0] sm:$0xf]
                  %436 = vst [vmem:[%s326 + $0xd8] sm:$0xf] %v435
                  %v437 = vld [vmem:[%s325 + $0x1b8] sm:$0xf]
                  %438 = vst [vmem:[%s326 + $0xdc] sm:$0xf] %v437
                  %v439 = vld [vmem:[%s325 + $0x1c0] sm:$0xf]
                  %440 = vst [vmem:[%s326 + $0xe0] sm:$0xf] %v439
                  %v441 = vld [vmem:[%s325 + $0x1c8] sm:$0xf]
                  %442 = vst [vmem:[%s326 + $0xe4] sm:$0xf] %v441
                  %v443 = vld [vmem:[%s325 + $0x1d0] sm:$0xf]
                  %444 = vst [vmem:[%s326 + $0xe8] sm:$0xf] %v443
                  %v445 = vld [vmem:[%s325 + $0x1d8] sm:$0xf]
                  %446 = vst [vmem:[%s326 + $0xec] sm:$0xf] %v445
                  %v447 = vld [vmem:[%s325 + $0x1e0] sm:$0xf]
                  %448 = vst [vmem:[%s326 + $0xf0] sm:$0xf] %v447
                  %v449 = vld [vmem:[%s325 + $0x1e8] sm:$0xf]
                  %450 = vst [vmem:[%s326 + $0xf4] sm:$0xf] %v449
                  %v451 = vld [vmem:[%s325 + $0x1f0] sm:$0xf]
                  %452 = vst [vmem:[%s326 + $0xf8] sm:$0xf] %v451
                  %v453 = vld [vmem:[%s325 + $0x1f8] sm:$0xf]
                  %454 = vst [vmem:[%s326 + $0xfc] sm:$0xf] %v453
                $region59: #{ae_forward.16} parent=46 // loop_footer
                  %s324 = sadd.s32 1, %s320
                $region60: #{ae_forward.16} parent=46 // loop_footer_branch
                  %319 = sbr.rel target = $region56
                $region61: #{ae_forward.16} parent=46 // loop_exit
                  _
              $region47: #{ae_forward.16} parent=31 // pred_fallthru
                _
            $region32: #{ae_forward.16} parent=27 // pred_fallthru
              _
            // Predicated region
            $region33: #{ae_forward.16} parent=27 // pred_check
              _
            $region34: #{ae_forward.16} parent=27 // pred_check_branch
              %170 = sbr.rel (0) target = $region36
            $region35: #{ae_forward.16} parent=27 // pred_region
              loop: start=0, step=1, limit=1
              $region37: #{ae_forward.16} parent=35 // loop_pre_header
                _
              $region38: #{ae_forward.16} parent=35 // loop_header
                %s173 = sphi 0, %s177
                %p174 = scmp.ge.s32.totalorder %s173, 1
                %s178 = sphi %s164, %s164
                %s179 = sphi %s162, %s162
              $region39: #{ae_forward.16} parent=35 // loop_header_branch
                %176 = sbr.rel (%p174) target = $region43
              $region40: #{ae_forward.16} parent=35 // loop_body
                %v180 = vld [vmem:[%s178] sm:$0xf]
                %181 = vst [vmem:[%s179] sm:$0xf] %v180
                %v182 = vld [vmem:[%s178 + $0x8] sm:$0xf]
                %183 = vst [vmem:[%s179 + $0x4] sm:$0xf] %v182
                %v184 = vld [vmem:[%s178 + $0x10] sm:$0xf]
                %185 = vst [vmem:[%s179 + $0x8] sm:$0xf] %v184
                %v186 = vld [vmem:[%s178 + $0x18] sm:$0xf]
                %187 = vst [vmem:[%s179 + $0xc] sm:$0xf] %v186
                %v188 = vld [vmem:[%s178 + $0x20] sm:$0xf]
                %189 = vst [vmem:[%s179 + $0x10] sm:$0xf] %v188
                %v190 = vld [vmem:[%s178 + $0x28] sm:$0xf]
                %191 = vst [vmem:[%s179 + $0x14] sm:$0xf] %v190
                %v192 = vld [vmem:[%s178 + $0x30] sm:$0xf]
                %193 = vst [vmem:[%s179 + $0x18] sm:$0xf] %v192
                %v194 = vld [vmem:[%s178 + $0x38] sm:$0xf]
                %195 = vst [vmem:[%s179 + $0x1c] sm:$0xf] %v194
                %v196 = vld [vmem:[%s178 + $0x40] sm:$0xf]
                %197 = vst [vmem:[%s179 + $0x20] sm:$0xf] %v196
                %v198 = vld [vmem:[%s178 + $0x48] sm:$0xf]
                %199 = vst [vmem:[%s179 + $0x24] sm:$0xf] %v198
                %v200 = vld [vmem:[%s178 + $0x50] sm:$0xf]
                %201 = vst [vmem:[%s179 + $0x28] sm:$0xf] %v200
                %v202 = vld [vmem:[%s178 + $0x58] sm:$0xf]
                %203 = vst [vmem:[%s179 + $0x2c] sm:$0xf] %v202
                %v204 = vld [vmem:[%s178 + $0x60] sm:$0xf]
                %205 = vst [vmem:[%s179 + $0x30] sm:$0xf] %v204
                %v206 = vld [vmem:[%s178 + $0x68] sm:$0xf]
                %207 = vst [vmem:[%s179 + $0x34] sm:$0xf] %v206
                %v208 = vld [vmem:[%s178 + $0x70] sm:$0xf]
                %209 = vst [vmem:[%s179 + $0x38] sm:$0xf] %v208
                %v210 = vld [vmem:[%s178 + $0x78] sm:$0xf]
                %211 = vst [vmem:[%s179 + $0x3c] sm:$0xf] %v210
                %v212 = vld [vmem:[%s178 + $0x80] sm:$0xf]
                %213 = vst [vmem:[%s179 + $0x40] sm:$0xf] %v212
                %v214 = vld [vmem:[%s178 + $0x88] sm:$0xf]
                %215 = vst [vmem:[%s179 + $0x44] sm:$0xf] %v214
                %v216 = vld [vmem:[%s178 + $0x90] sm:$0xf]
                %217 = vst [vmem:[%s179 + $0x48] sm:$0xf] %v216
                %v218 = vld [vmem:[%s178 + $0x98] sm:$0xf]
                %219 = vst [vmem:[%s179 + $0x4c] sm:$0xf] %v218
                %v220 = vld [vmem:[%s178 + $0xa0] sm:$0xf]
                %221 = vst [vmem:[%s179 + $0x50] sm:$0xf] %v220
                %v222 = vld [vmem:[%s178 + $0xa8] sm:$0xf]
                %223 = vst [vmem:[%s179 + $0x54] sm:$0xf] %v222
                %v224 = vld [vmem:[%s178 + $0xb0] sm:$0xf]
                %225 = vst [vmem:[%s179 + $0x58] sm:$0xf] %v224
                %v226 = vld [vmem:[%s178 + $0xb8] sm:$0xf]
                %227 = vst [vmem:[%s179 + $0x5c] sm:$0xf] %v226
                %v228 = vld [vmem:[%s178 + $0xc0] sm:$0xf]
                %229 = vst [vmem:[%s179 + $0x60] sm:$0xf] %v228
                %v230 = vld [vmem:[%s178 + $0xc8] sm:$0xf]
                %231 = vst [vmem:[%s179 + $0x64] sm:$0xf] %v230
                %v232 = vld [vmem:[%s178 + $0xd0] sm:$0xf]
                %233 = vst [vmem:[%s179 + $0x68] sm:$0xf] %v232
                %v234 = vld [vmem:[%s178 + $0xd8] sm:$0xf]
                %235 = vst [vmem:[%s179 + $0x6c] sm:$0xf] %v234
                %v236 = vld [vmem:[%s178 + $0xe0] sm:$0xf]
                %237 = vst [vmem:[%s179 + $0x70] sm:$0xf] %v236
                %v238 = vld [vmem:[%s178 + $0xe8] sm:$0xf]
                %239 = vst [vmem:[%s179 + $0x74] sm:$0xf] %v238
                %v240 = vld [vmem:[%s178 + $0xf0] sm:$0xf]
                %241 = vst [vmem:[%s179 + $0x78] sm:$0xf] %v240
                %v242 = vld [vmem:[%s178 + $0xf8] sm:$0xf]
                %243 = vst [vmem:[%s179 + $0x7c] sm:$0xf] %v242
                %v244 = vld [vmem:[%s178 + $0x100] sm:$0xf]
                %245 = vst [vmem:[%s179 + $0x80] sm:$0xf] %v244
                %v246 = vld [vmem:[%s178 + $0x108] sm:$0xf]
                %247 = vst [vmem:[%s179 + $0x84] sm:$0xf] %v246
                %v248 = vld [vmem:[%s178 + $0x110] sm:$0xf]
                %249 = vst [vmem:[%s179 + $0x88] sm:$0xf] %v248
                %v250 = vld [vmem:[%s178 + $0x118] sm:$0xf]
                %251 = vst [vmem:[%s179 + $0x8c] sm:$0xf] %v250
                %v252 = vld [vmem:[%s178 + $0x120] sm:$0xf]
                %253 = vst [vmem:[%s179 + $0x90] sm:$0xf] %v252
                %v254 = vld [vmem:[%s178 + $0x128] sm:$0xf]
                %255 = vst [vmem:[%s179 + $0x94] sm:$0xf] %v254
                %v256 = vld [vmem:[%s178 + $0x130] sm:$0xf]
                %257 = vst [vmem:[%s179 + $0x98] sm:$0xf] %v256
                %v258 = vld [vmem:[%s178 + $0x138] sm:$0xf]
                %259 = vst [vmem:[%s179 + $0x9c] sm:$0xf] %v258
                %v260 = vld [vmem:[%s178 + $0x140] sm:$0xf]
                %261 = vst [vmem:[%s179 + $0xa0] sm:$0xf] %v260
                %v262 = vld [vmem:[%s178 + $0x148] sm:$0xf]
                %263 = vst [vmem:[%s179 + $0xa4] sm:$0xf] %v262
                %v264 = vld [vmem:[%s178 + $0x150] sm:$0xf]
                %265 = vst [vmem:[%s179 + $0xa8] sm:$0xf] %v264
                %v266 = vld [vmem:[%s178 + $0x158] sm:$0xf]
                %267 = vst [vmem:[%s179 + $0xac] sm:$0xf] %v266
                %v268 = vld [vmem:[%s178 + $0x160] sm:$0xf]
                %269 = vst [vmem:[%s179 + $0xb0] sm:$0xf] %v268
                %v270 = vld [vmem:[%s178 + $0x168] sm:$0xf]
                %271 = vst [vmem:[%s179 + $0xb4] sm:$0xf] %v270
                %v272 = vld [vmem:[%s178 + $0x170] sm:$0xf]
                %273 = vst [vmem:[%s179 + $0xb8] sm:$0xf] %v272
                %v274 = vld [vmem:[%s178 + $0x178] sm:$0xf]
                %275 = vst [vmem:[%s179 + $0xbc] sm:$0xf] %v274
                %v276 = vld [vmem:[%s178 + $0x180] sm:$0xf]
                %277 = vst [vmem:[%s179 + $0xc0] sm:$0xf] %v276
                %v278 = vld [vmem:[%s178 + $0x188] sm:$0xf]
                %279 = vst [vmem:[%s179 + $0xc4] sm:$0xf] %v278
                %v280 = vld [vmem:[%s178 + $0x190] sm:$0xf]
                %281 = vst [vmem:[%s179 + $0xc8] sm:$0xf] %v280
                %v282 = vld [vmem:[%s178 + $0x198] sm:$0xf]
                %283 = vst [vmem:[%s179 + $0xcc] sm:$0xf] %v282
                %v284 = vld [vmem:[%s178 + $0x1a0] sm:$0xf]
                %285 = vst [vmem:[%s179 + $0xd0] sm:$0xf] %v284
                %v286 = vld [vmem:[%s178 + $0x1a8] sm:$0xf]
                %287 = vst [vmem:[%s179 + $0xd4] sm:$0xf] %v286
                %v288 = vld [vmem:[%s178 + $0x1b0] sm:$0xf]
                %289 = vst [vmem:[%s179 + $0xd8] sm:$0xf] %v288
                %v290 = vld [vmem:[%s178 + $0x1b8] sm:$0xf]
                %291 = vst [vmem:[%s179 + $0xdc] sm:$0xf] %v290
                %v292 = vld [vmem:[%s178 + $0x1c0] sm:$0xf]
                %293 = vst [vmem:[%s179 + $0xe0] sm:$0xf] %v292
                %v294 = vld [vmem:[%s178 + $0x1c8] sm:$0xf]
                %295 = vst [vmem:[%s179 + $0xe4] sm:$0xf] %v294
                %v296 = vld [vmem:[%s178 + $0x1d0] sm:$0xf]
                %297 = vst [vmem:[%s179 + $0xe8] sm:$0xf] %v296
                %v298 = vld [vmem:[%s178 + $0x1d8] sm:$0xf]
                %299 = vst [vmem:[%s179 + $0xec] sm:$0xf] %v298
                %v300 = vld [vmem:[%s178 + $0x1e0] sm:$0xf]
                %301 = vst [vmem:[%s179 + $0xf0] sm:$0xf] %v300
                %v302 = vld [vmem:[%s178 + $0x1e8] sm:$0xf]
                %303 = vst [vmem:[%s179 + $0xf4] sm:$0xf] %v302
                %v304 = vld [vmem:[%s178 + $0x1f0] sm:$0xf]
                %305 = vst [vmem:[%s179 + $0xf8] sm:$0xf] %v304
                %v306 = vld [vmem:[%s178 + $0x1f8] sm:$0xf]
                %307 = vst [vmem:[%s179 + $0xfc] sm:$0xf] %v306
              $region41: #{ae_forward.16} parent=35 // loop_footer
                %s177 = sadd.s32 1, %s173
              $region42: #{ae_forward.16} parent=35 // loop_footer_branch
                %172 = sbr.rel target = $region38
              $region43: #{ae_forward.16} parent=35 // loop_exit
                _
            $region36: #{ae_forward.16} parent=27 // pred_fallthru
              _
          $region28: #{ae_forward.16} parent=23 // pred_fallthru
            _
          %455 = vnop
        $region24: #{ae_forward.16} parent=19 // pred_fallthru
          _
        // Predicated region
        $region62: #{ae_forward.16} parent=19 // pred_check
          %p456 = pneg %p93
        $region63: #{ae_forward.16} parent=19 // pred_check_branch
          %458 = sbr.rel (%p456) target = $region65
        $region64: #{ae_forward.16} parent=19 // pred_region
          %p459 = scmp.lt.s32.totalorder %s17, 1
          %s460 = scalar_select %p459, %s17, 1
          %s461 = scalar_lea.vmem %s2, %s460
        $region65: #{ae_forward.16} parent=19 // pred_fallthru
          _
      $region20: #{ae_forward.16} parent=5 // pred_fallthru
        _
      %p462 = scmp.le.s32.totalorder 1, %s9
      %p463 = scmp.lt.s32.totalorder %s9, 3
      %p464 = pnand %p462, %p463
      %p465 = pneg %p464
      // Predicated region
      $region66: #{ae_forward.16} parent=5 // pred_check
        _
      $region67: #{ae_forward.16} parent=5 // pred_check_branch
        %467 = sbr.rel (%p464) target = $region69
      $region68: #{ae_forward.16} parent=5 // pred_region
        %s468 = ssub.s32 %s9, 1
        %s469 = sand.u32 %s60, 1
        %s470 = sand.u32 %s60, 1
        %s471 = smul.addr %s470, 256
        %s472 = scalar_lea.vmem [#allocation2], %s471
        // Predicated region
        $region70: #{ae_forward.16} parent=68 // pred_check
          %p473 = pneg %p73
        $region71: #{ae_forward.16} parent=68 // pred_check_branch
          %475 = sbr.rel (%p473) target = $region73
        $region72: #{ae_forward.16} parent=68 // pred_region
          _
        $region73: #{ae_forward.16} parent=68 // pred_fallthru
          _
        %s476 = smul.u32 9, %s18
        %p477 = scmp.lt.s32.totalorder %s476, 8
        %s478 = scalar_select %p477, %s476, 8
        %s479 = smul.addr %s478, 4
        %s480 = smul.addr %s479, 4
        %s481 = scalar_lea.vmem %s0, %s480
        %p482 = pneg %p47
        %p483 = pneg %p44
        %s484 = sand.u32 %s60, 1
        %s485 = sand.u32 %s60, 1
        %s486 = smul.addr %s485, 256
        %s487 = scalar_lea.vmem [#allocation2], %s486
        %p488 = pneg %p73
        %p489 = pneg %p70
        %p490 = scmp.lt.s32.totalorder %s19, 1
        %s491 = scalar_select %p490, %s19, 1
        %s492 = scalar_lea.vmem %s2, %s491
        %p493 = pneg %p99
        %p494 = pneg %p96
        %p495 = pneg %p127
        %p496 = pneg %p124
        %s497 = sand.u32 %s114, 1
        %s498 = sand.u32 %s114, 1
        %s499 = smul.addr %s498, 72
        %s500 = scalar_lea.vmem [#allocation3], %s499
        %s501 = smul.u32 9, %s18
        %p502 = scmp.lt.s32.totalorder %s501, 8
        %s503 = scalar_select %p502, %s501, 8
        %s504 = smul.addr %s503, 4
        %s505 = smul.addr %s504, 4
        %s506 = scalar_lea.vmem %s0, %s505
        %s507 = smul.u32 9, %s18
        %p508 = scmp.lt.s32.totalorder %s19, 1
        %s509 = scalar_select %p508, %s19, 1
        %s510 = scalar_lea.vmem %s2, %s509
        %s511 = smul.u32 9, %s18
        %v513 = vld [vmem:[%s506] sm:$0xff]
        %v514 = vld [vmem:[%s506 + $0x8] sm:$0xff]
        %v515 = vld [vmem:[%s506 + $0x10] sm:$0xff]
        %v516 = vld [vmem:[%s506 + $0x18] sm:$0xff]
        %v517 = vld [vmem:[%s506 + $0x20] sm:$0xff]
        %v518 = vld [vmem:[%s506 + $0x28] sm:$0xff]
        %v519 = vld [vmem:[%s506 + $0x30] sm:$0xff]
        %v520 = vld [vmem:[%s506 + $0x38] sm:$0xff]
        %v521 = vld [vmem:[%s506 + $0x40] sm:$0xff]
        %v522 = vld [vmem:[%s506 + $0x48] sm:$0xff]
        %v523 = vld [vmem:[%s506 + $0x50] sm:$0xff]
        %v524 = vld [vmem:[%s506 + $0x58] sm:$0xff]
        %v525 = vld [vmem:[%s506 + $0x60] sm:$0xff]
        %v526 = vld [vmem:[%s506 + $0x68] sm:$0xff]
        %v527 = vld [vmem:[%s506 + $0x70] sm:$0xff]
        %v528 = vld [vmem:[%s506 + $0x78] sm:$0xff]
        %v529 = vld [vmem:[%s506 + $0x80] sm:$0xff]
        %v530 = vld [vmem:[%s506 + $0x88] sm:$0xff]
        %v531 = vld [vmem:[%s472] sm:$0xf]
        %v532 = vld [vmem:[%s472 + $0x4] sm:$0xf]
        %v533 = vld [vmem:[%s472 + $0x8] sm:$0xf]
        %v534 = vld [vmem:[%s472 + $0xc] sm:$0xf]
        %v535 = vld [vmem:[%s472 + $0x10] sm:$0xf]
        %v536 = vld [vmem:[%s472 + $0x14] sm:$0xf]
        %v537 = vld [vmem:[%s472 + $0x18] sm:$0xf]
        %v538 = vld [vmem:[%s472 + $0x1c] sm:$0xf]
        %v539 = vld [vmem:[%s472 + $0x20] sm:$0xf]
        %v540 = vld [vmem:[%s472 + $0x24] sm:$0xf]
        %v541 = vld [vmem:[%s472 + $0x28] sm:$0xf]
        %v542 = vld [vmem:[%s472 + $0x2c] sm:$0xf]
        %v543 = vld [vmem:[%s472 + $0x30] sm:$0xf]
        %v544 = vld [vmem:[%s472 + $0x34] sm:$0xf]
        %v545 = vld [vmem:[%s472 + $0x38] sm:$0xf]
        %v546 = vld [vmem:[%s472 + $0x3c] sm:$0xf]
        %v547 = vld [vmem:[%s472 + $0x40] sm:$0xf]
        %v548 = vld [vmem:[%s472 + $0x44] sm:$0xf]
        %v549 = vld [vmem:[%s472 + $0x48] sm:$0xf]
        %v550 = vld [vmem:[%s472 + $0x4c] sm:$0xf]
        %v551 = vld [vmem:[%s472 + $0x50] sm:$0xf]
        %v552 = vld [vmem:[%s472 + $0x54] sm:$0xf]
        %v553 = vld [vmem:[%s472 + $0x58] sm:$0xf]
        %v554 = vld [vmem:[%s472 + $0x5c] sm:$0xf]
        %v555 = vld [vmem:[%s472 + $0x60] sm:$0xf]
        %v556 = vld [vmem:[%s472 + $0x64] sm:$0xf]
        %v557 = vld [vmem:[%s472 + $0x68] sm:$0xf]
        %v558 = vld [vmem:[%s472 + $0x6c] sm:$0xf]
        %v559 = vld [vmem:[%s472 + $0x70] sm:$0xf]
        %v560 = vld [vmem:[%s472 + $0x74] sm:$0xf]
        %v561 = vld [vmem:[%s472 + $0x78] sm:$0xf]
        %v562 = vld [vmem:[%s472 + $0x7c] sm:$0xf]
        %v563 = vld [vmem:[%s472 + $0x80] sm:$0xf]
        %v564 = vld [vmem:[%s472 + $0x84] sm:$0xf]
        %v565 = vld [vmem:[%s472 + $0x88] sm:$0xf]
        %v566 = vld [vmem:[%s472 + $0x8c] sm:$0xf]
        %v567 = vld [vmem:[%s472 + $0x90] sm:$0xf]
        %v568 = vld [vmem:[%s472 + $0x94] sm:$0xf]
        %v569 = vld [vmem:[%s472 + $0x98] sm:$0xf]
        %v570 = vld [vmem:[%s472 + $0x9c] sm:$0xf]
        %v571 = vld [vmem:[%s472 + $0xa0] sm:$0xf]
        %v572 = vld [vmem:[%s472 + $0xa4] sm:$0xf]
        %v573 = vld [vmem:[%s472 + $0xa8] sm:$0xf]
        %v574 = vld [vmem:[%s472 + $0xac] sm:$0xf]
        %v575 = vld [vmem:[%s472 + $0xb0] sm:$0xf]
        %v576 = vld [vmem:[%s472 + $0xb4] sm:$0xf]
        %v577 = vld [vmem:[%s472 + $0xb8] sm:$0xf]
        %v578 = vld [vmem:[%s472 + $0xbc] sm:$0xf]
        %v579 = vld [vmem:[%s472 + $0xc0] sm:$0xf]
        %v580 = vld [vmem:[%s472 + $0xc4] sm:$0xf]
        %v581 = vld [vmem:[%s472 + $0xc8] sm:$0xf]
        %v582 = vld [vmem:[%s472 + $0xcc] sm:$0xf]
        %v583 = vld [vmem:[%s472 + $0xd0] sm:$0xf]
        %v584 = vld [vmem:[%s472 + $0xd4] sm:$0xf]
        %v585 = vld [vmem:[%s472 + $0xd8] sm:$0xf]
        %v586 = vld [vmem:[%s472 + $0xdc] sm:$0xf]
        %v587 = vld [vmem:[%s472 + $0xe0] sm:$0xf]
        %v588 = vld [vmem:[%s472 + $0xe4] sm:$0xf]
        %v589 = vld [vmem:[%s472 + $0xe8] sm:$0xf]
        %v590 = vld [vmem:[%s472 + $0xec] sm:$0xf]
        %v591 = vld [vmem:[%s472 + $0xf0] sm:$0xf]
        %v592 = vld [vmem:[%s472 + $0xf4] sm:$0xf]
        %v593 = vld [vmem:[%s472 + $0xf8] sm:$0xf]
        %v594 = vld [vmem:[%s472 + $0xfc] sm:$0xf]
        %v595 = vld [vmem:[%s510] sm:$0x1]
        %v597 = vlaneseq
        %v598 = vshrl.u32 %v597, 7
        %v599 = vsub.s32 0, %v598
        %v600 = vrot.slane %v595, %v599
        %v620 = vunpack.c.l.b16 %v513
        %v621 = vunpack.c.h.b16 %v513
        %v622 = vunpack.c.l.b16 %v514
        %v623 = vunpack.c.h.b16 %v514
        %v624 = vunpack.c.l.b16 %v515
        %v625 = vunpack.c.h.b16 %v515
        %v626 = vunpack.c.l.b16 %v516
        %v627 = vunpack.c.h.b16 %v516
        %v628 = vunpack.c.l.b16 %v517
        %v629 = vunpack.c.h.b16 %v517
        %v630 = vunpack.c.l.b16 %v518
        %v631 = vunpack.c.h.b16 %v518
        %v632 = vunpack.c.l.b16 %v519
        %v633 = vunpack.c.h.b16 %v519
        %v634 = vunpack.c.l.b16 %v520
        %v635 = vunpack.c.h.b16 %v520
        %v636 = vunpack.c.l.b16 %v521
        %v637 = vunpack.c.h.b16 %v521
        %v638 = vunpack.c.l.b16 %v522
        %v639 = vunpack.c.h.b16 %v522
        %v640 = vunpack.c.l.b16 %v523
        %v641 = vunpack.c.h.b16 %v523
        %v642 = vunpack.c.l.b16 %v524
        %v643 = vunpack.c.h.b16 %v524
        %v644 = vunpack.c.l.b16 %v525
        %v645 = vunpack.c.h.b16 %v525
        %v646 = vunpack.c.l.b16 %v526
        %v647 = vunpack.c.h.b16 %v526
        %v648 = vunpack.c.l.b16 %v527
        %v649 = vunpack.c.h.b16 %v527
        %v650 = vunpack.c.l.b16 %v528
        %v651 = vunpack.c.h.b16 %v528
        %v652 = vunpack.c.l.b16 %v529
        %v653 = vunpack.c.h.b16 %v529
        %v654 = vunpack.c.l.b16 %v530
        %v655 = vunpack.c.h.b16 %v530
        %v656 = vpack.c.b16 %v624, %v620
        %v657 = vpack.c.b16 %v625, %v621
        %v658 = vpack.c.b16 %v626, %v622
        %v659 = vpack.c.b16 %v627, %v623
        %v660 = vpack.c.b16 %v632, %v628
        %v661 = vpack.c.b16 %v633, %v629
        %v662 = vpack.c.b16 %v634, %v630
        %v663 = vpack.c.b16 %v635, %v631
        %v664 = vpack.c.b16 %v640, %v636
        %v665 = vpack.c.b16 %v641, %v637
        %v666 = vpack.c.b16 %v642, %v638
        %v667 = vpack.c.b16 %v643, %v639
        %v668 = vpack.c.b16 %v648, %v644
        %v669 = vpack.c.b16 %v649, %v645
        %v670 = vpack.c.b16 %v650, %v646
        %v671 = vpack.c.b16 %v651, %v647
        %v672 = vpack.c.b16 %v652, %v652
        %v673 = vpack.c.b16 %v653, %v653
        %v674 = vpack.c.b16 %v654, %v654
        %v675 = vpack.c.b16 %v655, %v655
        %v760 = vunpack.c.l.b16 %v531
        %v761 = vunpack.c.l.b16 %v532
        %v762 = vunpack.c.l.b16 %v533
        %v763 = vunpack.c.l.b16 %v534
        %v764 = vunpack.c.l.b16 %v535
        %v765 = vunpack.c.l.b16 %v536
        %v766 = vunpack.c.l.b16 %v537
        %v767 = vunpack.c.l.b16 %v538
        %v768 = vunpack.c.l.b16 %v539
        %v769 = vunpack.c.l.b16 %v540
        %v770 = vunpack.c.l.b16 %v541
        %v771 = vunpack.c.l.b16 %v542
        %v772 = vunpack.c.l.b16 %v543
        %v773 = vunpack.c.l.b16 %v544
        %v774 = vunpack.c.l.b16 %v545
        %v775 = vunpack.c.l.b16 %v546
        %v776 = vunpack.c.l.b16 %v547
        %v777 = vunpack.c.l.b16 %v548
        %v778 = vunpack.c.l.b16 %v549
        %v779 = vunpack.c.l.b16 %v550
        %v780 = vunpack.c.l.b16 %v551
        %v781 = vunpack.c.l.b16 %v552
        %v782 = vunpack.c.l.b16 %v553
        %v783 = vunpack.c.l.b16 %v554
        %v784 = vunpack.c.l.b16 %v555
        %v785 = vunpack.c.l.b16 %v556
        %v786 = vunpack.c.l.b16 %v557
        %v787 = vunpack.c.l.b16 %v558
        %v788 = vunpack.c.l.b16 %v559
        %v789 = vunpack.c.l.b16 %v560
        %v790 = vunpack.c.l.b16 %v561
        %v791 = vunpack.c.l.b16 %v562
        %v792 = vunpack.c.l.b16 %v563
        %v793 = vunpack.c.l.b16 %v564
        %v794 = vunpack.c.l.b16 %v565
        %v795 = vunpack.c.l.b16 %v566
        %v796 = vunpack.c.l.b16 %v567
        %v797 = vunpack.c.l.b16 %v568
        %v798 = vunpack.c.l.b16 %v569
        %v799 = vunpack.c.l.b16 %v570
        %v800 = vunpack.c.l.b16 %v571
        %v801 = vunpack.c.l.b16 %v572
        %v802 = vunpack.c.l.b16 %v573
        %v803 = vunpack.c.l.b16 %v574
        %v804 = vunpack.c.l.b16 %v575
        %v805 = vunpack.c.l.b16 %v576
        %v806 = vunpack.c.l.b16 %v577
        %v807 = vunpack.c.l.b16 %v578
        %v808 = vunpack.c.l.b16 %v579
        %v809 = vunpack.c.l.b16 %v580
        %v810 = vunpack.c.l.b16 %v581
        %v811 = vunpack.c.l.b16 %v582
        %v812 = vunpack.c.l.b16 %v583
        %v813 = vunpack.c.l.b16 %v584
        %v814 = vunpack.c.l.b16 %v585
        %v815 = vunpack.c.l.b16 %v586
        %v816 = vunpack.c.l.b16 %v587
        %v817 = vunpack.c.l.b16 %v588
        %v818 = vunpack.c.l.b16 %v589
        %v819 = vunpack.c.l.b16 %v590
        %v820 = vunpack.c.l.b16 %v591
        %v821 = vunpack.c.l.b16 %v592
        %v822 = vunpack.c.l.b16 %v593
        %v823 = vunpack.c.l.b16 %v594
        %v824 = vpack.c.b16 %v761, %v760
        %v825 = vpack.c.b16 %v763, %v762
        %v826 = vpack.c.b16 %v765, %v764
        %v827 = vpack.c.b16 %v767, %v766
        %v828 = vpack.c.b16 %v769, %v768
        %v829 = vpack.c.b16 %v771, %v770
        %v830 = vpack.c.b16 %v773, %v772
        %v831 = vpack.c.b16 %v775, %v774
        %v832 = vpack.c.b16 %v777, %v776
        %v833 = vpack.c.b16 %v779, %v778
        %v834 = vpack.c.b16 %v781, %v780
        %v835 = vpack.c.b16 %v783, %v782
        %v836 = vpack.c.b16 %v785, %v784
        %v837 = vpack.c.b16 %v787, %v786
        %v838 = vpack.c.b16 %v789, %v788
        %v839 = vpack.c.b16 %v791, %v790
        %v840 = vpack.c.b16 %v793, %v792
        %v841 = vpack.c.b16 %v795, %v794
        %v842 = vpack.c.b16 %v797, %v796
        %v843 = vpack.c.b16 %v799, %v798
        %v844 = vpack.c.b16 %v801, %v800
        %v845 = vpack.c.b16 %v803, %v802
        %v846 = vpack.c.b16 %v805, %v804
        %v847 = vpack.c.b16 %v807, %v806
        %v848 = vpack.c.b16 %v809, %v808
        %v849 = vpack.c.b16 %v811, %v810
        %v850 = vpack.c.b16 %v813, %v812
        %v851 = vpack.c.b16 %v815, %v814
        %v852 = vpack.c.b16 %v817, %v816
        %v853 = vpack.c.b16 %v819, %v818
        %v854 = vpack.c.b16 %v821, %v820
        %v855 = vpack.c.b16 %v823, %v822
        %888 = vmatprep.subr.bf16.mxu0 0
        %889 = vmatpush1.bf16.msra.mxu0 %v824
        %890 = vmatprep.subr.bf16.mxu0 0
        %891 = vmatpush1.bf16.msra.mxu0 %v825
        %892 = vmatprep.subr.bf16.mxu0 0
        %893 = vmatpush1.bf16.msra.mxu0 %v826
        %894 = vmatprep.subr.bf16.mxu0 0
        %895 = vmatpush1.bf16.msra.mxu0 %v827
        %896 = vmatprep.subr.bf16.mxu0 0
        %897 = vmatpush1.bf16.msra.mxu0 %v828
        %898 = vmatprep.subr.bf16.mxu0 0
        %899 = vmatpush1.bf16.msra.mxu0 %v829
        %900 = vmatprep.subr.bf16.mxu0 0
        %901 = vmatpush1.bf16.msra.mxu0 %v830
        %902 = vmatprep.subr.bf16.mxu0 0
        %903 = vmatpush1.bf16.msra.mxu0 %v831
        %904 = vmatprep.subr.bf16.mxu0 0
        %905 = vmatpush1.bf16.msra.mxu0 %v832
        %906 = vmatprep.subr.bf16.mxu0 0
        %907 = vmatpush1.bf16.msra.mxu0 %v833
        %908 = vmatprep.subr.bf16.mxu0 0
        %909 = vmatpush1.bf16.msra.mxu0 %v834
        %910 = vmatprep.subr.bf16.mxu0 0
        %911 = vmatpush1.bf16.msra.mxu0 %v835
        %912 = vmatprep.subr.bf16.mxu0 0
        %913 = vmatpush1.bf16.msra.mxu0 %v836
        %914 = vmatprep.subr.bf16.mxu0 0
        %915 = vmatpush1.bf16.msra.mxu0 %v837
        %916 = vmatprep.subr.bf16.mxu0 0
        %917 = vmatpush1.bf16.msra.mxu0 %v838
        %918 = vmatprep.subr.bf16.mxu0 0
        %919 = vmatpush1.bf16.msra.mxu0 %v839
        %920 = vmatprep.mubr.bf16.mxu0 %v657
        %921 = vmatmul.mubr.bf16.gmra.mrb[0].mxu0 %v656
        %v922 = vpop.f32.mrb[0].mxu0
        %v923 = vadd.f32 %v600, %v922
        %v924 = vpop.f32.mrb[0].mxu0
        %v925 = vpop.f32.mrb[0].mxu0
        %v926 = vadd.f32 %v600, %v925
        %v927 = vpop.f32.mrb[0].mxu0
        %928 = vmatprep.mubr.bf16.mxu0 %v661
        %929 = vmatmul.mubr.bf16.gmra.mrb[0].mxu0 %v660
        %v930 = vpop.f32.mrb[0].mxu0
        %v931 = vadd.f32 %v600, %v930
        %v932 = vpop.f32.mrb[0].mxu0
        %v933 = vpop.f32.mrb[0].mxu0
        %v934 = vadd.f32 %v600, %v933
        %v935 = vpop.f32.mrb[0].mxu0
        %936 = vmatprep.mubr.bf16.mxu0 %v665
        %937 = vmatmul.mubr.bf16.gmra.mrb[0].mxu0 %v664
        %v938 = vpop.f32.mrb[0].mxu0
        %v939 = vadd.f32 %v600, %v938
        %v940 = vpop.f32.mrb[0].mxu0
        %v941 = vpop.f32.mrb[0].mxu0
        %v942 = vadd.f32 %v600, %v941
        %v943 = vpop.f32.mrb[0].mxu0
        %944 = vmatprep.mubr.bf16.mxu0 %v669
        %945 = vmatmul.mubr.bf16.gmra.mrb[0].mxu0 %v668
        %v946 = vpop.f32.mrb[0].mxu0
        %v947 = vadd.f32 %v600, %v946
        %v948 = vpop.f32.mrb[0].mxu0
        %v949 = vpop.f32.mrb[0].mxu0
        %v950 = vadd.f32 %v600, %v949
        %v951 = vpop.f32.mrb[0].mxu0
        %952 = vmatprep.mubr.bf16.mxu0 %v673
        %953 = vmatmul.mubr.bf16.gmra.mrb[0].mxu0 %v672
        %v954 = vpop.f32.mrb[0].mxu0
        %v955 = vadd.f32 %v600, %v954
        %v956 = vpop.f32.mrb[0].mxu0
        %v957 = vpop.f32.mrb[0].mxu0
        %v958 = vpop.f32.mrb[0].mxu0
        %959 = vdwg.mxu0
        %960 = vmatprep.subr.bf16.mxu0 0
        %961 = vmatpush1.bf16.msra.mxu0 %v840
        %962 = vmatprep.subr.bf16.mxu0 0
        %963 = vmatpush1.bf16.msra.mxu0 %v841
        %964 = vmatprep.subr.bf16.mxu0 0
        %965 = vmatpush1.bf16.msra.mxu0 %v842
        %966 = vmatprep.subr.bf16.mxu0 0
        %967 = vmatpush1.bf16.msra.mxu0 %v843
        %968 = vmatprep.subr.bf16.mxu0 0
        %969 = vmatpush1.bf16.msra.mxu0 %v844
        %970 = vmatprep.subr.bf16.mxu0 0
        %971 = vmatpush1.bf16.msra.mxu0 %v845
        %972 = vmatprep.subr.bf16.mxu0 0
        %973 = vmatpush1.bf16.msra.mxu0 %v846
        %974 = vmatprep.subr.bf16.mxu0 0
        %975 = vmatpush1.bf16.msra.mxu0 %v847
        %976 = vmatprep.subr.bf16.mxu0 0
        %977 = vmatpush1.bf16.msra.mxu0 %v848
        %978 = vmatprep.subr.bf16.mxu0 0
        %979 = vmatpush1.bf16.msra.mxu0 %v849
        %980 = vmatprep.subr.bf16.mxu0 0
        %981 = vmatpush1.bf16.msra.mxu0 %v850
        %982 = vmatprep.subr.bf16.mxu0 0
        %983 = vmatpush1.bf16.msra.mxu0 %v851
        %984 = vmatprep.subr.bf16.mxu0 0
        %985 = vmatpush1.bf16.msra.mxu0 %v852
        %986 = vmatprep.subr.bf16.mxu0 0
        %987 = vmatpush1.bf16.msra.mxu0 %v853
        %988 = vmatprep.subr.bf16.mxu0 0
        %989 = vmatpush1.bf16.msra.mxu0 %v854
        %990 = vmatprep.subr.bf16.mxu0 0
        %991 = vmatpush1.bf16.msra.mxu0 %v855
        %992 = vmatprep.mubr.bf16.mxu0 %v659
        %993 = vmatmul.mubr.bf16.gmra.mrb[0].mxu0 %v658
        %v994 = vpop.f32.mrb[0].mxu0
        %v995 = vadd.f32 %v923, %v994
        %v996 = vpop.f32.mrb[0].mxu0
        %v997 = vpop.f32.mrb[0].mxu0
        %v998 = vadd.f32 %v926, %v997
        %v999 = vpop.f32.mrb[0].mxu0
        %1000 = vmatprep.mubr.bf16.mxu0 %v663
        %1001 = vmatmul.mubr.bf16.gmra.mrb[0].mxu0 %v662
        %v1002 = vpop.f32.mrb[0].mxu0
        %v1003 = vadd.f32 %v931, %v1002
        %v1004 = vpop.f32.mrb[0].mxu0
        %v1005 = vpop.f32.mrb[0].mxu0
        %v1006 = vadd.f32 %v934, %v1005
        %v1007 = vpop.f32.mrb[0].mxu0
        %1008 = vmatprep.mubr.bf16.mxu0 %v667
        %1009 = vmatmul.mubr.bf16.gmra.mrb[0].mxu0 %v666
        %v1010 = vpop.f32.mrb[0].mxu0
        %v1011 = vadd.f32 %v939, %v1010
        %v1012 = vpop.f32.mrb[0].mxu0
        %v1013 = vpop.f32.mrb[0].mxu0
        %v1014 = vadd.f32 %v942, %v1013
        %v1015 = vpop.f32.mrb[0].mxu0
        %1016 = vmatprep.mubr.bf16.mxu0 %v671
        %1017 = vmatmul.mubr.bf16.gmra.mrb[0].mxu0 %v670
        %v1018 = vpop.f32.mrb[0].mxu0
        %v1019 = vadd.f32 %v947, %v1018
        %v1020 = vpop.f32.mrb[0].mxu0
        %v1021 = vpop.f32.mrb[0].mxu0
        %v1022 = vadd.f32 %v950, %v1021
        %v1023 = vpop.f32.mrb[0].mxu0
        %1024 = vmatprep.mubr.bf16.mxu0 %v675
        %1025 = vmatmul.mubr.bf16.gmra.mrb[0].mxu0 %v674
        %v1026 = vpop.f32.mrb[0].mxu0
        %v1027 = vadd.f32 %v955, %v1026
        %v1028 = vpop.f32.mrb[0].mxu0
        %v1029 = vpop.f32.mrb[0].mxu0
        %v1030 = vpop.f32.mrb[0].mxu0
        %1031 = vdwg.mxu0
        %v1032 = vmax.f32 %v995, 0.0
        %v1033 = vmax.f32 %v998, 0.0
        %v1034 = vmax.f32 %v1003, 0.0
        %v1035 = vmax.f32 %v1006, 0.0
        %v1036 = vmax.f32 %v1011, 0.0
        %v1037 = vmax.f32 %v1014, 0.0
        %v1038 = vmax.f32 %v1019, 0.0
        %v1039 = vmax.f32 %v1022, 0.0
        %v1040 = vmax.f32 %v1027, 0.0
        %1041 = vst [vmem:[%s500] sm:$0xff] %v1032
        %1042 = vst [vmem:[%s500 + $0x8] sm:$0xff] %v1033
        %1043 = vst [vmem:[%s500 + $0x10] sm:$0xff] %v1034
        %1044 = vst [vmem:[%s500 + $0x18] sm:$0xff] %v1035
        %1045 = vst [vmem:[%s500 + $0x20] sm:$0xff] %v1036
        %1046 = vst [vmem:[%s500 + $0x28] sm:$0xff] %v1037
        %1047 = vst [vmem:[%s500 + $0x30] sm:$0xff] %v1038
        %1048 = vst [vmem:[%s500 + $0x38] sm:$0xff] %v1039
        %1049 = vst [vmem:[%s500 + $0x40] sm:$0xff] %v1040
        %s1050 = sand.u32 %s114, 1
        %s1051 = sand.u32 %s114, 1
        %s1052 = smul.addr %s1051, 72
        %s1053 = scalar_lea.vmem [#allocation3], %s1052
        // Predicated region
        $region74: #{ae_forward.16} parent=68 // pred_check
          %p1054 = pneg %p124
        $region75: #{ae_forward.16} parent=68 // pred_check_branch
          %1056 = sbr.rel (%p1054) target = $region77
        $region76: #{ae_forward.16} parent=68 // pred_region
          %s1057 = smul.u32 9, %s18
          %s1058 = smul.addr %s1057, 2
          %s1059 = sadd.s32 %s19, %s1058
          %s1060 = smul.addr %s1059, 8
          %s1061 = scalar_lea.vmem %s3, %s1060
          // Predicated region
          $region78: #{ae_forward.16} parent=76 // pred_check
            _
          $region79: #{ae_forward.16} parent=76 // pred_check_branch
            %1063 = sbr.rel (0) target = $region81
          $region80: #{ae_forward.16} parent=76 // pred_region
            // Predicated region
            $region82: #{ae_forward.16} parent=80 // pred_check
              _
            $region83: #{ae_forward.16} parent=80 // pred_check_branch
              %1065 = sbr.rel (0) target = $region85
            $region84: #{ae_forward.16} parent=80 // pred_region
              // Predicated region
              $region97: #{ae_forward.16} parent=84 // pred_check
                _
              $region98: #{ae_forward.16} parent=84 // pred_check_branch
                %1096 = sbr.rel (0) target = $region100
              $region99: #{ae_forward.16} parent=84 // pred_region
                loop: start=0, step=1, limit=1
                $region101: #{ae_forward.16} parent=99 // loop_pre_header
                  _
                $region102: #{ae_forward.16} parent=99 // loop_header
                  %s1098 = sphi 0, %s1102
                  %p1099 = scmp.ge.s32.totalorder %s1098, 1
                  %s1103 = sphi %s1053, %s1053
                  %s1104 = sphi %s1061, %s1061
                $region103: #{ae_forward.16} parent=99 // loop_header_branch
                  %1101 = sbr.rel (%p1099) target = $region107
                $region104: #{ae_forward.16} parent=99 // loop_body
                  %v1105 = vld [vmem:[%s1103] sm:$0xff]
                  %1106 = vst [vmem:[%s1104] sm:$0xff] %v1105
                  %v1107 = vld [vmem:[%s1103 + $0x8] sm:$0xff]
                  %1108 = vst [vmem:[%s1104 + $0x10] sm:$0xff] %v1107
                  %v1109 = vld [vmem:[%s1103 + $0x10] sm:$0xff]
                  %1110 = vst [vmem:[%s1104 + $0x20] sm:$0xff] %v1109
                  %v1111 = vld [vmem:[%s1103 + $0x18] sm:$0xff]
                  %1112 = vst [vmem:[%s1104 + $0x30] sm:$0xff] %v1111
                  %v1113 = vld [vmem:[%s1103 + $0x20] sm:$0xff]
                  %1114 = vst [vmem:[%s1104 + $0x40] sm:$0xff] %v1113
                  %v1115 = vld [vmem:[%s1103 + $0x28] sm:$0xff]
                  %1116 = vst [vmem:[%s1104 + $0x50] sm:$0xff] %v1115
                  %v1117 = vld [vmem:[%s1103 + $0x30] sm:$0xff]
                  %1118 = vst [vmem:[%s1104 + $0x60] sm:$0xff] %v1117
                  %v1119 = vld [vmem:[%s1103 + $0x38] sm:$0xff]
                  %1120 = vst [vmem:[%s1104 + $0x70] sm:$0xff] %v1119
                  %v1121 = vld [vmem:[%s1103 + $0x40] sm:$0xff]
                  %1122 = vst [vmem:[%s1104 + $0x80] sm:$0xff] %v1121
                $region105: #{ae_forward.16} parent=99 // loop_footer
                  %s1102 = sadd.s32 1, %s1098
                $region106: #{ae_forward.16} parent=99 // loop_footer_branch
                  %1097 = sbr.rel target = $region102
                $region107: #{ae_forward.16} parent=99 // loop_exit
                  _
              $region100: #{ae_forward.16} parent=84 // pred_fallthru
                _
              // Predicated region
              $region108: #{ae_forward.16} parent=84 // pred_check
                _
              $region109: #{ae_forward.16} parent=84 // pred_check_branch
                %1124 = sbr.rel target = $region111
              $region110: #{ae_forward.16} parent=84 // pred_region
                _
              $region111: #{ae_forward.16} parent=84 // pred_fallthru
                _
            $region85: #{ae_forward.16} parent=80 // pred_fallthru
              _
            // Predicated region
            $region86: #{ae_forward.16} parent=80 // pred_check
              _
            $region87: #{ae_forward.16} parent=80 // pred_check_branch
              %1067 = sbr.rel target = $region89
            $region88: #{ae_forward.16} parent=80 // pred_region
              loop: start=0, step=1, limit=1
              $region90: #{ae_forward.16} parent=88 // loop_pre_header
                _
              $region91: #{ae_forward.16} parent=88 // loop_header
                %s1070 = sphi 0, %s1074
                %p1071 = scmp.ge.s32.totalorder %s1070, 1
                %s1075 = sphi %s1053, %s1053
                %s1076 = sphi %s1061, %s1061
              $region92: #{ae_forward.16} parent=88 // loop_header_branch
                %1073 = sbr.rel (%p1071) target = $region96
              $region93: #{ae_forward.16} parent=88 // loop_body
                %v1077 = vld [vmem:[%s1075] sm:$0xff]
                %1078 = vst [vmem:[%s1076] sm:$0xff] %v1077
                %v1079 = vld [vmem:[%s1075 + $0x8] sm:$0xff]
                %1080 = vst [vmem:[%s1076 + $0x10] sm:$0xff] %v1079
                %v1081 = vld [vmem:[%s1075 + $0x10] sm:$0xff]
                %1082 = vst [vmem:[%s1076 + $0x20] sm:$0xff] %v1081
                %v1083 = vld [vmem:[%s1075 + $0x18] sm:$0xff]
                %1084 = vst [vmem:[%s1076 + $0x30] sm:$0xff] %v1083
                %v1085 = vld [vmem:[%s1075 + $0x20] sm:$0xff]
                %1086 = vst [vmem:[%s1076 + $0x40] sm:$0xff] %v1085
                %v1087 = vld [vmem:[%s1075 + $0x28] sm:$0xff]
                %1088 = vst [vmem:[%s1076 + $0x50] sm:$0xff] %v1087
                %v1089 = vld [vmem:[%s1075 + $0x30] sm:$0xff]
                %1090 = vst [vmem:[%s1076 + $0x60] sm:$0xff] %v1089
                %v1091 = vld [vmem:[%s1075 + $0x38] sm:$0xff]
                %1092 = vst [vmem:[%s1076 + $0x70] sm:$0xff] %v1091
                %v1093 = vld [vmem:[%s1075 + $0x40] sm:$0xff]
                %1094 = vst [vmem:[%s1076 + $0x80] sm:$0xff] %v1093
              $region94: #{ae_forward.16} parent=88 // loop_footer
                %s1074 = sadd.s32 1, %s1070
              $region95: #{ae_forward.16} parent=88 // loop_footer_branch
                %1069 = sbr.rel target = $region91
              $region96: #{ae_forward.16} parent=88 // loop_exit
                _
            $region89: #{ae_forward.16} parent=80 // pred_fallthru
              _
          $region81: #{ae_forward.16} parent=76 // pred_fallthru
            _
          %1125 = vnop
        $region77: #{ae_forward.16} parent=68 // pred_fallthru
          _
      $region69: #{ae_forward.16} parent=5 // pred_fallthru
        _
      %p1126 = scmp.le.s32.totalorder 2, %s9
      // Predicated region
      $region112: #{ae_forward.16} parent=5 // pred_check
        %p1127 = pneg %p1126
      $region113: #{ae_forward.16} parent=5 // pred_check_branch
        %1129 = sbr.rel (%p1127) target = $region115
      $region114: #{ae_forward.16} parent=5 // pred_region
        %s1130 = ssub.s32 %s9, 2
        // Predicated region
        $region116: #{ae_forward.16} parent=114 // pred_check
          %p1131 = pneg %p130
        $region117: #{ae_forward.16} parent=114 // pred_check_branch
          %1133 = sbr.rel (%p1131) target = $region119
        $region118: #{ae_forward.16} parent=114 // pred_region
          %s1134 = sand.u32 %s115, 1
          %s1135 = sand.u32 %s115, 1
          %s1136 = smul.addr %s1135, 72
          %s1137 = scalar_lea.vmem [#allocation3], %s1136
        $region119: #{ae_forward.16} parent=114 // pred_fallthru
          _
      $region115: #{ae_forward.16} parent=5 // pred_fallthru
        _
    $region6: #{ae_forward.16} parent=1 // loop_footer
      %s13 = sadd.s32 1, %s9
    $region7: #{ae_forward.16} parent=1 // loop_footer_branch
      %8 = sbr.rel target = $region3
    $region8: #{ae_forward.16} parent=1 // loop_exit
      _

// kernel: ae_forward.17
$region0: #{ae_forward.17}
  #allocation0 [shape = 'u32[]', space=smem, size = 0x4, offset = 0x4, fixed_abs, tag = 'smem constant byte address 0x4 - core index']
  #allocation1 [shape = 'u32[144,128]{1,0:T(1,128)}', space=vmem, size = 0x12000, scoped, tag = 'internal scratch']
  %s0 = inlined_call_operand.vmem [shape: bf16[288,256], index: 0, kind: input, shape index: {}]
  %s1 = inlined_call_operand.vmem [shape: bf16[256,128], index: 1, kind: input, shape index: {}]
  %s2 = inlined_call_operand.vmem [shape: f32[1,128], index: 2, kind: input, shape index: {}]
  %s3 = inlined_call_operand.vmem [shape: f32[288,128], index: 3, kind: output, shape index: {}]
  %s4 = sld [smem:[#allocation0]]
  $region45: #{ae_forward.17} parent=0
    _
  %s6 = ssub.s32 1, %s4
  %s7 = scalar_select 0, %s6, %s4
  loop: start=0, step=1, limit=4
  $region2: #{ae_forward.17} parent=0 // loop_pre_header
    _
  $region3: #{ae_forward.17} parent=0 // loop_header
    %s9 = sphi 0, %s13
    %p10 = scmp.ge.s32.totalorder %s9, 4
    %s16 = sphi 0, %s28
    %s17 = sphi 0, %s24
    %s18 = sphi 0, %s16
    %s19 = sphi 0, %s17
    %s20 = sphi 0, %s18
    %s21 = sphi 0, %s19
    %s31 = sphi 0, %s33
    %s34 = sphi 0, %s31
    %s35 = sphi 0, %s34
    %s51 = sphi 0, %s35
    %s57 = sphi 0, %s59
    %s60 = sphi 0, %s57
    %s61 = sphi 0, %s60
    %s77 = sphi 0, %s61
    %s83 = sphi 0, %s85
    %s86 = sphi 0, %s83
    %s87 = sphi 0, %s86
    %s103 = sphi 0, %s87
    %s111 = sphi 0, %s113
    %s114 = sphi 0, %s111
    %s115 = sphi 0, %s114
    %s131 = sphi 0, %s115
  $region4: #{ae_forward.17} parent=0 // loop_header_branch
    %12 = sbr.rel (%p10) target = $region8
  $region5: #{ae_forward.17} parent=0 // loop_body
    %s14 = ssub.s32 %s9, 1
    %s15 = ssub.s32 %s9, 2
    %s22 = sadd.s32 1, %s17
    %p23 = scmp.ge.s32.totalorder %s22, 1
    %s24 = scalar_select %p23, 0, %s22
    %s25 = sadd.s32 1, %s16
    %s26 = scalar_select %p23, %s25, %s16
    %p27 = scmp.ge.s32.totalorder %s26, 2
    %s28 = scalar_select %p27, 0, %s26
    %s29 = ssub.s32 %s16, %s28
    %p30 = scmp.eq.s32.totalorder %s29, 0
    %s32 = sadd.s32 %s31, 1
    %s33 = scalar_select %p30, %s31, %s32
    %p36 = pneg %p30
    %p37 = scmp.eq.s32.totalorder %s9, 1
    %p38 = por %p36, %p37
    %p39 = scmp.ne.s32.totalorder %s31, %s34
    %p40 = scmp.eq.s32.totalorder %s9, 0
    %p41 = por %p39, %p40
    %p42 = scmp.ne.s32.totalorder %s31, %s34
    %p43 = scmp.eq.s32.totalorder %s14, 1
    %p44 = por %p42, %p43
    %p45 = scmp.ne.s32.totalorder %s34, %s35
    %p46 = scmp.eq.s32.totalorder %s14, 0
    %p47 = por %p45, %p46
    %p48 = scmp.ne.s32.totalorder %s34, %s35
    %p49 = scmp.eq.s32.totalorder %s15, 1
    %p50 = por %p48, %p49
    %p52 = scmp.ne.s32.totalorder %s35, %s51
    %p53 = scmp.eq.s32.totalorder %s15, 0
    %p54 = por %p52, %p53
    %s55 = ssub.s32 %s17, %s24
    %p56 = scmp.eq.s32.totalorder %s55, 0
    %s58 = sadd.s32 %s57, 1
    %s59 = scalar_select %p56, %s57, %s58
    %p62 = pneg %p56
    %p63 = scmp.eq.s32.totalorder %s9, 1
    %p64 = por %p62, %p63
    %p65 = scmp.ne.s32.totalorder %s57, %s60
    %p66 = scmp.eq.s32.totalorder %s9, 0
    %p67 = por %p65, %p66
    %p68 = scmp.ne.s32.totalorder %s57, %s60
    %p69 = scmp.eq.s32.totalorder %s14, 1
    %p70 = por %p68, %p69
    %p71 = scmp.ne.s32.totalorder %s60, %s61
    %p72 = scmp.eq.s32.totalorder %s14, 0
    %p73 = por %p71, %p72
    %p74 = scmp.ne.s32.totalorder %s60, %s61
    %p75 = scmp.eq.s32.totalorder %s15, 1
    %p76 = por %p74, %p75
    %p78 = scmp.ne.s32.totalorder %s61, %s77
    %p79 = scmp.eq.s32.totalorder %s15, 0
    %p80 = por %p78, %p79
    %s81 = ssub.s32 %s17, %s24
    %p82 = scmp.eq.s32.totalorder %s81, 0
    %s84 = sadd.s32 %s83, 1
    %s85 = scalar_select %p82, %s83, %s84
    %p88 = pneg %p82
    %p89 = scmp.eq.s32.totalorder %s9, 1
    %p90 = por %p88, %p89
    %p91 = scmp.ne.s32.totalorder %s83, %s86
    %p92 = scmp.eq.s32.totalorder %s9, 0
    %p93 = por %p91, %p92
    %p94 = scmp.ne.s32.totalorder %s83, %s86
    %p95 = scmp.eq.s32.totalorder %s14, 1
    %p96 = por %p94, %p95
    %p97 = scmp.ne.s32.totalorder %s86, %s87
    %p98 = scmp.eq.s32.totalorder %s14, 0
    %p99 = por %p97, %p98
    %p100 = scmp.ne.s32.totalorder %s86, %s87
    %p101 = scmp.eq.s32.totalorder %s15, 1
    %p102 = por %p100, %p101
    %p104 = scmp.ne.s32.totalorder %s87, %s103
    %p105 = scmp.eq.s32.totalorder %s15, 0
    %p106 = por %p104, %p105
    %s107 = ssub.s32 %s16, %s28
    %s108 = ssub.s32 %s17, %s24
    %s109 = sor.u32 %s107, %s108
    %p110 = scmp.eq.s32.totalorder %s109, 0
    %s112 = sadd.s32 %s111, 1
    %s113 = scalar_select %p110, %s111, %s112
    %p116 = pneg %p110
    %p117 = scmp.eq.s32.totalorder %s9, 1
    %p118 = por %p116, %p117
    %p119 = scmp.ne.s32.totalorder %s111, %s114
    %p120 = scmp.eq.s32.totalorder %s9, 0
    %p121 = por %p119, %p120
    %p122 = scmp.ne.s32.totalorder %s111, %s114
    %p123 = scmp.eq.s32.totalorder %s14, 1
    %p124 = por %p122, %p123
    %p125 = scmp.ne.s32.totalorder %s114, %s115
    %p126 = scmp.eq.s32.totalorder %s14, 0
    %p127 = por %p125, %p126
    %p128 = scmp.ne.s32.totalorder %s114, %s115
    %p129 = scmp.eq.s32.totalorder %s15, 1
    %p130 = por %p128, %p129
    %p132 = scmp.ne.s32.totalorder %s115, %s131
    %p133 = scmp.eq.s32.totalorder %s15, 0
    %p134 = por %p132, %p133
    %p135 = scmp.le.s32.totalorder 1, %s9
    %p136 = scmp.lt.s32.totalorder %s9, 3
    %p137 = pnand %p135, %p136
    %p138 = pneg %p137
    // Predicated region
    $region9: #{ae_forward.17} parent=5 // pred_check
      _
    $region10: #{ae_forward.17} parent=5 // pred_check_branch
      %140 = sbr.rel (%p137) target = $region12
    $region11: #{ae_forward.17} parent=5 // pred_region
      %s141 = ssub.s32 %s9, 1
      // Predicated region
      $region13: #{ae_forward.17} parent=11 // pred_check
        %p142 = pneg %p73
      $region14: #{ae_forward.17} parent=11 // pred_check_branch
        %144 = sbr.rel (%p142) target = $region16
      $region15: #{ae_forward.17} parent=11 // pred_region
        %p145 = scmp.lt.s32.totalorder %s19, 0
        %s146 = scalar_select %p145, %s19, 0
        %s147 = smul.addr %s146, 4
        %s148 = scalar_lea.vmem %s1, %s147
      $region16: #{ae_forward.17} parent=11 // pred_fallthru
        _
      // Predicated region
      $region17: #{ae_forward.17} parent=11 // pred_check
        %p149 = pneg %p99
      $region18: #{ae_forward.17} parent=11 // pred_check_branch
        %151 = sbr.rel (%p149) target = $region20
      $region19: #{ae_forward.17} parent=11 // pred_region
        %p152 = scmp.lt.s32.totalorder %s19, 0
        %s153 = scalar_select %p152, %s19, 0
        %s154 = scalar_lea.vmem %s2, %s153
      $region20: #{ae_forward.17} parent=11 // pred_fallthru
        _
    $region12: #{ae_forward.17} parent=5 // pred_fallthru
      _
    %p155 = scmp.lt.s32.totalorder %s9, 2
    // Predicated region
    $region21: #{ae_forward.17} parent=5 // pred_check
      %p156 = pneg %p155
    $region22: #{ae_forward.17} parent=5 // pred_check_branch
      %158 = sbr.rel (%p156) target = $region24
    $region23: #{ae_forward.17} parent=5 // pred_region
      // Predicated region
      $region25: #{ae_forward.17} parent=23 // pred_check
        %p159 = pneg %p41
      $region26: #{ae_forward.17} parent=23 // pred_check_branch
        %161 = sbr.rel (%p159) target = $region28
      $region27: #{ae_forward.17} parent=23 // pred_region
        %s162 = smul.u32 18, %s16
        %p163 = scmp.lt.s32.totalorder %s162, 35
        %s164 = scalar_select %p163, %s162, 35
        %s165 = smul.addr %s164, 2
        %s166 = smul.addr %s165, 4
        %s167 = scalar_lea.vmem %s0, %s166
        %s168 = smul.u32 18, %s16
      $region28: #{ae_forward.17} parent=23 // pred_fallthru
        _
    $region24: #{ae_forward.17} parent=5 // pred_fallthru
      _
    %p169 = scmp.le.s32.totalorder 1, %s9
    %p170 = scmp.lt.s32.totalorder %s9, 3
    %p171 = pnand %p169, %p170
    %p172 = pneg %p171
    // Predicated region
    $region29: #{ae_forward.17} parent=5 // pred_check
      _
    $region30: #{ae_forward.17} parent=5 // pred_check_branch
      %174 = sbr.rel (%p171) target = $region32
    $region31: #{ae_forward.17} parent=5 // pred_region
      %s175 = ssub.s32 %s9, 1
      %s176 = smul.u32 18, %s18
      %p177 = scmp.lt.s32.totalorder %s176, 35
      %s178 = scalar_select %p177, %s176, 35
      %s179 = smul.addr %s178, 2
      %s180 = smul.addr %s179, 4
      %s181 = scalar_lea.vmem %s0, %s180
      %p182 = pneg %p47
      %p183 = pneg %p44
      %p184 = scmp.lt.s32.totalorder %s19, 0
      %s185 = scalar_select %p184, %s19, 0
      %s186 = smul.addr %s185, 4
      %s187 = scalar_lea.vmem %s1, %s186
      %p188 = pneg %p73
      %p189 = pneg %p70
      %p190 = scmp.lt.s32.totalorder %s19, 0
      %s191 = scalar_select %p190, %s19, 0
      %s192 = scalar_lea.vmem %s2, %s191
      %p193 = pneg %p99
      %p194 = pneg %p96
      %p195 = pneg %p127
      %p196 = pneg %p124
      %s197 = smul.u32 18, %s18
      %p198 = scmp.lt.s32.totalorder %s197, 35
      %s199 = scalar_select %p198, %s197, 35
      %p200 = scmp.lt.s32.totalorder %s19, 0
      %s201 = scalar_select %p200, %s19, 0
      %s202 = sadd.s32 %s201, %s199
      %s203 = smul.addr %s202, 8
      %s204 = scalar_lea.vmem %s3, %s203
      %s205 = smul.u32 18, %s18
      %p206 = scmp.lt.s32.totalorder %s205, 35
      %s207 = scalar_select %p206, %s205, 35
      %s208 = smul.addr %s207, 2
      %s209 = smul.addr %s208, 4
      %s210 = scalar_lea.vmem %s0, %s209
      %s211 = smul.u32 18, %s18
      %p212 = scmp.lt.s32.totalorder %s19, 0
      %s213 = scalar_select %p212, %s19, 0
      %s214 = smul.addr %s213, 4
      %s215 = scalar_lea.vmem %s1, %s214
      %p216 = scmp.lt.s32.totalorder %s19, 0
      %s217 = scalar_select %p216, %s19, 0
      %s218 = scalar_lea.vmem %s2, %s217
      %s219 = smul.u32 18, %s18
      %p220 = scmp.lt.s32.totalorder %s219, 35
      %s221 = scalar_select %p220, %s219, 35
      %p222 = scmp.lt.s32.totalorder %s19, 0
      %s223 = scalar_select %p222, %s19, 0
      %s224 = sadd.s32 %s223, %s221
      %s225 = smul.addr %s224, 8
      %s226 = scalar_lea.vmem %s3, %s225
      %s227 = smul.u32 18, %s18
      %v229 = vld [vmem:[%s210] sm:$0xff]
      %v230 = vld [vmem:[%s210 + $0x8] sm:$0xff]
      %v231 = vld [vmem:[%s210 + $0x10] sm:$0xff]
      %v232 = vld [vmem:[%s210 + $0x18] sm:$0xff]
      %v233 = vld [vmem:[%s210 + $0x20] sm:$0xff]
      %v234 = vld [vmem:[%s210 + $0x28] sm:$0xff]
      %v235 = vld [vmem:[%s210 + $0x30] sm:$0xff]
      %v236 = vld [vmem:[%s210 + $0x38] sm:$0xff]
      %v237 = vld [vmem:[%s210 + $0x40] sm:$0xff]
      %v238 = vld [vmem:[%s210 + $0x48] sm:$0xff]
      %v239 = vld [vmem:[%s210 + $0x50] sm:$0xff]
      %v240 = vld [vmem:[%s210 + $0x58] sm:$0xff]
      %v241 = vld [vmem:[%s210 + $0x60] sm:$0xff]
      %v242 = vld [vmem:[%s210 + $0x68] sm:$0xff]
      %v243 = vld [vmem:[%s210 + $0x70] sm:$0xff]
      %v244 = vld [vmem:[%s210 + $0x78] sm:$0xff]
      %v245 = vld [vmem:[%s210 + $0x80] sm:$0xff]
      %v246 = vld [vmem:[%s210 + $0x88] sm:$0xff]
      %v247 = vld [vmem:[%s215] sm:$0xf]
      %v248 = vld [vmem:[%s215 + $0x4] sm:$0xf]
      %v249 = vld [vmem:[%s215 + $0x8] sm:$0xf]
      %v250 = vld [vmem:[%s215 + $0xc] sm:$0xf]
      %v251 = vld [vmem:[%s215 + $0x10] sm:$0xf]
      %v252 = vld [vmem:[%s215 + $0x14] sm:$0xf]
      %v253 = vld [vmem:[%s215 + $0x18] sm:$0xf]
      %v254 = vld [vmem:[%s215 + $0x1c] sm:$0xf]
      %v255 = vld [vmem:[%s215 + $0x20] sm:$0xf]
      %v256 = vld [vmem:[%s215 + $0x24] sm:$0xf]
      %v257 = vld [vmem:[%s215 + $0x28] sm:$0xf]
      %v258 = vld [vmem:[%s215 + $0x2c] sm:$0xf]
      %v259 = vld [vmem:[%s215 + $0x30] sm:$0xf]
      %v260 = vld [vmem:[%s215 + $0x34] sm:$0xf]
      %v261 = vld [vmem:[%s215 + $0x38] sm:$0xf]
      %v262 = vld [vmem:[%s215 + $0x3c] sm:$0xf]
      %v263 = vld [vmem:[%s215 + $0x40] sm:$0xf]
      %v264 = vld [vmem:[%s215 + $0x44] sm:$0xf]
      %v265 = vld [vmem:[%s215 + $0x48] sm:$0xf]
      %v266 = vld [vmem:[%s215 + $0x4c] sm:$0xf]
      %v267 = vld [vmem:[%s215 + $0x50] sm:$0xf]
      %v268 = vld [vmem:[%s215 + $0x54] sm:$0xf]
      %v269 = vld [vmem:[%s215 + $0x58] sm:$0xf]
      %v270 = vld [vmem:[%s215 + $0x5c] sm:$0xf]
      %v271 = vld [vmem:[%s215 + $0x60] sm:$0xf]
      %v272 = vld [vmem:[%s215 + $0x64] sm:$0xf]
      %v273 = vld [vmem:[%s215 + $0x68] sm:$0xf]
      %v274 = vld [vmem:[%s215 + $0x6c] sm:$0xf]
      %v275 = vld [vmem:[%s215 + $0x70] sm:$0xf]
      %v276 = vld [vmem:[%s215 + $0x74] sm:$0xf]
      %v277 = vld [vmem:[%s215 + $0x78] sm:$0xf]
      %v278 = vld [vmem:[%s215 + $0x7c] sm:$0xf]
      %v279 = vld [vmem:[%s218] sm:$0x1]
      %v281 = vlaneseq
      %v282 = vshrl.u32 %v281, 7
      %v283 = vsub.s32 0, %v282
      %v284 = vrot.slane %v279, %v283
      %v304 = vunpack.c.l.b16 %v229
      %v305 = vunpack.c.h.b16 %v229
      %v306 = vunpack.c.l.b16 %v230
      %v307 = vunpack.c.h.b16 %v230
      %v308 = vunpack.c.l.b16 %v231
      %v309 = vunpack.c.h.b16 %v231
      %v310 = vunpack.c.l.b16 %v232
      %v311 = vunpack.c.h.b16 %v232
      %v312 = vunpack.c.l.b16 %v233
      %v313 = vunpack.c.h.b16 %v233
      %v314 = vunpack.c.l.b16 %v234
      %v315 = vunpack.c.h.b16 %v234
      %v316 = vunpack.c.l.b16 %v235
      %v317 = vunpack.c.h.b16 %v235
      %v318 = vunpack.c.l.b16 %v236
      %v319 = vunpack.c.h.b16 %v236
      %v320 = vunpack.c.l.b16 %v237
      %v321 = vunpack.c.h.b16 %v237
      %v322 = vunpack.c.l.b16 %v238
      %v323 = vunpack.c.h.b16 %v238
      %v324 = vunpack.c.l.b16 %v239
      %v325 = vunpack.c.h.b16 %v239
      %v326 = vunpack.c.l.b16 %v240
      %v327 = vunpack.c.h.b16 %v240
      %v328 = vunpack.c.l.b16 %v241
      %v329 = vunpack.c.h.b16 %v241
      %v330 = vunpack.c.l.b16 %v242
      %v331 = vunpack.c.h.b16 %v242
      %v332 = vunpack.c.l.b16 %v243
      %v333 = vunpack.c.h.b16 %v243
      %v334 = vunpack.c.l.b16 %v244
      %v335 = vunpack.c.h.b16 %v244
      %v336 = vunpack.c.l.b16 %v245
      %v337 = vunpack.c.h.b16 %v245
      %v338 = vunpack.c.l.b16 %v246
      %v339 = vunpack.c.h.b16 %v246
      %v340 = vpack.c.b16 %v306, %v304
      %v341 = vpack.c.b16 %v307, %v305
      %v342 = vpack.c.b16 %v310, %v308
      %v343 = vpack.c.b16 %v311, %v309
      %v344 = vpack.c.b16 %v314, %v312
      %v345 = vpack.c.b16 %v315, %v313
      %v346 = vpack.c.b16 %v318, %v316
      %v347 = vpack.c.b16 %v319, %v317
      %v348 = vpack.c.b16 %v322, %v320
      %v349 = vpack.c.b16 %v323, %v321
      %v350 = vpack.c.b16 %v326, %v324
      %v351 = vpack.c.b16 %v327, %v325
      %v352 = vpack.c.b16 %v330, %v328
      %v353 = vpack.c.b16 %v331, %v329
      %v354 = vpack.c.b16 %v334, %v332
      %v355 = vpack.c.b16 %v335, %v333
      %v356 = vpack.c.b16 %v338, %v336
      %v357 = vpack.c.b16 %v339, %v337
      %v408 = vunpack.c.l.b16 %v247
      %v409 = vunpack.c.l.b16 %v248
      %v410 = vunpack.c.l.b16 %v249
      %v411 = vunpack.c.l.b16 %v250
      %v412 = vunpack.c.l.b16 %v251
      %v413 = vunpack.c.l.b16 %v252
      %v414 = vunpack.c.l.b16 %v253
      %v415 = vunpack.c.l.b16 %v254
      %v416 = vunpack.c.l.b16 %v255
      %v417 = vunpack.c.l.b16 %v256
      %v418 = vunpack.c.l.b16 %v257
      %v419 = vunpack.c.l.b16 %v258
      %v420 = vunpack.c.l.b16 %v259
      %v421 = vunpack.c.l.b16 %v260
      %v422 = vunpack.c.l.b16 %v261
      %v423 = vunpack.c.l.b16 %v262
      %v424 = vunpack.c.l.b16 %v263
      %v425 = vunpack.c.l.b16 %v264
      %v426 = vunpack.c.l.b16 %v265
      %v427 = vunpack.c.l.b16 %v266
      %v428 = vunpack.c.l.b16 %v267
      %v429 = vunpack.c.l.b16 %v268
      %v430 = vunpack.c.l.b16 %v269
      %v431 = vunpack.c.l.b16 %v270
      %v432 = vunpack.c.l.b16 %v271
      %v433 = vunpack.c.l.b16 %v272
      %v434 = vunpack.c.l.b16 %v273
      %v435 = vunpack.c.l.b16 %v274
      %v436 = vunpack.c.l.b16 %v275
      %v437 = vunpack.c.l.b16 %v276
      %v438 = vunpack.c.l.b16 %v277
      %v439 = vunpack.c.l.b16 %v278
      %v440 = vpack.c.b16 %v409, %v408
      %v441 = vpack.c.b16 %v411, %v410
      %v442 = vpack.c.b16 %v413, %v412
      %v443 = vpack.c.b16 %v415, %v414
      %v444 = vpack.c.b16 %v417, %v416
      %v445 = vpack.c.b16 %v419, %v418
      %v446 = vpack.c.b16 %v421, %v420
      %v447 = vpack.c.b16 %v423, %v422
      %v448 = vpack.c.b16 %v425, %v424
      %v449 = vpack.c.b16 %v427, %v426
      %v450 = vpack.c.b16 %v429, %v428
      %v451 = vpack.c.b16 %v431, %v430
      %v452 = vpack.c.b16 %v433, %v432
      %v453 = vpack.c.b16 %v435, %v434
      %v454 = vpack.c.b16 %v437, %v436
      %v455 = vpack.c.b16 %v439, %v438
      %472 = vmatprep.subr.bf16.mxu0 0
      %473 = vmatpush1.bf16.msra.mxu0 %v440
      %474 = vmatprep.subr.bf16.mxu0 0
      %475 = vmatpush1.bf16.msra.mxu0 %v441
      %476 = vmatprep.subr.bf16.mxu0 0
      %477 = vmatpush1.bf16.msra.mxu0 %v442
      %478 = vmatprep.subr.bf16.mxu0 0
      %479 = vmatpush1.bf16.msra.mxu0 %v443
      %480 = vmatprep.subr.bf16.mxu0 0
      %481 = vmatpush1.bf16.msra.mxu0 %v444
      %482 = vmatprep.subr.bf16.mxu0 0
      %483 = vmatpush1.bf16.msra.mxu0 %v445
      %484 = vmatprep.subr.bf16.mxu0 0
      %485 = vmatpush1.bf16.msra.mxu0 %v446
      %486 = vmatprep.subr.bf16.mxu0 0
      %487 = vmatpush1.bf16.msra.mxu0 %v447
      %488 = vmatprep.subr.bf16.mxu0 0
      %489 = vmatpush1.bf16.msra.mxu0 %v448
      %490 = vmatprep.subr.bf16.mxu0 0
      %491 = vmatpush1.bf16.msra.mxu0 %v449
      %492 = vmatprep.subr.bf16.mxu0 0
      %493 = vmatpush1.bf16.msra.mxu0 %v450
      %494 = vmatprep.subr.bf16.mxu0 0
      %495 = vmatpush1.bf16.msra.mxu0 %v451
      %496 = vmatprep.subr.bf16.mxu0 0
      %497 = vmatpush1.bf16.msra.mxu0 %v452
      %498 = vmatprep.subr.bf16.mxu0 0
      %499 = vmatpush1.bf16.msra.mxu0 %v453
      %500 = vmatprep.subr.bf16.mxu0 0
      %501 = vmatpush1.bf16.msra.mxu0 %v454
      %502 = vmatprep.subr.bf16.mxu0 0
      %503 = vmatpush1.bf16.msra.mxu0 %v455
      %504 = vmatprep.mubr.bf16.mxu0 %v341
      %505 = vmatmul.mubr.bf16.gmra.mrb[0].mxu0 %v340
      %v506 = vpop.f32.mrb[0].mxu0
      %v507 = vadd.f32 %v284, %v506
      %v508 = vpop.f32.mrb[0].mxu0
      %v509 = vpop.f32.mrb[0].mxu0
      %v510 = vadd.f32 %v284, %v509
      %v511 = vpop.f32.mrb[0].mxu0
      %512 = vmatprep.mubr.bf16.mxu0 %v343
      %513 = vmatmul.mubr.bf16.gmra.mrb[0].mxu0 %v342
      %v514 = vpop.f32.mrb[0].mxu0
      %v515 = vadd.f32 %v284, %v514
      %v516 = vpop.f32.mrb[0].mxu0
      %v517 = vpop.f32.mrb[0].mxu0
      %v518 = vadd.f32 %v284, %v517
      %v519 = vpop.f32.mrb[0].mxu0
      %520 = vmatprep.mubr.bf16.mxu0 %v345
      %521 = vmatmul.mubr.bf16.gmra.mrb[0].mxu0 %v344
      %v522 = vpop.f32.mrb[0].mxu0
      %v523 = vadd.f32 %v284, %v522
      %v524 = vpop.f32.mrb[0].mxu0
      %v525 = vpop.f32.mrb[0].mxu0
      %v526 = vadd.f32 %v284, %v525
      %v527 = vpop.f32.mrb[0].mxu0
      %528 = vmatprep.mubr.bf16.mxu0 %v347
      %529 = vmatmul.mubr.bf16.gmra.mrb[0].mxu0 %v346
      %v530 = vpop.f32.mrb[0].mxu0
      %v531 = vadd.f32 %v284, %v530
      %v532 = vpop.f32.mrb[0].mxu0
      %v533 = vpop.f32.mrb[0].mxu0
      %v534 = vadd.f32 %v284, %v533
      %v535 = vpop.f32.mrb[0].mxu0
      %536 = vmatprep.mubr.bf16.mxu0 %v349
      %537 = vmatmul.mubr.bf16.gmra.mrb[0].mxu0 %v348
      %v538 = vpop.f32.mrb[0].mxu0
      %v539 = vadd.f32 %v284, %v538
      %v540 = vpop.f32.mrb[0].mxu0
      %v541 = vpop.f32.mrb[0].mxu0
      %v542 = vadd.f32 %v284, %v541
      %v543 = vpop.f32.mrb[0].mxu0
      %544 = vmatprep.mubr.bf16.mxu0 %v351
      %545 = vmatmul.mubr.bf16.gmra.mrb[0].mxu0 %v350
      %v546 = vpop.f32.mrb[0].mxu0
      %v547 = vadd.f32 %v284, %v546
      %v548 = vpop.f32.mrb[0].mxu0
      %v549 = vpop.f32.mrb[0].mxu0
      %v550 = vadd.f32 %v284, %v549
      %v551 = vpop.f32.mrb[0].mxu0
      %552 = vmatprep.mubr.bf16.mxu0 %v353
      %553 = vmatmul.mubr.bf16.gmra.mrb[0].mxu0 %v352
      %v554 = vpop.f32.mrb[0].mxu0
      %v555 = vadd.f32 %v284, %v554
      %v556 = vpop.f32.mrb[0].mxu0
      %v557 = vpop.f32.mrb[0].mxu0
      %v558 = vadd.f32 %v284, %v557
      %v559 = vpop.f32.mrb[0].mxu0
      %560 = vmatprep.mubr.bf16.mxu0 %v355
      %561 = vmatmul.mubr.bf16.gmra.mrb[0].mxu0 %v354
      %v562 = vpop.f32.mrb[0].mxu0
      %v563 = vadd.f32 %v284, %v562
      %v564 = vpop.f32.mrb[0].mxu0
      %v565 = vpop.f32.mrb[0].mxu0
      %v566 = vadd.f32 %v284, %v565
      %v567 = vpop.f32.mrb[0].mxu0
      %568 = vmatprep.mubr.bf16.mxu0 %v357
      %569 = vmatmul.mubr.bf16.gmra.mrb[0].mxu0 %v356
      %v570 = vpop.f32.mrb[0].mxu0
      %v571 = vadd.f32 %v284, %v570
      %v572 = vpop.f32.mrb[0].mxu0
      %v573 = vpop.f32.mrb[0].mxu0
      %v574 = vadd.f32 %v284, %v573
      %v575 = vpop.f32.mrb[0].mxu0
      %576 = vdwg.mxu0
      %v577 = vmax.f32 %v507, 0.0
      %v578 = vmax.f32 %v510, 0.0
      %v579 = vmax.f32 %v515, 0.0
      %v580 = vmax.f32 %v518, 0.0
      %v581 = vmax.f32 %v523, 0.0
      %v582 = vmax.f32 %v526, 0.0
      %v583 = vmax.f32 %v531, 0.0
      %v584 = vmax.f32 %v534, 0.0
      %v585 = vmax.f32 %v539, 0.0
      %v586 = vmax.f32 %v542, 0.0
      %v587 = vmax.f32 %v547, 0.0
      %v588 = vmax.f32 %v550, 0.0
      %v589 = vmax.f32 %v555, 0.0
      %v590 = vmax.f32 %v558, 0.0
      %v591 = vmax.f32 %v563, 0.0
      %v592 = vmax.f32 %v566, 0.0
      %v593 = vmax.f32 %v571, 0.0
      %v594 = vmax.f32 %v574, 0.0
      %595 = vst [vmem:[%s226] sm:$0xff] %v577
      %596 = vst [vmem:[%s226 + $0x8] sm:$0xff] %v578
      %597 = vst [vmem:[%s226 + $0x10] sm:$0xff] %v579
      %598 = vst [vmem:[%s226 + $0x18] sm:$0xff] %v580
      %599 = vst [vmem:[%s226 + $0x20] sm:$0xff] %v581
      %600 = vst [vmem:[%s226 + $0x28] sm:$0xff] %v582
      %601 = vst [vmem:[%s226 + $0x30] sm:$0xff] %v583
      %602 = vst [vmem:[%s226 + $0x38] sm:$0xff] %v584
      %603 = vst [vmem:[%s226 + $0x40] sm:$0xff] %v585
      %604 = vst [vmem:[%s226 + $0x48] sm:$0xff] %v586
      %605 = vst [vmem:[%s226 + $0x50] sm:$0xff] %v587
      %606 = vst [vmem:[%s226 + $0x58] sm:$0xff] %v588
      %607 = vst [vmem:[%s226 + $0x60] sm:$0xff] %v589
      %608 = vst [vmem:[%s226 + $0x68] sm:$0xff] %v590
      %609 = vst [vmem:[%s226 + $0x70] sm:$0xff] %v591
      %610 = vst [vmem:[%s226 + $0x78] sm:$0xff] %v592
      %611 = vst [vmem:[%s226 + $0x80] sm:$0xff] %v593
      %612 = vst [vmem:[%s226 + $0x88] sm:$0xff] %v594
      %s613 = smul.u32 18, %s18
      %p614 = scmp.lt.s32.totalorder %s613, 35
      %s615 = scalar_select %p614, %s613, 35
      %p616 = scmp.lt.s32.totalorder %s19, 0
      %s617 = scalar_select %p616, %s19, 0
      %s618 = sadd.s32 %s617, %s615
      %s619 = smul.addr %s618, 8
      %s620 = scalar_lea.vmem %s3, %s619
      // Predicated region
      $region33: #{ae_forward.17} parent=31 // pred_check
        %p621 = pneg %p124
      $region34: #{ae_forward.17} parent=31 // pred_check_branch
        %623 = sbr.rel (%p621) target = $region36
      $region35: #{ae_forward.17} parent=31 // pred_region
        %s624 = smul.u32 18, %s18
      $region36: #{ae_forward.17} parent=31 // pred_fallthru
        _
    $region32: #{ae_forward.17} parent=5 // pred_fallthru
      _
    %p625 = scmp.le.s32.totalorder 2, %s9
    // Predicated region
    $region37: #{ae_forward.17} parent=5 // pred_check
      %p626 = pneg %p625
    $region38: #{ae_forward.17} parent=5 // pred_check_branch
      %628 = sbr.rel (%p626) target = $region40
    $region39: #{ae_forward.17} parent=5 // pred_region
      %s629 = ssub.s32 %s9, 2
      // Predicated region
      $region41: #{ae_forward.17} parent=39 // pred_check
        %p630 = pneg %p130
      $region42: #{ae_forward.17} parent=39 // pred_check_branch
        %632 = sbr.rel (%p630) target = $region44
      $region43: #{ae_forward.17} parent=39 // pred_region
        %s633 = smul.u32 18, %s20
        %p634 = scmp.lt.s32.totalorder %s633, 35
        %s635 = scalar_select %p634, %s633, 35
        %p636 = scmp.lt.s32.totalorder %s21, 0
        %s637 = scalar_select %p636, %s21, 0
        %s638 = sadd.s32 %s637, %s635
        %s639 = smul.addr %s638, 8
        %s640 = scalar_lea.vmem %s3, %s639
      $region44: #{ae_forward.17} parent=39 // pred_fallthru
        _
    $region40: #{ae_forward.17} parent=5 // pred_fallthru
      _
  $region6: #{ae_forward.17} parent=0 // loop_footer
    %s13 = sadd.s32 1, %s9
  $region7: #{ae_forward.17} parent=0 // loop_footer_branch
    %8 = sbr.rel target = $region3
  $region8: #{ae_forward.17} parent=0 // loop_exit
    _

// kernel: ae_forward.18
$region0: #{ae_forward.18}
  #allocation0 [shape = 'u32[]', space=smem, size = 0x4, offset = 0x4, fixed_abs, tag = 'smem constant byte address 0x4 - core index']
  #allocation1 [shape = 'u32[144,128]{1,0:T(1,128)}', space=vmem, size = 0x12000, scoped, tag = 'internal scratch']
  %s0 = inlined_call_operand.vmem [shape: bf16[1152,128], index: 0, kind: input, shape index: {}]
  %s1 = inlined_call_operand.vmem [shape: bf16[128,64], index: 1, kind: input, shape index: {}]
  %s2 = inlined_call_operand.vmem [shape: f32[1,64], index: 2, kind: input, shape index: {}]
  %s3 = inlined_call_operand.vmem [shape: f32[1152,64], index: 3, kind: output, shape index: {}]
  %s4 = sld [smem:[#allocation0]]
  $region45: #{ae_forward.18} parent=0
    _
  %s6 = ssub.s32 1, %s4
  %s7 = scalar_select 0, %s6, %s4
  loop: start=0, step=1, limit=5
  $region2: #{ae_forward.18} parent=0 // loop_pre_header
    _
  $region3: #{ae_forward.18} parent=0 // loop_header
    %s9 = sphi 0, %s13
    %p10 = scmp.ge.s32.totalorder %s9, 5
    %s16 = sphi 0, %s28
    %s17 = sphi 0, %s24
    %s18 = sphi 0, %s16
    %s19 = sphi 0, %s17
    %s20 = sphi 0, %s18
    %s21 = sphi 0, %s19
    %s31 = sphi 0, %s33
    %s34 = sphi 0, %s31
    %s35 = sphi 0, %s34
    %s51 = sphi 0, %s35
    %s57 = sphi 0, %s59
    %s60 = sphi 0, %s57
    %s61 = sphi 0, %s60
    %s77 = sphi 0, %s61
    %s83 = sphi 0, %s85
    %s86 = sphi 0, %s83
    %s87 = sphi 0, %s86
    %s103 = sphi 0, %s87
    %s111 = sphi 0, %s113
    %s114 = sphi 0, %s111
    %s115 = sphi 0, %s114
    %s131 = sphi 0, %s115
  $region4: #{ae_forward.18} parent=0 // loop_header_branch
    %12 = sbr.rel (%p10) target = $region8
  $region5: #{ae_forward.18} parent=0 // loop_body
    %s14 = ssub.s32 %s9, 1
    %s15 = ssub.s32 %s9, 2
    %s22 = sadd.s32 1, %s17
    %p23 = scmp.ge.s32.totalorder %s22, 1
    %s24 = scalar_select %p23, 0, %s22
    %s25 = sadd.s32 1, %s16
    %s26 = scalar_select %p23, %s25, %s16
    %p27 = scmp.ge.s32.totalorder %s26, 3
    %s28 = scalar_select %p27, 0, %s26
    %s29 = ssub.s32 %s16, %s28
    %p30 = scmp.eq.s32.totalorder %s29, 0
    %s32 = sadd.s32 %s31, 1
    %s33 = scalar_select %p30, %s31, %s32
    %p36 = pneg %p30
    %p37 = scmp.eq.s32.totalorder %s9, 2
    %p38 = por %p36, %p37
    %p39 = scmp.ne.s32.totalorder %s31, %s34
    %p40 = scmp.eq.s32.totalorder %s9, 0
    %p41 = por %p39, %p40
    %p42 = scmp.ne.s32.totalorder %s31, %s34
    %p43 = scmp.eq.s32.totalorder %s14, 2
    %p44 = por %p42, %p43
    %p45 = scmp.ne.s32.totalorder %s34, %s35
    %p46 = scmp.eq.s32.totalorder %s14, 0
    %p47 = por %p45, %p46
    %p48 = scmp.ne.s32.totalorder %s34, %s35
    %p49 = scmp.eq.s32.totalorder %s15, 2
    %p50 = por %p48, %p49
    %p52 = scmp.ne.s32.totalorder %s35, %s51
    %p53 = scmp.eq.s32.totalorder %s15, 0
    %p54 = por %p52, %p53
    %s55 = ssub.s32 %s17, %s24
    %p56 = scmp.eq.s32.totalorder %s55, 0
    %s58 = sadd.s32 %s57, 1
    %s59 = scalar_select %p56, %s57, %s58
    %p62 = pneg %p56
    %p63 = scmp.eq.s32.totalorder %s9, 2
    %p64 = por %p62, %p63
    %p65 = scmp.ne.s32.totalorder %s57, %s60
    %p66 = scmp.eq.s32.totalorder %s9, 0
    %p67 = por %p65, %p66
    %p68 = scmp.ne.s32.totalorder %s57, %s60
    %p69 = scmp.eq.s32.totalorder %s14, 2
    %p70 = por %p68, %p69
    %p71 = scmp.ne.s32.totalorder %s60, %s61
    %p72 = scmp.eq.s32.totalorder %s14, 0
    %p73 = por %p71, %p72
    %p74 = scmp.ne.s32.totalorder %s60, %s61
    %p75 = scmp.eq.s32.totalorder %s15, 2
    %p76 = por %p74, %p75
    %p78 = scmp.ne.s32.totalorder %s61, %s77
    %p79 = scmp.eq.s32.totalorder %s15, 0
    %p80 = por %p78, %p79
    %s81 = ssub.s32 %s17, %s24
    %p82 = scmp.eq.s32.totalorder %s81, 0
    %s84 = sadd.s32 %s83, 1
    %s85 = scalar_select %p82, %s83, %s84
    %p88 = pneg %p82
    %p89 = scmp.eq.s32.totalorder %s9, 2
    %p90 = por %p88, %p89
    %p91 = scmp.ne.s32.totalorder %s83, %s86
    %p92 = scmp.eq.s32.totalorder %s9, 0
    %p93 = por %p91, %p92
    %p94 = scmp.ne.s32.totalorder %s83, %s86
    %p95 = scmp.eq.s32.totalorder %s14, 2
    %p96 = por %p94, %p95
    %p97 = scmp.ne.s32.totalorder %s86, %s87
    %p98 = scmp.eq.s32.totalorder %s14, 0
    %p99 = por %p97, %p98
    %p100 = scmp.ne.s32.totalorder %s86, %s87
    %p101 = scmp.eq.s32.totalorder %s15, 2
    %p102 = por %p100, %p101
    %p104 = scmp.ne.s32.totalorder %s87, %s103
    %p105 = scmp.eq.s32.totalorder %s15, 0
    %p106 = por %p104, %p105
    %s107 = ssub.s32 %s16, %s28
    %s108 = ssub.s32 %s17, %s24
    %s109 = sor.u32 %s107, %s108
    %p110 = scmp.eq.s32.totalorder %s109, 0
    %s112 = sadd.s32 %s111, 1
    %s113 = scalar_select %p110, %s111, %s112
    %p116 = pneg %p110
    %p117 = scmp.eq.s32.totalorder %s9, 2
    %p118 = por %p116, %p117
    %p119 = scmp.ne.s32.totalorder %s111, %s114
    %p120 = scmp.eq.s32.totalorder %s9, 0
    %p121 = por %p119, %p120
    %p122 = scmp.ne.s32.totalorder %s111, %s114
    %p123 = scmp.eq.s32.totalorder %s14, 2
    %p124 = por %p122, %p123
    %p125 = scmp.ne.s32.totalorder %s114, %s115
    %p126 = scmp.eq.s32.totalorder %s14, 0
    %p127 = por %p125, %p126
    %p128 = scmp.ne.s32.totalorder %s114, %s115
    %p129 = scmp.eq.s32.totalorder %s15, 2
    %p130 = por %p128, %p129
    %p132 = scmp.ne.s32.totalorder %s115, %s131
    %p133 = scmp.eq.s32.totalorder %s15, 0
    %p134 = por %p132, %p133
    %p135 = scmp.le.s32.totalorder 1, %s9
    %p136 = scmp.lt.s32.totalorder %s9, 4
    %p137 = pnand %p135, %p136
    %p138 = pneg %p137
    // Predicated region
    $region9: #{ae_forward.18} parent=5 // pred_check
      _
    $region10: #{ae_forward.18} parent=5 // pred_check_branch
      %140 = sbr.rel (%p137) target = $region12
    $region11: #{ae_forward.18} parent=5 // pred_region
      %s141 = ssub.s32 %s9, 1
      // Predicated region
      $region13: #{ae_forward.18} parent=11 // pred_check
        %p142 = pneg %p73
      $region14: #{ae_forward.18} parent=11 // pred_check_branch
        %144 = sbr.rel (%p142) target = $region16
      $region15: #{ae_forward.18} parent=11 // pred_region
        %p145 = scmp.lt.s32.totalorder %s19, 0
        %s146 = scalar_select %p145, %s19, 0
        %s147 = smul.addr %s146, 4
        %s148 = scalar_lea.vmem %s1, %s147
      $region16: #{ae_forward.18} parent=11 // pred_fallthru
        _
      // Predicated region
      $region17: #{ae_forward.18} parent=11 // pred_check
        %p149 = pneg %p99
      $region18: #{ae_forward.18} parent=11 // pred_check_branch
        %151 = sbr.rel (%p149) target = $region20
      $region19: #{ae_forward.18} parent=11 // pred_region
        %p152 = scmp.lt.s32.totalorder %s19, 0
        %s153 = scalar_select %p152, %s19, 0
        %s154 = scalar_lea.vmem %s2, %s153
      $region20: #{ae_forward.18} parent=11 // pred_fallthru
        _
    $region12: #{ae_forward.18} parent=5 // pred_fallthru
      _
    %p155 = scmp.lt.s32.totalorder %s9, 3
    // Predicated region
    $region21: #{ae_forward.18} parent=5 // pred_check
      %p156 = pneg %p155
    $region22: #{ae_forward.18} parent=5 // pred_check_branch
      %158 = sbr.rel (%p156) target = $region24
    $region23: #{ae_forward.18} parent=5 // pred_region
      // Predicated region
      $region25: #{ae_forward.18} parent=23 // pred_check
        %p159 = pneg %p41
      $region26: #{ae_forward.18} parent=23 // pred_check_branch
        %161 = sbr.rel (%p159) target = $region28
      $region27: #{ae_forward.18} parent=23 // pred_region
        %s162 = smul.u32 48, %s16
        %p163 = scmp.lt.s32.totalorder %s162, 143
        %s164 = scalar_select %p163, %s162, 143
        %s165 = smul.addr %s164, 4
        %s166 = scalar_lea.vmem %s0, %s165
        %s167 = smul.u32 48, %s16
      $region28: #{ae_forward.18} parent=23 // pred_fallthru
        _
    $region24: #{ae_forward.18} parent=5 // pred_fallthru
      _
    %p168 = scmp.le.s32.totalorder 1, %s9
    %p169 = scmp.lt.s32.totalorder %s9, 4
    %p170 = pnand %p168, %p169
    %p171 = pneg %p170
    // Predicated region
    $region29: #{ae_forward.18} parent=5 // pred_check
      _
    $region30: #{ae_forward.18} parent=5 // pred_check_branch
      %173 = sbr.rel (%p170) target = $region32
    $region31: #{ae_forward.18} parent=5 // pred_region
      %s174 = ssub.s32 %s9, 1
      %s175 = smul.u32 48, %s18
      %p176 = scmp.lt.s32.totalorder %s175, 143
      %s177 = scalar_select %p176, %s175, 143
      %s178 = smul.addr %s177, 4
      %s179 = scalar_lea.vmem %s0, %s178
      %p180 = pneg %p47
      %p181 = pneg %p44
      %p182 = scmp.lt.s32.totalorder %s19, 0
      %s183 = scalar_select %p182, %s19, 0
      %s184 = smul.addr %s183, 4
      %s185 = scalar_lea.vmem %s1, %s184
      %p186 = pneg %p73
      %p187 = pneg %p70
      %p188 = scmp.lt.s32.totalorder %s19, 0
      %s189 = scalar_select %p188, %s19, 0
      %s190 = scalar_lea.vmem %s2, %s189
      %p191 = pneg %p99
      %p192 = pneg %p96
      %p193 = pneg %p127
      %p194 = pneg %p124
      %s195 = smul.u32 48, %s18
      %p196 = scmp.lt.s32.totalorder %s195, 143
      %s197 = scalar_select %p196, %s195, 143
      %p198 = scmp.lt.s32.totalorder %s19, 0
      %s199 = scalar_select %p198, %s19, 0
      %s200 = sadd.s32 %s199, %s197
      %s201 = smul.addr %s200, 8
      %s202 = scalar_lea.vmem %s3, %s201
      %s203 = smul.u32 48, %s18
      %p204 = scmp.lt.s32.totalorder %s203, 143
      %s205 = scalar_select %p204, %s203, 143
      %s206 = smul.addr %s205, 4
      %s207 = scalar_lea.vmem %s0, %s206
      %s208 = smul.u32 48, %s18
      %p209 = scmp.lt.s32.totalorder %s19, 0
      %s210 = scalar_select %p209, %s19, 0
      %s211 = smul.addr %s210, 4
      %s212 = scalar_lea.vmem %s1, %s211
      %p213 = scmp.lt.s32.totalorder %s19, 0
      %s214 = scalar_select %p213, %s19, 0
      %s215 = scalar_lea.vmem %s2, %s214
      %s216 = smul.u32 48, %s18
      %p217 = scmp.lt.s32.totalorder %s216, 143
      %s218 = scalar_select %p217, %s216, 143
      %p219 = scmp.lt.s32.totalorder %s19, 0
      %s220 = scalar_select %p219, %s19, 0
      %s221 = sadd.s32 %s220, %s218
      %s222 = smul.addr %s221, 8
      %s223 = scalar_lea.vmem %s3, %s222
      %s224 = smul.u32 48, %s18
      %v226 = vld [vmem:[%s207] sm:$0xf]
      %v227 = vld [vmem:[%s207 + $0x4] sm:$0xf]
      %v228 = vld [vmem:[%s207 + $0x8] sm:$0xf]
      %v229 = vld [vmem:[%s207 + $0xc] sm:$0xf]
      %v230 = vld [vmem:[%s207 + $0x10] sm:$0xf]
      %v231 = vld [vmem:[%s207 + $0x14] sm:$0xf]
      %v232 = vld [vmem:[%s207 + $0x18] sm:$0xf]
      %v233 = vld [vmem:[%s207 + $0x1c] sm:$0xf]
      %v234 = vld [vmem:[%s207 + $0x20] sm:$0xf]
      %v235 = vld [vmem:[%s207 + $0x24] sm:$0xf]
      %v236 = vld [vmem:[%s207 + $0x28] sm:$0xf]
      %v237 = vld [vmem:[%s207 + $0x2c] sm:$0xf]
      %v238 = vld [vmem:[%s207 + $0x30] sm:$0xf]
      %v239 = vld [vmem:[%s207 + $0x34] sm:$0xf]
      %v240 = vld [vmem:[%s207 + $0x38] sm:$0xf]
      %v241 = vld [vmem:[%s207 + $0x3c] sm:$0xf]
      %v242 = vld [vmem:[%s207 + $0x40] sm:$0xf]
      %v243 = vld [vmem:[%s207 + $0x44] sm:$0xf]
      %v244 = vld [vmem:[%s207 + $0x48] sm:$0xf]
      %v245 = vld [vmem:[%s207 + $0x4c] sm:$0xf]
      %v246 = vld [vmem:[%s207 + $0x50] sm:$0xf]
      %v247 = vld [vmem:[%s207 + $0x54] sm:$0xf]
      %v248 = vld [vmem:[%s207 + $0x58] sm:$0xf]
      %v249 = vld [vmem:[%s207 + $0x5c] sm:$0xf]
      %v250 = vld [vmem:[%s207 + $0x60] sm:$0xf]
      %v251 = vld [vmem:[%s207 + $0x64] sm:$0xf]
      %v252 = vld [vmem:[%s207 + $0x68] sm:$0xf]
      %v253 = vld [vmem:[%s207 + $0x6c] sm:$0xf]
      %v254 = vld [vmem:[%s207 + $0x70] sm:$0xf]
      %v255 = vld [vmem:[%s207 + $0x74] sm:$0xf]
      %v256 = vld [vmem:[%s207 + $0x78] sm:$0xf]
      %v257 = vld [vmem:[%s207 + $0x7c] sm:$0xf]
      %v258 = vld [vmem:[%s207 + $0x80] sm:$0xf]
      %v259 = vld [vmem:[%s207 + $0x84] sm:$0xf]
      %v260 = vld [vmem:[%s207 + $0x88] sm:$0xf]
      %v261 = vld [vmem:[%s207 + $0x8c] sm:$0xf]
      %v262 = vld [vmem:[%s207 + $0x90] sm:$0xf]
      %v263 = vld [vmem:[%s207 + $0x94] sm:$0xf]
      %v264 = vld [vmem:[%s207 + $0x98] sm:$0xf]
      %v265 = vld [vmem:[%s207 + $0x9c] sm:$0xf]
      %v266 = vld [vmem:[%s207 + $0xa0] sm:$0xf]
      %v267 = vld [vmem:[%s207 + $0xa4] sm:$0xf]
      %v268 = vld [vmem:[%s207 + $0xa8] sm:$0xf]
      %v269 = vld [vmem:[%s207 + $0xac] sm:$0xf]
      %v270 = vld [vmem:[%s207 + $0xb0] sm:$0xf]
      %v271 = vld [vmem:[%s207 + $0xb4] sm:$0xf]
      %v272 = vld [vmem:[%s207 + $0xb8] sm:$0xf]
      %v273 = vld [vmem:[%s207 + $0xbc] sm:$0xf]
      %v274 = vld [vmem:[%s212] sm:$0xf]
      %v275 = vld [vmem:[%s212 + $0x4] sm:$0xf]
      %v276 = vld [vmem:[%s212 + $0x8] sm:$0xf]
      %v277 = vld [vmem:[%s212 + $0xc] sm:$0xf]
      %v278 = vld [vmem:[%s212 + $0x10] sm:$0xf]
      %v279 = vld [vmem:[%s212 + $0x14] sm:$0xf]
      %v280 = vld [vmem:[%s212 + $0x18] sm:$0xf]
      %v281 = vld [vmem:[%s212 + $0x1c] sm:$0xf]
      %v282 = vld [vmem:[%s212 + $0x20] sm:$0xf]
      %v283 = vld [vmem:[%s212 + $0x24] sm:$0xf]
      %v284 = vld [vmem:[%s212 + $0x28] sm:$0xf]
      %v285 = vld [vmem:[%s212 + $0x2c] sm:$0xf]
      %v286 = vld [vmem:[%s212 + $0x30] sm:$0xf]
      %v287 = vld [vmem:[%s212 + $0x34] sm:$0xf]
      %v288 = vld [vmem:[%s212 + $0x38] sm:$0xf]
      %v289 = vld [vmem:[%s212 + $0x3c] sm:$0xf]
      %v290 = vld [vmem:[%s215] sm:$0x1]
      %v292 = vlaneseq
      %v293 = vshrl.u32 %v292, 7
      %v294 = vsub.s32 0, %v293
      %v295 = vrot.slane %v290, %v294
      %v345 = vunpack.c.l.b16 %v226
      %v346 = vunpack.c.l.b16 %v227
      %v347 = vunpack.c.l.b16 %v228
      %v348 = vunpack.c.l.b16 %v229
      %v349 = vunpack.c.l.b16 %v230
      %v350 = vunpack.c.l.b16 %v231
      %v351 = vunpack.c.l.b16 %v232
      %v352 = vunpack.c.l.b16 %v233
      %v353 = vunpack.c.l.b16 %v234
      %v354 = vunpack.c.l.b16 %v235
      %v355 = vunpack.c.l.b16 %v236
      %v356 = vunpack.c.l.b16 %v237
      %v357 = vunpack.c.l.b16 %v238
      %v358 = vunpack.c.l.b16 %v239
      %v359 = vunpack.c.l.b16 %v240
      %v360 = vunpack.c.l.b16 %v241
      %v361 = vunpack.c.l.b16 %v242
      %v362 = vunpack.c.l.b16 %v243
      %v363 = vunpack.c.l.b16 %v244
      %v364 = vunpack.c.l.b16 %v245
      %v365 = vunpack.c.l.b16 %v246
      %v366 = vunpack.c.l.b16 %v247
      %v367 = vunpack.c.l.b16 %v248
      %v368 = vunpack.c.l.b16 %v249
      %v369 = vunpack.c.l.b16 %v250
      %v370 = vunpack.c.l.b16 %v251
      %v371 = vunpack.c.l.b16 %v252
      %v372 = vunpack.c.l.b16 %v253
      %v373 = vunpack.c.l.b16 %v254
      %v374 = vunpack.c.l.b16 %v255
      %v375 = vunpack.c.l.b16 %v256
      %v376 = vunpack.c.l.b16 %v257
      %v377 = vunpack.c.l.b16 %v258
      %v378 = vunpack.c.l.b16 %v259
      %v379 = vunpack.c.l.b16 %v260
      %v380 = vunpack.c.l.b16 %v261
      %v381 = vunpack.c.l.b16 %v262
      %v382 = vunpack.c.l.b16 %v263
      %v383 = vunpack.c.l.b16 %v264
      %v384 = vunpack.c.l.b16 %v265
      %v385 = vunpack.c.l.b16 %v266
      %v386 = vunpack.c.l.b16 %v267
      %v387 = vunpack.c.l.b16 %v268
      %v388 = vunpack.c.l.b16 %v269
      %v389 = vunpack.c.l.b16 %v270
      %v390 = vunpack.c.l.b16 %v271
      %v391 = vunpack.c.l.b16 %v272
      %v392 = vunpack.c.l.b16 %v273
      %v393 = vpack.c.b16 %v346, %v345
      %v394 = vpack.c.b16 %v348, %v347
      %v395 = vpack.c.b16 %v350, %v349
      %v396 = vpack.c.b16 %v352, %v351
      %v397 = vpack.c.b16 %v354, %v353
      %v398 = vpack.c.b16 %v356, %v355
      %v399 = vpack.c.b16 %v358, %v357
      %v400 = vpack.c.b16 %v360, %v359
      %v401 = vpack.c.b16 %v362, %v361
      %v402 = vpack.c.b16 %v364, %v363
      %v403 = vpack.c.b16 %v366, %v365
      %v404 = vpack.c.b16 %v368, %v367
      %v405 = vpack.c.b16 %v370, %v369
      %v406 = vpack.c.b16 %v372, %v371
      %v407 = vpack.c.b16 %v374, %v373
      %v408 = vpack.c.b16 %v376, %v375
      %v409 = vpack.c.b16 %v378, %v377
      %v410 = vpack.c.b16 %v380, %v379
      %v411 = vpack.c.b16 %v382, %v381
      %v412 = vpack.c.b16 %v384, %v383
      %v413 = vpack.c.b16 %v386, %v385
      %v414 = vpack.c.b16 %v388, %v387
      %v415 = vpack.c.b16 %v390, %v389
      %v416 = vpack.c.b16 %v392, %v391
      %v457 = vunpack.c.l.b16 %v274
      %v458 = vunpack.c.l.b16 %v275
      %v459 = vunpack.c.l.b16 %v276
      %v460 = vunpack.c.l.b16 %v277
      %v461 = vunpack.c.l.b16 %v278
      %v462 = vunpack.c.l.b16 %v279
      %v463 = vunpack.c.l.b16 %v280
      %v464 = vunpack.c.l.b16 %v281
      %v465 = vunpack.c.l.b16 %v282
      %v466 = vunpack.c.l.b16 %v283
      %v467 = vunpack.c.l.b16 %v284
      %v468 = vunpack.c.l.b16 %v285
      %v469 = vunpack.c.l.b16 %v286
      %v470 = vunpack.c.l.b16 %v287
      %v471 = vunpack.c.l.b16 %v288
      %v472 = vunpack.c.l.b16 %v289
      %v473 = vpack.c.b16 %v458, %v457
      %v474 = vpack.c.b16 %v460, %v459
      %v475 = vpack.c.b16 %v462, %v461
      %v476 = vpack.c.b16 %v464, %v463
      %v477 = vpack.c.b16 %v466, %v465
      %v478 = vpack.c.b16 %v468, %v467
      %v479 = vpack.c.b16 %v470, %v469
      %v480 = vpack.c.b16 %v472, %v471
      %489 = vmatprep.subr.bf16.mxu0 0
      %490 = vmatpush1.bf16.msra.mxu0 %v473
      %491 = vmatprep.subr.bf16.mxu0 0
      %492 = vmatpush1.bf16.msra.mxu0 %v474
      %493 = vmatprep.subr.bf16.mxu0 0
      %494 = vmatpush1.bf16.msra.mxu0 %v475
      %495 = vmatprep.subr.bf16.mxu0 0
      %496 = vmatpush1.bf16.msra.mxu0 %v476
      %497 = vmatprep.subr.bf16.mxu0 0
      %498 = vmatpush1.bf16.msra.mxu0 %v477
      %499 = vmatprep.subr.bf16.mxu0 0
      %500 = vmatpush1.bf16.msra.mxu0 %v478
      %501 = vmatprep.subr.bf16.mxu0 0
      %502 = vmatpush1.bf16.msra.mxu0 %v479
      %503 = vmatprep.subr.bf16.mxu0 0
      %504 = vmatpush1.bf16.msra.mxu0 %v480
      %505 = vmatprep.subr.bf16.mxu0 0
      %506 = vmatpush1.bf16.msra.mxu0 0
      %507 = vmatprep.subr.bf16.mxu0 0
      %508 = vmatpush1.bf16.msra.mxu0 0
      %509 = vmatprep.subr.bf16.mxu0 0
      %510 = vmatpush1.bf16.msra.mxu0 0
      %511 = vmatprep.subr.bf16.mxu0 0
      %512 = vmatpush1.bf16.msra.mxu0 0
      %513 = vmatprep.subr.bf16.mxu0 0
      %514 = vmatpush1.bf16.msra.mxu0 0
      %515 = vmatprep.subr.bf16.mxu0 0
      %516 = vmatpush1.bf16.msra.mxu0 0
      %517 = vmatprep.subr.bf16.mxu0 0
      %518 = vmatpush1.bf16.msra.mxu0 0
      %519 = vmatprep.subr.bf16.mxu0 0
      %520 = vmatpush1.bf16.msra.mxu0 0
      %521 = vmatprep.mubr.bf16.mxu0 0
      %522 = vmatmul.mubr.bf16.gmra.mrb[0].mxu0 %v393
      %v523 = vpop.f32.mrb[0].mxu0
      %v524 = vadd.f32 %v295, %v523
      %v525 = vpop.f32.mrb[0].mxu0
      %v526 = vpop.f32.mrb[0].mxu0
      %v527 = vadd.f32 %v295, %v526
      %v528 = vpop.f32.mrb[0].mxu0
      %529 = vmatprep.mubr.bf16.mxu0 0
      %530 = vmatmul.mubr.bf16.gmra.mrb[0].mxu0 %v394
      %v531 = vpop.f32.mrb[0].mxu0
      %v532 = vadd.f32 %v295, %v531
      %v533 = vpop.f32.mrb[0].mxu0
      %v534 = vpop.f32.mrb[0].mxu0
      %v535 = vadd.f32 %v295, %v534
      %v536 = vpop.f32.mrb[0].mxu0
      %537 = vmatprep.mubr.bf16.mxu0 0
      %538 = vmatmul.mubr.bf16.gmra.mrb[0].mxu0 %v395
      %v539 = vpop.f32.mrb[0].mxu0
      %v540 = vadd.f32 %v295, %v539
      %v541 = vpop.f32.mrb[0].mxu0
      %v542 = vpop.f32.mrb[0].mxu0
      %v543 = vadd.f32 %v295, %v542
      %v544 = vpop.f32.mrb[0].mxu0
      %545 = vmatprep.mubr.bf16.mxu0 0
      %546 = vmatmul.mubr.bf16.gmra.mrb[0].mxu0 %v396
      %v547 = vpop.f32.mrb[0].mxu0
      %v548 = vadd.f32 %v295, %v547
      %v549 = vpop.f32.mrb[0].mxu0
      %v550 = vpop.f32.mrb[0].mxu0
      %v551 = vadd.f32 %v295, %v550
      %v552 = vpop.f32.mrb[0].mxu0
      %553 = vmatprep.mubr.bf16.mxu0 0
      %554 = vmatmul.mubr.bf16.gmra.mrb[0].mxu0 %v397
      %v555 = vpop.f32.mrb[0].mxu0
      %v556 = vadd.f32 %v295, %v555
      %v557 = vpop.f32.mrb[0].mxu0
      %v558 = vpop.f32.mrb[0].mxu0
      %v559 = vadd.f32 %v295, %v558
      %v560 = vpop.f32.mrb[0].mxu0
      %561 = vmatprep.mubr.bf16.mxu0 0
      %562 = vmatmul.mubr.bf16.gmra.mrb[0].mxu0 %v398
      %v563 = vpop.f32.mrb[0].mxu0
      %v564 = vadd.f32 %v295, %v563
      %v565 = vpop.f32.mrb[0].mxu0
      %v566 = vpop.f32.mrb[0].mxu0
      %v567 = vadd.f32 %v295, %v566
      %v568 = vpop.f32.mrb[0].mxu0
      %569 = vmatprep.mubr.bf16.mxu0 0
      %570 = vmatmul.mubr.bf16.gmra.mrb[0].mxu0 %v399
      %v571 = vpop.f32.mrb[0].mxu0
      %v572 = vadd.f32 %v295, %v571
      %v573 = vpop.f32.mrb[0].mxu0
      %v574 = vpop.f32.mrb[0].mxu0
      %v575 = vadd.f32 %v295, %v574
      %v576 = vpop.f32.mrb[0].mxu0
      %577 = vmatprep.mubr.bf16.mxu0 0
      %578 = vmatmul.mubr.bf16.gmra.mrb[0].mxu0 %v400
      %v579 = vpop.f32.mrb[0].mxu0
      %v580 = vadd.f32 %v295, %v579
      %v581 = vpop.f32.mrb[0].mxu0
      %v582 = vpop.f32.mrb[0].mxu0
      %v583 = vadd.f32 %v295, %v582
      %v584 = vpop.f32.mrb[0].mxu0
      %585 = vmatprep.mubr.bf16.mxu0 0
      %586 = vmatmul.mubr.bf16.gmra.mrb[0].mxu0 %v401
      %v587 = vpop.f32.mrb[0].mxu0
      %v588 = vadd.f32 %v295, %v587
      %v589 = vpop.f32.mrb[0].mxu0
      %v590 = vpop.f32.mrb[0].mxu0
      %v591 = vadd.f32 %v295, %v590
      %v592 = vpop.f32.mrb[0].mxu0
      %593 = vmatprep.mubr.bf16.mxu0 0
      %594 = vmatmul.mubr.bf16.gmra.mrb[0].mxu0 %v402
      %v595 = vpop.f32.mrb[0].mxu0
      %v596 = vadd.f32 %v295, %v595
      %v597 = vpop.f32.mrb[0].mxu0
      %v598 = vpop.f32.mrb[0].mxu0
      %v599 = vadd.f32 %v295, %v598
      %v600 = vpop.f32.mrb[0].mxu0
      %601 = vmatprep.mubr.bf16.mxu0 0
      %602 = vmatmul.mubr.bf16.gmra.mrb[0].mxu0 %v403
      %v603 = vpop.f32.mrb[0].mxu0
      %v604 = vadd.f32 %v295, %v603
      %v605 = vpop.f32.mrb[0].mxu0
      %v606 = vpop.f32.mrb[0].mxu0
      %v607 = vadd.f32 %v295, %v606
      %v608 = vpop.f32.mrb[0].mxu0
      %609 = vmatprep.mubr.bf16.mxu0 0
      %610 = vmatmul.mubr.bf16.gmra.mrb[0].mxu0 %v404
      %v611 = vpop.f32.mrb[0].mxu0
      %v612 = vadd.f32 %v295, %v611
      %v613 = vpop.f32.mrb[0].mxu0
      %v614 = vpop.f32.mrb[0].mxu0
      %v615 = vadd.f32 %v295, %v614
      %v616 = vpop.f32.mrb[0].mxu0
      %617 = vmatprep.mubr.bf16.mxu0 0
      %618 = vmatmul.mubr.bf16.gmra.mrb[0].mxu0 %v405
      %v619 = vpop.f32.mrb[0].mxu0
      %v620 = vadd.f32 %v295, %v619
      %v621 = vpop.f32.mrb[0].mxu0
      %v622 = vpop.f32.mrb[0].mxu0
      %v623 = vadd.f32 %v295, %v622
      %v624 = vpop.f32.mrb[0].mxu0
      %625 = vmatprep.mubr.bf16.mxu0 0
      %626 = vmatmul.mubr.bf16.gmra.mrb[0].mxu0 %v406
      %v627 = vpop.f32.mrb[0].mxu0
      %v628 = vadd.f32 %v295, %v627
      %v629 = vpop.f32.mrb[0].mxu0
      %v630 = vpop.f32.mrb[0].mxu0
      %v631 = vadd.f32 %v295, %v630
      %v632 = vpop.f32.mrb[0].mxu0
      %633 = vmatprep.mubr.bf16.mxu0 0
      %634 = vmatmul.mubr.bf16.gmra.mrb[0].mxu0 %v407
      %v635 = vpop.f32.mrb[0].mxu0
      %v636 = vadd.f32 %v295, %v635
      %v637 = vpop.f32.mrb[0].mxu0
      %v638 = vpop.f32.mrb[0].mxu0
      %v639 = vadd.f32 %v295, %v638
      %v640 = vpop.f32.mrb[0].mxu0
      %641 = vmatprep.mubr.bf16.mxu0 0
      %642 = vmatmul.mubr.bf16.gmra.mrb[0].mxu0 %v408
      %v643 = vpop.f32.mrb[0].mxu0
      %v644 = vadd.f32 %v295, %v643
      %v645 = vpop.f32.mrb[0].mxu0
      %v646 = vpop.f32.mrb[0].mxu0
      %v647 = vadd.f32 %v295, %v646
      %v648 = vpop.f32.mrb[0].mxu0
      %649 = vmatprep.mubr.bf16.mxu0 0
      %650 = vmatmul.mubr.bf16.gmra.mrb[0].mxu0 %v409
      %v651 = vpop.f32.mrb[0].mxu0
      %v652 = vadd.f32 %v295, %v651
      %v653 = vpop.f32.mrb[0].mxu0
      %v654 = vpop.f32.mrb[0].mxu0
      %v655 = vadd.f32 %v295, %v654
      %v656 = vpop.f32.mrb[0].mxu0
      %657 = vmatprep.mubr.bf16.mxu0 0
      %658 = vmatmul.mubr.bf16.gmra.mrb[0].mxu0 %v410
      %v659 = vpop.f32.mrb[0].mxu0
      %v660 = vadd.f32 %v295, %v659
      %v661 = vpop.f32.mrb[0].mxu0
      %v662 = vpop.f32.mrb[0].mxu0
      %v663 = vadd.f32 %v295, %v662
      %v664 = vpop.f32.mrb[0].mxu0
      %665 = vmatprep.mubr.bf16.mxu0 0
      %666 = vmatmul.mubr.bf16.gmra.mrb[0].mxu0 %v411
      %v667 = vpop.f32.mrb[0].mxu0
      %v668 = vadd.f32 %v295, %v667
      %v669 = vpop.f32.mrb[0].mxu0
      %v670 = vpop.f32.mrb[0].mxu0
      %v671 = vadd.f32 %v295, %v670
      %v672 = vpop.f32.mrb[0].mxu0
      %673 = vmatprep.mubr.bf16.mxu0 0
      %674 = vmatmul.mubr.bf16.gmra.mrb[0].mxu0 %v412
      %v675 = vpop.f32.mrb[0].mxu0
      %v676 = vadd.f32 %v295, %v675
      %v677 = vpop.f32.mrb[0].mxu0
      %v678 = vpop.f32.mrb[0].mxu0
      %v679 = vadd.f32 %v295, %v678
      %v680 = vpop.f32.mrb[0].mxu0
      %681 = vmatprep.mubr.bf16.mxu0 0
      %682 = vmatmul.mubr.bf16.gmra.mrb[0].mxu0 %v413
      %v683 = vpop.f32.mrb[0].mxu0
      %v684 = vadd.f32 %v295, %v683
      %v685 = vpop.f32.mrb[0].mxu0
      %v686 = vpop.f32.mrb[0].mxu0
      %v687 = vadd.f32 %v295, %v686
      %v688 = vpop.f32.mrb[0].mxu0
      %689 = vmatprep.mubr.bf16.mxu0 0
      %690 = vmatmul.mubr.bf16.gmra.mrb[0].mxu0 %v414
      %v691 = vpop.f32.mrb[0].mxu0
      %v692 = vadd.f32 %v295, %v691
      %v693 = vpop.f32.mrb[0].mxu0
      %v694 = vpop.f32.mrb[0].mxu0
      %v695 = vadd.f32 %v295, %v694
      %v696 = vpop.f32.mrb[0].mxu0
      %697 = vmatprep.mubr.bf16.mxu0 0
      %698 = vmatmul.mubr.bf16.gmra.mrb[0].mxu0 %v415
      %v699 = vpop.f32.mrb[0].mxu0
      %v700 = vadd.f32 %v295, %v699
      %v701 = vpop.f32.mrb[0].mxu0
      %v702 = vpop.f32.mrb[0].mxu0
      %v703 = vadd.f32 %v295, %v702
      %v704 = vpop.f32.mrb[0].mxu0
      %705 = vmatprep.mubr.bf16.mxu0 0
      %706 = vmatmul.mubr.bf16.gmra.mrb[0].mxu0 %v416
      %v707 = vpop.f32.mrb[0].mxu0
      %v708 = vadd.f32 %v295, %v707
      %v709 = vpop.f32.mrb[0].mxu0
      %v710 = vpop.f32.mrb[0].mxu0
      %v711 = vadd.f32 %v295, %v710
      %v712 = vpop.f32.mrb[0].mxu0
      %713 = vdwg.mxu0
      %v714 = vmax.f32 %v524, 0.0
      %v715 = vmax.f32 %v527, 0.0
      %v716 = vmax.f32 %v532, 0.0
      %v717 = vmax.f32 %v535, 0.0
      %v718 = vmax.f32 %v540, 0.0
      %v719 = vmax.f32 %v543, 0.0
      %v720 = vmax.f32 %v548, 0.0
      %v721 = vmax.f32 %v551, 0.0
      %v722 = vmax.f32 %v556, 0.0
      %v723 = vmax.f32 %v559, 0.0
      %v724 = vmax.f32 %v564, 0.0
      %v725 = vmax.f32 %v567, 0.0
      %v726 = vmax.f32 %v572, 0.0
      %v727 = vmax.f32 %v575, 0.0
      %v728 = vmax.f32 %v580, 0.0
      %v729 = vmax.f32 %v583, 0.0
      %v730 = vmax.f32 %v588, 0.0
      %v731 = vmax.f32 %v591, 0.0
      %v732 = vmax.f32 %v596, 0.0
      %v733 = vmax.f32 %v599, 0.0
      %v734 = vmax.f32 %v604, 0.0
      %v735 = vmax.f32 %v607, 0.0
      %v736 = vmax.f32 %v612, 0.0
      %v737 = vmax.f32 %v615, 0.0
      %v738 = vmax.f32 %v620, 0.0
      %v739 = vmax.f32 %v623, 0.0
      %v740 = vmax.f32 %v628, 0.0
      %v741 = vmax.f32 %v631, 0.0
      %v742 = vmax.f32 %v636, 0.0
      %v743 = vmax.f32 %v639, 0.0
      %v744 = vmax.f32 %v644, 0.0
      %v745 = vmax.f32 %v647, 0.0
      %v746 = vmax.f32 %v652, 0.0
      %v747 = vmax.f32 %v655, 0.0
      %v748 = vmax.f32 %v660, 0.0
      %v749 = vmax.f32 %v663, 0.0
      %v750 = vmax.f32 %v668, 0.0
      %v751 = vmax.f32 %v671, 0.0
      %v752 = vmax.f32 %v676, 0.0
      %v753 = vmax.f32 %v679, 0.0
      %v754 = vmax.f32 %v684, 0.0
      %v755 = vmax.f32 %v687, 0.0
      %v756 = vmax.f32 %v692, 0.0
      %v757 = vmax.f32 %v695, 0.0
      %v758 = vmax.f32 %v700, 0.0
      %v759 = vmax.f32 %v703, 0.0
      %v760 = vmax.f32 %v708, 0.0
      %v761 = vmax.f32 %v711, 0.0
      %vm762 = vcmask 523264
      %763 = vst.msk [vmem:[%s223] sm:$0xff] %vm762, %v714
      %764 = vst.msk [vmem:[%s223 + $0x8] sm:$0xff] %vm762, %v715
      %765 = vst.msk [vmem:[%s223 + $0x10] sm:$0xff] %vm762, %v716
      %766 = vst.msk [vmem:[%s223 + $0x18] sm:$0xff] %vm762, %v717
      %767 = vst.msk [vmem:[%s223 + $0x20] sm:$0xff] %vm762, %v718
      %768 = vst.msk [vmem:[%s223 + $0x28] sm:$0xff] %vm762, %v719
      %769 = vst.msk [vmem:[%s223 + $0x30] sm:$0xff] %vm762, %v720
      %770 = vst.msk [vmem:[%s223 + $0x38] sm:$0xff] %vm762, %v721
      %771 = vst.msk [vmem:[%s223 + $0x40] sm:$0xff] %vm762, %v722
      %772 = vst.msk [vmem:[%s223 + $0x48] sm:$0xff] %vm762, %v723
      %773 = vst.msk [vmem:[%s223 + $0x50] sm:$0xff] %vm762, %v724
      %774 = vst.msk [vmem:[%s223 + $0x58] sm:$0xff] %vm762, %v725
      %775 = vst.msk [vmem:[%s223 + $0x60] sm:$0xff] %vm762, %v726
      %776 = vst.msk [vmem:[%s223 + $0x68] sm:$0xff] %vm762, %v727
      %777 = vst.msk [vmem:[%s223 + $0x70] sm:$0xff] %vm762, %v728
      %778 = vst.msk [vmem:[%s223 + $0x78] sm:$0xff] %vm762, %v729
      %779 = vst.msk [vmem:[%s223 + $0x80] sm:$0xff] %vm762, %v730
      %780 = vst.msk [vmem:[%s223 + $0x88] sm:$0xff] %vm762, %v731
      %781 = vst.msk [vmem:[%s223 + $0x90] sm:$0xff] %vm762, %v732
      %782 = vst.msk [vmem:[%s223 + $0x98] sm:$0xff] %vm762, %v733
      %783 = vst.msk [vmem:[%s223 + $0xa0] sm:$0xff] %vm762, %v734
      %784 = vst.msk [vmem:[%s223 + $0xa8] sm:$0xff] %vm762, %v735
      %785 = vst.msk [vmem:[%s223 + $0xb0] sm:$0xff] %vm762, %v736
      %786 = vst.msk [vmem:[%s223 + $0xb8] sm:$0xff] %vm762, %v737
      %787 = vst.msk [vmem:[%s223 + $0xc0] sm:$0xff] %vm762, %v738
      %788 = vst.msk [vmem:[%s223 + $0xc8] sm:$0xff] %vm762, %v739
      %789 = vst.msk [vmem:[%s223 + $0xd0] sm:$0xff] %vm762, %v740
      %790 = vst.msk [vmem:[%s223 + $0xd8] sm:$0xff] %vm762, %v741
      %791 = vst.msk [vmem:[%s223 + $0xe0] sm:$0xff] %vm762, %v742
      %792 = vst.msk [vmem:[%s223 + $0xe8] sm:$0xff] %vm762, %v743
      %793 = vst.msk [vmem:[%s223 + $0xf0] sm:$0xff] %vm762, %v744
      %794 = vst.msk [vmem:[%s223 + $0xf8] sm:$0xff] %vm762, %v745
      %795 = vst.msk [vmem:[%s223 + $0x100] sm:$0xff] %vm762, %v746
      %796 = vst.msk [vmem:[%s223 + $0x108] sm:$0xff] %vm762, %v747
      %797 = vst.msk [vmem:[%s223 + $0x110] sm:$0xff] %vm762, %v748
      %798 = vst.msk [vmem:[%s223 + $0x118] sm:$0xff] %vm762, %v749
      %799 = vst.msk [vmem:[%s223 + $0x120] sm:$0xff] %vm762, %v750
      %800 = vst.msk [vmem:[%s223 + $0x128] sm:$0xff] %vm762, %v751
      %801 = vst.msk [vmem:[%s223 + $0x130] sm:$0xff] %vm762, %v752
      %802 = vst.msk [vmem:[%s223 + $0x138] sm:$0xff] %vm762, %v753
      %803 = vst.msk [vmem:[%s223 + $0x140] sm:$0xff] %vm762, %v754
      %804 = vst.msk [vmem:[%s223 + $0x148] sm:$0xff] %vm762, %v755
      %805 = vst.msk [vmem:[%s223 + $0x150] sm:$0xff] %vm762, %v756
      %806 = vst.msk [vmem:[%s223 + $0x158] sm:$0xff] %vm762, %v757
      %807 = vst.msk [vmem:[%s223 + $0x160] sm:$0xff] %vm762, %v758
      %808 = vst.msk [vmem:[%s223 + $0x168] sm:$0xff] %vm762, %v759
      %809 = vst.msk [vmem:[%s223 + $0x170] sm:$0xff] %vm762, %v760
      %810 = vst.msk [vmem:[%s223 + $0x178] sm:$0xff] %vm762, %v761
      %s811 = smul.u32 48, %s18
      %p812 = scmp.lt.s32.totalorder %s811, 143
      %s813 = scalar_select %p812, %s811, 143
      %p814 = scmp.lt.s32.totalorder %s19, 0
      %s815 = scalar_select %p814, %s19, 0
      %s816 = sadd.s32 %s815, %s813
      %s817 = smul.addr %s816, 8
      %s818 = scalar_lea.vmem %s3, %s817
      // Predicated region
      $region33: #{ae_forward.18} parent=31 // pred_check
        %p819 = pneg %p124
      $region34: #{ae_forward.18} parent=31 // pred_check_branch
        %821 = sbr.rel (%p819) target = $region36
      $region35: #{ae_forward.18} parent=31 // pred_region
        %s822 = smul.u32 48, %s18
      $region36: #{ae_forward.18} parent=31 // pred_fallthru
        _
    $region32: #{ae_forward.18} parent=5 // pred_fallthru
      _
    %p823 = scmp.le.s32.totalorder 2, %s9
    // Predicated region
    $region37: #{ae_forward.18} parent=5 // pred_check
      %p824 = pneg %p823
    $region38: #{ae_forward.18} parent=5 // pred_check_branch
      %826 = sbr.rel (%p824) target = $region40
    $region39: #{ae_forward.18} parent=5 // pred_region
      %s827 = ssub.s32 %s9, 2
      // Predicated region
      $region41: #{ae_forward.18} parent=39 // pred_check
        %p828 = pneg %p130
      $region42: #{ae_forward.18} parent=39 // pred_check_branch
        %830 = sbr.rel (%p828) target = $region44
      $region43: #{ae_forward.18} parent=39 // pred_region
        %s831 = smul.u32 48, %s20
        %p832 = scmp.lt.s32.totalorder %s831, 143
        %s833 = scalar_select %p832, %s831, 143
        %p834 = scmp.lt.s32.totalorder %s21, 0
        %s835 = scalar_select %p834, %s21, 0
        %s836 = sadd.s32 %s835, %s833
        %s837 = smul.addr %s836, 8
        %s838 = scalar_lea.vmem %s3, %s837
      $region44: #{ae_forward.18} parent=39 // pred_fallthru
        _
    $region40: #{ae_forward.18} parent=5 // pred_fallthru
      _
  $region6: #{ae_forward.18} parent=0 // loop_footer
    %s13 = sadd.s32 1, %s9
  $region7: #{ae_forward.18} parent=0 // loop_footer_branch
    %8 = sbr.rel target = $region3
  $region8: #{ae_forward.18} parent=0 // loop_exit
    _

// kernel: ae_forward.19
$region0: #{ae_forward.19}
  #allocation0 [shape = 'u32[]', space=smem, size = 0x4, offset = 0x4, fixed_abs, tag = 'smem constant byte address 0x4 - core index']
  #allocation1 [shape = 'u32[144,128]{1,0:T(1,128)}', space=vmem, size = 0x12000, scoped, tag = 'internal scratch']
  %s0 = inlined_call_operand.vmem [shape: bf16[4608,64], index: 0, kind: input, shape index: {}]
  %s1 = inlined_call_operand.vmem [shape: bf16[64,12], index: 1, kind: input, shape index: {}]
  %s2 = inlined_call_operand.vmem [shape: f32[1,12], index: 2, kind: input, shape index: {}]
  %s3 = inlined_call_operand.vmem [shape: f32[4608,12], index: 3, kind: output, shape index: {}]
  %s4 = sld [smem:[#allocation0]]
  $region45: #{ae_forward.19} parent=0
    _
  %s6 = ssub.s32 1, %s4
  %s7 = scalar_select 0, %s6, %s4
  loop: start=0, step=1, limit=11
  $region2: #{ae_forward.19} parent=0 // loop_pre_header
    _
  $region3: #{ae_forward.19} parent=0 // loop_header
    %s9 = sphi 0, %s13
    %p10 = scmp.ge.s32.totalorder %s9, 11
    %s16 = sphi 0, %s28
    %s17 = sphi 0, %s24
    %s18 = sphi 0, %s16
    %s19 = sphi 0, %s17
    %s20 = sphi 0, %s18
    %s21 = sphi 0, %s19
    %s31 = sphi 0, %s33
    %s34 = sphi 0, %s31
    %s35 = sphi 0, %s34
    %s51 = sphi 0, %s35
    %s57 = sphi 0, %s59
    %s60 = sphi 0, %s57
    %s61 = sphi 0, %s60
    %s77 = sphi 0, %s61
    %s83 = sphi 0, %s85
    %s86 = sphi 0, %s83
    %s87 = sphi 0, %s86
    %s103 = sphi 0, %s87
    %s111 = sphi 0, %s113
    %s114 = sphi 0, %s111
    %s115 = sphi 0, %s114
    %s131 = sphi 0, %s115
  $region4: #{ae_forward.19} parent=0 // loop_header_branch
    %12 = sbr.rel (%p10) target = $region8
  $region5: #{ae_forward.19} parent=0 // loop_body
    %s14 = ssub.s32 %s9, 1
    %s15 = ssub.s32 %s9, 2
    %s22 = sadd.s32 1, %s17
    %p23 = scmp.ge.s32.totalorder %s22, 1
    %s24 = scalar_select %p23, 0, %s22
    %s25 = sadd.s32 1, %s16
    %s26 = scalar_select %p23, %s25, %s16
    %p27 = scmp.ge.s32.totalorder %s26, 9
    %s28 = scalar_select %p27, 0, %s26
    %s29 = ssub.s32 %s16, %s28
    %p30 = scmp.eq.s32.totalorder %s29, 0
    %s32 = sadd.s32 %s31, 1
    %s33 = scalar_select %p30, %s31, %s32
    %p36 = pneg %p30
    %p37 = scmp.eq.s32.totalorder %s9, 8
    %p38 = por %p36, %p37
    %p39 = scmp.ne.s32.totalorder %s31, %s34
    %p40 = scmp.eq.s32.totalorder %s9, 0
    %p41 = por %p39, %p40
    %p42 = scmp.ne.s32.totalorder %s31, %s34
    %p43 = scmp.eq.s32.totalorder %s14, 8
    %p44 = por %p42, %p43
    %p45 = scmp.ne.s32.totalorder %s34, %s35
    %p46 = scmp.eq.s32.totalorder %s14, 0
    %p47 = por %p45, %p46
    %p48 = scmp.ne.s32.totalorder %s34, %s35
    %p49 = scmp.eq.s32.totalorder %s15, 8
    %p50 = por %p48, %p49
    %p52 = scmp.ne.s32.totalorder %s35, %s51
    %p53 = scmp.eq.s32.totalorder %s15, 0
    %p54 = por %p52, %p53
    %s55 = ssub.s32 %s17, %s24
    %p56 = scmp.eq.s32.totalorder %s55, 0
    %s58 = sadd.s32 %s57, 1
    %s59 = scalar_select %p56, %s57, %s58
    %p62 = pneg %p56
    %p63 = scmp.eq.s32.totalorder %s9, 8
    %p64 = por %p62, %p63
    %p65 = scmp.ne.s32.totalorder %s57, %s60
    %p66 = scmp.eq.s32.totalorder %s9, 0
    %p67 = por %p65, %p66
    %p68 = scmp.ne.s32.totalorder %s57, %s60
    %p69 = scmp.eq.s32.totalorder %s14, 8
    %p70 = por %p68, %p69
    %p71 = scmp.ne.s32.totalorder %s60, %s61
    %p72 = scmp.eq.s32.totalorder %s14, 0
    %p73 = por %p71, %p72
    %p74 = scmp.ne.s32.totalorder %s60, %s61
    %p75 = scmp.eq.s32.totalorder %s15, 8
    %p76 = por %p74, %p75
    %p78 = scmp.ne.s32.totalorder %s61, %s77
    %p79 = scmp.eq.s32.totalorder %s15, 0
    %p80 = por %p78, %p79
    %s81 = ssub.s32 %s17, %s24
    %p82 = scmp.eq.s32.totalorder %s81, 0
    %s84 = sadd.s32 %s83, 1
    %s85 = scalar_select %p82, %s83, %s84
    %p88 = pneg %p82
    %p89 = scmp.eq.s32.totalorder %s9, 8
    %p90 = por %p88, %p89
    %p91 = scmp.ne.s32.totalorder %s83, %s86
    %p92 = scmp.eq.s32.totalorder %s9, 0
    %p93 = por %p91, %p92
    %p94 = scmp.ne.s32.totalorder %s83, %s86
    %p95 = scmp.eq.s32.totalorder %s14, 8
    %p96 = por %p94, %p95
    %p97 = scmp.ne.s32.totalorder %s86, %s87
    %p98 = scmp.eq.s32.totalorder %s14, 0
    %p99 = por %p97, %p98
    %p100 = scmp.ne.s32.totalorder %s86, %s87
    %p101 = scmp.eq.s32.totalorder %s15, 8
    %p102 = por %p100, %p101
    %p104 = scmp.ne.s32.totalorder %s87, %s103
    %p105 = scmp.eq.s32.totalorder %s15, 0
    %p106 = por %p104, %p105
    %s107 = ssub.s32 %s16, %s28
    %s108 = ssub.s32 %s17, %s24
    %s109 = sor.u32 %s107, %s108
    %p110 = scmp.eq.s32.totalorder %s109, 0
    %s112 = sadd.s32 %s111, 1
    %s113 = scalar_select %p110, %s111, %s112
    %p116 = pneg %p110
    %p117 = scmp.eq.s32.totalorder %s9, 8
    %p118 = por %p116, %p117
    %p119 = scmp.ne.s32.totalorder %s111, %s114
    %p120 = scmp.eq.s32.totalorder %s9, 0
    %p121 = por %p119, %p120
    %p122 = scmp.ne.s32.totalorder %s111, %s114
    %p123 = scmp.eq.s32.totalorder %s14, 8
    %p124 = por %p122, %p123
    %p125 = scmp.ne.s32.totalorder %s114, %s115
    %p126 = scmp.eq.s32.totalorder %s14, 0
    %p127 = por %p125, %p126
    %p128 = scmp.ne.s32.totalorder %s114, %s115
    %p129 = scmp.eq.s32.totalorder %s15, 8
    %p130 = por %p128, %p129
    %p132 = scmp.ne.s32.totalorder %s115, %s131
    %p133 = scmp.eq.s32.totalorder %s15, 0
    %p134 = por %p132, %p133
    %p135 = scmp.le.s32.totalorder 1, %s9
    %p136 = scmp.lt.s32.totalorder %s9, 10
    %p137 = pnand %p135, %p136
    %p138 = pneg %p137
    // Predicated region
    $region9: #{ae_forward.19} parent=5 // pred_check
      _
    $region10: #{ae_forward.19} parent=5 // pred_check_branch
      %140 = sbr.rel (%p137) target = $region12
    $region11: #{ae_forward.19} parent=5 // pred_region
      %s141 = ssub.s32 %s9, 1
      // Predicated region
      $region13: #{ae_forward.19} parent=11 // pred_check
        %p142 = pneg %p73
      $region14: #{ae_forward.19} parent=11 // pred_check_branch
        %144 = sbr.rel (%p142) target = $region16
      $region15: #{ae_forward.19} parent=11 // pred_region
        %p145 = scmp.lt.s32.totalorder %s19, 0
        %s146 = scalar_select %p145, %s19, 0
        %s147 = smul.addr %s146, 4
        %s148 = scalar_lea.vmem %s1, %s147
      $region16: #{ae_forward.19} parent=11 // pred_fallthru
        _
      // Predicated region
      $region17: #{ae_forward.19} parent=11 // pred_check
        %p149 = pneg %p99
      $region18: #{ae_forward.19} parent=11 // pred_check_branch
        %151 = sbr.rel (%p149) target = $region20
      $region19: #{ae_forward.19} parent=11 // pred_region
        %p152 = scmp.lt.s32.totalorder %s19, 0
        %s153 = scalar_select %p152, %s19, 0
        %s154 = scalar_lea.vmem %s2, %s153
      $region20: #{ae_forward.19} parent=11 // pred_fallthru
        _
    $region12: #{ae_forward.19} parent=5 // pred_fallthru
      _
    %p155 = scmp.lt.s32.totalorder %s9, 9
    // Predicated region
    $region21: #{ae_forward.19} parent=5 // pred_check
      %p156 = pneg %p155
    $region22: #{ae_forward.19} parent=5 // pred_check_branch
      %158 = sbr.rel (%p156) target = $region24
    $region23: #{ae_forward.19} parent=5 // pred_region
      // Predicated region
      $region25: #{ae_forward.19} parent=23 // pred_check
        %p159 = pneg %p41
      $region26: #{ae_forward.19} parent=23 // pred_check_branch
        %161 = sbr.rel (%p159) target = $region28
      $region27: #{ae_forward.19} parent=23 // pred_region
        %s162 = smul.u32 64, %s16
        %p163 = scmp.lt.s32.totalorder %s162, 575
        %s164 = scalar_select %p163, %s162, 575
        %s165 = smul.addr %s164, 4
        %s166 = scalar_lea.vmem %s0, %s165
        %s167 = smul.u32 64, %s16
      $region28: #{ae_forward.19} parent=23 // pred_fallthru
        _
    $region24: #{ae_forward.19} parent=5 // pred_fallthru
      _
    %p168 = scmp.le.s32.totalorder 1, %s9
    %p169 = scmp.lt.s32.totalorder %s9, 10
    %p170 = pnand %p168, %p169
    %p171 = pneg %p170
    // Predicated region
    $region29: #{ae_forward.19} parent=5 // pred_check
      _
    $region30: #{ae_forward.19} parent=5 // pred_check_branch
      %173 = sbr.rel (%p170) target = $region32
    $region31: #{ae_forward.19} parent=5 // pred_region
      %s174 = ssub.s32 %s9, 1
      %s175 = smul.u32 64, %s18
      %p176 = scmp.lt.s32.totalorder %s175, 575
      %s177 = scalar_select %p176, %s175, 575
      %s178 = smul.addr %s177, 4
      %s179 = scalar_lea.vmem %s0, %s178
      %p180 = pneg %p47
      %p181 = pneg %p44
      %p182 = scmp.lt.s32.totalorder %s19, 0
      %s183 = scalar_select %p182, %s19, 0
      %s184 = smul.addr %s183, 4
      %s185 = scalar_lea.vmem %s1, %s184
      %p186 = pneg %p73
      %p187 = pneg %p70
      %p188 = scmp.lt.s32.totalorder %s19, 0
      %s189 = scalar_select %p188, %s19, 0
      %s190 = scalar_lea.vmem %s2, %s189
      %p191 = pneg %p99
      %p192 = pneg %p96
      %p193 = pneg %p127
      %p194 = pneg %p124
      %s195 = smul.u32 64, %s18
      %p196 = scmp.lt.s32.totalorder %s195, 575
      %s197 = scalar_select %p196, %s195, 575
      %p198 = scmp.lt.s32.totalorder %s19, 0
      %s199 = scalar_select %p198, %s19, 0
      %s200 = sadd.s32 %s199, %s197
      %s201 = smul.addr %s200, 8
      %s202 = scalar_lea.vmem %s3, %s201
      %s203 = smul.u32 64, %s18
      %p204 = scmp.lt.s32.totalorder %s203, 575
      %s205 = scalar_select %p204, %s203, 575
      %s206 = smul.addr %s205, 4
      %s207 = scalar_lea.vmem %s0, %s206
      %s208 = smul.u32 64, %s18
      %p209 = scmp.lt.s32.totalorder %s19, 0
      %s210 = scalar_select %p209, %s19, 0
      %s211 = smul.addr %s210, 4
      %s212 = scalar_lea.vmem %s1, %s211
      %p213 = scmp.lt.s32.totalorder %s19, 0
      %s214 = scalar_select %p213, %s19, 0
      %s215 = scalar_lea.vmem %s2, %s214
      %s216 = smul.u32 64, %s18
      %p217 = scmp.lt.s32.totalorder %s216, 575
      %s218 = scalar_select %p217, %s216, 575
      %p219 = scmp.lt.s32.totalorder %s19, 0
      %s220 = scalar_select %p219, %s19, 0
      %s221 = sadd.s32 %s220, %s218
      %s222 = smul.addr %s221, 8
      %s223 = scalar_lea.vmem %s3, %s222
      %s224 = smul.u32 64, %s18
      %v226 = vld [vmem:[%s207] sm:$0xf]
      %v227 = vld [vmem:[%s207 + $0x4] sm:$0xf]
      %v228 = vld [vmem:[%s207 + $0x8] sm:$0xf]
      %v229 = vld [vmem:[%s207 + $0xc] sm:$0xf]
      %v230 = vld [vmem:[%s207 + $0x10] sm:$0xf]
      %v231 = vld [vmem:[%s207 + $0x14] sm:$0xf]
      %v232 = vld [vmem:[%s207 + $0x18] sm:$0xf]
      %v233 = vld [vmem:[%s207 + $0x1c] sm:$0xf]
      %v234 = vld [vmem:[%s207 + $0x20] sm:$0xf]
      %v235 = vld [vmem:[%s207 + $0x24] sm:$0xf]
      %v236 = vld [vmem:[%s207 + $0x28] sm:$0xf]
      %v237 = vld [vmem:[%s207 + $0x2c] sm:$0xf]
      %v238 = vld [vmem:[%s207 + $0x30] sm:$0xf]
      %v239 = vld [vmem:[%s207 + $0x34] sm:$0xf]
      %v240 = vld [vmem:[%s207 + $0x38] sm:$0xf]
      %v241 = vld [vmem:[%s207 + $0x3c] sm:$0xf]
      %v242 = vld [vmem:[%s207 + $0x40] sm:$0xf]
      %v243 = vld [vmem:[%s207 + $0x44] sm:$0xf]
      %v244 = vld [vmem:[%s207 + $0x48] sm:$0xf]
      %v245 = vld [vmem:[%s207 + $0x4c] sm:$0xf]
      %v246 = vld [vmem:[%s207 + $0x50] sm:$0xf]
      %v247 = vld [vmem:[%s207 + $0x54] sm:$0xf]
      %v248 = vld [vmem:[%s207 + $0x58] sm:$0xf]
      %v249 = vld [vmem:[%s207 + $0x5c] sm:$0xf]
      %v250 = vld [vmem:[%s207 + $0x60] sm:$0xf]
      %v251 = vld [vmem:[%s207 + $0x64] sm:$0xf]
      %v252 = vld [vmem:[%s207 + $0x68] sm:$0xf]
      %v253 = vld [vmem:[%s207 + $0x6c] sm:$0xf]
      %v254 = vld [vmem:[%s207 + $0x70] sm:$0xf]
      %v255 = vld [vmem:[%s207 + $0x74] sm:$0xf]
      %v256 = vld [vmem:[%s207 + $0x78] sm:$0xf]
      %v257 = vld [vmem:[%s207 + $0x7c] sm:$0xf]
      %v258 = vld [vmem:[%s207 + $0x80] sm:$0xf]
      %v259 = vld [vmem:[%s207 + $0x84] sm:$0xf]
      %v260 = vld [vmem:[%s207 + $0x88] sm:$0xf]
      %v261 = vld [vmem:[%s207 + $0x8c] sm:$0xf]
      %v262 = vld [vmem:[%s207 + $0x90] sm:$0xf]
      %v263 = vld [vmem:[%s207 + $0x94] sm:$0xf]
      %v264 = vld [vmem:[%s207 + $0x98] sm:$0xf]
      %v265 = vld [vmem:[%s207 + $0x9c] sm:$0xf]
      %v266 = vld [vmem:[%s207 + $0xa0] sm:$0xf]
      %v267 = vld [vmem:[%s207 + $0xa4] sm:$0xf]
      %v268 = vld [vmem:[%s207 + $0xa8] sm:$0xf]
      %v269 = vld [vmem:[%s207 + $0xac] sm:$0xf]
      %v270 = vld [vmem:[%s207 + $0xb0] sm:$0xf]
      %v271 = vld [vmem:[%s207 + $0xb4] sm:$0xf]
      %v272 = vld [vmem:[%s207 + $0xb8] sm:$0xf]
      %v273 = vld [vmem:[%s207 + $0xbc] sm:$0xf]
      %v274 = vld [vmem:[%s207 + $0xc0] sm:$0xf]
      %v275 = vld [vmem:[%s207 + $0xc4] sm:$0xf]
      %v276 = vld [vmem:[%s207 + $0xc8] sm:$0xf]
      %v277 = vld [vmem:[%s207 + $0xcc] sm:$0xf]
      %v278 = vld [vmem:[%s207 + $0xd0] sm:$0xf]
      %v279 = vld [vmem:[%s207 + $0xd4] sm:$0xf]
      %v280 = vld [vmem:[%s207 + $0xd8] sm:$0xf]
      %v281 = vld [vmem:[%s207 + $0xdc] sm:$0xf]
      %v282 = vld [vmem:[%s207 + $0xe0] sm:$0xf]
      %v283 = vld [vmem:[%s207 + $0xe4] sm:$0xf]
      %v284 = vld [vmem:[%s207 + $0xe8] sm:$0xf]
      %v285 = vld [vmem:[%s207 + $0xec] sm:$0xf]
      %v286 = vld [vmem:[%s207 + $0xf0] sm:$0xf]
      %v287 = vld [vmem:[%s207 + $0xf4] sm:$0xf]
      %v288 = vld [vmem:[%s207 + $0xf8] sm:$0xf]
      %v289 = vld [vmem:[%s207 + $0xfc] sm:$0xf]
      %v290 = vld [vmem:[%s212] sm:$0xf]
      %v291 = vld [vmem:[%s212 + $0x4] sm:$0xf]
      %v292 = vld [vmem:[%s212 + $0x8] sm:$0xf]
      %v293 = vld [vmem:[%s212 + $0xc] sm:$0xf]
      %v294 = vld [vmem:[%s212 + $0x10] sm:$0xf]
      %v295 = vld [vmem:[%s212 + $0x14] sm:$0xf]
      %v296 = vld [vmem:[%s212 + $0x18] sm:$0xf]
      %v297 = vld [vmem:[%s212 + $0x1c] sm:$0xf]
      %v298 = vld [vmem:[%s215] sm:$0x1]
      %v300 = vlaneseq
      %v301 = vshrl.u32 %v300, 7
      %v302 = vsub.s32 0, %v301
      %v303 = vrot.slane %v298, %v302
      %v369 = vunpack.c.l.b16 %v226
      %v370 = vunpack.c.l.b16 %v227
      %v371 = vunpack.c.l.b16 %v228
      %v372 = vunpack.c.l.b16 %v229
      %v373 = vunpack.c.l.b16 %v230
      %v374 = vunpack.c.l.b16 %v231
      %v375 = vunpack.c.l.b16 %v232
      %v376 = vunpack.c.l.b16 %v233
      %v377 = vunpack.c.l.b16 %v234
      %v378 = vunpack.c.l.b16 %v235
      %v379 = vunpack.c.l.b16 %v236
      %v380 = vunpack.c.l.b16 %v237
      %v381 = vunpack.c.l.b16 %v238
      %v382 = vunpack.c.l.b16 %v239
      %v383 = vunpack.c.l.b16 %v240
      %v384 = vunpack.c.l.b16 %v241
      %v385 = vunpack.c.l.b16 %v242
      %v386 = vunpack.c.l.b16 %v243
      %v387 = vunpack.c.l.b16 %v244
      %v388 = vunpack.c.l.b16 %v245
      %v389 = vunpack.c.l.b16 %v246
      %v390 = vunpack.c.l.b16 %v247
      %v391 = vunpack.c.l.b16 %v248
      %v392 = vunpack.c.l.b16 %v249
      %v393 = vunpack.c.l.b16 %v250
      %v394 = vunpack.c.l.b16 %v251
      %v395 = vunpack.c.l.b16 %v252
      %v396 = vunpack.c.l.b16 %v253
      %v397 = vunpack.c.l.b16 %v254
      %v398 = vunpack.c.l.b16 %v255
      %v399 = vunpack.c.l.b16 %v256
      %v400 = vunpack.c.l.b16 %v257
      %v401 = vunpack.c.l.b16 %v258
      %v402 = vunpack.c.l.b16 %v259
      %v403 = vunpack.c.l.b16 %v260
      %v404 = vunpack.c.l.b16 %v261
      %v405 = vunpack.c.l.b16 %v262
      %v406 = vunpack.c.l.b16 %v263
      %v407 = vunpack.c.l.b16 %v264
      %v408 = vunpack.c.l.b16 %v265
      %v409 = vunpack.c.l.b16 %v266
      %v410 = vunpack.c.l.b16 %v267
      %v411 = vunpack.c.l.b16 %v268
      %v412 = vunpack.c.l.b16 %v269
      %v413 = vunpack.c.l.b16 %v270
      %v414 = vunpack.c.l.b16 %v271
      %v415 = vunpack.c.l.b16 %v272
      %v416 = vunpack.c.l.b16 %v273
      %v417 = vunpack.c.l.b16 %v274
      %v418 = vunpack.c.l.b16 %v275
      %v419 = vunpack.c.l.b16 %v276
      %v420 = vunpack.c.l.b16 %v277
      %v421 = vunpack.c.l.b16 %v278
      %v422 = vunpack.c.l.b16 %v279
      %v423 = vunpack.c.l.b16 %v280
      %v424 = vunpack.c.l.b16 %v281
      %v425 = vunpack.c.l.b16 %v282
      %v426 = vunpack.c.l.b16 %v283
      %v427 = vunpack.c.l.b16 %v284
      %v428 = vunpack.c.l.b16 %v285
      %v429 = vunpack.c.l.b16 %v286
      %v430 = vunpack.c.l.b16 %v287
      %v431 = vunpack.c.l.b16 %v288
      %v432 = vunpack.c.l.b16 %v289
      %v433 = vpack.c.b16 %v370, %v369
      %v434 = vpack.c.b16 %v372, %v371
      %v435 = vpack.c.b16 %v374, %v373
      %v436 = vpack.c.b16 %v376, %v375
      %v437 = vpack.c.b16 %v378, %v377
      %v438 = vpack.c.b16 %v380, %v379
      %v439 = vpack.c.b16 %v382, %v381
      %v440 = vpack.c.b16 %v384, %v383
      %v441 = vpack.c.b16 %v386, %v385
      %v442 = vpack.c.b16 %v388, %v387
      %v443 = vpack.c.b16 %v390, %v389
      %v444 = vpack.c.b16 %v392, %v391
      %v445 = vpack.c.b16 %v394, %v393
      %v446 = vpack.c.b16 %v396, %v395
      %v447 = vpack.c.b16 %v398, %v397
      %v448 = vpack.c.b16 %v400, %v399
      %v449 = vpack.c.b16 %v402, %v401
      %v450 = vpack.c.b16 %v404, %v403
      %v451 = vpack.c.b16 %v406, %v405
      %v452 = vpack.c.b16 %v408, %v407
      %v453 = vpack.c.b16 %v410, %v409
      %v454 = vpack.c.b16 %v412, %v411
      %v455 = vpack.c.b16 %v414, %v413
      %v456 = vpack.c.b16 %v416, %v415
      %v457 = vpack.c.b16 %v418, %v417
      %v458 = vpack.c.b16 %v420, %v419
      %v459 = vpack.c.b16 %v422, %v421
      %v460 = vpack.c.b16 %v424, %v423
      %v461 = vpack.c.b16 %v426, %v425
      %v462 = vpack.c.b16 %v428, %v427
      %v463 = vpack.c.b16 %v430, %v429
      %v464 = vpack.c.b16 %v432, %v431
      %v473 = vunpack.c.l.b16 %v290
      %v474 = vunpack.c.l.b16 %v291
      %v475 = vunpack.c.l.b16 %v292
      %v476 = vunpack.c.l.b16 %v293
      %v477 = vunpack.c.l.b16 %v294
      %v478 = vunpack.c.l.b16 %v295
      %v479 = vunpack.c.l.b16 %v296
      %v480 = vunpack.c.l.b16 %v297
      %v481 = vpack.c.b16 %v474, %v473
      %v482 = vpack.c.b16 %v476, %v475
      %v483 = vpack.c.b16 %v478, %v477
      %v484 = vpack.c.b16 %v480, %v479
      %vm489 = vcmask 523264
      %v491 = vsel %vm489, %v433, 0
      %v494 = vsel %vm489, %v434, 0
      %v497 = vsel %vm489, %v435, 0
      %v500 = vsel %vm489, %v436, 0
      %v503 = vsel %vm489, %v437, 0
      %v506 = vsel %vm489, %v438, 0
      %v509 = vsel %vm489, %v439, 0
      %v512 = vsel %vm489, %v440, 0
      %v515 = vsel %vm489, %v441, 0
      %v518 = vsel %vm489, %v442, 0
      %v521 = vsel %vm489, %v443, 0
      %v524 = vsel %vm489, %v444, 0
      %v527 = vsel %vm489, %v445, 0
      %v530 = vsel %vm489, %v446, 0
      %v533 = vsel %vm489, %v447, 0
      %v536 = vsel %vm489, %v448, 0
      %v539 = vsel %vm489, %v449, 0
      %v542 = vsel %vm489, %v450, 0
      %v545 = vsel %vm489, %v451, 0
      %v548 = vsel %vm489, %v452, 0
      %v551 = vsel %vm489, %v453, 0
      %v554 = vsel %vm489, %v454, 0
      %v557 = vsel %vm489, %v455, 0
      %v560 = vsel %vm489, %v456, 0
      %v563 = vsel %vm489, %v457, 0
      %v566 = vsel %vm489, %v458, 0
      %v569 = vsel %vm489, %v459, 0
      %v572 = vsel %vm489, %v460, 0
      %v575 = vsel %vm489, %v461, 0
      %v578 = vsel %vm489, %v462, 0
      %v581 = vsel %vm489, %v463, 0
      %v584 = vsel %vm489, %v464, 0
      %586 = vmatprep.subr.bf16.mxu0 0
      %587 = vmatpush1.bf16.msra.mxu0 %v481
      %588 = vmatprep.subr.bf16.mxu0 0
      %589 = vmatpush1.bf16.msra.mxu0 %v482
      %590 = vmatprep.subr.bf16.mxu0 0
      %591 = vmatpush1.bf16.msra.mxu0 %v483
      %592 = vmatprep.subr.bf16.mxu0 0
      %593 = vmatpush1.bf16.msra.mxu0 %v484
      %594 = vmatprep.subr.bf16.mxu0 0
      %595 = vmatpush1.bf16.msra.mxu0 0
      %596 = vmatprep.subr.bf16.mxu0 0
      %597 = vmatpush1.bf16.msra.mxu0 0
      %598 = vmatprep.subr.bf16.mxu0 0
      %599 = vmatpush1.bf16.msra.mxu0 0
      %600 = vmatprep.subr.bf16.mxu0 0
      %601 = vmatpush1.bf16.msra.mxu0 0
      %602 = vmatprep.subr.bf16.mxu0 0
      %603 = vmatpush1.bf16.msra.mxu0 0
      %604 = vmatprep.subr.bf16.mxu0 0
      %605 = vmatpush1.bf16.msra.mxu0 0
      %606 = vmatprep.subr.bf16.mxu0 0
      %607 = vmatpush1.bf16.msra.mxu0 0
      %608 = vmatprep.subr.bf16.mxu0 0
      %609 = vmatpush1.bf16.msra.mxu0 0
      %610 = vmatprep.subr.bf16.mxu0 0
      %611 = vmatpush1.bf16.msra.mxu0 0
      %612 = vmatprep.subr.bf16.mxu0 0
      %613 = vmatpush1.bf16.msra.mxu0 0
      %614 = vmatprep.subr.bf16.mxu0 0
      %615 = vmatpush1.bf16.msra.mxu0 0
      %616 = vmatprep.subr.bf16.mxu0 0
      %617 = vmatpush1.bf16.msra.mxu0 0
      %618 = vmatprep.mubr.bf16.mxu0 0
      %619 = vmatmul.mubr.bf16.gmra.mrb[0].mxu0 %v491
      %v620 = vpop.f32.mrb[0].mxu0
      %v621 = vadd.f32 %v303, %v620
      %v622 = vpop.f32.mrb[0].mxu0
      %v623 = vpop.f32.mrb[0].mxu0
      %v624 = vadd.f32 %v303, %v623
      %v625 = vpop.f32.mrb[0].mxu0
      %626 = vmatprep.mubr.bf16.mxu0 0
      %627 = vmatmul.mubr.bf16.gmra.mrb[0].mxu0 %v494
      %v628 = vpop.f32.mrb[0].mxu0
      %v629 = vadd.f32 %v303, %v628
      %v630 = vpop.f32.mrb[0].mxu0
      %v631 = vpop.f32.mrb[0].mxu0
      %v632 = vadd.f32 %v303, %v631
      %v633 = vpop.f32.mrb[0].mxu0
      %634 = vmatprep.mubr.bf16.mxu0 0
      %635 = vmatmul.mubr.bf16.gmra.mrb[0].mxu0 %v497
      %v636 = vpop.f32.mrb[0].mxu0
      %v637 = vadd.f32 %v303, %v636
      %v638 = vpop.f32.mrb[0].mxu0
      %v639 = vpop.f32.mrb[0].mxu0
      %v640 = vadd.f32 %v303, %v639
      %v641 = vpop.f32.mrb[0].mxu0
      %642 = vmatprep.mubr.bf16.mxu0 0
      %643 = vmatmul.mubr.bf16.gmra.mrb[0].mxu0 %v500
      %v644 = vpop.f32.mrb[0].mxu0
      %v645 = vadd.f32 %v303, %v644
      %v646 = vpop.f32.mrb[0].mxu0
      %v647 = vpop.f32.mrb[0].mxu0
      %v648 = vadd.f32 %v303, %v647
      %v649 = vpop.f32.mrb[0].mxu0
      %650 = vmatprep.mubr.bf16.mxu0 0
      %651 = vmatmul.mubr.bf16.gmra.mrb[0].mxu0 %v503
      %v652 = vpop.f32.mrb[0].mxu0
      %v653 = vadd.f32 %v303, %v652
      %v654 = vpop.f32.mrb[0].mxu0
      %v655 = vpop.f32.mrb[0].mxu0
      %v656 = vadd.f32 %v303, %v655
      %v657 = vpop.f32.mrb[0].mxu0
      %658 = vmatprep.mubr.bf16.mxu0 0
      %659 = vmatmul.mubr.bf16.gmra.mrb[0].mxu0 %v506
      %v660 = vpop.f32.mrb[0].mxu0
      %v661 = vadd.f32 %v303, %v660
      %v662 = vpop.f32.mrb[0].mxu0
      %v663 = vpop.f32.mrb[0].mxu0
      %v664 = vadd.f32 %v303, %v663
      %v665 = vpop.f32.mrb[0].mxu0
      %666 = vmatprep.mubr.bf16.mxu0 0
      %667 = vmatmul.mubr.bf16.gmra.mrb[0].mxu0 %v509
      %v668 = vpop.f32.mrb[0].mxu0
      %v669 = vadd.f32 %v303, %v668
      %v670 = vpop.f32.mrb[0].mxu0
      %v671 = vpop.f32.mrb[0].mxu0
      %v672 = vadd.f32 %v303, %v671
      %v673 = vpop.f32.mrb[0].mxu0
      %674 = vmatprep.mubr.bf16.mxu0 0
      %675 = vmatmul.mubr.bf16.gmra.mrb[0].mxu0 %v512
      %v676 = vpop.f32.mrb[0].mxu0
      %v677 = vadd.f32 %v303, %v676
      %v678 = vpop.f32.mrb[0].mxu0
      %v679 = vpop.f32.mrb[0].mxu0
      %v680 = vadd.f32 %v303, %v679
      %v681 = vpop.f32.mrb[0].mxu0
      %682 = vmatprep.mubr.bf16.mxu0 0
      %683 = vmatmul.mubr.bf16.gmra.mrb[0].mxu0 %v515
      %v684 = vpop.f32.mrb[0].mxu0
      %v685 = vadd.f32 %v303, %v684
      %v686 = vpop.f32.mrb[0].mxu0
      %v687 = vpop.f32.mrb[0].mxu0
      %v688 = vadd.f32 %v303, %v687
      %v689 = vpop.f32.mrb[0].mxu0
      %690 = vmatprep.mubr.bf16.mxu0 0
      %691 = vmatmul.mubr.bf16.gmra.mrb[0].mxu0 %v518
      %v692 = vpop.f32.mrb[0].mxu0
      %v693 = vadd.f32 %v303, %v692
      %v694 = vpop.f32.mrb[0].mxu0
      %v695 = vpop.f32.mrb[0].mxu0
      %v696 = vadd.f32 %v303, %v695
      %v697 = vpop.f32.mrb[0].mxu0
      %698 = vmatprep.mubr.bf16.mxu0 0
      %699 = vmatmul.mubr.bf16.gmra.mrb[0].mxu0 %v521
      %v700 = vpop.f32.mrb[0].mxu0
      %v701 = vadd.f32 %v303, %v700
      %v702 = vpop.f32.mrb[0].mxu0
      %v703 = vpop.f32.mrb[0].mxu0
      %v704 = vadd.f32 %v303, %v703
      %v705 = vpop.f32.mrb[0].mxu0
      %706 = vmatprep.mubr.bf16.mxu0 0
      %707 = vmatmul.mubr.bf16.gmra.mrb[0].mxu0 %v524
      %v708 = vpop.f32.mrb[0].mxu0
      %v709 = vadd.f32 %v303, %v708
      %v710 = vpop.f32.mrb[0].mxu0
      %v711 = vpop.f32.mrb[0].mxu0
      %v712 = vadd.f32 %v303, %v711
      %v713 = vpop.f32.mrb[0].mxu0
      %714 = vmatprep.mubr.bf16.mxu0 0
      %715 = vmatmul.mubr.bf16.gmra.mrb[0].mxu0 %v527
      %v716 = vpop.f32.mrb[0].mxu0
      %v717 = vadd.f32 %v303, %v716
      %v718 = vpop.f32.mrb[0].mxu0
      %v719 = vpop.f32.mrb[0].mxu0
      %v720 = vadd.f32 %v303, %v719
      %v721 = vpop.f32.mrb[0].mxu0
      %722 = vmatprep.mubr.bf16.mxu0 0
      %723 = vmatmul.mubr.bf16.gmra.mrb[0].mxu0 %v530
      %v724 = vpop.f32.mrb[0].mxu0
      %v725 = vadd.f32 %v303, %v724
      %v726 = vpop.f32.mrb[0].mxu0
      %v727 = vpop.f32.mrb[0].mxu0
      %v728 = vadd.f32 %v303, %v727
      %v729 = vpop.f32.mrb[0].mxu0
      %730 = vmatprep.mubr.bf16.mxu0 0
      %731 = vmatmul.mubr.bf16.gmra.mrb[0].mxu0 %v533
      %v732 = vpop.f32.mrb[0].mxu0
      %v733 = vadd.f32 %v303, %v732
      %v734 = vpop.f32.mrb[0].mxu0
      %v735 = vpop.f32.mrb[0].mxu0
      %v736 = vadd.f32 %v303, %v735
      %v737 = vpop.f32.mrb[0].mxu0
      %738 = vmatprep.mubr.bf16.mxu0 0
      %739 = vmatmul.mubr.bf16.gmra.mrb[0].mxu0 %v536
      %v740 = vpop.f32.mrb[0].mxu0
      %v741 = vadd.f32 %v303, %v740
      %v742 = vpop.f32.mrb[0].mxu0
      %v743 = vpop.f32.mrb[0].mxu0
      %v744 = vadd.f32 %v303, %v743
      %v745 = vpop.f32.mrb[0].mxu0
      %746 = vmatprep.mubr.bf16.mxu0 0
      %747 = vmatmul.mubr.bf16.gmra.mrb[0].mxu0 %v539
      %v748 = vpop.f32.mrb[0].mxu0
      %v749 = vadd.f32 %v303, %v748
      %v750 = vpop.f32.mrb[0].mxu0
      %v751 = vpop.f32.mrb[0].mxu0
      %v752 = vadd.f32 %v303, %v751
      %v753 = vpop.f32.mrb[0].mxu0
      %754 = vmatprep.mubr.bf16.mxu0 0
      %755 = vmatmul.mubr.bf16.gmra.mrb[0].mxu0 %v542
      %v756 = vpop.f32.mrb[0].mxu0
      %v757 = vadd.f32 %v303, %v756
      %v758 = vpop.f32.mrb[0].mxu0
      %v759 = vpop.f32.mrb[0].mxu0
      %v760 = vadd.f32 %v303, %v759
      %v761 = vpop.f32.mrb[0].mxu0
      %762 = vmatprep.mubr.bf16.mxu0 0
      %763 = vmatmul.mubr.bf16.gmra.mrb[0].mxu0 %v545
      %v764 = vpop.f32.mrb[0].mxu0
      %v765 = vadd.f32 %v303, %v764
      %v766 = vpop.f32.mrb[0].mxu0
      %v767 = vpop.f32.mrb[0].mxu0
      %v768 = vadd.f32 %v303, %v767
      %v769 = vpop.f32.mrb[0].mxu0
      %770 = vmatprep.mubr.bf16.mxu0 0
      %771 = vmatmul.mubr.bf16.gmra.mrb[0].mxu0 %v548
      %v772 = vpop.f32.mrb[0].mxu0
      %v773 = vadd.f32 %v303, %v772
      %v774 = vpop.f32.mrb[0].mxu0
      %v775 = vpop.f32.mrb[0].mxu0
      %v776 = vadd.f32 %v303, %v775
      %v777 = vpop.f32.mrb[0].mxu0
      %778 = vmatprep.mubr.bf16.mxu0 0
      %779 = vmatmul.mubr.bf16.gmra.mrb[0].mxu0 %v551
      %v780 = vpop.f32.mrb[0].mxu0
      %v781 = vadd.f32 %v303, %v780
      %v782 = vpop.f32.mrb[0].mxu0
      %v783 = vpop.f32.mrb[0].mxu0
      %v784 = vadd.f32 %v303, %v783
      %v785 = vpop.f32.mrb[0].mxu0
      %786 = vmatprep.mubr.bf16.mxu0 0
      %787 = vmatmul.mubr.bf16.gmra.mrb[0].mxu0 %v554
      %v788 = vpop.f32.mrb[0].mxu0
      %v789 = vadd.f32 %v303, %v788
      %v790 = vpop.f32.mrb[0].mxu0
      %v791 = vpop.f32.mrb[0].mxu0
      %v792 = vadd.f32 %v303, %v791
      %v793 = vpop.f32.mrb[0].mxu0
      %794 = vmatprep.mubr.bf16.mxu0 0
      %795 = vmatmul.mubr.bf16.gmra.mrb[0].mxu0 %v557
      %v796 = vpop.f32.mrb[0].mxu0
      %v797 = vadd.f32 %v303, %v796
      %v798 = vpop.f32.mrb[0].mxu0
      %v799 = vpop.f32.mrb[0].mxu0
      %v800 = vadd.f32 %v303, %v799
      %v801 = vpop.f32.mrb[0].mxu0
      %802 = vmatprep.mubr.bf16.mxu0 0
      %803 = vmatmul.mubr.bf16.gmra.mrb[0].mxu0 %v560
      %v804 = vpop.f32.mrb[0].mxu0
      %v805 = vadd.f32 %v303, %v804
      %v806 = vpop.f32.mrb[0].mxu0
      %v807 = vpop.f32.mrb[0].mxu0
      %v808 = vadd.f32 %v303, %v807
      %v809 = vpop.f32.mrb[0].mxu0
      %810 = vmatprep.mubr.bf16.mxu0 0
      %811 = vmatmul.mubr.bf16.gmra.mrb[0].mxu0 %v563
      %v812 = vpop.f32.mrb[0].mxu0
      %v813 = vadd.f32 %v303, %v812
      %v814 = vpop.f32.mrb[0].mxu0
      %v815 = vpop.f32.mrb[0].mxu0
      %v816 = vadd.f32 %v303, %v815
      %v817 = vpop.f32.mrb[0].mxu0
      %818 = vmatprep.mubr.bf16.mxu0 0
      %819 = vmatmul.mubr.bf16.gmra.mrb[0].mxu0 %v566
      %v820 = vpop.f32.mrb[0].mxu0
      %v821 = vadd.f32 %v303, %v820
      %v822 = vpop.f32.mrb[0].mxu0
      %v823 = vpop.f32.mrb[0].mxu0
      %v824 = vadd.f32 %v303, %v823
      %v825 = vpop.f32.mrb[0].mxu0
      %826 = vmatprep.mubr.bf16.mxu0 0
      %827 = vmatmul.mubr.bf16.gmra.mrb[0].mxu0 %v569
      %v828 = vpop.f32.mrb[0].mxu0
      %v829 = vadd.f32 %v303, %v828
      %v830 = vpop.f32.mrb[0].mxu0
      %v831 = vpop.f32.mrb[0].mxu0
      %v832 = vadd.f32 %v303, %v831
      %v833 = vpop.f32.mrb[0].mxu0
      %834 = vmatprep.mubr.bf16.mxu0 0
      %835 = vmatmul.mubr.bf16.gmra.mrb[0].mxu0 %v572
      %v836 = vpop.f32.mrb[0].mxu0
      %v837 = vadd.f32 %v303, %v836
      %v838 = vpop.f32.mrb[0].mxu0
      %v839 = vpop.f32.mrb[0].mxu0
      %v840 = vadd.f32 %v303, %v839
      %v841 = vpop.f32.mrb[0].mxu0
      %842 = vmatprep.mubr.bf16.mxu0 0
      %843 = vmatmul.mubr.bf16.gmra.mrb[0].mxu0 %v575
      %v844 = vpop.f32.mrb[0].mxu0
      %v845 = vadd.f32 %v303, %v844
      %v846 = vpop.f32.mrb[0].mxu0
      %v847 = vpop.f32.mrb[0].mxu0
      %v848 = vadd.f32 %v303, %v847
      %v849 = vpop.f32.mrb[0].mxu0
      %850 = vmatprep.mubr.bf16.mxu0 0
      %851 = vmatmul.mubr.bf16.gmra.mrb[0].mxu0 %v578
      %v852 = vpop.f32.mrb[0].mxu0
      %v853 = vadd.f32 %v303, %v852
      %v854 = vpop.f32.mrb[0].mxu0
      %v855 = vpop.f32.mrb[0].mxu0
      %v856 = vadd.f32 %v303, %v855
      %v857 = vpop.f32.mrb[0].mxu0
      %858 = vmatprep.mubr.bf16.mxu0 0
      %859 = vmatmul.mubr.bf16.gmra.mrb[0].mxu0 %v581
      %v860 = vpop.f32.mrb[0].mxu0
      %v861 = vadd.f32 %v303, %v860
      %v862 = vpop.f32.mrb[0].mxu0
      %v863 = vpop.f32.mrb[0].mxu0
      %v864 = vadd.f32 %v303, %v863
      %v865 = vpop.f32.mrb[0].mxu0
      %866 = vmatprep.mubr.bf16.mxu0 0
      %867 = vmatmul.mubr.bf16.gmra.mrb[0].mxu0 %v584
      %v868 = vpop.f32.mrb[0].mxu0
      %v869 = vadd.f32 %v303, %v868
      %v870 = vpop.f32.mrb[0].mxu0
      %v871 = vpop.f32.mrb[0].mxu0
      %v872 = vadd.f32 %v303, %v871
      %v873 = vpop.f32.mrb[0].mxu0
      %874 = vdwg.mxu0
      %v875 = vmax.f32 %v621, 0.0
      %v876 = vmax.f32 %v624, 0.0
      %v877 = vmax.f32 %v629, 0.0
      %v878 = vmax.f32 %v632, 0.0
      %v879 = vmax.f32 %v637, 0.0
      %v880 = vmax.f32 %v640, 0.0
      %v881 = vmax.f32 %v645, 0.0
      %v882 = vmax.f32 %v648, 0.0
      %v883 = vmax.f32 %v653, 0.0
      %v884 = vmax.f32 %v656, 0.0
      %v885 = vmax.f32 %v661, 0.0
      %v886 = vmax.f32 %v664, 0.0
      %v887 = vmax.f32 %v669, 0.0
      %v888 = vmax.f32 %v672, 0.0
      %v889 = vmax.f32 %v677, 0.0
      %v890 = vmax.f32 %v680, 0.0
      %v891 = vmax.f32 %v685, 0.0
      %v892 = vmax.f32 %v688, 0.0
      %v893 = vmax.f32 %v693, 0.0
      %v894 = vmax.f32 %v696, 0.0
      %v895 = vmax.f32 %v701, 0.0
      %v896 = vmax.f32 %v704, 0.0
      %v897 = vmax.f32 %v709, 0.0
      %v898 = vmax.f32 %v712, 0.0
      %v899 = vmax.f32 %v717, 0.0
      %v900 = vmax.f32 %v720, 0.0
      %v901 = vmax.f32 %v725, 0.0
      %v902 = vmax.f32 %v728, 0.0
      %v903 = vmax.f32 %v733, 0.0
      %v904 = vmax.f32 %v736, 0.0
      %v905 = vmax.f32 %v741, 0.0
      %v906 = vmax.f32 %v744, 0.0
      %v907 = vmax.f32 %v749, 0.0
      %v908 = vmax.f32 %v752, 0.0
      %v909 = vmax.f32 %v757, 0.0
      %v910 = vmax.f32 %v760, 0.0
      %v911 = vmax.f32 %v765, 0.0
      %v912 = vmax.f32 %v768, 0.0
      %v913 = vmax.f32 %v773, 0.0
      %v914 = vmax.f32 %v776, 0.0
      %v915 = vmax.f32 %v781, 0.0
      %v916 = vmax.f32 %v784, 0.0
      %v917 = vmax.f32 %v789, 0.0
      %v918 = vmax.f32 %v792, 0.0
      %v919 = vmax.f32 %v797, 0.0
      %v920 = vmax.f32 %v800, 0.0
      %v921 = vmax.f32 %v805, 0.0
      %v922 = vmax.f32 %v808, 0.0
      %v923 = vmax.f32 %v813, 0.0
      %v924 = vmax.f32 %v816, 0.0
      %v925 = vmax.f32 %v821, 0.0
      %v926 = vmax.f32 %v824, 0.0
      %v927 = vmax.f32 %v829, 0.0
      %v928 = vmax.f32 %v832, 0.0
      %v929 = vmax.f32 %v837, 0.0
      %v930 = vmax.f32 %v840, 0.0
      %v931 = vmax.f32 %v845, 0.0
      %v932 = vmax.f32 %v848, 0.0
      %v933 = vmax.f32 %v853, 0.0
      %v934 = vmax.f32 %v856, 0.0
      %v935 = vmax.f32 %v861, 0.0
      %v936 = vmax.f32 %v864, 0.0
      %v937 = vmax.f32 %v869, 0.0
      %v938 = vmax.f32 %v872, 0.0
      %vm939 = vcmask 97280
      %940 = vst.msk [vmem:[%s223] sm:$0xff] %vm939, %v875
      %941 = vst.msk [vmem:[%s223 + $0x8] sm:$0xff] %vm939, %v876
      %942 = vst.msk [vmem:[%s223 + $0x10] sm:$0xff] %vm939, %v877
      %943 = vst.msk [vmem:[%s223 + $0x18] sm:$0xff] %vm939, %v878
      %944 = vst.msk [vmem:[%s223 + $0x20] sm:$0xff] %vm939, %v879
      %945 = vst.msk [vmem:[%s223 + $0x28] sm:$0xff] %vm939, %v880
      %946 = vst.msk [vmem:[%s223 + $0x30] sm:$0xff] %vm939, %v881
      %947 = vst.msk [vmem:[%s223 + $0x38] sm:$0xff] %vm939, %v882
      %948 = vst.msk [vmem:[%s223 + $0x40] sm:$0xff] %vm939, %v883
      %949 = vst.msk [vmem:[%s223 + $0x48] sm:$0xff] %vm939, %v884
      %950 = vst.msk [vmem:[%s223 + $0x50] sm:$0xff] %vm939, %v885
      %951 = vst.msk [vmem:[%s223 + $0x58] sm:$0xff] %vm939, %v886
      %952 = vst.msk [vmem:[%s223 + $0x60] sm:$0xff] %vm939, %v887
      %953 = vst.msk [vmem:[%s223 + $0x68] sm:$0xff] %vm939, %v888
      %954 = vst.msk [vmem:[%s223 + $0x70] sm:$0xff] %vm939, %v889
      %955 = vst.msk [vmem:[%s223 + $0x78] sm:$0xff] %vm939, %v890
      %956 = vst.msk [vmem:[%s223 + $0x80] sm:$0xff] %vm939, %v891
      %957 = vst.msk [vmem:[%s223 + $0x88] sm:$0xff] %vm939, %v892
      %958 = vst.msk [vmem:[%s223 + $0x90] sm:$0xff] %vm939, %v893
      %959 = vst.msk [vmem:[%s223 + $0x98] sm:$0xff] %vm939, %v894
      %960 = vst.msk [vmem:[%s223 + $0xa0] sm:$0xff] %vm939, %v895
      %961 = vst.msk [vmem:[%s223 + $0xa8] sm:$0xff] %vm939, %v896
      %962 = vst.msk [vmem:[%s223 + $0xb0] sm:$0xff] %vm939, %v897
      %963 = vst.msk [vmem:[%s223 + $0xb8] sm:$0xff] %vm939, %v898
      %964 = vst.msk [vmem:[%s223 + $0xc0] sm:$0xff] %vm939, %v899
      %965 = vst.msk [vmem:[%s223 + $0xc8] sm:$0xff] %vm939, %v900
      %966 = vst.msk [vmem:[%s223 + $0xd0] sm:$0xff] %vm939, %v901
      %967 = vst.msk [vmem:[%s223 + $0xd8] sm:$0xff] %vm939, %v902
      %968 = vst.msk [vmem:[%s223 + $0xe0] sm:$0xff] %vm939, %v903
      %969 = vst.msk [vmem:[%s223 + $0xe8] sm:$0xff] %vm939, %v904
      %970 = vst.msk [vmem:[%s223 + $0xf0] sm:$0xff] %vm939, %v905
      %971 = vst.msk [vmem:[%s223 + $0xf8] sm:$0xff] %vm939, %v906
      %972 = vst.msk [vmem:[%s223 + $0x100] sm:$0xff] %vm939, %v907
      %973 = vst.msk [vmem:[%s223 + $0x108] sm:$0xff] %vm939, %v908
      %974 = vst.msk [vmem:[%s223 + $0x110] sm:$0xff] %vm939, %v909
      %975 = vst.msk [vmem:[%s223 + $0x118] sm:$0xff] %vm939, %v910
      %976 = vst.msk [vmem:[%s223 + $0x120] sm:$0xff] %vm939, %v911
      %977 = vst.msk [vmem:[%s223 + $0x128] sm:$0xff] %vm939, %v912
      %978 = vst.msk [vmem:[%s223 + $0x130] sm:$0xff] %vm939, %v913
      %979 = vst.msk [vmem:[%s223 + $0x138] sm:$0xff] %vm939, %v914
      %980 = vst.msk [vmem:[%s223 + $0x140] sm:$0xff] %vm939, %v915
      %981 = vst.msk [vmem:[%s223 + $0x148] sm:$0xff] %vm939, %v916
      %982 = vst.msk [vmem:[%s223 + $0x150] sm:$0xff] %vm939, %v917
      %983 = vst.msk [vmem:[%s223 + $0x158] sm:$0xff] %vm939, %v918
      %984 = vst.msk [vmem:[%s223 + $0x160] sm:$0xff] %vm939, %v919
      %985 = vst.msk [vmem:[%s223 + $0x168] sm:$0xff] %vm939, %v920
      %986 = vst.msk [vmem:[%s223 + $0x170] sm:$0xff] %vm939, %v921
      %987 = vst.msk [vmem:[%s223 + $0x178] sm:$0xff] %vm939, %v922
      %988 = vst.msk [vmem:[%s223 + $0x180] sm:$0xff] %vm939, %v923
      %989 = vst.msk [vmem:[%s223 + $0x188] sm:$0xff] %vm939, %v924
      %990 = vst.msk [vmem:[%s223 + $0x190] sm:$0xff] %vm939, %v925
      %991 = vst.msk [vmem:[%s223 + $0x198] sm:$0xff] %vm939, %v926
      %992 = vst.msk [vmem:[%s223 + $0x1a0] sm:$0xff] %vm939, %v927
      %993 = vst.msk [vmem:[%s223 + $0x1a8] sm:$0xff] %vm939, %v928
      %994 = vst.msk [vmem:[%s223 + $0x1b0] sm:$0xff] %vm939, %v929
      %995 = vst.msk [vmem:[%s223 + $0x1b8] sm:$0xff] %vm939, %v930
      %996 = vst.msk [vmem:[%s223 + $0x1c0] sm:$0xff] %vm939, %v931
      %997 = vst.msk [vmem:[%s223 + $0x1c8] sm:$0xff] %vm939, %v932
      %998 = vst.msk [vmem:[%s223 + $0x1d0] sm:$0xff] %vm939, %v933
      %999 = vst.msk [vmem:[%s223 + $0x1d8] sm:$0xff] %vm939, %v934
      %1000 = vst.msk [vmem:[%s223 + $0x1e0] sm:$0xff] %vm939, %v935
      %1001 = vst.msk [vmem:[%s223 + $0x1e8] sm:$0xff] %vm939, %v936
      %1002 = vst.msk [vmem:[%s223 + $0x1f0] sm:$0xff] %vm939, %v937
      %1003 = vst.msk [vmem:[%s223 + $0x1f8] sm:$0xff] %vm939, %v938
      %s1004 = smul.u32 64, %s18
      %p1005 = scmp.lt.s32.totalorder %s1004, 575
      %s1006 = scalar_select %p1005, %s1004, 575
      %p1007 = scmp.lt.s32.totalorder %s19, 0
      %s1008 = scalar_select %p1007, %s19, 0
      %s1009 = sadd.s32 %s1008, %s1006
      %s1010 = smul.addr %s1009, 8
      %s1011 = scalar_lea.vmem %s3, %s1010
      // Predicated region
      $region33: #{ae_forward.19} parent=31 // pred_check
        %p1012 = pneg %p124
      $region34: #{ae_forward.19} parent=31 // pred_check_branch
        %1014 = sbr.rel (%p1012) target = $region36
      $region35: #{ae_forward.19} parent=31 // pred_region
        %s1015 = smul.u32 64, %s18
      $region36: #{ae_forward.19} parent=31 // pred_fallthru
        _
    $region32: #{ae_forward.19} parent=5 // pred_fallthru
      _
    %p1016 = scmp.le.s32.totalorder 2, %s9
    // Predicated region
    $region37: #{ae_forward.19} parent=5 // pred_check
      %p1017 = pneg %p1016
    $region38: #{ae_forward.19} parent=5 // pred_check_branch
      %1019 = sbr.rel (%p1017) target = $region40
    $region39: #{ae_forward.19} parent=5 // pred_region
      %s1020 = ssub.s32 %s9, 2
      // Predicated region
      $region41: #{ae_forward.19} parent=39 // pred_check
        %p1021 = pneg %p130
      $region42: #{ae_forward.19} parent=39 // pred_check_branch
        %1023 = sbr.rel (%p1021) target = $region44
      $region43: #{ae_forward.19} parent=39 // pred_region
        %s1024 = smul.u32 64, %s20
        %p1025 = scmp.lt.s32.totalorder %s1024, 575
        %s1026 = scalar_select %p1025, %s1024, 575
        %p1027 = scmp.lt.s32.totalorder %s21, 0
        %s1028 = scalar_select %p1027, %s21, 0
        %s1029 = sadd.s32 %s1028, %s1026
        %s1030 = smul.addr %s1029, 8
        %s1031 = scalar_lea.vmem %s3, %s1030
      $region44: #{ae_forward.19} parent=39 // pred_fallthru
        _
    $region40: #{ae_forward.19} parent=5 // pred_fallthru
      _
  $region6: #{ae_forward.19} parent=0 // loop_footer
    %s13 = sadd.s32 1, %s9
  $region7: #{ae_forward.19} parent=0 // loop_footer_branch
    %8 = sbr.rel target = $region3
  $region8: #{ae_forward.19} parent=0 // loop_exit
    _

</llo_original>
